<compile_context>
chip_gen: v7x
topology: tpu7x:2x2x1
jax: 0.10.0
libtpu: 0.0.40
codegen_flags: <defaults>
</compile_context>

<pallas_src>
import functools

import numpy as np

import jax
import jax.numpy as jnp
from jax import lax
from jax.experimental import pallas as pl
from jax.experimental.pallas import tpu as pltpu


# -----------------------------------------------------------------------------
# Fused kernel: conv1 + conv2 + conv3 + flatten + fc1 (all ReLU) for one batch
# tile per grid step.  All intermediates stay in VMEM; each layer is a single
# deep-K MXU matmul built from an im2col staged in VMEM scratch.
# -----------------------------------------------------------------------------
def _fused_forward_kernel(x_ref, w1_ref, b1_ref, w2_ref, b2_ref, w3_ref, b3_ref,
                          wfc_ref, bfc_ref, out_ref,
                          x2p_ref, x3p_ref, a2_ref, a3_ref, x4_ref, xf_ref):
    f32 = jnp.float32
    nt = x_ref.shape[0]              # batch tile
    k1 = x_ref.shape[3]              # 16 * C_in (conv1 im2col depth)
    c1 = w1_ref.shape[-1]            # 128 = 4*32 (conv1 out, space-to-depth)
    c2 = w2_ref.shape[-1]            # 64
    c3 = w3_ref.shape[-1]            # 64
    m = nt * 64                      # rows of the 8x8 output block grid

    # NOTE: the pad rows/cols of x2p (index 8) and x3p (indices 7..9 hold either
    # garbage conv2 outputs or stale VMEM) are intentionally left uninitialised:
    # values derived from them only reach conv2/conv3 output positions that the
    # valid 5x5 fc1 window never reads, so they cannot affect the result.

    # ---- conv1 (3x3, s1, p1): the 2x2-tap im2col over the space-to-depth input
    #      was folded into the input layout by the wrapper -> one K=16*C matmul.
    x2 = jnp.maximum(
        jnp.dot(x_ref[...].reshape(m, k1), w1_ref[...],
                preferred_element_type=f32) + b1_ref[...], 0.0)
    x2p_ref[:, 0:8, 0:8, :] = x2.reshape(nt, 8, 8, c1)

    # ---- conv2 (4x4, s2) == 2x2 stride-1 conv over the s2d channels.
    #      Stage the 4 taps as 128-lane blocks of one im2col buffer -> K=512.
    for t, (p, q) in enumerate((p, q) for p in range(2) for q in range(2)):
        a2_ref[:, :, :, t * c1:(t + 1) * c1] = x2p_ref[:, p:p + 8, q:q + 8, :]
    x3 = jnp.maximum(
        jnp.dot(a2_ref[...].reshape(m, 4 * c1), w2_ref[...],
                preferred_element_type=f32) + b2_ref[...], 0.0)
    x3p_ref[:, 0:8, 0:8, :] = x3.reshape(nt, 8, 8, c2)

    # ---- conv3 (3x3, s1): stage the 9 taps -> one K=576 matmul.  Valid output
    #      region is the 5x5 corner of the 8x8 grid.
    for t, (p, q) in enumerate((p, q) for p in range(3) for q in range(3)):
        a3_ref[:, :, :, t * c2:(t + 1) * c2] = x3p_ref[:, p:p + 8, q:q + 8, :]
    x4_ref[...] = jnp.maximum(
        jnp.dot(a3_ref[...].reshape(m, 9 * c2), w3_ref[...],
                preferred_element_type=f32) + b3_ref[...],
        0.0).reshape(nt, 8, 8, c3)

    # ---- fc1: gather the valid 5x5 window into a lane-dense (nt, 1600) buffer
    #      (row order (h*5+w)*64 + c; the PyTorch NCHW flatten + Linear .T were
    #      folded into wfc at prep time), then one K=1600 matmul.  wfc is stored
    #      bf16 in HBM (halves the dominant weight DMA); accumulation stays f32.
    for h in range(5):
        for w in range(5):
            xf_ref[:, (h * 5 + w) * c3:(h * 5 + w + 1) * c3] = x4_ref[:, h, w, :]
    out_ref[...] = jnp.maximum(
        jnp.dot(xf_ref[...].astype(jnp.bfloat16), wfc_ref[...],
                preferred_element_type=f32) + bfc_ref[...], 0.0)


# -----------------------------------------------------------------------------
# Input prep (pure layout plumbing on the small input, done in XLA):
#   NCHW -> padded NHWC -> 2x2 space-to-depth -> conv1 2x2-tap im2col.
# Result: (N, 8, 8, 16*C) with channel order tap*(4C) + (2r+s)*C + ci, matching
# the row order of the prepared conv1 weight.
# -----------------------------------------------------------------------------
def _prep_input(x_nchw):
    n, c, h, w = x_nchw.shape
    x = jnp.transpose(x_nchw, (0, 2, 3, 1)).astype(jnp.float32)      # NHWC
    x = jnp.pad(x, ((0, 0), (1, 1), (1, 1), (0, 0)))                 # conv1 pad=1
    hb, wb = (h + 2) // 2, (w + 2) // 2                              # 9, 9
    x = x.reshape(n, hb, 2, wb, 2, c)
    x = jnp.transpose(x, (0, 1, 3, 2, 4, 5))                         # (n,Hb,Wb,r,s,c)
    xs = x.reshape(n, hb, wb, 4 * c)                                 # s2d layout
    taps = [xs[:, p:p + 8, q:q + 8, :] for p in range(2) for q in range(2)]
    return jnp.concatenate(taps, axis=-1)                            # (n,8,8,16C)


# -----------------------------------------------------------------------------
# Parameter init (PyTorch layouts, as in nn.Conv2d / nn.Linear defaults)
# -----------------------------------------------------------------------------
def init_params(key, input_shape):
    c_in, h, w = input_shape

    def uniform(key, shape, fan_in):
        bound = 1.0 / jnp.sqrt(jnp.float32(fan_in))
        return jax.random.uniform(key, shape, jnp.float32, -bound, bound)

    k = jax.random.split(key, 8)
    params = {}
    params["conv1_w"] = uniform(k[0], (32, c_in, 3, 3), c_in * 3 * 3)
    params["conv1_b"] = uniform(k[1], (32,), c_in * 3 * 3)
    params["conv2_w"] = uniform(k[2], (64, 32, 4, 4), 32 * 4 * 4)
    params["conv2_b"] = uniform(k[3], (64,), 32 * 4 * 4)
    params["conv3_w"] = uniform(k[4], (64, 64, 3, 3), 64 * 3 * 3)
    params["conv3_b"] = uniform(k[5], (64,), 64 * 3 * 3)

    # mirrors output_size_of_convolution()
    h1, w1 = h, w                                   # conv1: k3 s1 p1
    h2, w2 = (h1 - 4) // 2 + 1, (w1 - 4) // 2 + 1   # conv2: k4 s2 p0
    h3, w3 = h2 - 2, w2 - 2                         # conv3: k3 s1 p0
    conv_out = 64 * h3 * w3
    params["fc1_w"] = uniform(k[6], (512, conv_out), conv_out)   # (out, in)
    params["fc1_b"] = uniform(k[7], (512,), conv_out)
    return params


# -----------------------------------------------------------------------------
# One-time weight prep (runs at init, NOT per forward):
#  - conv1 folded into the space-to-depth domain and flattened tap-major (K=16C),
#  - conv2 rearranged as a 2x2 stride-1 conv over 128 s2d channels (K=512),
#  - conv3 flattened tap-major (K=576),
#  - fc1: Linear transpose + NCHW flatten permutation folded into its rows
#    (K=1600) and stored bf16 (it dominates weight DMA).
# -----------------------------------------------------------------------------
def prepare_params(params):
    w1 = np.asarray(params["conv1_w"], np.float32)   # (32, cin, 3, 3)
    b1 = np.asarray(params["conv1_b"], np.float32)
    w2 = np.asarray(params["conv2_w"], np.float32)   # (64, 32, 4, 4)
    b2 = np.asarray(params["conv2_b"], np.float32)
    w3 = np.asarray(params["conv3_w"], np.float32)   # (64, 64, 3, 3)
    b3 = np.asarray(params["conv3_b"], np.float32)
    wf = np.asarray(params["fc1_w"], np.float32)     # (512, 1600)
    bf = np.asarray(params["fc1_b"], np.float32)

    cout1, cin = w1.shape[0], w1.shape[1]
    # conv1 in the s2d domain: in-channel (2r+s)*cin + ci, out (2a+b)*32 + oc
    w1_big = np.zeros((2, 2, 4 * cin, 4 * cout1), np.float32)
    for P in range(2):
        for Q in range(2):
            for r in range(2):
                for s in range(2):
                    for a in range(2):
                        for b in range(2):
                            p = 2 * P + r - a
                            q = 2 * Q + s - b
                            if 0 <= p < 3 and 0 <= q < 3:
                                w1_big[P, Q,
                                       (r * 2 + s) * cin:(r * 2 + s + 1) * cin,
                                       (a * 2 + b) * cout1:(a * 2 + b + 1) * cout1] = \
                                    w1[:, :, p, q].T
    w1_cat = w1_big.reshape(4 * 4 * cin, 4 * cout1)                   # (16cin, 128)
    b1_cat = np.tile(b1, 4)[None, :]                                  # (1, 128)

    # conv2 (k4,s2) over conv1's s2d output == 2x2 stride-1 conv, tap-major rows
    w2_cat = (w2.reshape(64, 32, 2, 2, 2, 2)        # (o, c, I, a, J, b)
                .transpose(2, 4, 3, 5, 1, 0)        # (I, J, a, b, c, o)
                .reshape(4 * 4 * 32, 64))                              # (512, 64)
    # conv3: tap-major (kh*3+kw)*64 + cin rows
    w3_cat = np.ascontiguousarray(w3.transpose(2, 3, 1, 0)).reshape(9 * 64, 64)
    # fc1: PyTorch flatten columns were c*25 + h*5 + w; reorder rows to
    # (h*5+w)*64 + c so conv3's NHWC 5x5 window feeds it directly.  bf16 storage.
    wf_cat = np.ascontiguousarray(
        wf.reshape(512, 64, 25).transpose(2, 1, 0)).reshape(25 * 64, 512)

    return {
        "w1": jnp.asarray(w1_cat), "b1": jnp.asarray(b1_cat),
        "w2": jnp.asarray(w2_cat), "b2": jnp.asarray(b2[None, :]),
        "w3": jnp.asarray(w3_cat), "b3": jnp.asarray(b3[None, :]),
        "wfc": jnp.asarray(wf_cat, dtype=jnp.bfloat16),
        "bfc": jnp.asarray(bf[None, :]),
    }


# -----------------------------------------------------------------------------
# Forward: one fused pallas_call over a batch-tiled "parallel" grid
# -----------------------------------------------------------------------------
@functools.partial(jax.jit, static_argnames=("batch_tile",))
def base_feature_extractor_forward(prep, x_nchw, *, batch_tile=16):
    n, _, h, w = x_nchw.shape
    assert h == 16 and w == 16, "fused kernel is specialised to 16x16 inputs"

    nt = min(batch_tile, n)
    n_pad = ((n + nt - 1) // nt) * nt
    if n_pad != n:
        x_nchw = jnp.pad(x_nchw, ((0, n_pad - n), (0, 0), (0, 0), (0, 0)))
    xi = _prep_input(x_nchw)                        # (n_pad, 8, 8, 16*C)

    k1 = xi.shape[-1]
    c1 = prep["w1"].shape[-1]                       # 128
    c2 = prep["w2"].shape[-1]                       # 64
    c3 = prep["w3"].shape[-1]                       # 64
    cf = prep["wfc"].shape[-1]                      # 512

    weights = (prep["w1"], prep["b1"], prep["w2"], prep["b2"],
               prep["w3"], prep["b3"], prep["wfc"], prep["bfc"])

    def const_spec(a):
        zeros = (0,) * a.ndim
        return pl.BlockSpec(a.shape, lambda i, z=zeros: z)   # stays VMEM-resident

    m = n_pad * 64
    flops = (2 * m * (k1 * c1 + 4 * c1 * c2 + 9 * c2 * c3)
             + 2 * n_pad * 25 * c3 * cf)
    bytes_accessed = (xi.size * 4 + n_pad * cf * 4
                      + sum(int(v.size) * v.dtype.itemsize for v in weights))

    out = pl.pallas_call(
        _fused_forward_kernel,
        out_shape=jax.ShapeDtypeStruct((n_pad, cf), jnp.float32),
        grid=(n_pad // nt,),
        in_specs=[pl.BlockSpec((nt, 8, 8, k1), lambda i: (i, 0, 0, 0))]
                 + [const_spec(a) for a in weights],
        out_specs=pl.BlockSpec((nt, cf), lambda i: (i, 0)),
        scratch_shapes=[
            pltpu.VMEM((nt, 9, 9, c1), jnp.float32),      # padded conv1 out (s2d)
            pltpu.VMEM((nt, 10, 10, c2), jnp.float32),    # padded conv2 out
            pltpu.VMEM((nt, 8, 8, 4 * c1), jnp.float32),  # conv2 im2col (K=512)
            pltpu.VMEM((nt, 8, 8, 9 * c2), jnp.float32),  # conv3 im2col (K=576)
            pltpu.VMEM((nt, 8, 8, c3), jnp.float32),      # conv3 out (valid 5x5)
            pltpu.VMEM((nt, 25 * c3), jnp.float32),       # fc1 im2col (K=1600)
        ],
        compiler_params=pltpu.CompilerParams(
            dimension_semantics=("parallel",),
            vmem_limit_bytes=64 * 1024 * 1024),
        cost_estimate=pl.CostEstimate(
            flops=flops, transcendentals=0, bytes_accessed=bytes_accessed),
    )(xi, *weights)
    return out[:n]


# -----------------------------------------------------------------------------
# Pure-JAX reference (no Pallas) mirroring the PyTorch semantics
# -----------------------------------------------------------------------------
def _reference_forward(params, x_nchw):
    def conv(x, w, b, stride, padding):
        y = lax.conv_general_dilated(
            x, w, window_strides=(stride, stride),
            padding=((padding, padding), (padding, padding)),
            dimension_numbers=("NCHW", "OIHW", "NCHW"))
        return jax.nn.relu(y + b[None, :, None, None])

    x = conv(x_nchw, params["conv1_w"], params["conv1_b"], 1, 1)
    x = conv(x, params["conv2_w"], params["conv2_b"], 2, 0)
    x = conv(x, params["conv3_w"], params["conv3_b"], 1, 0)
    x = x.reshape(x.shape[0], -1)
    return jax.nn.relu(x @ params["fc1_w"].T + params["fc1_b"])


if __name__ == "__main__":
    input_shape = (4, 16, 16)   # (C, H, W)
    batch = 2

    key = jax.random.PRNGKey(0)
    k_param, k_x = jax.random.split(key)
    params = init_params(k_param, input_shape)
    prep = prepare_params(params)          # one-time weight re-layout (not per call)
    x = jax.random.normal(k_x, (batch,) + input_shape, dtype=jnp.float32)

    out = base_feature_extractor_forward(prep, x)
    out = jax.block_until_ready(out)
    assert out.shape == (batch, 512), out.shape

    # Tight check against a reference that uses the same bf16-stored fc1 weight.
    params_bf = dict(params)
    params_bf["fc1_w"] = params["fc1_w"].astype(jnp.bfloat16).astype(jnp.float32)
    ref_bf = _reference_forward(params_bf, x)
    err_bf = float(jnp.max(jnp.abs(out - ref_bf)))
    assert jnp.allclose(out, ref_bf, atol=2e-3, rtol=2e-3), err_bf

    # Loose check against the exact f32 PyTorch semantics (bf16 fc1 storage only
    # changes the result at the ~1e-4 level at these magnitudes).
    ref = _reference_forward(params, x)
    err = float(jnp.max(jnp.abs(out - ref)))
    assert jnp.allclose(out, ref, atol=3e-2, rtol=3e-2), err

    print("KERNEL_OK")
</pallas_src>

<mosaic_0001>
module attributes {stable_mosaic.version = 11 : i64} {
  func.func @_fused_forward_kernel(%arg0: i32, %arg1: memref<2x8x8x64xf32, #tpu.memory_space<vmem>>, %arg2: memref<64x128xf32, #tpu.memory_space<vmem>>, %arg3: memref<1x128xf32, #tpu.memory_space<vmem>>, %arg4: memref<512x64xf32, #tpu.memory_space<vmem>>, %arg5: memref<1x64xf32, #tpu.memory_space<vmem>>, %arg6: memref<576x64xf32, #tpu.memory_space<vmem>>, %arg7: memref<1x64xf32, #tpu.memory_space<vmem>>, %arg8: memref<1600x512xbf16, #tpu.memory_space<vmem>>, %arg9: memref<1x512xf32, #tpu.memory_space<vmem>>, %arg10: memref<2x512xf32, #tpu.memory_space<vmem>>, %arg11: memref<2x9x9x128xf32, #tpu.memory_space<vmem>>, %arg12: memref<2x10x10x64xf32, #tpu.memory_space<vmem>>, %arg13: memref<2x8x8x512xf32, #tpu.memory_space<vmem>>, %arg14: memref<2x8x8x576xf32, #tpu.memory_space<vmem>>, %arg15: memref<2x8x8x64xf32, #tpu.memory_space<vmem>>, %arg16: memref<2x1600xf32, #tpu.memory_space<vmem>>) attributes {dimension_semantics = [#tpu.dimension_semantics<parallel>], iteration_bounds = array<i64: 1>, scalar_prefetch = 0 : i64, scratch_operands = 6 : i64, tpu.core_type = #tpu.core_type<tc>, window_params = [{transform_indices = @transform_0, window_bounds = array<i64: 2, 8, 8, 64>}, {pipeline_mode = #tpu.pipeline_mode<synchronous>, transform_indices = @transform_1, window_bounds = array<i64: 64, 128>}, {pipeline_mode = #tpu.pipeline_mode<synchronous>, transform_indices = @transform_2, window_bounds = array<i64: 1, 128>}, {pipeline_mode = #tpu.pipeline_mode<synchronous>, transform_indices = @transform_3, window_bounds = array<i64: 512, 64>}, {pipeline_mode = #tpu.pipeline_mode<synchronous>, transform_indices = @transform_4, window_bounds = array<i64: 1, 64>}, {pipeline_mode = #tpu.pipeline_mode<synchronous>, transform_indices = @transform_5, window_bounds = array<i64: 576, 64>}, {pipeline_mode = #tpu.pipeline_mode<synchronous>, transform_indices = @transform_6, window_bounds = array<i64: 1, 64>}, {pipeline_mode = #tpu.pipeline_mode<synchronous>, transform_indices = @transform_7, window_bounds = array<i64: 1600, 512>}, {pipeline_mode = #tpu.pipeline_mode<synchronous>, transform_indices = @transform_8, window_bounds = array<i64: 1, 512>}, {transform_indices = @transform_9, window_bounds = array<i64: 2, 512>}]} {
    %c0 = arith.constant 0 : index
    %c0_0 = arith.constant 0 : index
    %c0_1 = arith.constant 0 : index
    %c0_2 = arith.constant 0 : index
    %0 = vector.load %arg1[%c0, %c0_0, %c0_1, %c0_2] : memref<2x8x8x64xf32, #tpu.memory_space<vmem>>, vector<2x8x8x64xf32>
    %1 = vector.shape_cast %0 : vector<2x8x8x64xf32> to vector<128x64xf32>
    %c0_3 = arith.constant 0 : index
    %c0_4 = arith.constant 0 : index
    %2 = vector.load %arg2[%c0_3, %c0_4] : memref<64x128xf32, #tpu.memory_space<vmem>>, vector<64x128xf32>
    %cst = arith.constant dense<0.000000e+00> : vector<128x128xf32>
    %3 = tpu.matmul %1, %2, %cst {dimension_numbers = #tpu.dot_dimension_numbers<[1], [0], [0], [1], [0, 0, 1, 1], [], []>} : vector<128x64xf32>, vector<64x128xf32>, vector<128x128xf32> -> vector<128x128xf32>
    %c0_5 = arith.constant 0 : index
    %c0_6 = arith.constant 0 : index
    %4 = vector.load %arg3[%c0_5, %c0_6] : memref<1x128xf32, #tpu.memory_space<vmem>>, vector<1x128xf32>
    %5 = vector.broadcast %4 : vector<1x128xf32> to vector<128x128xf32>
    %6 = arith.addf %3, %5 : vector<128x128xf32>
    %cst_7 = arith.constant 0.000000e+00 : f32
    %7 = vector.broadcast %cst_7 : f32 to vector<128x128xf32>
    %8 = arith.maximumf %6, %7 : vector<128x128xf32>
    %9 = vector.shape_cast %8 : vector<128x128xf32> to vector<2x8x8x128xf32>
    %c0_8 = arith.constant 0 : index
    %c0_9 = arith.constant 0 : index
    %c0_10 = arith.constant 0 : index
    %c0_11 = arith.constant 0 : index
    %10 = vector.load %arg11[%c0_8, %c0_9, %c0_10, %c0_11] : memref<2x9x9x128xf32, #tpu.memory_space<vmem>>, vector<2x8x8x128xf32>
    tpu.vector_store %arg11[%c0_8, %c0_9, %c0_10, %c0_11], %9 {strides = array<i32>} : memref<2x9x9x128xf32, #tpu.memory_space<vmem>>, vector<2x8x8x128xf32>,
    %c0_12 = arith.constant 0 : index
    %c0_13 = arith.constant 0 : index
    %c0_14 = arith.constant 0 : index
    %c0_15 = arith.constant 0 : index
    %11 = vector.load %arg11[%c0_12, %c0_13, %c0_14, %c0_15] : memref<2x9x9x128xf32, #tpu.memory_space<vmem>>, vector<2x8x8x128xf32>
    %c0_16 = arith.constant 0 : index
    %c0_17 = arith.constant 0 : index
    %c0_18 = arith.constant 0 : index
    %c0_19 = arith.constant 0 : index
    %12 = vector.load %arg13[%c0_16, %c0_17, %c0_18, %c0_19] : memref<2x8x8x512xf32, #tpu.memory_space<vmem>>, vector<2x8x8x128xf32>
    tpu.vector_store %arg13[%c0_16, %c0_17, %c0_18, %c0_19], %11 {strides = array<i32>} : memref<2x8x8x512xf32, #tpu.memory_space<vmem>>, vector<2x8x8x128xf32>,
    %c0_20 = arith.constant 0 : index
    %c0_21 = arith.constant 0 : index
    %c1 = arith.constant 1 : index
    %c0_22 = arith.constant 0 : index
    %13 = vector.load %arg11[%c0_20, %c0_21, %c1, %c0_22] : memref<2x9x9x128xf32, #tpu.memory_space<vmem>>, vector<2x8x8x128xf32>
    %c0_23 = arith.constant 0 : index
    %c0_24 = arith.constant 0 : index
    %c0_25 = arith.constant 0 : index
    %c128 = arith.constant 128 : index
    %14 = vector.load %arg13[%c0_23, %c0_24, %c0_25, %c128] : memref<2x8x8x512xf32, #tpu.memory_space<vmem>>, vector<2x8x8x128xf32>
    tpu.vector_store %arg13[%c0_23, %c0_24, %c0_25, %c128], %13 {strides = array<i32>} : memref<2x8x8x512xf32, #tpu.memory_space<vmem>>, vector<2x8x8x128xf32>,
    %c0_26 = arith.constant 0 : index
    %c1_27 = arith.constant 1 : index
    %c0_28 = arith.constant 0 : index
    %c0_29 = arith.constant 0 : index
    %15 = vector.load %arg11[%c0_26, %c1_27, %c0_28, %c0_29] : memref<2x9x9x128xf32, #tpu.memory_space<vmem>>, vector<2x8x8x128xf32>
    %c0_30 = arith.constant 0 : index
    %c0_31 = arith.constant 0 : index
    %c0_32 = arith.constant 0 : index
    %c256 = arith.constant 256 : index
    %16 = vector.load %arg13[%c0_30, %c0_31, %c0_32, %c256] : memref<2x8x8x512xf32, #tpu.memory_space<vmem>>, vector<2x8x8x128xf32>
    tpu.vector_store %arg13[%c0_30, %c0_31, %c0_32, %c256], %15 {strides = array<i32>} : memref<2x8x8x512xf32, #tpu.memory_space<vmem>>, vector<2x8x8x128xf32>,
    %c0_33 = arith.constant 0 : index
    %c1_34 = arith.constant 1 : index
    %c1_35 = arith.constant 1 : index
    %c0_36 = arith.constant 0 : index
    %17 = vector.load %arg11[%c0_33, %c1_34, %c1_35, %c0_36] : memref<2x9x9x128xf32, #tpu.memory_space<vmem>>, vector<2x8x8x128xf32>
    %c0_37 = arith.constant 0 : index
    %c0_38 = arith.constant 0 : index
    %c0_39 = arith.constant 0 : index
    %c384 = arith.constant 384 : index
    %18 = vector.load %arg13[%c0_37, %c0_38, %c0_39, %c384] : memref<2x8x8x512xf32, #tpu.memory_space<vmem>>, vector<2x8x8x128xf32>
    tpu.vector_store %arg13[%c0_37, %c0_38, %c0_39, %c384], %17 {strides = array<i32>} : memref<2x8x8x512xf32, #tpu.memory_space<vmem>>, vector<2x8x8x128xf32>,
    %c0_40 = arith.constant 0 : index
    %c0_41 = arith.constant 0 : index
    %c0_42 = arith.constant 0 : index
    %c0_43 = arith.constant 0 : index
    %19 = vector.load %arg13[%c0_40, %c0_41, %c0_42, %c0_43] : memref<2x8x8x512xf32, #tpu.memory_space<vmem>>, vector<2x8x8x512xf32>
    %20 = vector.shape_cast %19 : vector<2x8x8x512xf32> to vector<128x512xf32>
    %c0_44 = arith.constant 0 : index
    %c0_45 = arith.constant 0 : index
    %21 = vector.load %arg4[%c0_44, %c0_45] : memref<512x64xf32, #tpu.memory_space<vmem>>, vector<512x64xf32>
    %cst_46 = arith.constant dense<0.000000e+00> : vector<128x64xf32>
    %22 = tpu.matmul %20, %21, %cst_46 {dimension_numbers = #tpu.dot_dimension_numbers<[1], [0], [0], [1], [0, 0, 1, 1], [], []>} : vector<128x512xf32>, vector<512x64xf32>, vector<128x64xf32> -> vector<128x64xf32>
    %c0_47 = arith.constant 0 : index
    %c0_48 = arith.constant 0 : index
    %23 = vector.load %arg5[%c0_47, %c0_48] : memref<1x64xf32, #tpu.memory_space<vmem>>, vector<1x64xf32>
    %24 = vector.broadcast %23 : vector<1x64xf32> to vector<128x64xf32>
    %25 = arith.addf %22, %24 : vector<128x64xf32>
    %cst_49 = arith.constant 0.000000e+00 : f32
    %26 = vector.broadcast %cst_49 : f32 to vector<128x64xf32>
    %27 = arith.maximumf %25, %26 : vector<128x64xf32>
    %28 = vector.shape_cast %27 : vector<128x64xf32> to vector<2x8x8x64xf32>
    %c0_50 = arith.constant 0 : index
    %c0_51 = arith.constant 0 : index
    %c0_52 = arith.constant 0 : index
    %c0_53 = arith.constant 0 : index
    %29 = vector.load %arg12[%c0_50, %c0_51, %c0_52, %c0_53] : memref<2x10x10x64xf32, #tpu.memory_space<vmem>>, vector<2x8x8x64xf32>
    tpu.vector_store %arg12[%c0_50, %c0_51, %c0_52, %c0_53], %28 {strides = array<i32>} : memref<2x10x10x64xf32, #tpu.memory_space<vmem>>, vector<2x8x8x64xf32>,
    %c0_54 = arith.constant 0 : index
    %c0_55 = arith.constant 0 : index
    %c0_56 = arith.constant 0 : index
    %c0_57 = arith.constant 0 : index
    %30 = vector.load %arg12[%c0_54, %c0_55, %c0_56, %c0_57] : memref<2x10x10x64xf32, #tpu.memory_space<vmem>>, vector<2x8x8x64xf32>
    %c0_58 = arith.constant 0 : index
    %c0_59 = arith.constant 0 : index
    %c0_60 = arith.constant 0 : index
    %c0_61 = arith.constant 0 : index
    %31 = vector.load %arg14[%c0_58, %c0_59, %c0_60, %c0_61] : memref<2x8x8x576xf32, #tpu.memory_space<vmem>>, vector<2x8x8x64xf32>
    tpu.vector_store %arg14[%c0_58, %c0_59, %c0_60, %c0_61], %30 {strides = array<i32>} : memref<2x8x8x576xf32, #tpu.memory_space<vmem>>, vector<2x8x8x64xf32>,
    %c0_62 = arith.constant 0 : index
    %c0_63 = arith.constant 0 : index
    %c1_64 = arith.constant 1 : index
    %c0_65 = arith.constant 0 : index
    %32 = vector.load %arg12[%c0_62, %c0_63, %c1_64, %c0_65] : memref<2x10x10x64xf32, #tpu.memory_space<vmem>>, vector<2x8x8x64xf32>
    %c0_66 = arith.constant 0 : index
    %c0_67 = arith.constant 0 : index
    %c0_68 = arith.constant 0 : index
    %c64 = arith.constant 64 : index
    %33 = vector.load %arg14[%c0_66, %c0_67, %c0_68, %c64] : memref<2x8x8x576xf32, #tpu.memory_space<vmem>>, vector<2x8x8x64xf32>
    tpu.vector_store %arg14[%c0_66, %c0_67, %c0_68, %c64], %32 {strides = array<i32>} : memref<2x8x8x576xf32, #tpu.memory_space<vmem>>, vector<2x8x8x64xf32>,
    %c0_69 = arith.constant 0 : index
    %c0_70 = arith.constant 0 : index
    %c2 = arith.constant 2 : index
    %c0_71 = arith.constant 0 : index
    %34 = vector.load %arg12[%c0_69, %c0_70, %c2, %c0_71] : memref<2x10x10x64xf32, #tpu.memory_space<vmem>>, vector<2x8x8x64xf32>
    %c0_72 = arith.constant 0 : index
    %c0_73 = arith.constant 0 : index
    %c0_74 = arith.constant 0 : index
    %c128_75 = arith.constant 128 : index
    %35 = vector.load %arg14[%c0_72, %c0_73, %c0_74, %c128_75] : memref<2x8x8x576xf32, #tpu.memory_space<vmem>>, vector<2x8x8x64xf32>
    tpu.vector_store %arg14[%c0_72, %c0_73, %c0_74, %c128_75], %34 {strides = array<i32>} : memref<2x8x8x576xf32, #tpu.memory_space<vmem>>, vector<2x8x8x64xf32>,
    %c0_76 = arith.constant 0 : index
    %c1_77 = arith.constant 1 : index
    %c0_78 = arith.constant 0 : index
    %c0_79 = arith.constant 0 : index
    %36 = vector.load %arg12[%c0_76, %c1_77, %c0_78, %c0_79] : memref<2x10x10x64xf32, #tpu.memory_space<vmem>>, vector<2x8x8x64xf32>
    %c0_80 = arith.constant 0 : index
    %c0_81 = arith.constant 0 : index
    %c0_82 = arith.constant 0 : index
    %c192 = arith.constant 192 : index
    %37 = vector.load %arg14[%c0_80, %c0_81, %c0_82, %c192] : memref<2x8x8x576xf32, #tpu.memory_space<vmem>>, vector<2x8x8x64xf32>
    tpu.vector_store %arg14[%c0_80, %c0_81, %c0_82, %c192], %36 {strides = array<i32>} : memref<2x8x8x576xf32, #tpu.memory_space<vmem>>, vector<2x8x8x64xf32>,
    %c0_83 = arith.constant 0 : index
    %c1_84 = arith.constant 1 : index
    %c1_85 = arith.constant 1 : index
    %c0_86 = arith.constant 0 : index
    %38 = vector.load %arg12[%c0_83, %c1_84, %c1_85, %c0_86] : memref<2x10x10x64xf32, #tpu.memory_space<vmem>>, vector<2x8x8x64xf32>
    %c0_87 = arith.constant 0 : index
    %c0_88 = arith.constant 0 : index
    %c0_89 = arith.constant 0 : index
    %c256_90 = arith.constant 256 : index
    %39 = vector.load %arg14[%c0_87, %c0_88, %c0_89, %c256_90] : memref<2x8x8x576xf32, #tpu.memory_space<vmem>>, vector<2x8x8x64xf32>
    tpu.vector_store %arg14[%c0_87, %c0_88, %c0_89, %c256_90], %38 {strides = array<i32>} : memref<2x8x8x576xf32, #tpu.memory_space<vmem>>, vector<2x8x8x64xf32>,
    %c0_91 = arith.constant 0 : index
    %c1_92 = arith.constant 1 : index
    %c2_93 = arith.constant 2 : index
    %c0_94 = arith.constant 0 : index
    %40 = vector.load %arg12[%c0_91, %c1_92, %c2_93, %c0_94] : memref<2x10x10x64xf32, #tpu.memory_space<vmem>>, vector<2x8x8x64xf32>
    %c0_95 = arith.constant 0 : index
    %c0_96 = arith.constant 0 : index
    %c0_97 = arith.constant 0 : index
    %c320 = arith.constant 320 : index
    %41 = vector.load %arg14[%c0_95, %c0_96, %c0_97, %c320] : memref<2x8x8x576xf32, #tpu.memory_space<vmem>>, vector<2x8x8x64xf32>
    tpu.vector_store %arg14[%c0_95, %c0_96, %c0_97, %c320], %40 {strides = array<i32>} : memref<2x8x8x576xf32, #tpu.memory_space<vmem>>, vector<2x8x8x64xf32>,
    %c0_98 = arith.constant 0 : index
    %c2_99 = arith.constant 2 : index
    %c0_100 = arith.constant 0 : index
    %c0_101 = arith.constant 0 : index
    %42 = vector.load %arg12[%c0_98, %c2_99, %c0_100, %c0_101] : memref<2x10x10x64xf32, #tpu.memory_space<vmem>>, vector<2x8x8x64xf32>
    %c0_102 = arith.constant 0 : index
    %c0_103 = arith.constant 0 : index
    %c0_104 = arith.constant 0 : index
    %c384_105 = arith.constant 384 : index
    %43 = vector.load %arg14[%c0_102, %c0_103, %c0_104, %c384_105] : memref<2x8x8x576xf32, #tpu.memory_space<vmem>>, vector<2x8x8x64xf32>
    tpu.vector_store %arg14[%c0_102, %c0_103, %c0_104, %c384_105], %42 {strides = array<i32>} : memref<2x8x8x576xf32, #tpu.memory_space<vmem>>, vector<2x8x8x64xf32>,
    %c0_106 = arith.constant 0 : index
    %c2_107 = arith.constant 2 : index
    %c1_108 = arith.constant 1 : index
    %c0_109 = arith.constant 0 : index
    %44 = vector.load %arg12[%c0_106, %c2_107, %c1_108, %c0_109] : memref<2x10x10x64xf32, #tpu.memory_space<vmem>>, vector<2x8x8x64xf32>
    %c0_110 = arith.constant 0 : index
    %c0_111 = arith.constant 0 : index
    %c0_112 = arith.constant 0 : index
    %c448 = arith.constant 448 : index
    %45 = vector.load %arg14[%c0_110, %c0_111, %c0_112, %c448] : memref<2x8x8x576xf32, #tpu.memory_space<vmem>>, vector<2x8x8x64xf32>
    tpu.vector_store %arg14[%c0_110, %c0_111, %c0_112, %c448], %44 {strides = array<i32>} : memref<2x8x8x576xf32, #tpu.memory_space<vmem>>, vector<2x8x8x64xf32>,
    %c0_113 = arith.constant 0 : index
    %c2_114 = arith.constant 2 : index
    %c2_115 = arith.constant 2 : index
    %c0_116 = arith.constant 0 : index
    %46 = vector.load %arg12[%c0_113, %c2_114, %c2_115, %c0_116] : memref<2x10x10x64xf32, #tpu.memory_space<vmem>>, vector<2x8x8x64xf32>
    %c0_117 = arith.constant 0 : index
    %c0_118 = arith.constant 0 : index
    %c0_119 = arith.constant 0 : index
    %c512 = arith.constant 512 : index
    %47 = vector.load %arg14[%c0_117, %c0_118, %c0_119, %c512] : memref<2x8x8x576xf32, #tpu.memory_space<vmem>>, vector<2x8x8x64xf32>
    tpu.vector_store %arg14[%c0_117, %c0_118, %c0_119, %c512], %46 {strides = array<i32>} : memref<2x8x8x576xf32, #tpu.memory_space<vmem>>, vector<2x8x8x64xf32>,
    %c0_120 = arith.constant 0 : index
    %c0_121 = arith.constant 0 : index
    %c0_122 = arith.constant 0 : index
    %c0_123 = arith.constant 0 : index
    %48 = vector.load %arg14[%c0_120, %c0_121, %c0_122, %c0_123] : memref<2x8x8x576xf32, #tpu.memory_space<vmem>>, vector<2x8x8x576xf32>
    %49 = vector.shape_cast %48 : vector<2x8x8x576xf32> to vector<128x576xf32>
    %c0_124 = arith.constant 0 : index
    %c0_125 = arith.constant 0 : index
    %50 = vector.load %arg6[%c0_124, %c0_125] : memref<576x64xf32, #tpu.memory_space<vmem>>, vector<576x64xf32>
    %cst_126 = arith.constant dense<0.000000e+00> : vector<128x64xf32>
    %51 = tpu.matmul %49, %50, %cst_126 {dimension_numbers = #tpu.dot_dimension_numbers<[1], [0], [0], [1], [0, 0, 1, 1], [], []>} : vector<128x576xf32>, vector<576x64xf32>, vector<128x64xf32> -> vector<128x64xf32>
    %c0_127 = arith.constant 0 : index
    %c0_128 = arith.constant 0 : index
    %52 = vector.load %arg7[%c0_127, %c0_128] : memref<1x64xf32, #tpu.memory_space<vmem>>, vector<1x64xf32>
    %53 = vector.broadcast %52 : vector<1x64xf32> to vector<128x64xf32>
    %54 = arith.addf %51, %53 : vector<128x64xf32>
    %cst_129 = arith.constant 0.000000e+00 : f32
    %55 = vector.broadcast %cst_129 : f32 to vector<128x64xf32>
    %56 = arith.maximumf %54, %55 : vector<128x64xf32>
    %57 = vector.shape_cast %56 : vector<128x64xf32> to vector<2x8x8x64xf32>
    %c0_130 = arith.constant 0 : index
    %c0_131 = arith.constant 0 : index
    %c0_132 = arith.constant 0 : index
    %c0_133 = arith.constant 0 : index
    %58 = vector.load %arg15[%c0_130, %c0_131, %c0_132, %c0_133] : memref<2x8x8x64xf32, #tpu.memory_space<vmem>>, vector<2x8x8x64xf32>
    tpu.vector_store %arg15[%c0_130, %c0_131, %c0_132, %c0_133], %57 {strides = array<i32>} : memref<2x8x8x64xf32, #tpu.memory_space<vmem>>, vector<2x8x8x64xf32>,
    %c0_134 = arith.constant 0 : index
    %c0_135 = arith.constant 0 : index
    %c0_136 = arith.constant 0 : index
    %c0_137 = arith.constant 0 : index
    %59 = vector.load %arg15[%c0_134, %c0_135, %c0_136, %c0_137] : memref<2x8x8x64xf32, #tpu.memory_space<vmem>>, vector<2x1x1x64xf32>
    %60 = vector.shape_cast %59 : vector<2x1x1x64xf32> to vector<2x64xf32>
    %c0_138 = arith.constant 0 : index
    %c0_139 = arith.constant 0 : index
    %61 = vector.load %arg16[%c0_138, %c0_139] : memref<2x1600xf32, #tpu.memory_space<vmem>>, vector<2x64xf32>
    tpu.vector_store %arg16[%c0_138, %c0_139], %60 {strides = array<i32>} : memref<2x1600xf32, #tpu.memory_space<vmem>>, vector<2x64xf32>,
    %c0_140 = arith.constant 0 : index
    %c0_141 = arith.constant 0 : index
    %c1_142 = arith.constant 1 : index
    %c0_143 = arith.constant 0 : index
    %62 = vector.load %arg15[%c0_140, %c0_141, %c1_142, %c0_143] : memref<2x8x8x64xf32, #tpu.memory_space<vmem>>, vector<2x1x1x64xf32>
    %63 = vector.shape_cast %62 : vector<2x1x1x64xf32> to vector<2x64xf32>
    %c0_144 = arith.constant 0 : index
    %c64_145 = arith.constant 64 : index
    %64 = vector.load %arg16[%c0_144, %c64_145] : memref<2x1600xf32, #tpu.memory_space<vmem>>, vector<2x64xf32>
    tpu.vector_store %arg16[%c0_144, %c64_145], %63 {strides = array<i32>} : memref<2x1600xf32, #tpu.memory_space<vmem>>, vector<2x64xf32>,
    %c0_146 = arith.constant 0 : index
    %c0_147 = arith.constant 0 : index
    %c2_148 = arith.constant 2 : index
    %c0_149 = arith.constant 0 : index
    %65 = vector.load %arg15[%c0_146, %c0_147, %c2_148, %c0_149] : memref<2x8x8x64xf32, #tpu.memory_space<vmem>>, vector<2x1x1x64xf32>
    %66 = vector.shape_cast %65 : vector<2x1x1x64xf32> to vector<2x64xf32>
    %c0_150 = arith.constant 0 : index
    %c128_151 = arith.constant 128 : index
    %67 = vector.load %arg16[%c0_150, %c128_151] : memref<2x1600xf32, #tpu.memory_space<vmem>>, vector<2x64xf32>
    tpu.vector_store %arg16[%c0_150, %c128_151], %66 {strides = array<i32>} : memref<2x1600xf32, #tpu.memory_space<vmem>>, vector<2x64xf32>,
    %c0_152 = arith.constant 0 : index
    %c0_153 = arith.constant 0 : index
    %c3 = arith.constant 3 : index
    %c0_154 = arith.constant 0 : index
    %68 = vector.load %arg15[%c0_152, %c0_153, %c3, %c0_154] : memref<2x8x8x64xf32, #tpu.memory_space<vmem>>, vector<2x1x1x64xf32>
    %69 = vector.shape_cast %68 : vector<2x1x1x64xf32> to vector<2x64xf32>
    %c0_155 = arith.constant 0 : index
    %c192_156 = arith.constant 192 : index
    %70 = vector.load %arg16[%c0_155, %c192_156] : memref<2x1600xf32, #tpu.memory_space<vmem>>, vector<2x64xf32>
    tpu.vector_store %arg16[%c0_155, %c192_156], %69 {strides = array<i32>} : memref<2x1600xf32, #tpu.memory_space<vmem>>, vector<2x64xf32>,
    %c0_157 = arith.constant 0 : index
    %c0_158 = arith.constant 0 : index
    %c4 = arith.constant 4 : index
    %c0_159 = arith.constant 0 : index
    %71 = vector.load %arg15[%c0_157, %c0_158, %c4, %c0_159] : memref<2x8x8x64xf32, #tpu.memory_space<vmem>>, vector<2x1x1x64xf32>
    %72 = vector.shape_cast %71 : vector<2x1x1x64xf32> to vector<2x64xf32>
    %c0_160 = arith.constant 0 : index
    %c256_161 = arith.constant 256 : index
    %73 = vector.load %arg16[%c0_160, %c256_161] : memref<2x1600xf32, #tpu.memory_space<vmem>>, vector<2x64xf32>
    tpu.vector_store %arg16[%c0_160, %c256_161], %72 {strides = array<i32>} : memref<2x1600xf32, #tpu.memory_space<vmem>>, vector<2x64xf32>,
    %c0_162 = arith.constant 0 : index
    %c1_163 = arith.constant 1 : index
    %c0_164 = arith.constant 0 : index
    %c0_165 = arith.constant 0 : index
    %74 = vector.load %arg15[%c0_162, %c1_163, %c0_164, %c0_165] : memref<2x8x8x64xf32, #tpu.memory_space<vmem>>, vector<2x1x1x64xf32>
    %75 = vector.shape_cast %74 : vector<2x1x1x64xf32> to vector<2x64xf32>
    %c0_166 = arith.constant 0 : index
    %c320_167 = arith.constant 320 : index
    %76 = vector.load %arg16[%c0_166, %c320_167] : memref<2x1600xf32, #tpu.memory_space<vmem>>, vector<2x64xf32>
    tpu.vector_store %arg16[%c0_166, %c320_167], %75 {strides = array<i32>} : memref<2x1600xf32, #tpu.memory_space<vmem>>, vector<2x64xf32>,
    %c0_168 = arith.constant 0 : index
    %c1_169 = arith.constant 1 : index
    %c1_170 = arith.constant 1 : index
    %c0_171 = arith.constant 0 : index
    %77 = vector.load %arg15[%c0_168, %c1_169, %c1_170, %c0_171] : memref<2x8x8x64xf32, #tpu.memory_space<vmem>>, vector<2x1x1x64xf32>
    %78 = vector.shape_cast %77 : vector<2x1x1x64xf32> to vector<2x64xf32>
    %c0_172 = arith.constant 0 : index
    %c384_173 = arith.constant 384 : index
    %79 = vector.load %arg16[%c0_172, %c384_173] : memref<2x1600xf32, #tpu.memory_space<vmem>>, vector<2x64xf32>
    tpu.vector_store %arg16[%c0_172, %c384_173], %78 {strides = array<i32>} : memref<2x1600xf32, #tpu.memory_space<vmem>>, vector<2x64xf32>,
    %c0_174 = arith.constant 0 : index
    %c1_175 = arith.constant 1 : index
    %c2_176 = arith.constant 2 : index
    %c0_177 = arith.constant 0 : index
    %80 = vector.load %arg15[%c0_174, %c1_175, %c2_176, %c0_177] : memref<2x8x8x64xf32, #tpu.memory_space<vmem>>, vector<2x1x1x64xf32>
    %81 = vector.shape_cast %80 : vector<2x1x1x64xf32> to vector<2x64xf32>
    %c0_178 = arith.constant 0 : index
    %c448_179 = arith.constant 448 : index
    %82 = vector.load %arg16[%c0_178, %c448_179] : memref<2x1600xf32, #tpu.memory_space<vmem>>, vector<2x64xf32>
    tpu.vector_store %arg16[%c0_178, %c448_179], %81 {strides = array<i32>} : memref<2x1600xf32, #tpu.memory_space<vmem>>, vector<2x64xf32>,
    %c0_180 = arith.constant 0 : index
    %c1_181 = arith.constant 1 : index
    %c3_182 = arith.constant 3 : index
    %c0_183 = arith.constant 0 : index
    %83 = vector.load %arg15[%c0_180, %c1_181, %c3_182, %c0_183] : memref<2x8x8x64xf32, #tpu.memory_space<vmem>>, vector<2x1x1x64xf32>
    %84 = vector.shape_cast %83 : vector<2x1x1x64xf32> to vector<2x64xf32>
    %c0_184 = arith.constant 0 : index
    %c512_185 = arith.constant 512 : index
    %85 = vector.load %arg16[%c0_184, %c512_185] : memref<2x1600xf32, #tpu.memory_space<vmem>>, vector<2x64xf32>
    tpu.vector_store %arg16[%c0_184, %c512_185], %84 {strides = array<i32>} : memref<2x1600xf32, #tpu.memory_space<vmem>>, vector<2x64xf32>,
    %c0_186 = arith.constant 0 : index
    %c1_187 = arith.constant 1 : index
    %c4_188 = arith.constant 4 : index
    %c0_189 = arith.constant 0 : index
    %86 = vector.load %arg15[%c0_186, %c1_187, %c4_188, %c0_189] : memref<2x8x8x64xf32, #tpu.memory_space<vmem>>, vector<2x1x1x64xf32>
    %87 = vector.shape_cast %86 : vector<2x1x1x64xf32> to vector<2x64xf32>
    %c0_190 = arith.constant 0 : index
    %c576 = arith.constant 576 : index
    %88 = vector.load %arg16[%c0_190, %c576] : memref<2x1600xf32, #tpu.memory_space<vmem>>, vector<2x64xf32>
    tpu.vector_store %arg16[%c0_190, %c576], %87 {strides = array<i32>} : memref<2x1600xf32, #tpu.memory_space<vmem>>, vector<2x64xf32>,
    %c0_191 = arith.constant 0 : index
    %c2_192 = arith.constant 2 : index
    %c0_193 = arith.constant 0 : index
    %c0_194 = arith.constant 0 : index
    %89 = vector.load %arg15[%c0_191, %c2_192, %c0_193, %c0_194] : memref<2x8x8x64xf32, #tpu.memory_space<vmem>>, vector<2x1x1x64xf32>
    %90 = vector.shape_cast %89 : vector<2x1x1x64xf32> to vector<2x64xf32>
    %c0_195 = arith.constant 0 : index
    %c640 = arith.constant 640 : index
    %91 = vector.load %arg16[%c0_195, %c640] : memref<2x1600xf32, #tpu.memory_space<vmem>>, vector<2x64xf32>
    tpu.vector_store %arg16[%c0_195, %c640], %90 {strides = array<i32>} : memref<2x1600xf32, #tpu.memory_space<vmem>>, vector<2x64xf32>,
    %c0_196 = arith.constant 0 : index
    %c2_197 = arith.constant 2 : index
    %c1_198 = arith.constant 1 : index
    %c0_199 = arith.constant 0 : index
    %92 = vector.load %arg15[%c0_196, %c2_197, %c1_198, %c0_199] : memref<2x8x8x64xf32, #tpu.memory_space<vmem>>, vector<2x1x1x64xf32>
    %93 = vector.shape_cast %92 : vector<2x1x1x64xf32> to vector<2x64xf32>
    %c0_200 = arith.constant 0 : index
    %c704 = arith.constant 704 : index
    %94 = vector.load %arg16[%c0_200, %c704] : memref<2x1600xf32, #tpu.memory_space<vmem>>, vector<2x64xf32>
    tpu.vector_store %arg16[%c0_200, %c704], %93 {strides = array<i32>} : memref<2x1600xf32, #tpu.memory_space<vmem>>, vector<2x64xf32>,
    %c0_201 = arith.constant 0 : index
    %c2_202 = arith.constant 2 : index
    %c2_203 = arith.constant 2 : index
    %c0_204 = arith.constant 0 : index
    %95 = vector.load %arg15[%c0_201, %c2_202, %c2_203, %c0_204] : memref<2x8x8x64xf32, #tpu.memory_space<vmem>>, vector<2x1x1x64xf32>
    %96 = vector.shape_cast %95 : vector<2x1x1x64xf32> to vector<2x64xf32>
    %c0_205 = arith.constant 0 : index
    %c768 = arith.constant 768 : index
    %97 = vector.load %arg16[%c0_205, %c768] : memref<2x1600xf32, #tpu.memory_space<vmem>>, vector<2x64xf32>
    tpu.vector_store %arg16[%c0_205, %c768], %96 {strides = array<i32>} : memref<2x1600xf32, #tpu.memory_space<vmem>>, vector<2x64xf32>,
    %c0_206 = arith.constant 0 : index
    %c2_207 = arith.constant 2 : index
    %c3_208 = arith.constant 3 : index
    %c0_209 = arith.constant 0 : index
    %98 = vector.load %arg15[%c0_206, %c2_207, %c3_208, %c0_209] : memref<2x8x8x64xf32, #tpu.memory_space<vmem>>, vector<2x1x1x64xf32>
    %99 = vector.shape_cast %98 : vector<2x1x1x64xf32> to vector<2x64xf32>
    %c0_210 = arith.constant 0 : index
    %c832 = arith.constant 832 : index
    %100 = vector.load %arg16[%c0_210, %c832] : memref<2x1600xf32, #tpu.memory_space<vmem>>, vector<2x64xf32>
    tpu.vector_store %arg16[%c0_210, %c832], %99 {strides = array<i32>} : memref<2x1600xf32, #tpu.memory_space<vmem>>, vector<2x64xf32>,
    %c0_211 = arith.constant 0 : index
    %c2_212 = arith.constant 2 : index
    %c4_213 = arith.constant 4 : index
    %c0_214 = arith.constant 0 : index
    %101 = vector.load %arg15[%c0_211, %c2_212, %c4_213, %c0_214] : memref<2x8x8x64xf32, #tpu.memory_space<vmem>>, vector<2x1x1x64xf32>
    %102 = vector.shape_cast %101 : vector<2x1x1x64xf32> to vector<2x64xf32>
    %c0_215 = arith.constant 0 : index
    %c896 = arith.constant 896 : index
    %103 = vector.load %arg16[%c0_215, %c896] : memref<2x1600xf32, #tpu.memory_space<vmem>>, vector<2x64xf32>
    tpu.vector_store %arg16[%c0_215, %c896], %102 {strides = array<i32>} : memref<2x1600xf32, #tpu.memory_space<vmem>>, vector<2x64xf32>,
    %c0_216 = arith.constant 0 : index
    %c3_217 = arith.constant 3 : index
    %c0_218 = arith.constant 0 : index
    %c0_219 = arith.constant 0 : index
    %104 = vector.load %arg15[%c0_216, %c3_217, %c0_218, %c0_219] : memref<2x8x8x64xf32, #tpu.memory_space<vmem>>, vector<2x1x1x64xf32>
    %105 = vector.shape_cast %104 : vector<2x1x1x64xf32> to vector<2x64xf32>
    %c0_220 = arith.constant 0 : index
    %c960 = arith.constant 960 : index
    %106 = vector.load %arg16[%c0_220, %c960] : memref<2x1600xf32, #tpu.memory_space<vmem>>, vector<2x64xf32>
    tpu.vector_store %arg16[%c0_220, %c960], %105 {strides = array<i32>} : memref<2x1600xf32, #tpu.memory_space<vmem>>, vector<2x64xf32>,
    %c0_221 = arith.constant 0 : index
    %c3_222 = arith.constant 3 : index
    %c1_223 = arith.constant 1 : index
    %c0_224 = arith.constant 0 : index
    %107 = vector.load %arg15[%c0_221, %c3_222, %c1_223, %c0_224] : memref<2x8x8x64xf32, #tpu.memory_space<vmem>>, vector<2x1x1x64xf32>
    %108 = vector.shape_cast %107 : vector<2x1x1x64xf32> to vector<2x64xf32>
    %c0_225 = arith.constant 0 : index
    %c1024 = arith.constant 1024 : index
    %109 = vector.load %arg16[%c0_225, %c1024] : memref<2x1600xf32, #tpu.memory_space<vmem>>, vector<2x64xf32>
    tpu.vector_store %arg16[%c0_225, %c1024], %108 {strides = array<i32>} : memref<2x1600xf32, #tpu.memory_space<vmem>>, vector<2x64xf32>,
    %c0_226 = arith.constant 0 : index
    %c3_227 = arith.constant 3 : index
    %c2_228 = arith.constant 2 : index
    %c0_229 = arith.constant 0 : index
    %110 = vector.load %arg15[%c0_226, %c3_227, %c2_228, %c0_229] : memref<2x8x8x64xf32, #tpu.memory_space<vmem>>, vector<2x1x1x64xf32>
    %111 = vector.shape_cast %110 : vector<2x1x1x64xf32> to vector<2x64xf32>
    %c0_230 = arith.constant 0 : index
    %c1088 = arith.constant 1088 : index
    %112 = vector.load %arg16[%c0_230, %c1088] : memref<2x1600xf32, #tpu.memory_space<vmem>>, vector<2x64xf32>
    tpu.vector_store %arg16[%c0_230, %c1088], %111 {strides = array<i32>} : memref<2x1600xf32, #tpu.memory_space<vmem>>, vector<2x64xf32>,
    %c0_231 = arith.constant 0 : index
    %c3_232 = arith.constant 3 : index
    %c3_233 = arith.constant 3 : index
    %c0_234 = arith.constant 0 : index
    %113 = vector.load %arg15[%c0_231, %c3_232, %c3_233, %c0_234] : memref<2x8x8x64xf32, #tpu.memory_space<vmem>>, vector<2x1x1x64xf32>
    %114 = vector.shape_cast %113 : vector<2x1x1x64xf32> to vector<2x64xf32>
    %c0_235 = arith.constant 0 : index
    %c1152 = arith.constant 1152 : index
    %115 = vector.load %arg16[%c0_235, %c1152] : memref<2x1600xf32, #tpu.memory_space<vmem>>, vector<2x64xf32>
    tpu.vector_store %arg16[%c0_235, %c1152], %114 {strides = array<i32>} : memref<2x1600xf32, #tpu.memory_space<vmem>>, vector<2x64xf32>,
    %c0_236 = arith.constant 0 : index
    %c3_237 = arith.constant 3 : index
    %c4_238 = arith.constant 4 : index
    %c0_239 = arith.constant 0 : index
    %116 = vector.load %arg15[%c0_236, %c3_237, %c4_238, %c0_239] : memref<2x8x8x64xf32, #tpu.memory_space<vmem>>, vector<2x1x1x64xf32>
    %117 = vector.shape_cast %116 : vector<2x1x1x64xf32> to vector<2x64xf32>
    %c0_240 = arith.constant 0 : index
    %c1216 = arith.constant 1216 : index
    %118 = vector.load %arg16[%c0_240, %c1216] : memref<2x1600xf32, #tpu.memory_space<vmem>>, vector<2x64xf32>
    tpu.vector_store %arg16[%c0_240, %c1216], %117 {strides = array<i32>} : memref<2x1600xf32, #tpu.memory_space<vmem>>, vector<2x64xf32>,
    %c0_241 = arith.constant 0 : index
    %c4_242 = arith.constant 4 : index
    %c0_243 = arith.constant 0 : index
    %c0_244 = arith.constant 0 : index
    %119 = vector.load %arg15[%c0_241, %c4_242, %c0_243, %c0_244] : memref<2x8x8x64xf32, #tpu.memory_space<vmem>>, vector<2x1x1x64xf32>
    %120 = vector.shape_cast %119 : vector<2x1x1x64xf32> to vector<2x64xf32>
    %c0_245 = arith.constant 0 : index
    %c1280 = arith.constant 1280 : index
    %121 = vector.load %arg16[%c0_245, %c1280] : memref<2x1600xf32, #tpu.memory_space<vmem>>, vector<2x64xf32>
    tpu.vector_store %arg16[%c0_245, %c1280], %120 {strides = array<i32>} : memref<2x1600xf32, #tpu.memory_space<vmem>>, vector<2x64xf32>,
    %c0_246 = arith.constant 0 : index
    %c4_247 = arith.constant 4 : index
    %c1_248 = arith.constant 1 : index
    %c0_249 = arith.constant 0 : index
    %122 = vector.load %arg15[%c0_246, %c4_247, %c1_248, %c0_249] : memref<2x8x8x64xf32, #tpu.memory_space<vmem>>, vector<2x1x1x64xf32>
    %123 = vector.shape_cast %122 : vector<2x1x1x64xf32> to vector<2x64xf32>
    %c0_250 = arith.constant 0 : index
    %c1344 = arith.constant 1344 : index
    %124 = vector.load %arg16[%c0_250, %c1344] : memref<2x1600xf32, #tpu.memory_space<vmem>>, vector<2x64xf32>
    tpu.vector_store %arg16[%c0_250, %c1344], %123 {strides = array<i32>} : memref<2x1600xf32, #tpu.memory_space<vmem>>, vector<2x64xf32>,
    %c0_251 = arith.constant 0 : index
    %c4_252 = arith.constant 4 : index
    %c2_253 = arith.constant 2 : index
    %c0_254 = arith.constant 0 : index
    %125 = vector.load %arg15[%c0_251, %c4_252, %c2_253, %c0_254] : memref<2x8x8x64xf32, #tpu.memory_space<vmem>>, vector<2x1x1x64xf32>
    %126 = vector.shape_cast %125 : vector<2x1x1x64xf32> to vector<2x64xf32>
    %c0_255 = arith.constant 0 : index
    %c1408 = arith.constant 1408 : index
    %127 = vector.load %arg16[%c0_255, %c1408] : memref<2x1600xf32, #tpu.memory_space<vmem>>, vector<2x64xf32>
    tpu.vector_store %arg16[%c0_255, %c1408], %126 {strides = array<i32>} : memref<2x1600xf32, #tpu.memory_space<vmem>>, vector<2x64xf32>,
    %c0_256 = arith.constant 0 : index
    %c4_257 = arith.constant 4 : index
    %c3_258 = arith.constant 3 : index
    %c0_259 = arith.constant 0 : index
    %128 = vector.load %arg15[%c0_256, %c4_257, %c3_258, %c0_259] : memref<2x8x8x64xf32, #tpu.memory_space<vmem>>, vector<2x1x1x64xf32>
    %129 = vector.shape_cast %128 : vector<2x1x1x64xf32> to vector<2x64xf32>
    %c0_260 = arith.constant 0 : index
    %c1472 = arith.constant 1472 : index
    %130 = vector.load %arg16[%c0_260, %c1472] : memref<2x1600xf32, #tpu.memory_space<vmem>>, vector<2x64xf32>
    tpu.vector_store %arg16[%c0_260, %c1472], %129 {strides = array<i32>} : memref<2x1600xf32, #tpu.memory_space<vmem>>, vector<2x64xf32>,
    %c0_261 = arith.constant 0 : index
    %c4_262 = arith.constant 4 : index
    %c4_263 = arith.constant 4 : index
    %c0_264 = arith.constant 0 : index
    %131 = vector.load %arg15[%c0_261, %c4_262, %c4_263, %c0_264] : memref<2x8x8x64xf32, #tpu.memory_space<vmem>>, vector<2x1x1x64xf32>
    %132 = vector.shape_cast %131 : vector<2x1x1x64xf32> to vector<2x64xf32>
    %c0_265 = arith.constant 0 : index
    %c1536 = arith.constant 1536 : index
    %133 = vector.load %arg16[%c0_265, %c1536] : memref<2x1600xf32, #tpu.memory_space<vmem>>, vector<2x64xf32>
    tpu.vector_store %arg16[%c0_265, %c1536], %132 {strides = array<i32>} : memref<2x1600xf32, #tpu.memory_space<vmem>>, vector<2x64xf32>,
    %c0_266 = arith.constant 0 : index
    %c0_267 = arith.constant 0 : index
    %134 = vector.load %arg16[%c0_266, %c0_267] : memref<2x1600xf32, #tpu.memory_space<vmem>>, vector<2x1600xf32>
    %135 = arith.truncf %134 : vector<2x1600xf32> to vector<2x1600xbf16>
    %c0_268 = arith.constant 0 : index
    %c0_269 = arith.constant 0 : index
    %136 = vector.load %arg8[%c0_268, %c0_269] : memref<1600x512xbf16, #tpu.memory_space<vmem>>, vector<1600x512xbf16>
    %cst_270 = arith.constant dense<0.000000e+00> : vector<2x512xf32>
    %137 = tpu.matmul %135, %136, %cst_270 {dimension_numbers = #tpu.dot_dimension_numbers<[1], [0], [0], [1], [0, 0, 1, 1], [], []>} : vector<2x1600xbf16>, vector<1600x512xbf16>, vector<2x512xf32> -> vector<2x512xf32>
    %c0_271 = arith.constant 0 : index
    %c0_272 = arith.constant 0 : index
    %138 = vector.load %arg9[%c0_271, %c0_272] : memref<1x512xf32, #tpu.memory_space<vmem>>, vector<1x512xf32>
    %139 = vector.broadcast %138 : vector<1x512xf32> to vector<2x512xf32>
    %140 = arith.addf %137, %139 : vector<2x512xf32>
    %cst_273 = arith.constant 0.000000e+00 : f32
    %141 = vector.broadcast %cst_273 : f32 to vector<2x512xf32>
    %142 = arith.maximumf %140, %141 : vector<2x512xf32>
    %c0_274 = arith.constant 0 : index
    %c0_275 = arith.constant 0 : index
    %143 = vector.load %arg10[%c0_274, %c0_275] : memref<2x512xf32, #tpu.memory_space<vmem>>, vector<2x512xf32>
    tpu.vector_store %arg10[%c0_274, %c0_275], %142 {strides = array<i32>} : memref<2x512xf32, #tpu.memory_space<vmem>>, vector<2x512xf32>,
    return
  }
  func.func @transform_0(%arg0: i32) -> (i32, i32, i32, i32) {
    %c0_i32 = arith.constant 0 : i32
    %c0_i32_0 = arith.constant 0 : i32
    %c0_i32_1 = arith.constant 0 : i32
    %c0_i32_2 = arith.constant 0 : i32
    return %arg0, %c0_i32, %c0_i32_0, %c0_i32_1 : i32, i32, i32, i32
  }
  func.func @transform_1(%arg0: i32) -> (i32, i32) {
    %c0_i32 = arith.constant 0 : i32
    %c0_i32_0 = arith.constant 0 : i32
    %c0_i32_1 = arith.constant 0 : i32
    return %c0_i32, %c0_i32_0 : i32, i32
  }
  func.func @transform_2(%arg0: i32) -> (i32, i32) {
    %c0_i32 = arith.constant 0 : i32
    %c0_i32_0 = arith.constant 0 : i32
    %c0_i32_1 = arith.constant 0 : i32
    return %c0_i32, %c0_i32_0 : i32, i32
  }
  func.func @transform_3(%arg0: i32) -> (i32, i32) {
    %c0_i32 = arith.constant 0 : i32
    %c0_i32_0 = arith.constant 0 : i32
    %c0_i32_1 = arith.constant 0 : i32
    return %c0_i32, %c0_i32_0 : i32, i32
  }
  func.func @transform_4(%arg0: i32) -> (i32, i32) {
    %c0_i32 = arith.constant 0 : i32
    %c0_i32_0 = arith.constant 0 : i32
    %c0_i32_1 = arith.constant 0 : i32
    return %c0_i32, %c0_i32_0 : i32, i32
  }
  func.func @transform_5(%arg0: i32) -> (i32, i32) {
    %c0_i32 = arith.constant 0 : i32
    %c0_i32_0 = arith.constant 0 : i32
    %c0_i32_1 = arith.constant 0 : i32
    return %c0_i32, %c0_i32_0 : i32, i32
  }
  func.func @transform_6(%arg0: i32) -> (i32, i32) {
    %c0_i32 = arith.constant 0 : i32
    %c0_i32_0 = arith.constant 0 : i32
    %c0_i32_1 = arith.constant 0 : i32
    return %c0_i32, %c0_i32_0 : i32, i32
  }
  func.func @transform_7(%arg0: i32) -> (i32, i32) {
    %c0_i32 = arith.constant 0 : i32
    %c0_i32_0 = arith.constant 0 : i32
    %c0_i32_1 = arith.constant 0 : i32
    return %c0_i32, %c0_i32_0 : i32, i32
  }
  func.func @transform_8(%arg0: i32) -> (i32, i32) {
    %c0_i32 = arith.constant 0 : i32
    %c0_i32_0 = arith.constant 0 : i32
    %c0_i32_1 = arith.constant 0 : i32
    return %c0_i32, %c0_i32_0 : i32, i32
  }
  func.func @transform_9(%arg0: i32) -> (i32, i32) {
    %c0_i32 = arith.constant 0 : i32
    %c0_i32_0 = arith.constant 0 : i32
    return %arg0, %c0_i32 : i32, i32
  }
}

</mosaic_0001>

<llo_original>
// kernel: base_feature_extractor_forward.1
$region0: #{base_feature_extractor_forward.1}
  #allocation0 [shape = 'u32[]', space=smem, size = 0x4, offset = 0x4, fixed_abs, tag = 'smem constant byte address 0x4 - core index']
  #allocation1 [shape = 'u32[144,128]{1,0:T(1,128)}', space=vmem, size = 0x12000, scoped, tag = 'internal scratch']
  #allocation2 [shape = 'f32[2,9,9,128]{3,2,1,0:T(8,128)}', space=vmem, size = 0x24000, scoped, tag = 'scratch operand']
  #allocation3 [shape = 'f32[2,10,10,64]{3,2,1,0:T(8,128)}', space=vmem, size = 0x28000, scoped, tag = 'scratch operand']
  #allocation4 [shape = 'f32[2,8,8,512]{3,2,1,0:T(8,128)}', space=vmem, size = 0x40000, scoped, tag = 'scratch operand']
  #allocation5 [shape = 'f32[2,8,8,576]{3,2,1,0:T(8,128)}', space=vmem, size = 0x50000, scoped, tag = 'scratch operand']
  #allocation6 [shape = 'f32[2,8,8,64]{3,2,1,0:T(8,128)}', space=vmem, size = 0x10000, scoped, tag = 'scratch operand']
  #allocation7 [shape = 'f32[2,1600]{1,0:T(2,128)}', space=vmem, size = 0x3400, scoped, tag = 'scratch operand']
  %s0 = inlined_call_operand.hbm [shape: f32[2,8,8,64], index: 0, kind: input, shape index: {}]
  %s1 = inlined_call_operand.hbm [shape: f32[64,128], index: 1, kind: input, shape index: {}]
  %s2 = inlined_call_operand.hbm [shape: f32[1,128], index: 2, kind: input, shape index: {}]
  %s3 = inlined_call_operand.hbm [shape: f32[512,64], index: 3, kind: input, shape index: {}]
  %s4 = inlined_call_operand.hbm [shape: f32[1,64], index: 4, kind: input, shape index: {}]
  %s5 = inlined_call_operand.hbm [shape: f32[576,64], index: 5, kind: input, shape index: {}]
  %s6 = inlined_call_operand.hbm [shape: f32[1,64], index: 6, kind: input, shape index: {}]
  %s7 = inlined_call_operand.hbm [shape: bf16[1600,512], index: 7, kind: input, shape index: {}]
  %s8 = inlined_call_operand.hbm [shape: f32[1,512], index: 8, kind: input, shape index: {}]
  %s9 = inlined_call_operand.hbm [shape: f32[2,512], index: 9, kind: output, shape index: {}]
  %s10 = sld [smem:[#allocation0]]
  $region82: #{base_feature_extractor_forward.1} parent=0
    _
  %s12 = ssub.s32 1, %s10
  %s13 = scalar_select 0, %s12, %s10
  $region1: #{base_feature_extractor_forward.1} parent=0
    #allocation8 [shape = 'u8[65536]{0}', space=vmem, size = 0x10000, scoped, tag = 'input window, operand 0, single buffered']
    #allocation9 [shape = 's32[1]{0}', space=sflag, size = 0x4, scoped, tag = 'scoped memory for base_feature_extractor_forward.1']
    #allocation10 [shape = 's32[1]{0}', space=sflag, size = 0x4, scoped, tag = 'scoped memory for base_feature_extractor_forward.1']
    #allocation11 [shape = 'u8[32768]{0}', space=vmem, size = 0x8000, scoped, tag = 'input window, operand 1, single buffered']
    #allocation12 [shape = 's32[1]{0}', space=sflag, size = 0x4, scoped, tag = 'scoped memory for base_feature_extractor_forward.1']
    #allocation13 [shape = 'u8[512]{0}', space=vmem, size = 0x400, scoped, tag = 'input window, operand 2, single buffered']
    #allocation14 [shape = 'u8[262144]{0}', space=vmem, size = 0x40000, scoped, tag = 'input window, operand 3, single buffered']
    #allocation15 [shape = 's32[1]{0}', space=sflag, size = 0x4, scoped, tag = 'scoped memory for base_feature_extractor_forward.1']
    #allocation16 [shape = 'u8[512]{0}', space=vmem, size = 0x400, scoped, tag = 'input window, operand 4, single buffered']
    #allocation17 [shape = 'u8[294912]{0}', space=vmem, size = 0x48000, scoped, tag = 'input window, operand 5, single buffered']
    #allocation18 [shape = 's32[1]{0}', space=sflag, size = 0x4, scoped, tag = 'scoped memory for base_feature_extractor_forward.1']
    #allocation19 [shape = 'u8[512]{0}', space=vmem, size = 0x400, scoped, tag = 'input window, operand 6, single buffered']
    #allocation20 [shape = 'u8[1638400]{0}', space=vmem, size = 0x190000, scoped, tag = 'input window, operand 7, single buffered']
    #allocation21 [shape = 's32[1]{0}', space=sflag, size = 0x4, scoped, tag = 'scoped memory for base_feature_extractor_forward.1']
    #allocation22 [shape = 'u8[2048]{0}', space=vmem, size = 0x800, scoped, tag = 'input window, operand 8, single buffered']
    #allocation23 [shape = 'u8[4096]{0}', space=vmem, size = 0x1000, scoped, tag = 'output window, operand 0, single buffered']
    %14 = vsyncpa [#allocation9], 0
    %15 = vsyncpa [#allocation12], 0
    %16 = vsyncpa [#allocation15], 0
    %17 = vsyncpa [#allocation18], 0
    %18 = vsyncpa [#allocation21], 0
    %19 = vsyncpa [#allocation10], 0
    // Predicated region
    $region2: #{base_feature_extractor_forward.1} parent=1 // pred_check
      _
    $region3: #{base_feature_extractor_forward.1} parent=1 // pred_check_branch
      %21 = sbr.rel (0) target = $region5
    $region4: #{base_feature_extractor_forward.1} parent=1 // pred_region
      %s23 = ssub.s32 2048, 2048
      %24 = vsyncadd [#allocation9], %s23
      %s25 = sshll.u32 [#allocation8], 4
      %s26 = int_to_ptr.vmem [resolvable:$true] %s25
      %31 = dma.hbm_to_vmem [thread:$0]  %s0, 2048, %s26, [#allocation9], 128, 128, 8
    $region5: #{base_feature_extractor_forward.1} parent=1 // pred_fallthru
      _
    // Predicated region
    $region6: #{base_feature_extractor_forward.1} parent=1 // pred_check
      _
    $region7: #{base_feature_extractor_forward.1} parent=1 // pred_check_branch
      %33 = sbr.rel (0) target = $region9
    $region8: #{base_feature_extractor_forward.1} parent=1 // pred_region
      %s35 = ssub.s32 1024, 1024
      %36 = vsyncadd [#allocation12], %s35
      %s37 = sshll.u32 [#allocation11], 4
      %s38 = int_to_ptr.vmem [resolvable:$true] %s37
      %43 = dma.hbm_to_vmem [thread:$0]  %s1, 1024, %s38, [#allocation12], 128, 128, 8
    $region9: #{base_feature_extractor_forward.1} parent=1 // pred_fallthru
      _
    // Predicated region
    $region10: #{base_feature_extractor_forward.1} parent=1 // pred_check
      _
    $region11: #{base_feature_extractor_forward.1} parent=1 // pred_check_branch
      %45 = sbr.rel (0) target = $region13
    $region12: #{base_feature_extractor_forward.1} parent=1 // pred_region
      %s47 = ssub.s32 16, 16
      %48 = vsyncadd [#allocation12], %s47
      %s50 = sshll.u32 [#allocation13], 4
      %s51 = int_to_ptr.vmem [resolvable:$true] %s50
      %53 = dma.hbm_to_vmem [thread:$0]  %s2, 16, %s51, [#allocation12]
    $region13: #{base_feature_extractor_forward.1} parent=1 // pred_fallthru
      _
    // Predicated region
    $region14: #{base_feature_extractor_forward.1} parent=1 // pred_check
      _
    $region15: #{base_feature_extractor_forward.1} parent=1 // pred_check_branch
      %55 = sbr.rel (0) target = $region17
    $region16: #{base_feature_extractor_forward.1} parent=1 // pred_region
      %s57 = ssub.s32 8192, 8192
      %58 = vsyncadd [#allocation15], %s57
      %s59 = sshll.u32 [#allocation14], 4
      %s60 = int_to_ptr.vmem [resolvable:$true] %s59
      %65 = dma.hbm_to_vmem [thread:$0]  %s3, 8192, %s60, [#allocation15], 128, 128, 8
    $region17: #{base_feature_extractor_forward.1} parent=1 // pred_fallthru
      _
    // Predicated region
    $region18: #{base_feature_extractor_forward.1} parent=1 // pred_check
      _
    $region19: #{base_feature_extractor_forward.1} parent=1 // pred_check_branch
      %67 = sbr.rel (0) target = $region21
    $region20: #{base_feature_extractor_forward.1} parent=1 // pred_region
      %s69 = ssub.s32 16, 16
      %70 = vsyncadd [#allocation15], %s69
      %s72 = sshll.u32 [#allocation16], 4
      %s73 = int_to_ptr.vmem [resolvable:$true] %s72
      %75 = dma.hbm_to_vmem [thread:$0]  %s4, 16, %s73, [#allocation15]
    $region21: #{base_feature_extractor_forward.1} parent=1 // pred_fallthru
      _
    // Predicated region
    $region22: #{base_feature_extractor_forward.1} parent=1 // pred_check
      _
    $region23: #{base_feature_extractor_forward.1} parent=1 // pred_check_branch
      %77 = sbr.rel (0) target = $region25
    $region24: #{base_feature_extractor_forward.1} parent=1 // pred_region
      %s79 = ssub.s32 9216, 9216
      %80 = vsyncadd [#allocation18], %s79
      %s81 = sshll.u32 [#allocation17], 4
      %s82 = int_to_ptr.vmem [resolvable:$true] %s81
      %87 = dma.hbm_to_vmem [thread:$0]  %s5, 9216, %s82, [#allocation18], 128, 128, 8
    $region25: #{base_feature_extractor_forward.1} parent=1 // pred_fallthru
      _
    // Predicated region
    $region26: #{base_feature_extractor_forward.1} parent=1 // pred_check
      _
    $region27: #{base_feature_extractor_forward.1} parent=1 // pred_check_branch
      %89 = sbr.rel (0) target = $region29
    $region28: #{base_feature_extractor_forward.1} parent=1 // pred_region
      %s91 = ssub.s32 16, 16
      %92 = vsyncadd [#allocation18], %s91
      %s94 = sshll.u32 [#allocation19], 4
      %s95 = int_to_ptr.vmem [resolvable:$true] %s94
      %97 = dma.hbm_to_vmem [thread:$0]  %s6, 16, %s95, [#allocation18]
    $region29: #{base_feature_extractor_forward.1} parent=1 // pred_fallthru
      _
    // Predicated region
    $region30: #{base_feature_extractor_forward.1} parent=1 // pred_check
      _
    $region31: #{base_feature_extractor_forward.1} parent=1 // pred_check_branch
      %99 = sbr.rel (0) target = $region33
    $region32: #{base_feature_extractor_forward.1} parent=1 // pred_region
      %s101 = ssub.s32 51200, 51200
      %102 = vsyncadd [#allocation21], %s101
      %s103 = sshll.u32 [#allocation20], 4
      %s104 = int_to_ptr.vmem [resolvable:$true] %s103
      %109 = dma.hbm_to_vmem [thread:$0]  %s7, 51200, %s104, [#allocation21], 256, 256, 16
    $region33: #{base_feature_extractor_forward.1} parent=1 // pred_fallthru
      _
    // Predicated region
    $region34: #{base_feature_extractor_forward.1} parent=1 // pred_check
      _
    $region35: #{base_feature_extractor_forward.1} parent=1 // pred_check_branch
      %111 = sbr.rel (0) target = $region37
    $region36: #{base_feature_extractor_forward.1} parent=1 // pred_region
      %s113 = ssub.s32 64, 64
      %114 = vsyncadd [#allocation21], %s113
      %s116 = sshll.u32 [#allocation22], 4
      %s117 = int_to_ptr.vmem [resolvable:$true] %s116
      %119 = dma.hbm_to_vmem [thread:$0]  %s8, 64, %s117, [#allocation21]
    $region37: #{base_feature_extractor_forward.1} parent=1 // pred_fallthru
      _
    // Predicated region
    $region38: #{base_feature_extractor_forward.1} parent=1 // pred_check
      _
    $region39: #{base_feature_extractor_forward.1} parent=1 // pred_check_branch
      %121 = sbr.rel (0) target = $region41
    $region40: #{base_feature_extractor_forward.1} parent=1 // pred_region
      %122 = dma.done [#allocation9], 2048
    $region41: #{base_feature_extractor_forward.1} parent=1 // pred_fallthru
      _
    // Predicated region
    $region42: #{base_feature_extractor_forward.1} parent=1 // pred_check
      _
    $region43: #{base_feature_extractor_forward.1} parent=1 // pred_check_branch
      %124 = sbr.rel (0) target = $region45
    $region44: #{base_feature_extractor_forward.1} parent=1 // pred_region
      %125 = dma.done [#allocation12], 1024
    $region45: #{base_feature_extractor_forward.1} parent=1 // pred_fallthru
      _
    // Predicated region
    $region46: #{base_feature_extractor_forward.1} parent=1 // pred_check
      _
    $region47: #{base_feature_extractor_forward.1} parent=1 // pred_check_branch
      %127 = sbr.rel (0) target = $region49
    $region48: #{base_feature_extractor_forward.1} parent=1 // pred_region
      %128 = dma.done [#allocation12], 16
    $region49: #{base_feature_extractor_forward.1} parent=1 // pred_fallthru
      _
    // Predicated region
    $region50: #{base_feature_extractor_forward.1} parent=1 // pred_check
      _
    $region51: #{base_feature_extractor_forward.1} parent=1 // pred_check_branch
      %130 = sbr.rel (0) target = $region53
    $region52: #{base_feature_extractor_forward.1} parent=1 // pred_region
      %131 = dma.done [#allocation15], 8192
    $region53: #{base_feature_extractor_forward.1} parent=1 // pred_fallthru
      _
    // Predicated region
    $region54: #{base_feature_extractor_forward.1} parent=1 // pred_check
      _
    $region55: #{base_feature_extractor_forward.1} parent=1 // pred_check_branch
      %133 = sbr.rel (0) target = $region57
    $region56: #{base_feature_extractor_forward.1} parent=1 // pred_region
      %134 = dma.done [#allocation15], 16
    $region57: #{base_feature_extractor_forward.1} parent=1 // pred_fallthru
      _
    // Predicated region
    $region58: #{base_feature_extractor_forward.1} parent=1 // pred_check
      _
    $region59: #{base_feature_extractor_forward.1} parent=1 // pred_check_branch
      %136 = sbr.rel (0) target = $region61
    $region60: #{base_feature_extractor_forward.1} parent=1 // pred_region
      %137 = dma.done [#allocation18], 9216
    $region61: #{base_feature_extractor_forward.1} parent=1 // pred_fallthru
      _
    // Predicated region
    $region62: #{base_feature_extractor_forward.1} parent=1 // pred_check
      _
    $region63: #{base_feature_extractor_forward.1} parent=1 // pred_check_branch
      %139 = sbr.rel (0) target = $region65
    $region64: #{base_feature_extractor_forward.1} parent=1 // pred_region
      %140 = dma.done [#allocation18], 16
    $region65: #{base_feature_extractor_forward.1} parent=1 // pred_fallthru
      _
    // Predicated region
    $region66: #{base_feature_extractor_forward.1} parent=1 // pred_check
      _
    $region67: #{base_feature_extractor_forward.1} parent=1 // pred_check_branch
      %142 = sbr.rel (0) target = $region69
    $region68: #{base_feature_extractor_forward.1} parent=1 // pred_region
      %143 = dma.done [#allocation21], 51200
    $region69: #{base_feature_extractor_forward.1} parent=1 // pred_fallthru
      _
    // Predicated region
    $region70: #{base_feature_extractor_forward.1} parent=1 // pred_check
      _
    $region71: #{base_feature_extractor_forward.1} parent=1 // pred_check_branch
      %145 = sbr.rel (0) target = $region73
    $region72: #{base_feature_extractor_forward.1} parent=1 // pred_region
      %146 = dma.done [#allocation21], 64
    $region73: #{base_feature_extractor_forward.1} parent=1 // pred_fallthru
      _
    %v148 = vld [vmem:[#allocation8] sm:$0xff]
    %v149 = vld [vmem:[#allocation8 + $0x8] sm:$0xff]
    %v150 = vld [vmem:[#allocation8 + $0x10] sm:$0xff]
    %v151 = vld [vmem:[#allocation8 + $0x18] sm:$0xff]
    %v152 = vld [vmem:[#allocation8 + $0x20] sm:$0xff]
    %v153 = vld [vmem:[#allocation8 + $0x28] sm:$0xff]
    %v154 = vld [vmem:[#allocation8 + $0x30] sm:$0xff]
    %v155 = vld [vmem:[#allocation8 + $0x38] sm:$0xff]
    %v156 = vld [vmem:[#allocation8 + $0x40] sm:$0xff]
    %v157 = vld [vmem:[#allocation8 + $0x48] sm:$0xff]
    %v158 = vld [vmem:[#allocation8 + $0x50] sm:$0xff]
    %v159 = vld [vmem:[#allocation8 + $0x58] sm:$0xff]
    %v160 = vld [vmem:[#allocation8 + $0x60] sm:$0xff]
    %v161 = vld [vmem:[#allocation8 + $0x68] sm:$0xff]
    %v162 = vld [vmem:[#allocation8 + $0x70] sm:$0xff]
    %v163 = vld [vmem:[#allocation8 + $0x78] sm:$0xff]
    %v164 = vld [vmem:[#allocation11] sm:$0xff]
    %v165 = vld [vmem:[#allocation11 + $0x8] sm:$0xff]
    %v166 = vld [vmem:[#allocation11 + $0x10] sm:$0xff]
    %v167 = vld [vmem:[#allocation11 + $0x18] sm:$0xff]
    %v168 = vld [vmem:[#allocation11 + $0x20] sm:$0xff]
    %v169 = vld [vmem:[#allocation11 + $0x28] sm:$0xff]
    %v170 = vld [vmem:[#allocation11 + $0x30] sm:$0xff]
    %v171 = vld [vmem:[#allocation11 + $0x38] sm:$0xff]
    %v172 = vld [vmem:[#allocation13] sm:$0x1]
    %v174 = vlaneseq
    %v175 = vshrl.u32 %v174, 7
    %v176 = vsub.s32 0, %v175
    %v177 = vrot.slane %v172, %v176
    %vm179 = vcmask 523264
    %v181 = vsel %vm179, %v148, 0
    %v184 = vsel %vm179, %v149, 0
    %v187 = vsel %vm179, %v150, 0
    %v190 = vsel %vm179, %v151, 0
    %v193 = vsel %vm179, %v152, 0
    %v196 = vsel %vm179, %v153, 0
    %v199 = vsel %vm179, %v154, 0
    %v202 = vsel %vm179, %v155, 0
    %v205 = vsel %vm179, %v156, 0
    %v208 = vsel %vm179, %v157, 0
    %v211 = vsel %vm179, %v158, 0
    %v214 = vsel %vm179, %v159, 0
    %v217 = vsel %vm179, %v160, 0
    %v220 = vsel %vm179, %v161, 0
    %v223 = vsel %vm179, %v162, 0
    %v226 = vsel %vm179, %v163, 0
    %228 = vmatprep.subr.mxu0 0.0
    %229 = vmatpush1.msra.mxu0 %v164
    %230 = vmatprep.subr.mxu0 0.0
    %231 = vmatpush1.msra.mxu0 %v165
    %232 = vmatprep.subr.mxu0 0.0
    %233 = vmatpush1.msra.mxu0 %v166
    %234 = vmatprep.subr.mxu0 0.0
    %235 = vmatpush1.msra.mxu0 %v167
    %236 = vmatprep.subr.mxu0 0.0
    %237 = vmatpush1.msra.mxu0 %v168
    %238 = vmatprep.subr.mxu0 0.0
    %239 = vmatpush1.msra.mxu0 %v169
    %240 = vmatprep.subr.mxu0 0.0
    %241 = vmatpush1.msra.mxu0 %v170
    %242 = vmatprep.subr.mxu0 0.0
    %243 = vmatpush1.msra.mxu0 %v171
    %244 = vmatprep.subr.mxu0 0.0
    %245 = vmatpush1.msra.mxu0 0.0
    %246 = vmatprep.subr.mxu0 0.0
    %247 = vmatpush1.msra.mxu0 0.0
    %248 = vmatprep.subr.mxu0 0.0
    %249 = vmatpush1.msra.mxu0 0.0
    %250 = vmatprep.subr.mxu0 0.0
    %251 = vmatpush1.msra.mxu0 0.0
    %252 = vmatprep.subr.mxu0 0.0
    %253 = vmatpush1.msra.mxu0 0.0
    %254 = vmatprep.subr.mxu0 0.0
    %255 = vmatpush1.msra.mxu0 0.0
    %256 = vmatprep.subr.mxu0 0.0
    %257 = vmatpush1.msra.mxu0 0.0
    %258 = vmatprep.subr.mxu0 0.0
    %259 = vmatpush1.msra.mxu0 0.0
    %260 = vmatprep.subr.mxu0 0.0
    %261 = vmatpush1.msra.mxu0 0.0
    %262 = vmatprep.subr.mxu0 0.0
    %263 = vmatpush1.msra.mxu0 0.0
    %264 = vmatprep.subr.mxu0 0.0
    %265 = vmatpush1.msra.mxu0 0.0
    %266 = vmatprep.subr.mxu0 0.0
    %267 = vmatpush1.msra.mxu0 0.0
    %268 = vmatprep.subr.mxu0 0.0
    %269 = vmatpush1.msra.mxu0 0.0
    %270 = vmatprep.subr.mxu0 0.0
    %271 = vmatpush1.msra.mxu0 0.0
    %272 = vmatprep.subr.mxu0 0.0
    %273 = vmatpush1.msra.mxu0 0.0
    %274 = vmatprep.subr.mxu0 0.0
    %275 = vmatpush1.msra.mxu0 0.0
    %276 = vmatprep.subr.mxu0 0.0
    %277 = vmatpush1.msra.mxu0 0.0
    %278 = vmatprep.subr.mxu0 0.0
    %279 = vmatpush1.msra.mxu0 0.0
    %280 = vmatprep.subr.mxu0 0.0
    %281 = vmatpush1.msra.mxu0 0.0
    %282 = vmatprep.subr.mxu0 0.0
    %283 = vmatpush1.msra.mxu0 0.0
    %284 = vmatprep.subr.mxu0 0.0
    %285 = vmatpush1.msra.mxu0 0.0
    %286 = vmatprep.subr.mxu0 0.0
    %287 = vmatpush1.msra.mxu0 0.0
    %288 = vmatprep.subr.mxu0 0.0
    %289 = vmatpush1.msra.mxu0 0.0
    %290 = vmatprep.subr.mxu0 0.0
    %291 = vmatpush1.msra.mxu0 0.0
    %292 = vmatprep.mubr.f32.mxu0 0.0
    %293 = vmatmul.mubr.f32.gmra.mrb[0].mxu0 %v181
    %v294 = vpop.f32.mrb[0].mxu0
    %v295 = vadd.f32 %v177, %v294
    %v296 = vpop.f32.mrb[0].mxu0
    %297 = vmatprep.mubr.f32.mxu0 0.0
    %298 = vmatmul.mubr.f32.gmra.mrb[0].mxu0 %v184
    %v299 = vpop.f32.mrb[0].mxu0
    %v300 = vadd.f32 %v177, %v299
    %v301 = vpop.f32.mrb[0].mxu0
    %302 = vmatprep.mubr.f32.mxu0 0.0
    %303 = vmatmul.mubr.f32.gmra.mrb[0].mxu0 %v187
    %v304 = vpop.f32.mrb[0].mxu0
    %v305 = vadd.f32 %v177, %v304
    %v306 = vpop.f32.mrb[0].mxu0
    %307 = vmatprep.mubr.f32.mxu0 0.0
    %308 = vmatmul.mubr.f32.gmra.mrb[0].mxu0 %v190
    %v309 = vpop.f32.mrb[0].mxu0
    %v310 = vadd.f32 %v177, %v309
    %v311 = vpop.f32.mrb[0].mxu0
    %312 = vmatprep.mubr.f32.mxu0 0.0
    %313 = vmatmul.mubr.f32.gmra.mrb[0].mxu0 %v193
    %v314 = vpop.f32.mrb[0].mxu0
    %v315 = vadd.f32 %v177, %v314
    %v316 = vpop.f32.mrb[0].mxu0
    %317 = vmatprep.mubr.f32.mxu0 0.0
    %318 = vmatmul.mubr.f32.gmra.mrb[0].mxu0 %v196
    %v319 = vpop.f32.mrb[0].mxu0
    %v320 = vadd.f32 %v177, %v319
    %v321 = vpop.f32.mrb[0].mxu0
    %322 = vmatprep.mubr.f32.mxu0 0.0
    %323 = vmatmul.mubr.f32.gmra.mrb[0].mxu0 %v199
    %v324 = vpop.f32.mrb[0].mxu0
    %v325 = vadd.f32 %v177, %v324
    %v326 = vpop.f32.mrb[0].mxu0
    %327 = vmatprep.mubr.f32.mxu0 0.0
    %328 = vmatmul.mubr.f32.gmra.mrb[0].mxu0 %v202
    %v329 = vpop.f32.mrb[0].mxu0
    %v330 = vadd.f32 %v177, %v329
    %v331 = vpop.f32.mrb[0].mxu0
    %332 = vmatprep.mubr.f32.mxu0 0.0
    %333 = vmatmul.mubr.f32.gmra.mrb[0].mxu0 %v205
    %v334 = vpop.f32.mrb[0].mxu0
    %v335 = vadd.f32 %v177, %v334
    %v336 = vpop.f32.mrb[0].mxu0
    %337 = vmatprep.mubr.f32.mxu0 0.0
    %338 = vmatmul.mubr.f32.gmra.mrb[0].mxu0 %v208
    %v339 = vpop.f32.mrb[0].mxu0
    %v340 = vadd.f32 %v177, %v339
    %v341 = vpop.f32.mrb[0].mxu0
    %342 = vmatprep.mubr.f32.mxu0 0.0
    %343 = vmatmul.mubr.f32.gmra.mrb[0].mxu0 %v211
    %v344 = vpop.f32.mrb[0].mxu0
    %v345 = vadd.f32 %v177, %v344
    %v346 = vpop.f32.mrb[0].mxu0
    %347 = vmatprep.mubr.f32.mxu0 0.0
    %348 = vmatmul.mubr.f32.gmra.mrb[0].mxu0 %v214
    %v349 = vpop.f32.mrb[0].mxu0
    %v350 = vadd.f32 %v177, %v349
    %v351 = vpop.f32.mrb[0].mxu0
    %352 = vmatprep.mubr.f32.mxu0 0.0
    %353 = vmatmul.mubr.f32.gmra.mrb[0].mxu0 %v217
    %v354 = vpop.f32.mrb[0].mxu0
    %v355 = vadd.f32 %v177, %v354
    %v356 = vpop.f32.mrb[0].mxu0
    %357 = vmatprep.mubr.f32.mxu0 0.0
    %358 = vmatmul.mubr.f32.gmra.mrb[0].mxu0 %v220
    %v359 = vpop.f32.mrb[0].mxu0
    %v360 = vadd.f32 %v177, %v359
    %v361 = vpop.f32.mrb[0].mxu0
    %362 = vmatprep.mubr.f32.mxu0 0.0
    %363 = vmatmul.mubr.f32.gmra.mrb[0].mxu0 %v223
    %v364 = vpop.f32.mrb[0].mxu0
    %v365 = vadd.f32 %v177, %v364
    %v366 = vpop.f32.mrb[0].mxu0
    %367 = vmatprep.mubr.f32.mxu0 0.0
    %368 = vmatmul.mubr.f32.gmra.mrb[0].mxu0 %v226
    %v369 = vpop.f32.mrb[0].mxu0
    %v370 = vadd.f32 %v177, %v369
    %v371 = vpop.f32.mrb[0].mxu0
    %372 = vdwg.mxu0
    %v373 = vmax.f32 %v295, 0.0
    %v374 = vmax.f32 %v300, 0.0
    %v375 = vmax.f32 %v305, 0.0
    %v376 = vmax.f32 %v310, 0.0
    %v377 = vmax.f32 %v315, 0.0
    %v378 = vmax.f32 %v320, 0.0
    %v379 = vmax.f32 %v325, 0.0
    %v380 = vmax.f32 %v330, 0.0
    %v381 = vmax.f32 %v335, 0.0
    %v382 = vmax.f32 %v340, 0.0
    %v383 = vmax.f32 %v345, 0.0
    %v384 = vmax.f32 %v350, 0.0
    %v385 = vmax.f32 %v355, 0.0
    %v386 = vmax.f32 %v360, 0.0
    %v387 = vmax.f32 %v365, 0.0
    %v388 = vmax.f32 %v370, 0.0
    %389 = vst [vmem:[#allocation2] sm:$0xff] %v373
    %390 = vst [vmem:[#allocation2 + $0x10] sm:$0xff] %v374
    %391 = vst [vmem:[#allocation2 + $0x20] sm:$0xff] %v375
    %392 = vst [vmem:[#allocation2 + $0x30] sm:$0xff] %v376
    %393 = vst [vmem:[#allocation2 + $0x40] sm:$0xff] %v377
    %394 = vst [vmem:[#allocation2 + $0x50] sm:$0xff] %v378
    %395 = vst [vmem:[#allocation2 + $0x60] sm:$0xff] %v379
    %396 = vst [vmem:[#allocation2 + $0x70] sm:$0xff] %v380
    %397 = vst [vmem:[#allocation2 + $0x90] sm:$0xff] %v381
    %398 = vst [vmem:[#allocation2 + $0xa0] sm:$0xff] %v382
    %399 = vst [vmem:[#allocation2 + $0xb0] sm:$0xff] %v383
    %400 = vst [vmem:[#allocation2 + $0xc0] sm:$0xff] %v384
    %401 = vst [vmem:[#allocation2 + $0xd0] sm:$0xff] %v385
    %402 = vst [vmem:[#allocation2 + $0xe0] sm:$0xff] %v386
    %403 = vst [vmem:[#allocation2 + $0xf0] sm:$0xff] %v387
    %404 = vst [vmem:[#allocation2 + $0x100] sm:$0xff] %v388
    %v405 = vld [vmem:[#allocation2] sm:$0xff]
    %v406 = vld [vmem:[#allocation2 + $0x10] sm:$0xff]
    %v407 = vld [vmem:[#allocation2 + $0x20] sm:$0xff]
    %v408 = vld [vmem:[#allocation2 + $0x30] sm:$0xff]
    %v409 = vld [vmem:[#allocation2 + $0x40] sm:$0xff]
    %v410 = vld [vmem:[#allocation2 + $0x50] sm:$0xff]
    %v411 = vld [vmem:[#allocation2 + $0x60] sm:$0xff]
    %v412 = vld [vmem:[#allocation2 + $0x70] sm:$0xff]
    %v413 = vld [vmem:[#allocation2 + $0x90] sm:$0xff]
    %v414 = vld [vmem:[#allocation2 + $0xa0] sm:$0xff]
    %v415 = vld [vmem:[#allocation2 + $0xb0] sm:$0xff]
    %v416 = vld [vmem:[#allocation2 + $0xc0] sm:$0xff]
    %v417 = vld [vmem:[#allocation2 + $0xd0] sm:$0xff]
    %v418 = vld [vmem:[#allocation2 + $0xe0] sm:$0xff]
    %v419 = vld [vmem:[#allocation2 + $0xf0] sm:$0xff]
    %v420 = vld [vmem:[#allocation2 + $0x100] sm:$0xff]
    %421 = vst [vmem:[#allocation4] sm:$0xff] %v405
    %422 = vst [vmem:[#allocation4 + $0x20] sm:$0xff] %v406
    %423 = vst [vmem:[#allocation4 + $0x40] sm:$0xff] %v407
    %424 = vst [vmem:[#allocation4 + $0x60] sm:$0xff] %v408
    %425 = vst [vmem:[#allocation4 + $0x80] sm:$0xff] %v409
    %426 = vst [vmem:[#allocation4 + $0xa0] sm:$0xff] %v410
    %427 = vst [vmem:[#allocation4 + $0xc0] sm:$0xff] %v411
    %428 = vst [vmem:[#allocation4 + $0xe0] sm:$0xff] %v412
    %429 = vst [vmem:[#allocation4 + $0x100] sm:$0xff] %v413
    %430 = vst [vmem:[#allocation4 + $0x120] sm:$0xff] %v414
    %431 = vst [vmem:[#allocation4 + $0x140] sm:$0xff] %v415
    %432 = vst [vmem:[#allocation4 + $0x160] sm:$0xff] %v416
    %433 = vst [vmem:[#allocation4 + $0x180] sm:$0xff] %v417
    %434 = vst [vmem:[#allocation4 + $0x1a0] sm:$0xff] %v418
    %435 = vst [vmem:[#allocation4 + $0x1c0] sm:$0xff] %v419
    %436 = vst [vmem:[#allocation4 + $0x1e0] sm:$0xff] %v420
    %v437 = vld [vmem:[#allocation2 + $0x1] sm:$0xff]
    %v438 = vld [vmem:[#allocation2 + $0x11] sm:$0xff]
    %v439 = vld [vmem:[#allocation2 + $0x21] sm:$0xff]
    %v440 = vld [vmem:[#allocation2 + $0x31] sm:$0xff]
    %v441 = vld [vmem:[#allocation2 + $0x41] sm:$0xff]
    %v442 = vld [vmem:[#allocation2 + $0x51] sm:$0xff]
    %v443 = vld [vmem:[#allocation2 + $0x61] sm:$0xff]
    %v444 = vld [vmem:[#allocation2 + $0x71] sm:$0xff]
    %v445 = vld [vmem:[#allocation2 + $0x91] sm:$0xff]
    %v446 = vld [vmem:[#allocation2 + $0xa1] sm:$0xff]
    %v447 = vld [vmem:[#allocation2 + $0xb1] sm:$0xff]
    %v448 = vld [vmem:[#allocation2 + $0xc1] sm:$0xff]
    %v449 = vld [vmem:[#allocation2 + $0xd1] sm:$0xff]
    %v450 = vld [vmem:[#allocation2 + $0xe1] sm:$0xff]
    %v451 = vld [vmem:[#allocation2 + $0xf1] sm:$0xff]
    %v452 = vld [vmem:[#allocation2 + $0x101] sm:$0xff]
    %453 = vst [vmem:[#allocation4 + $0x8] sm:$0xff] %v437
    %454 = vst [vmem:[#allocation4 + $0x28] sm:$0xff] %v438
    %455 = vst [vmem:[#allocation4 + $0x48] sm:$0xff] %v439
    %456 = vst [vmem:[#allocation4 + $0x68] sm:$0xff] %v440
    %457 = vst [vmem:[#allocation4 + $0x88] sm:$0xff] %v441
    %458 = vst [vmem:[#allocation4 + $0xa8] sm:$0xff] %v442
    %459 = vst [vmem:[#allocation4 + $0xc8] sm:$0xff] %v443
    %460 = vst [vmem:[#allocation4 + $0xe8] sm:$0xff] %v444
    %461 = vst [vmem:[#allocation4 + $0x108] sm:$0xff] %v445
    %462 = vst [vmem:[#allocation4 + $0x128] sm:$0xff] %v446
    %463 = vst [vmem:[#allocation4 + $0x148] sm:$0xff] %v447
    %464 = vst [vmem:[#allocation4 + $0x168] sm:$0xff] %v448
    %465 = vst [vmem:[#allocation4 + $0x188] sm:$0xff] %v449
    %466 = vst [vmem:[#allocation4 + $0x1a8] sm:$0xff] %v450
    %467 = vst [vmem:[#allocation4 + $0x1c8] sm:$0xff] %v451
    %468 = vst [vmem:[#allocation4 + $0x1e8] sm:$0xff] %v452
    %s469 = scalar_lea.vmem [#allocation2], 16
    %v470 = vld [vmem:[%s469] sm:$0xff]
    %v471 = vld [vmem:[%s469 + $0x10] sm:$0xff]
    %v472 = vld [vmem:[%s469 + $0x20] sm:$0xff]
    %v473 = vld [vmem:[%s469 + $0x30] sm:$0xff]
    %v474 = vld [vmem:[%s469 + $0x40] sm:$0xff]
    %v475 = vld [vmem:[%s469 + $0x50] sm:$0xff]
    %v476 = vld [vmem:[%s469 + $0x60] sm:$0xff]
    %v477 = vld [vmem:[%s469 + $0x70] sm:$0xff]
    %v478 = vld [vmem:[%s469 + $0x90] sm:$0xff]
    %v479 = vld [vmem:[%s469 + $0xa0] sm:$0xff]
    %v480 = vld [vmem:[%s469 + $0xb0] sm:$0xff]
    %v481 = vld [vmem:[%s469 + $0xc0] sm:$0xff]
    %v482 = vld [vmem:[%s469 + $0xd0] sm:$0xff]
    %v483 = vld [vmem:[%s469 + $0xe0] sm:$0xff]
    %v484 = vld [vmem:[%s469 + $0xf0] sm:$0xff]
    %v485 = vld [vmem:[%s469 + $0x100] sm:$0xff]
    %486 = vst [vmem:[#allocation4 + $0x10] sm:$0xff] %v470
    %487 = vst [vmem:[#allocation4 + $0x30] sm:$0xff] %v471
    %488 = vst [vmem:[#allocation4 + $0x50] sm:$0xff] %v472
    %489 = vst [vmem:[#allocation4 + $0x70] sm:$0xff] %v473
    %490 = vst [vmem:[#allocation4 + $0x90] sm:$0xff] %v474
    %491 = vst [vmem:[#allocation4 + $0xb0] sm:$0xff] %v475
    %492 = vst [vmem:[#allocation4 + $0xd0] sm:$0xff] %v476
    %493 = vst [vmem:[#allocation4 + $0xf0] sm:$0xff] %v477
    %494 = vst [vmem:[#allocation4 + $0x110] sm:$0xff] %v478
    %495 = vst [vmem:[#allocation4 + $0x130] sm:$0xff] %v479
    %496 = vst [vmem:[#allocation4 + $0x150] sm:$0xff] %v480
    %497 = vst [vmem:[#allocation4 + $0x170] sm:$0xff] %v481
    %498 = vst [vmem:[#allocation4 + $0x190] sm:$0xff] %v482
    %499 = vst [vmem:[#allocation4 + $0x1b0] sm:$0xff] %v483
    %500 = vst [vmem:[#allocation4 + $0x1d0] sm:$0xff] %v484
    %501 = vst [vmem:[#allocation4 + $0x1f0] sm:$0xff] %v485
    %v502 = vld [vmem:[%s469 + $0x1] sm:$0xff]
    %v503 = vld [vmem:[%s469 + $0x11] sm:$0xff]
    %v504 = vld [vmem:[%s469 + $0x21] sm:$0xff]
    %v505 = vld [vmem:[%s469 + $0x31] sm:$0xff]
    %v506 = vld [vmem:[%s469 + $0x41] sm:$0xff]
    %v507 = vld [vmem:[%s469 + $0x51] sm:$0xff]
    %v508 = vld [vmem:[%s469 + $0x61] sm:$0xff]
    %v509 = vld [vmem:[%s469 + $0x71] sm:$0xff]
    %v510 = vld [vmem:[%s469 + $0x91] sm:$0xff]
    %v511 = vld [vmem:[%s469 + $0xa1] sm:$0xff]
    %v512 = vld [vmem:[%s469 + $0xb1] sm:$0xff]
    %v513 = vld [vmem:[%s469 + $0xc1] sm:$0xff]
    %v514 = vld [vmem:[%s469 + $0xd1] sm:$0xff]
    %v515 = vld [vmem:[%s469 + $0xe1] sm:$0xff]
    %v516 = vld [vmem:[%s469 + $0xf1] sm:$0xff]
    %v517 = vld [vmem:[%s469 + $0x101] sm:$0xff]
    %518 = vst [vmem:[#allocation4 + $0x18] sm:$0xff] %v502
    %519 = vst [vmem:[#allocation4 + $0x38] sm:$0xff] %v503
    %520 = vst [vmem:[#allocation4 + $0x58] sm:$0xff] %v504
    %521 = vst [vmem:[#allocation4 + $0x78] sm:$0xff] %v505
    %522 = vst [vmem:[#allocation4 + $0x98] sm:$0xff] %v506
    %523 = vst [vmem:[#allocation4 + $0xb8] sm:$0xff] %v507
    %524 = vst [vmem:[#allocation4 + $0xd8] sm:$0xff] %v508
    %525 = vst [vmem:[#allocation4 + $0xf8] sm:$0xff] %v509
    %526 = vst [vmem:[#allocation4 + $0x118] sm:$0xff] %v510
    %527 = vst [vmem:[#allocation4 + $0x138] sm:$0xff] %v511
    %528 = vst [vmem:[#allocation4 + $0x158] sm:$0xff] %v512
    %529 = vst [vmem:[#allocation4 + $0x178] sm:$0xff] %v513
    %530 = vst [vmem:[#allocation4 + $0x198] sm:$0xff] %v514
    %531 = vst [vmem:[#allocation4 + $0x1b8] sm:$0xff] %v515
    %532 = vst [vmem:[#allocation4 + $0x1d8] sm:$0xff] %v516
    %533 = vst [vmem:[#allocation4 + $0x1f8] sm:$0xff] %v517
    %v534 = vld [vmem:[#allocation4] sm:$0xff]
    %v535 = vld [vmem:[#allocation4 + $0x8] sm:$0xff]
    %v536 = vld [vmem:[#allocation4 + $0x10] sm:$0xff]
    %v537 = vld [vmem:[#allocation4 + $0x18] sm:$0xff]
    %v538 = vld [vmem:[#allocation4 + $0x20] sm:$0xff]
    %v539 = vld [vmem:[#allocation4 + $0x28] sm:$0xff]
    %v540 = vld [vmem:[#allocation4 + $0x30] sm:$0xff]
    %v541 = vld [vmem:[#allocation4 + $0x38] sm:$0xff]
    %v542 = vld [vmem:[#allocation4 + $0x40] sm:$0xff]
    %v543 = vld [vmem:[#allocation4 + $0x48] sm:$0xff]
    %v544 = vld [vmem:[#allocation4 + $0x50] sm:$0xff]
    %v545 = vld [vmem:[#allocation4 + $0x58] sm:$0xff]
    %v546 = vld [vmem:[#allocation4 + $0x60] sm:$0xff]
    %v547 = vld [vmem:[#allocation4 + $0x68] sm:$0xff]
    %v548 = vld [vmem:[#allocation4 + $0x70] sm:$0xff]
    %v549 = vld [vmem:[#allocation4 + $0x78] sm:$0xff]
    %v550 = vld [vmem:[#allocation4 + $0x80] sm:$0xff]
    %v551 = vld [vmem:[#allocation4 + $0x88] sm:$0xff]
    %v552 = vld [vmem:[#allocation4 + $0x90] sm:$0xff]
    %v553 = vld [vmem:[#allocation4 + $0x98] sm:$0xff]
    %v554 = vld [vmem:[#allocation4 + $0xa0] sm:$0xff]
    %v555 = vld [vmem:[#allocation4 + $0xa8] sm:$0xff]
    %v556 = vld [vmem:[#allocation4 + $0xb0] sm:$0xff]
    %v557 = vld [vmem:[#allocation4 + $0xb8] sm:$0xff]
    %v558 = vld [vmem:[#allocation4 + $0xc0] sm:$0xff]
    %v559 = vld [vmem:[#allocation4 + $0xc8] sm:$0xff]
    %v560 = vld [vmem:[#allocation4 + $0xd0] sm:$0xff]
    %v561 = vld [vmem:[#allocation4 + $0xd8] sm:$0xff]
    %v562 = vld [vmem:[#allocation4 + $0xe0] sm:$0xff]
    %v563 = vld [vmem:[#allocation4 + $0xe8] sm:$0xff]
    %v564 = vld [vmem:[#allocation4 + $0xf0] sm:$0xff]
    %v565 = vld [vmem:[#allocation4 + $0xf8] sm:$0xff]
    %v566 = vld [vmem:[#allocation4 + $0x100] sm:$0xff]
    %v567 = vld [vmem:[#allocation4 + $0x108] sm:$0xff]
    %v568 = vld [vmem:[#allocation4 + $0x110] sm:$0xff]
    %v569 = vld [vmem:[#allocation4 + $0x118] sm:$0xff]
    %v570 = vld [vmem:[#allocation4 + $0x120] sm:$0xff]
    %v571 = vld [vmem:[#allocation4 + $0x128] sm:$0xff]
    %v572 = vld [vmem:[#allocation4 + $0x130] sm:$0xff]
    %v573 = vld [vmem:[#allocation4 + $0x138] sm:$0xff]
    %v574 = vld [vmem:[#allocation4 + $0x140] sm:$0xff]
    %v575 = vld [vmem:[#allocation4 + $0x148] sm:$0xff]
    %v576 = vld [vmem:[#allocation4 + $0x150] sm:$0xff]
    %v577 = vld [vmem:[#allocation4 + $0x158] sm:$0xff]
    %v578 = vld [vmem:[#allocation4 + $0x160] sm:$0xff]
    %v579 = vld [vmem:[#allocation4 + $0x168] sm:$0xff]
    %v580 = vld [vmem:[#allocation4 + $0x170] sm:$0xff]
    %v581 = vld [vmem:[#allocation4 + $0x178] sm:$0xff]
    %v582 = vld [vmem:[#allocation4 + $0x180] sm:$0xff]
    %v583 = vld [vmem:[#allocation4 + $0x188] sm:$0xff]
    %v584 = vld [vmem:[#allocation4 + $0x190] sm:$0xff]
    %v585 = vld [vmem:[#allocation4 + $0x198] sm:$0xff]
    %v586 = vld [vmem:[#allocation4 + $0x1a0] sm:$0xff]
    %v587 = vld [vmem:[#allocation4 + $0x1a8] sm:$0xff]
    %v588 = vld [vmem:[#allocation4 + $0x1b0] sm:$0xff]
    %v589 = vld [vmem:[#allocation4 + $0x1b8] sm:$0xff]
    %v590 = vld [vmem:[#allocation4 + $0x1c0] sm:$0xff]
    %v591 = vld [vmem:[#allocation4 + $0x1c8] sm:$0xff]
    %v592 = vld [vmem:[#allocation4 + $0x1d0] sm:$0xff]
    %v593 = vld [vmem:[#allocation4 + $0x1d8] sm:$0xff]
    %v594 = vld [vmem:[#allocation4 + $0x1e0] sm:$0xff]
    %v595 = vld [vmem:[#allocation4 + $0x1e8] sm:$0xff]
    %v596 = vld [vmem:[#allocation4 + $0x1f0] sm:$0xff]
    %v597 = vld [vmem:[#allocation4 + $0x1f8] sm:$0xff]
    %v598 = vld [vmem:[#allocation14] sm:$0xff]
    %v599 = vld [vmem:[#allocation14 + $0x8] sm:$0xff]
    %v600 = vld [vmem:[#allocation14 + $0x10] sm:$0xff]
    %v601 = vld [vmem:[#allocation14 + $0x18] sm:$0xff]
    %v602 = vld [vmem:[#allocation14 + $0x20] sm:$0xff]
    %v603 = vld [vmem:[#allocation14 + $0x28] sm:$0xff]
    %v604 = vld [vmem:[#allocation14 + $0x30] sm:$0xff]
    %v605 = vld [vmem:[#allocation14 + $0x38] sm:$0xff]
    %v606 = vld [vmem:[#allocation14 + $0x40] sm:$0xff]
    %v607 = vld [vmem:[#allocation14 + $0x48] sm:$0xff]
    %v608 = vld [vmem:[#allocation14 + $0x50] sm:$0xff]
    %v609 = vld [vmem:[#allocation14 + $0x58] sm:$0xff]
    %v610 = vld [vmem:[#allocation14 + $0x60] sm:$0xff]
    %v611 = vld [vmem:[#allocation14 + $0x68] sm:$0xff]
    %v612 = vld [vmem:[#allocation14 + $0x70] sm:$0xff]
    %v613 = vld [vmem:[#allocation14 + $0x78] sm:$0xff]
    %v614 = vld [vmem:[#allocation14 + $0x80] sm:$0xff]
    %v615 = vld [vmem:[#allocation14 + $0x88] sm:$0xff]
    %v616 = vld [vmem:[#allocation14 + $0x90] sm:$0xff]
    %v617 = vld [vmem:[#allocation14 + $0x98] sm:$0xff]
    %v618 = vld [vmem:[#allocation14 + $0xa0] sm:$0xff]
    %v619 = vld [vmem:[#allocation14 + $0xa8] sm:$0xff]
    %v620 = vld [vmem:[#allocation14 + $0xb0] sm:$0xff]
    %v621 = vld [vmem:[#allocation14 + $0xb8] sm:$0xff]
    %v622 = vld [vmem:[#allocation14 + $0xc0] sm:$0xff]
    %v623 = vld [vmem:[#allocation14 + $0xc8] sm:$0xff]
    %v624 = vld [vmem:[#allocation14 + $0xd0] sm:$0xff]
    %v625 = vld [vmem:[#allocation14 + $0xd8] sm:$0xff]
    %v626 = vld [vmem:[#allocation14 + $0xe0] sm:$0xff]
    %v627 = vld [vmem:[#allocation14 + $0xe8] sm:$0xff]
    %v628 = vld [vmem:[#allocation14 + $0xf0] sm:$0xff]
    %v629 = vld [vmem:[#allocation14 + $0xf8] sm:$0xff]
    %v630 = vld [vmem:[#allocation14 + $0x100] sm:$0xff]
    %v631 = vld [vmem:[#allocation14 + $0x108] sm:$0xff]
    %v632 = vld [vmem:[#allocation14 + $0x110] sm:$0xff]
    %v633 = vld [vmem:[#allocation14 + $0x118] sm:$0xff]
    %v634 = vld [vmem:[#allocation14 + $0x120] sm:$0xff]
    %v635 = vld [vmem:[#allocation14 + $0x128] sm:$0xff]
    %v636 = vld [vmem:[#allocation14 + $0x130] sm:$0xff]
    %v637 = vld [vmem:[#allocation14 + $0x138] sm:$0xff]
    %v638 = vld [vmem:[#allocation14 + $0x140] sm:$0xff]
    %v639 = vld [vmem:[#allocation14 + $0x148] sm:$0xff]
    %v640 = vld [vmem:[#allocation14 + $0x150] sm:$0xff]
    %v641 = vld [vmem:[#allocation14 + $0x158] sm:$0xff]
    %v642 = vld [vmem:[#allocation14 + $0x160] sm:$0xff]
    %v643 = vld [vmem:[#allocation14 + $0x168] sm:$0xff]
    %v644 = vld [vmem:[#allocation14 + $0x170] sm:$0xff]
    %v645 = vld [vmem:[#allocation14 + $0x178] sm:$0xff]
    %v646 = vld [vmem:[#allocation14 + $0x180] sm:$0xff]
    %v647 = vld [vmem:[#allocation14 + $0x188] sm:$0xff]
    %v648 = vld [vmem:[#allocation14 + $0x190] sm:$0xff]
    %v649 = vld [vmem:[#allocation14 + $0x198] sm:$0xff]
    %v650 = vld [vmem:[#allocation14 + $0x1a0] sm:$0xff]
    %v651 = vld [vmem:[#allocation14 + $0x1a8] sm:$0xff]
    %v652 = vld [vmem:[#allocation14 + $0x1b0] sm:$0xff]
    %v653 = vld [vmem:[#allocation14 + $0x1b8] sm:$0xff]
    %v654 = vld [vmem:[#allocation14 + $0x1c0] sm:$0xff]
    %v655 = vld [vmem:[#allocation14 + $0x1c8] sm:$0xff]
    %v656 = vld [vmem:[#allocation14 + $0x1d0] sm:$0xff]
    %v657 = vld [vmem:[#allocation14 + $0x1d8] sm:$0xff]
    %v658 = vld [vmem:[#allocation14 + $0x1e0] sm:$0xff]
    %v659 = vld [vmem:[#allocation14 + $0x1e8] sm:$0xff]
    %v660 = vld [vmem:[#allocation14 + $0x1f0] sm:$0xff]
    %v661 = vld [vmem:[#allocation14 + $0x1f8] sm:$0xff]
    %v662 = vld [vmem:[#allocation16] sm:$0x1]
    %v664 = vlaneseq
    %v665 = vshrl.u32 %v664, 7
    %v666 = vsub.s32 0, %v665
    %v667 = vrot.slane %v662, %v666
    %669 = vmatprep.subr.mxu0 0.0
    %670 = vmatpush1.msra.mxu0 %v598
    %671 = vmatprep.subr.mxu0 0.0
    %672 = vmatpush1.msra.mxu0 %v599
    %673 = vmatprep.subr.mxu0 0.0
    %674 = vmatpush1.msra.mxu0 %v600
    %675 = vmatprep.subr.mxu0 0.0
    %676 = vmatpush1.msra.mxu0 %v601
    %677 = vmatprep.subr.mxu0 0.0
    %678 = vmatpush1.msra.mxu0 %v602
    %679 = vmatprep.subr.mxu0 0.0
    %680 = vmatpush1.msra.mxu0 %v603
    %681 = vmatprep.subr.mxu0 0.0
    %682 = vmatpush1.msra.mxu0 %v604
    %683 = vmatprep.subr.mxu0 0.0
    %684 = vmatpush1.msra.mxu0 %v605
    %685 = vmatprep.subr.mxu0 0.0
    %686 = vmatpush1.msra.mxu0 %v606
    %687 = vmatprep.subr.mxu0 0.0
    %688 = vmatpush1.msra.mxu0 %v607
    %689 = vmatprep.subr.mxu0 0.0
    %690 = vmatpush1.msra.mxu0 %v608
    %691 = vmatprep.subr.mxu0 0.0
    %692 = vmatpush1.msra.mxu0 %v609
    %693 = vmatprep.subr.mxu0 0.0
    %694 = vmatpush1.msra.mxu0 %v610
    %695 = vmatprep.subr.mxu0 0.0
    %696 = vmatpush1.msra.mxu0 %v611
    %697 = vmatprep.subr.mxu0 0.0
    %698 = vmatpush1.msra.mxu0 %v612
    %699 = vmatprep.subr.mxu0 0.0
    %700 = vmatpush1.msra.mxu0 %v613
    %701 = vmatprep.subr.mxu0 0.0
    %702 = vmatpush1.msra.mxu0 %v614
    %703 = vmatprep.subr.mxu0 0.0
    %704 = vmatpush1.msra.mxu0 %v615
    %705 = vmatprep.subr.mxu0 0.0
    %706 = vmatpush1.msra.mxu0 %v616
    %707 = vmatprep.subr.mxu0 0.0
    %708 = vmatpush1.msra.mxu0 %v617
    %709 = vmatprep.subr.mxu0 0.0
    %710 = vmatpush1.msra.mxu0 %v618
    %711 = vmatprep.subr.mxu0 0.0
    %712 = vmatpush1.msra.mxu0 %v619
    %713 = vmatprep.subr.mxu0 0.0
    %714 = vmatpush1.msra.mxu0 %v620
    %715 = vmatprep.subr.mxu0 0.0
    %716 = vmatpush1.msra.mxu0 %v621
    %717 = vmatprep.subr.mxu0 0.0
    %718 = vmatpush1.msra.mxu0 %v622
    %719 = vmatprep.subr.mxu0 0.0
    %720 = vmatpush1.msra.mxu0 %v623
    %721 = vmatprep.subr.mxu0 0.0
    %722 = vmatpush1.msra.mxu0 %v624
    %723 = vmatprep.subr.mxu0 0.0
    %724 = vmatpush1.msra.mxu0 %v625
    %725 = vmatprep.subr.mxu0 0.0
    %726 = vmatpush1.msra.mxu0 %v626
    %727 = vmatprep.subr.mxu0 0.0
    %728 = vmatpush1.msra.mxu0 %v627
    %729 = vmatprep.subr.mxu0 0.0
    %730 = vmatpush1.msra.mxu0 %v628
    %731 = vmatprep.subr.mxu0 0.0
    %732 = vmatpush1.msra.mxu0 %v629
    %733 = vmatprep.mubr.f32.mxu0 %v535
    %734 = vmatmul.mubr.f32.gmra.mrb[0].mxu0 %v534
    %v735 = vpop.f32.mrb[0].mxu0
    %v736 = vadd.f32 %v667, %v735
    %v737 = vpop.f32.mrb[0].mxu0
    %738 = vmatprep.mubr.f32.mxu0 %v539
    %739 = vmatmul.mubr.f32.gmra.mrb[0].mxu0 %v538
    %v740 = vpop.f32.mrb[0].mxu0
    %v741 = vadd.f32 %v667, %v740
    %v742 = vpop.f32.mrb[0].mxu0
    %743 = vmatprep.mubr.f32.mxu0 %v543
    %744 = vmatmul.mubr.f32.gmra.mrb[0].mxu0 %v542
    %v745 = vpop.f32.mrb[0].mxu0
    %v746 = vadd.f32 %v667, %v745
    %v747 = vpop.f32.mrb[0].mxu0
    %748 = vmatprep.mubr.f32.mxu0 %v547
    %749 = vmatmul.mubr.f32.gmra.mrb[0].mxu0 %v546
    %v750 = vpop.f32.mrb[0].mxu0
    %v751 = vadd.f32 %v667, %v750
    %v752 = vpop.f32.mrb[0].mxu0
    %753 = vmatprep.mubr.f32.mxu0 %v551
    %754 = vmatmul.mubr.f32.gmra.mrb[0].mxu0 %v550
    %v755 = vpop.f32.mrb[0].mxu0
    %v756 = vadd.f32 %v667, %v755
    %v757 = vpop.f32.mrb[0].mxu0
    %758 = vmatprep.mubr.f32.mxu0 %v555
    %759 = vmatmul.mubr.f32.gmra.mrb[0].mxu0 %v554
    %v760 = vpop.f32.mrb[0].mxu0
    %v761 = vadd.f32 %v667, %v760
    %v762 = vpop.f32.mrb[0].mxu0
    %763 = vmatprep.mubr.f32.mxu0 %v559
    %764 = vmatmul.mubr.f32.gmra.mrb[0].mxu0 %v558
    %v765 = vpop.f32.mrb[0].mxu0
    %v766 = vadd.f32 %v667, %v765
    %v767 = vpop.f32.mrb[0].mxu0
    %768 = vmatprep.mubr.f32.mxu0 %v563
    %769 = vmatmul.mubr.f32.gmra.mrb[0].mxu0 %v562
    %v770 = vpop.f32.mrb[0].mxu0
    %v771 = vadd.f32 %v667, %v770
    %v772 = vpop.f32.mrb[0].mxu0
    %773 = vmatprep.mubr.f32.mxu0 %v567
    %774 = vmatmul.mubr.f32.gmra.mrb[0].mxu0 %v566
    %v775 = vpop.f32.mrb[0].mxu0
    %v776 = vadd.f32 %v667, %v775
    %v777 = vpop.f32.mrb[0].mxu0
    %778 = vmatprep.mubr.f32.mxu0 %v571
    %779 = vmatmul.mubr.f32.gmra.mrb[0].mxu0 %v570
    %v780 = vpop.f32.mrb[0].mxu0
    %v781 = vadd.f32 %v667, %v780
    %v782 = vpop.f32.mrb[0].mxu0
    %783 = vmatprep.mubr.f32.mxu0 %v575
    %784 = vmatmul.mubr.f32.gmra.mrb[0].mxu0 %v574
    %v785 = vpop.f32.mrb[0].mxu0
    %v786 = vadd.f32 %v667, %v785
    %v787 = vpop.f32.mrb[0].mxu0
    %788 = vmatprep.mubr.f32.mxu0 %v579
    %789 = vmatmul.mubr.f32.gmra.mrb[0].mxu0 %v578
    %v790 = vpop.f32.mrb[0].mxu0
    %v791 = vadd.f32 %v667, %v790
    %v792 = vpop.f32.mrb[0].mxu0
    %793 = vmatprep.mubr.f32.mxu0 %v583
    %794 = vmatmul.mubr.f32.gmra.mrb[0].mxu0 %v582
    %v795 = vpop.f32.mrb[0].mxu0
    %v796 = vadd.f32 %v667, %v795
    %v797 = vpop.f32.mrb[0].mxu0
    %798 = vmatprep.mubr.f32.mxu0 %v587
    %799 = vmatmul.mubr.f32.gmra.mrb[0].mxu0 %v586
    %v800 = vpop.f32.mrb[0].mxu0
    %v801 = vadd.f32 %v667, %v800
    %v802 = vpop.f32.mrb[0].mxu0
    %803 = vmatprep.mubr.f32.mxu0 %v591
    %804 = vmatmul.mubr.f32.gmra.mrb[0].mxu0 %v590
    %v805 = vpop.f32.mrb[0].mxu0
    %v806 = vadd.f32 %v667, %v805
    %v807 = vpop.f32.mrb[0].mxu0
    %808 = vmatprep.mubr.f32.mxu0 %v595
    %809 = vmatmul.mubr.f32.gmra.mrb[0].mxu0 %v594
    %v810 = vpop.f32.mrb[0].mxu0
    %v811 = vadd.f32 %v667, %v810
    %v812 = vpop.f32.mrb[0].mxu0
    %813 = vdwg.mxu0
    %814 = vmatprep.subr.mxu0 0.0
    %815 = vmatpush1.msra.mxu0 %v630
    %816 = vmatprep.subr.mxu0 0.0
    %817 = vmatpush1.msra.mxu0 %v631
    %818 = vmatprep.subr.mxu0 0.0
    %819 = vmatpush1.msra.mxu0 %v632
    %820 = vmatprep.subr.mxu0 0.0
    %821 = vmatpush1.msra.mxu0 %v633
    %822 = vmatprep.subr.mxu0 0.0
    %823 = vmatpush1.msra.mxu0 %v634
    %824 = vmatprep.subr.mxu0 0.0
    %825 = vmatpush1.msra.mxu0 %v635
    %826 = vmatprep.subr.mxu0 0.0
    %827 = vmatpush1.msra.mxu0 %v636
    %828 = vmatprep.subr.mxu0 0.0
    %829 = vmatpush1.msra.mxu0 %v637
    %830 = vmatprep.subr.mxu0 0.0
    %831 = vmatpush1.msra.mxu0 %v638
    %832 = vmatprep.subr.mxu0 0.0
    %833 = vmatpush1.msra.mxu0 %v639
    %834 = vmatprep.subr.mxu0 0.0
    %835 = vmatpush1.msra.mxu0 %v640
    %836 = vmatprep.subr.mxu0 0.0
    %837 = vmatpush1.msra.mxu0 %v641
    %838 = vmatprep.subr.mxu0 0.0
    %839 = vmatpush1.msra.mxu0 %v642
    %840 = vmatprep.subr.mxu0 0.0
    %841 = vmatpush1.msra.mxu0 %v643
    %842 = vmatprep.subr.mxu0 0.0
    %843 = vmatpush1.msra.mxu0 %v644
    %844 = vmatprep.subr.mxu0 0.0
    %845 = vmatpush1.msra.mxu0 %v645
    %846 = vmatprep.subr.mxu0 0.0
    %847 = vmatpush1.msra.mxu0 %v646
    %848 = vmatprep.subr.mxu0 0.0
    %849 = vmatpush1.msra.mxu0 %v647
    %850 = vmatprep.subr.mxu0 0.0
    %851 = vmatpush1.msra.mxu0 %v648
    %852 = vmatprep.subr.mxu0 0.0
    %853 = vmatpush1.msra.mxu0 %v649
    %854 = vmatprep.subr.mxu0 0.0
    %855 = vmatpush1.msra.mxu0 %v650
    %856 = vmatprep.subr.mxu0 0.0
    %857 = vmatpush1.msra.mxu0 %v651
    %858 = vmatprep.subr.mxu0 0.0
    %859 = vmatpush1.msra.mxu0 %v652
    %860 = vmatprep.subr.mxu0 0.0
    %861 = vmatpush1.msra.mxu0 %v653
    %862 = vmatprep.subr.mxu0 0.0
    %863 = vmatpush1.msra.mxu0 %v654
    %864 = vmatprep.subr.mxu0 0.0
    %865 = vmatpush1.msra.mxu0 %v655
    %866 = vmatprep.subr.mxu0 0.0
    %867 = vmatpush1.msra.mxu0 %v656
    %868 = vmatprep.subr.mxu0 0.0
    %869 = vmatpush1.msra.mxu0 %v657
    %870 = vmatprep.subr.mxu0 0.0
    %871 = vmatpush1.msra.mxu0 %v658
    %872 = vmatprep.subr.mxu0 0.0
    %873 = vmatpush1.msra.mxu0 %v659
    %874 = vmatprep.subr.mxu0 0.0
    %875 = vmatpush1.msra.mxu0 %v660
    %876 = vmatprep.subr.mxu0 0.0
    %877 = vmatpush1.msra.mxu0 %v661
    %878 = vmatprep.mubr.f32.mxu0 %v537
    %879 = vmatmul.mubr.f32.gmra.mrb[0].mxu0 %v536
    %v880 = vpop.f32.mrb[0].mxu0
    %v881 = vadd.f32 %v736, %v880
    %v882 = vpop.f32.mrb[0].mxu0
    %883 = vmatprep.mubr.f32.mxu0 %v541
    %884 = vmatmul.mubr.f32.gmra.mrb[0].mxu0 %v540
    %v885 = vpop.f32.mrb[0].mxu0
    %v886 = vadd.f32 %v741, %v885
    %v887 = vpop.f32.mrb[0].mxu0
    %888 = vmatprep.mubr.f32.mxu0 %v545
    %889 = vmatmul.mubr.f32.gmra.mrb[0].mxu0 %v544
    %v890 = vpop.f32.mrb[0].mxu0
    %v891 = vadd.f32 %v746, %v890
    %v892 = vpop.f32.mrb[0].mxu0
    %893 = vmatprep.mubr.f32.mxu0 %v549
    %894 = vmatmul.mubr.f32.gmra.mrb[0].mxu0 %v548
    %v895 = vpop.f32.mrb[0].mxu0
    %v896 = vadd.f32 %v751, %v895
    %v897 = vpop.f32.mrb[0].mxu0
    %898 = vmatprep.mubr.f32.mxu0 %v553
    %899 = vmatmul.mubr.f32.gmra.mrb[0].mxu0 %v552
    %v900 = vpop.f32.mrb[0].mxu0
    %v901 = vadd.f32 %v756, %v900
    %v902 = vpop.f32.mrb[0].mxu0
    %903 = vmatprep.mubr.f32.mxu0 %v557
    %904 = vmatmul.mubr.f32.gmra.mrb[0].mxu0 %v556
    %v905 = vpop.f32.mrb[0].mxu0
    %v906 = vadd.f32 %v761, %v905
    %v907 = vpop.f32.mrb[0].mxu0
    %908 = vmatprep.mubr.f32.mxu0 %v561
    %909 = vmatmul.mubr.f32.gmra.mrb[0].mxu0 %v560
    %v910 = vpop.f32.mrb[0].mxu0
    %v911 = vadd.f32 %v766, %v910
    %v912 = vpop.f32.mrb[0].mxu0
    %913 = vmatprep.mubr.f32.mxu0 %v565
    %914 = vmatmul.mubr.f32.gmra.mrb[0].mxu0 %v564
    %v915 = vpop.f32.mrb[0].mxu0
    %v916 = vadd.f32 %v771, %v915
    %v917 = vpop.f32.mrb[0].mxu0
    %918 = vmatprep.mubr.f32.mxu0 %v569
    %919 = vmatmul.mubr.f32.gmra.mrb[0].mxu0 %v568
    %v920 = vpop.f32.mrb[0].mxu0
    %v921 = vadd.f32 %v776, %v920
    %v922 = vpop.f32.mrb[0].mxu0
    %923 = vmatprep.mubr.f32.mxu0 %v573
    %924 = vmatmul.mubr.f32.gmra.mrb[0].mxu0 %v572
    %v925 = vpop.f32.mrb[0].mxu0
    %v926 = vadd.f32 %v781, %v925
    %v927 = vpop.f32.mrb[0].mxu0
    %928 = vmatprep.mubr.f32.mxu0 %v577
    %929 = vmatmul.mubr.f32.gmra.mrb[0].mxu0 %v576
    %v930 = vpop.f32.mrb[0].mxu0
    %v931 = vadd.f32 %v786, %v930
    %v932 = vpop.f32.mrb[0].mxu0
    %933 = vmatprep.mubr.f32.mxu0 %v581
    %934 = vmatmul.mubr.f32.gmra.mrb[0].mxu0 %v580
    %v935 = vpop.f32.mrb[0].mxu0
    %v936 = vadd.f32 %v791, %v935
    %v937 = vpop.f32.mrb[0].mxu0
    %938 = vmatprep.mubr.f32.mxu0 %v585
    %939 = vmatmul.mubr.f32.gmra.mrb[0].mxu0 %v584
    %v940 = vpop.f32.mrb[0].mxu0
    %v941 = vadd.f32 %v796, %v940
    %v942 = vpop.f32.mrb[0].mxu0
    %943 = vmatprep.mubr.f32.mxu0 %v589
    %944 = vmatmul.mubr.f32.gmra.mrb[0].mxu0 %v588
    %v945 = vpop.f32.mrb[0].mxu0
    %v946 = vadd.f32 %v801, %v945
    %v947 = vpop.f32.mrb[0].mxu0
    %948 = vmatprep.mubr.f32.mxu0 %v593
    %949 = vmatmul.mubr.f32.gmra.mrb[0].mxu0 %v592
    %v950 = vpop.f32.mrb[0].mxu0
    %v951 = vadd.f32 %v806, %v950
    %v952 = vpop.f32.mrb[0].mxu0
    %953 = vmatprep.mubr.f32.mxu0 %v597
    %954 = vmatmul.mubr.f32.gmra.mrb[0].mxu0 %v596
    %v955 = vpop.f32.mrb[0].mxu0
    %v956 = vadd.f32 %v811, %v955
    %v957 = vpop.f32.mrb[0].mxu0
    %958 = vdwg.mxu0
    %v959 = vmax.f32 %v881, 0.0
    %v960 = vmax.f32 %v886, 0.0
    %v961 = vmax.f32 %v891, 0.0
    %v962 = vmax.f32 %v896, 0.0
    %v963 = vmax.f32 %v901, 0.0
    %v964 = vmax.f32 %v906, 0.0
    %v965 = vmax.f32 %v911, 0.0
    %v966 = vmax.f32 %v916, 0.0
    %v967 = vmax.f32 %v921, 0.0
    %v968 = vmax.f32 %v926, 0.0
    %v969 = vmax.f32 %v931, 0.0
    %v970 = vmax.f32 %v936, 0.0
    %v971 = vmax.f32 %v941, 0.0
    %v972 = vmax.f32 %v946, 0.0
    %v973 = vmax.f32 %v951, 0.0
    %v974 = vmax.f32 %v956, 0.0
    %975 = vst.msk [vmem:[#allocation3] sm:$0xff] %vm179, %v959
    %976 = vst.msk [vmem:[#allocation3 + $0x10] sm:$0xff] %vm179, %v960
    %977 = vst.msk [vmem:[#allocation3 + $0x20] sm:$0xff] %vm179, %v961
    %978 = vst.msk [vmem:[#allocation3 + $0x30] sm:$0xff] %vm179, %v962
    %979 = vst.msk [vmem:[#allocation3 + $0x40] sm:$0xff] %vm179, %v963
    %980 = vst.msk [vmem:[#allocation3 + $0x50] sm:$0xff] %vm179, %v964
    %981 = vst.msk [vmem:[#allocation3 + $0x60] sm:$0xff] %vm179, %v965
    %982 = vst.msk [vmem:[#allocation3 + $0x70] sm:$0xff] %vm179, %v966
    %983 = vst.msk [vmem:[#allocation3 + $0xa0] sm:$0xff] %vm179, %v967
    %984 = vst.msk [vmem:[#allocation3 + $0xb0] sm:$0xff] %vm179, %v968
    %985 = vst.msk [vmem:[#allocation3 + $0xc0] sm:$0xff] %vm179, %v969
    %986 = vst.msk [vmem:[#allocation3 + $0xd0] sm:$0xff] %vm179, %v970
    %987 = vst.msk [vmem:[#allocation3 + $0xe0] sm:$0xff] %vm179, %v971
    %988 = vst.msk [vmem:[#allocation3 + $0xf0] sm:$0xff] %vm179, %v972
    %989 = vst.msk [vmem:[#allocation3 + $0x100] sm:$0xff] %vm179, %v973
    %990 = vst.msk [vmem:[#allocation3 + $0x110] sm:$0xff] %vm179, %v974
    %v991 = vld [vmem:[#allocation3] sm:$0xff]
    %v992 = vld [vmem:[#allocation3 + $0x10] sm:$0xff]
    %v993 = vld [vmem:[#allocation3 + $0x20] sm:$0xff]
    %v994 = vld [vmem:[#allocation3 + $0x30] sm:$0xff]
    %v995 = vld [vmem:[#allocation3 + $0x40] sm:$0xff]
    %v996 = vld [vmem:[#allocation3 + $0x50] sm:$0xff]
    %v997 = vld [vmem:[#allocation3 + $0x60] sm:$0xff]
    %v998 = vld [vmem:[#allocation3 + $0x70] sm:$0xff]
    %v999 = vld [vmem:[#allocation3 + $0xa0] sm:$0xff]
    %v1000 = vld [vmem:[#allocation3 + $0xb0] sm:$0xff]
    %v1001 = vld [vmem:[#allocation3 + $0xc0] sm:$0xff]
    %v1002 = vld [vmem:[#allocation3 + $0xd0] sm:$0xff]
    %v1003 = vld [vmem:[#allocation3 + $0xe0] sm:$0xff]
    %v1004 = vld [vmem:[#allocation3 + $0xf0] sm:$0xff]
    %v1005 = vld [vmem:[#allocation3 + $0x100] sm:$0xff]
    %v1006 = vld [vmem:[#allocation3 + $0x110] sm:$0xff]
    %1007 = vst.msk [vmem:[#allocation5] sm:$0xff] %vm179, %v991
    %1008 = vst.msk [vmem:[#allocation5 + $0x28] sm:$0xff] %vm179, %v992
    %1009 = vst.msk [vmem:[#allocation5 + $0x50] sm:$0xff] %vm179, %v993
    %1010 = vst.msk [vmem:[#allocation5 + $0x78] sm:$0xff] %vm179, %v994
    %1011 = vst.msk [vmem:[#allocation5 + $0xa0] sm:$0xff] %vm179, %v995
    %1012 = vst.msk [vmem:[#allocation5 + $0xc8] sm:$0xff] %vm179, %v996
    %1013 = vst.msk [vmem:[#allocation5 + $0xf0] sm:$0xff] %vm179, %v997
    %1014 = vst.msk [vmem:[#allocation5 + $0x118] sm:$0xff] %vm179, %v998
    %1015 = vst.msk [vmem:[#allocation5 + $0x140] sm:$0xff] %vm179, %v999
    %1016 = vst.msk [vmem:[#allocation5 + $0x168] sm:$0xff] %vm179, %v1000
    %1017 = vst.msk [vmem:[#allocation5 + $0x190] sm:$0xff] %vm179, %v1001
    %1018 = vst.msk [vmem:[#allocation5 + $0x1b8] sm:$0xff] %vm179, %v1002
    %1019 = vst.msk [vmem:[#allocation5 + $0x1e0] sm:$0xff] %vm179, %v1003
    %1020 = vst.msk [vmem:[#allocation5 + $0x208] sm:$0xff] %vm179, %v1004
    %1021 = vst.msk [vmem:[#allocation5 + $0x230] sm:$0xff] %vm179, %v1005
    %1022 = vst.msk [vmem:[#allocation5 + $0x258] sm:$0xff] %vm179, %v1006
    %v1023 = vld [vmem:[#allocation3 + $0x1] sm:$0xff]
    %v1024 = vld [vmem:[#allocation3 + $0x11] sm:$0xff]
    %v1025 = vld [vmem:[#allocation3 + $0x21] sm:$0xff]
    %v1026 = vld [vmem:[#allocation3 + $0x31] sm:$0xff]
    %v1027 = vld [vmem:[#allocation3 + $0x41] sm:$0xff]
    %v1028 = vld [vmem:[#allocation3 + $0x51] sm:$0xff]
    %v1029 = vld [vmem:[#allocation3 + $0x61] sm:$0xff]
    %v1030 = vld [vmem:[#allocation3 + $0x71] sm:$0xff]
    %v1031 = vld [vmem:[#allocation3 + $0xa1] sm:$0xff]
    %v1032 = vld [vmem:[#allocation3 + $0xb1] sm:$0xff]
    %v1033 = vld [vmem:[#allocation3 + $0xc1] sm:$0xff]
    %v1034 = vld [vmem:[#allocation3 + $0xd1] sm:$0xff]
    %v1035 = vld [vmem:[#allocation3 + $0xe1] sm:$0xff]
    %v1036 = vld [vmem:[#allocation3 + $0xf1] sm:$0xff]
    %v1037 = vld [vmem:[#allocation3 + $0x101] sm:$0xff]
    %v1038 = vld [vmem:[#allocation3 + $0x111] sm:$0xff]
    %1055 = vrot.lane.b32.xlu0 %v1023, 64
    %v1056 = vpop.permute.xlu0 %1055
    %1057 = vrot.lane.b32.xlu0 %v1024, 64
    %v1058 = vpop.permute.xlu0 %1057
    %1059 = vrot.lane.b32.xlu0 %v1025, 64
    %v1060 = vpop.permute.xlu0 %1059
    %1061 = vrot.lane.b32.xlu0 %v1026, 64
    %v1062 = vpop.permute.xlu0 %1061
    %1063 = vrot.lane.b32.xlu0 %v1027, 64
    %v1064 = vpop.permute.xlu0 %1063
    %1065 = vrot.lane.b32.xlu0 %v1028, 64
    %v1066 = vpop.permute.xlu0 %1065
    %1067 = vrot.lane.b32.xlu0 %v1029, 64
    %v1068 = vpop.permute.xlu0 %1067
    %1069 = vrot.lane.b32.xlu0 %v1030, 64
    %v1070 = vpop.permute.xlu0 %1069
    %1071 = vrot.lane.b32.xlu0 %v1031, 64
    %v1072 = vpop.permute.xlu0 %1071
    %1073 = vrot.lane.b32.xlu0 %v1032, 64
    %v1074 = vpop.permute.xlu0 %1073
    %1075 = vrot.lane.b32.xlu0 %v1033, 64
    %v1076 = vpop.permute.xlu0 %1075
    %1077 = vrot.lane.b32.xlu0 %v1034, 64
    %v1078 = vpop.permute.xlu0 %1077
    %1079 = vrot.lane.b32.xlu0 %v1035, 64
    %v1080 = vpop.permute.xlu0 %1079
    %1081 = vrot.lane.b32.xlu0 %v1036, 64
    %v1082 = vpop.permute.xlu0 %1081
    %1083 = vrot.lane.b32.xlu0 %v1037, 64
    %v1084 = vpop.permute.xlu0 %1083
    %1085 = vrot.lane.b32.xlu0 %v1038, 64
    %v1086 = vpop.permute.xlu0 %1085
    %vm1103 = vcmask 1048064
    %1104 = vst.msk [vmem:[#allocation5] sm:$0xff] %vm1103, %v1056
    %1105 = vst.msk [vmem:[#allocation5 + $0x28] sm:$0xff] %vm1103, %v1058
    %1106 = vst.msk [vmem:[#allocation5 + $0x50] sm:$0xff] %vm1103, %v1060
    %1107 = vst.msk [vmem:[#allocation5 + $0x78] sm:$0xff] %vm1103, %v1062
    %1108 = vst.msk [vmem:[#allocation5 + $0xa0] sm:$0xff] %vm1103, %v1064
    %1109 = vst.msk [vmem:[#allocation5 + $0xc8] sm:$0xff] %vm1103, %v1066
    %1110 = vst.msk [vmem:[#allocation5 + $0xf0] sm:$0xff] %vm1103, %v1068
    %1111 = vst.msk [vmem:[#allocation5 + $0x118] sm:$0xff] %vm1103, %v1070
    %1112 = vst.msk [vmem:[#allocation5 + $0x140] sm:$0xff] %vm1103, %v1072
    %1113 = vst.msk [vmem:[#allocation5 + $0x168] sm:$0xff] %vm1103, %v1074
    %1114 = vst.msk [vmem:[#allocation5 + $0x190] sm:$0xff] %vm1103, %v1076
    %1115 = vst.msk [vmem:[#allocation5 + $0x1b8] sm:$0xff] %vm1103, %v1078
    %1116 = vst.msk [vmem:[#allocation5 + $0x1e0] sm:$0xff] %vm1103, %v1080
    %1117 = vst.msk [vmem:[#allocation5 + $0x208] sm:$0xff] %vm1103, %v1082
    %1118 = vst.msk [vmem:[#allocation5 + $0x230] sm:$0xff] %vm1103, %v1084
    %1119 = vst.msk [vmem:[#allocation5 + $0x258] sm:$0xff] %vm1103, %v1086
    %v1120 = vld [vmem:[#allocation3 + $0x2] sm:$0xff]
    %v1121 = vld [vmem:[#allocation3 + $0x12] sm:$0xff]
    %v1122 = vld [vmem:[#allocation3 + $0x22] sm:$0xff]
    %v1123 = vld [vmem:[#allocation3 + $0x32] sm:$0xff]
    %v1124 = vld [vmem:[#allocation3 + $0x42] sm:$0xff]
    %v1125 = vld [vmem:[#allocation3 + $0x52] sm:$0xff]
    %v1126 = vld [vmem:[#allocation3 + $0x62] sm:$0xff]
    %v1127 = vld [vmem:[#allocation3 + $0x72] sm:$0xff]
    %v1128 = vld [vmem:[#allocation3 + $0xa2] sm:$0xff]
    %v1129 = vld [vmem:[#allocation3 + $0xb2] sm:$0xff]
    %v1130 = vld [vmem:[#allocation3 + $0xc2] sm:$0xff]
    %v1131 = vld [vmem:[#allocation3 + $0xd2] sm:$0xff]
    %v1132 = vld [vmem:[#allocation3 + $0xe2] sm:$0xff]
    %v1133 = vld [vmem:[#allocation3 + $0xf2] sm:$0xff]
    %v1134 = vld [vmem:[#allocation3 + $0x102] sm:$0xff]
    %v1135 = vld [vmem:[#allocation3 + $0x112] sm:$0xff]
    %1136 = vst.msk [vmem:[#allocation5 + $0x8] sm:$0xff] %vm179, %v1120
    %1137 = vst.msk [vmem:[#allocation5 + $0x30] sm:$0xff] %vm179, %v1121
    %1138 = vst.msk [vmem:[#allocation5 + $0x58] sm:$0xff] %vm179, %v1122
    %1139 = vst.msk [vmem:[#allocation5 + $0x80] sm:$0xff] %vm179, %v1123
    %1140 = vst.msk [vmem:[#allocation5 + $0xa8] sm:$0xff] %vm179, %v1124
    %1141 = vst.msk [vmem:[#allocation5 + $0xd0] sm:$0xff] %vm179, %v1125
    %1142 = vst.msk [vmem:[#allocation5 + $0xf8] sm:$0xff] %vm179, %v1126
    %1143 = vst.msk [vmem:[#allocation5 + $0x120] sm:$0xff] %vm179, %v1127
    %1144 = vst.msk [vmem:[#allocation5 + $0x148] sm:$0xff] %vm179, %v1128
    %1145 = vst.msk [vmem:[#allocation5 + $0x170] sm:$0xff] %vm179, %v1129
    %1146 = vst.msk [vmem:[#allocation5 + $0x198] sm:$0xff] %vm179, %v1130
    %1147 = vst.msk [vmem:[#allocation5 + $0x1c0] sm:$0xff] %vm179, %v1131
    %1148 = vst.msk [vmem:[#allocation5 + $0x1e8] sm:$0xff] %vm179, %v1132
    %1149 = vst.msk [vmem:[#allocation5 + $0x210] sm:$0xff] %vm179, %v1133
    %1150 = vst.msk [vmem:[#allocation5 + $0x238] sm:$0xff] %vm179, %v1134
    %1151 = vst.msk [vmem:[#allocation5 + $0x260] sm:$0xff] %vm179, %v1135
    %s1152 = scalar_lea.vmem [#allocation3], 16
    %v1153 = vld [vmem:[%s1152] sm:$0xff]
    %v1154 = vld [vmem:[%s1152 + $0x10] sm:$0xff]
    %v1155 = vld [vmem:[%s1152 + $0x20] sm:$0xff]
    %v1156 = vld [vmem:[%s1152 + $0x30] sm:$0xff]
    %v1157 = vld [vmem:[%s1152 + $0x40] sm:$0xff]
    %v1158 = vld [vmem:[%s1152 + $0x50] sm:$0xff]
    %v1159 = vld [vmem:[%s1152 + $0x60] sm:$0xff]
    %v1160 = vld [vmem:[%s1152 + $0x70] sm:$0xff]
    %v1161 = vld [vmem:[%s1152 + $0xa0] sm:$0xff]
    %v1162 = vld [vmem:[%s1152 + $0xb0] sm:$0xff]
    %v1163 = vld [vmem:[%s1152 + $0xc0] sm:$0xff]
    %v1164 = vld [vmem:[%s1152 + $0xd0] sm:$0xff]
    %v1165 = vld [vmem:[%s1152 + $0xe0] sm:$0xff]
    %v1166 = vld [vmem:[%s1152 + $0xf0] sm:$0xff]
    %v1167 = vld [vmem:[%s1152 + $0x100] sm:$0xff]
    %v1168 = vld [vmem:[%s1152 + $0x110] sm:$0xff]
    %1185 = vrot.lane.b32.xlu0 %v1153, 64
    %v1186 = vpop.permute.xlu0 %1185
    %1187 = vrot.lane.b32.xlu0 %v1154, 64
    %v1188 = vpop.permute.xlu0 %1187
    %1189 = vrot.lane.b32.xlu0 %v1155, 64
    %v1190 = vpop.permute.xlu0 %1189
    %1191 = vrot.lane.b32.xlu0 %v1156, 64
    %v1192 = vpop.permute.xlu0 %1191
    %1193 = vrot.lane.b32.xlu0 %v1157, 64
    %v1194 = vpop.permute.xlu0 %1193
    %1195 = vrot.lane.b32.xlu0 %v1158, 64
    %v1196 = vpop.permute.xlu0 %1195
    %1197 = vrot.lane.b32.xlu0 %v1159, 64
    %v1198 = vpop.permute.xlu0 %1197
    %1199 = vrot.lane.b32.xlu0 %v1160, 64
    %v1200 = vpop.permute.xlu0 %1199
    %1201 = vrot.lane.b32.xlu0 %v1161, 64
    %v1202 = vpop.permute.xlu0 %1201
    %1203 = vrot.lane.b32.xlu0 %v1162, 64
    %v1204 = vpop.permute.xlu0 %1203
    %1205 = vrot.lane.b32.xlu0 %v1163, 64
    %v1206 = vpop.permute.xlu0 %1205
    %1207 = vrot.lane.b32.xlu0 %v1164, 64
    %v1208 = vpop.permute.xlu0 %1207
    %1209 = vrot.lane.b32.xlu0 %v1165, 64
    %v1210 = vpop.permute.xlu0 %1209
    %1211 = vrot.lane.b32.xlu0 %v1166, 64
    %v1212 = vpop.permute.xlu0 %1211
    %1213 = vrot.lane.b32.xlu0 %v1167, 64
    %v1214 = vpop.permute.xlu0 %1213
    %1215 = vrot.lane.b32.xlu0 %v1168, 64
    %v1216 = vpop.permute.xlu0 %1215
    %1233 = vst.msk [vmem:[#allocation5 + $0x8] sm:$0xff] %vm1103, %v1186
    %1234 = vst.msk [vmem:[#allocation5 + $0x30] sm:$0xff] %vm1103, %v1188
    %1235 = vst.msk [vmem:[#allocation5 + $0x58] sm:$0xff] %vm1103, %v1190
    %1236 = vst.msk [vmem:[#allocation5 + $0x80] sm:$0xff] %vm1103, %v1192
    %1237 = vst.msk [vmem:[#allocation5 + $0xa8] sm:$0xff] %vm1103, %v1194
    %1238 = vst.msk [vmem:[#allocation5 + $0xd0] sm:$0xff] %vm1103, %v1196
    %1239 = vst.msk [vmem:[#allocation5 + $0xf8] sm:$0xff] %vm1103, %v1198
    %1240 = vst.msk [vmem:[#allocation5 + $0x120] sm:$0xff] %vm1103, %v1200
    %1241 = vst.msk [vmem:[#allocation5 + $0x148] sm:$0xff] %vm1103, %v1202
    %1242 = vst.msk [vmem:[#allocation5 + $0x170] sm:$0xff] %vm1103, %v1204
    %1243 = vst.msk [vmem:[#allocation5 + $0x198] sm:$0xff] %vm1103, %v1206
    %1244 = vst.msk [vmem:[#allocation5 + $0x1c0] sm:$0xff] %vm1103, %v1208
    %1245 = vst.msk [vmem:[#allocation5 + $0x1e8] sm:$0xff] %vm1103, %v1210
    %1246 = vst.msk [vmem:[#allocation5 + $0x210] sm:$0xff] %vm1103, %v1212
    %1247 = vst.msk [vmem:[#allocation5 + $0x238] sm:$0xff] %vm1103, %v1214
    %1248 = vst.msk [vmem:[#allocation5 + $0x260] sm:$0xff] %vm1103, %v1216
    %v1249 = vld [vmem:[%s1152 + $0x1] sm:$0xff]
    %v1250 = vld [vmem:[%s1152 + $0x11] sm:$0xff]
    %v1251 = vld [vmem:[%s1152 + $0x21] sm:$0xff]
    %v1252 = vld [vmem:[%s1152 + $0x31] sm:$0xff]
    %v1253 = vld [vmem:[%s1152 + $0x41] sm:$0xff]
    %v1254 = vld [vmem:[%s1152 + $0x51] sm:$0xff]
    %v1255 = vld [vmem:[%s1152 + $0x61] sm:$0xff]
    %v1256 = vld [vmem:[%s1152 + $0x71] sm:$0xff]
    %v1257 = vld [vmem:[%s1152 + $0xa1] sm:$0xff]
    %v1258 = vld [vmem:[%s1152 + $0xb1] sm:$0xff]
    %v1259 = vld [vmem:[%s1152 + $0xc1] sm:$0xff]
    %v1260 = vld [vmem:[%s1152 + $0xd1] sm:$0xff]
    %v1261 = vld [vmem:[%s1152 + $0xe1] sm:$0xff]
    %v1262 = vld [vmem:[%s1152 + $0xf1] sm:$0xff]
    %v1263 = vld [vmem:[%s1152 + $0x101] sm:$0xff]
    %v1264 = vld [vmem:[%s1152 + $0x111] sm:$0xff]
    %1265 = vst.msk [vmem:[#allocation5 + $0x10] sm:$0xff] %vm179, %v1249
    %1266 = vst.msk [vmem:[#allocation5 + $0x38] sm:$0xff] %vm179, %v1250
    %1267 = vst.msk [vmem:[#allocation5 + $0x60] sm:$0xff] %vm179, %v1251
    %1268 = vst.msk [vmem:[#allocation5 + $0x88] sm:$0xff] %vm179, %v1252
    %1269 = vst.msk [vmem:[#allocation5 + $0xb0] sm:$0xff] %vm179, %v1253
    %1270 = vst.msk [vmem:[#allocation5 + $0xd8] sm:$0xff] %vm179, %v1254
    %1271 = vst.msk [vmem:[#allocation5 + $0x100] sm:$0xff] %vm179, %v1255
    %1272 = vst.msk [vmem:[#allocation5 + $0x128] sm:$0xff] %vm179, %v1256
    %1273 = vst.msk [vmem:[#allocation5 + $0x150] sm:$0xff] %vm179, %v1257
    %1274 = vst.msk [vmem:[#allocation5 + $0x178] sm:$0xff] %vm179, %v1258
    %1275 = vst.msk [vmem:[#allocation5 + $0x1a0] sm:$0xff] %vm179, %v1259
    %1276 = vst.msk [vmem:[#allocation5 + $0x1c8] sm:$0xff] %vm179, %v1260
    %1277 = vst.msk [vmem:[#allocation5 + $0x1f0] sm:$0xff] %vm179, %v1261
    %1278 = vst.msk [vmem:[#allocation5 + $0x218] sm:$0xff] %vm179, %v1262
    %1279 = vst.msk [vmem:[#allocation5 + $0x240] sm:$0xff] %vm179, %v1263
    %1280 = vst.msk [vmem:[#allocation5 + $0x268] sm:$0xff] %vm179, %v1264
    %v1281 = vld [vmem:[%s1152 + $0x2] sm:$0xff]
    %v1282 = vld [vmem:[%s1152 + $0x12] sm:$0xff]
    %v1283 = vld [vmem:[%s1152 + $0x22] sm:$0xff]
    %v1284 = vld [vmem:[%s1152 + $0x32] sm:$0xff]
    %v1285 = vld [vmem:[%s1152 + $0x42] sm:$0xff]
    %v1286 = vld [vmem:[%s1152 + $0x52] sm:$0xff]
    %v1287 = vld [vmem:[%s1152 + $0x62] sm:$0xff]
    %v1288 = vld [vmem:[%s1152 + $0x72] sm:$0xff]
    %v1289 = vld [vmem:[%s1152 + $0xa2] sm:$0xff]
    %v1290 = vld [vmem:[%s1152 + $0xb2] sm:$0xff]
    %v1291 = vld [vmem:[%s1152 + $0xc2] sm:$0xff]
    %v1292 = vld [vmem:[%s1152 + $0xd2] sm:$0xff]
    %v1293 = vld [vmem:[%s1152 + $0xe2] sm:$0xff]
    %v1294 = vld [vmem:[%s1152 + $0xf2] sm:$0xff]
    %v1295 = vld [vmem:[%s1152 + $0x102] sm:$0xff]
    %v1296 = vld [vmem:[%s1152 + $0x112] sm:$0xff]
    %1313 = vrot.lane.b32.xlu0 %v1281, 64
    %v1314 = vpop.permute.xlu0 %1313
    %1315 = vrot.lane.b32.xlu0 %v1282, 64
    %v1316 = vpop.permute.xlu0 %1315
    %1317 = vrot.lane.b32.xlu0 %v1283, 64
    %v1318 = vpop.permute.xlu0 %1317
    %1319 = vrot.lane.b32.xlu0 %v1284, 64
    %v1320 = vpop.permute.xlu0 %1319
    %1321 = vrot.lane.b32.xlu0 %v1285, 64
    %v1322 = vpop.permute.xlu0 %1321
    %1323 = vrot.lane.b32.xlu0 %v1286, 64
    %v1324 = vpop.permute.xlu0 %1323
    %1325 = vrot.lane.b32.xlu0 %v1287, 64
    %v1326 = vpop.permute.xlu0 %1325
    %1327 = vrot.lane.b32.xlu0 %v1288, 64
    %v1328 = vpop.permute.xlu0 %1327
    %1329 = vrot.lane.b32.xlu0 %v1289, 64
    %v1330 = vpop.permute.xlu0 %1329
    %1331 = vrot.lane.b32.xlu0 %v1290, 64
    %v1332 = vpop.permute.xlu0 %1331
    %1333 = vrot.lane.b32.xlu0 %v1291, 64
    %v1334 = vpop.permute.xlu0 %1333
    %1335 = vrot.lane.b32.xlu0 %v1292, 64
    %v1336 = vpop.permute.xlu0 %1335
    %1337 = vrot.lane.b32.xlu0 %v1293, 64
    %v1338 = vpop.permute.xlu0 %1337
    %1339 = vrot.lane.b32.xlu0 %v1294, 64
    %v1340 = vpop.permute.xlu0 %1339
    %1341 = vrot.lane.b32.xlu0 %v1295, 64
    %v1342 = vpop.permute.xlu0 %1341
    %1343 = vrot.lane.b32.xlu0 %v1296, 64
    %v1344 = vpop.permute.xlu0 %1343
    %1361 = vst.msk [vmem:[#allocation5 + $0x10] sm:$0xff] %vm1103, %v1314
    %1362 = vst.msk [vmem:[#allocation5 + $0x38] sm:$0xff] %vm1103, %v1316
    %1363 = vst.msk [vmem:[#allocation5 + $0x60] sm:$0xff] %vm1103, %v1318
    %1364 = vst.msk [vmem:[#allocation5 + $0x88] sm:$0xff] %vm1103, %v1320
    %1365 = vst.msk [vmem:[#allocation5 + $0xb0] sm:$0xff] %vm1103, %v1322
    %1366 = vst.msk [vmem:[#allocation5 + $0xd8] sm:$0xff] %vm1103, %v1324
    %1367 = vst.msk [vmem:[#allocation5 + $0x100] sm:$0xff] %vm1103, %v1326
    %1368 = vst.msk [vmem:[#allocation5 + $0x128] sm:$0xff] %vm1103, %v1328
    %1369 = vst.msk [vmem:[#allocation5 + $0x150] sm:$0xff] %vm1103, %v1330
    %1370 = vst.msk [vmem:[#allocation5 + $0x178] sm:$0xff] %vm1103, %v1332
    %1371 = vst.msk [vmem:[#allocation5 + $0x1a0] sm:$0xff] %vm1103, %v1334
    %1372 = vst.msk [vmem:[#allocation5 + $0x1c8] sm:$0xff] %vm1103, %v1336
    %1373 = vst.msk [vmem:[#allocation5 + $0x1f0] sm:$0xff] %vm1103, %v1338
    %1374 = vst.msk [vmem:[#allocation5 + $0x218] sm:$0xff] %vm1103, %v1340
    %1375 = vst.msk [vmem:[#allocation5 + $0x240] sm:$0xff] %vm1103, %v1342
    %1376 = vst.msk [vmem:[#allocation5 + $0x268] sm:$0xff] %vm1103, %v1344
    %s1377 = scalar_lea.vmem [#allocation3], 32
    %v1378 = vld [vmem:[%s1377] sm:$0xff]
    %v1379 = vld [vmem:[%s1377 + $0x10] sm:$0xff]
    %v1380 = vld [vmem:[%s1377 + $0x20] sm:$0xff]
    %v1381 = vld [vmem:[%s1377 + $0x30] sm:$0xff]
    %v1382 = vld [vmem:[%s1377 + $0x40] sm:$0xff]
    %v1383 = vld [vmem:[%s1377 + $0x50] sm:$0xff]
    %v1384 = vld [vmem:[%s1377 + $0x60] sm:$0xff]
    %v1385 = vld [vmem:[%s1377 + $0x70] sm:$0xff]
    %v1386 = vld [vmem:[%s1377 + $0xa0] sm:$0xff]
    %v1387 = vld [vmem:[%s1377 + $0xb0] sm:$0xff]
    %v1388 = vld [vmem:[%s1377 + $0xc0] sm:$0xff]
    %v1389 = vld [vmem:[%s1377 + $0xd0] sm:$0xff]
    %v1390 = vld [vmem:[%s1377 + $0xe0] sm:$0xff]
    %v1391 = vld [vmem:[%s1377 + $0xf0] sm:$0xff]
    %v1392 = vld [vmem:[%s1377 + $0x100] sm:$0xff]
    %v1393 = vld [vmem:[%s1377 + $0x110] sm:$0xff]
    %1394 = vst.msk [vmem:[#allocation5 + $0x18] sm:$0xff] %vm179, %v1378
    %1395 = vst.msk [vmem:[#allocation5 + $0x40] sm:$0xff] %vm179, %v1379
    %1396 = vst.msk [vmem:[#allocation5 + $0x68] sm:$0xff] %vm179, %v1380
    %1397 = vst.msk [vmem:[#allocation5 + $0x90] sm:$0xff] %vm179, %v1381
    %1398 = vst.msk [vmem:[#allocation5 + $0xb8] sm:$0xff] %vm179, %v1382
    %1399 = vst.msk [vmem:[#allocation5 + $0xe0] sm:$0xff] %vm179, %v1383
    %1400 = vst.msk [vmem:[#allocation5 + $0x108] sm:$0xff] %vm179, %v1384
    %1401 = vst.msk [vmem:[#allocation5 + $0x130] sm:$0xff] %vm179, %v1385
    %1402 = vst.msk [vmem:[#allocation5 + $0x158] sm:$0xff] %vm179, %v1386
    %1403 = vst.msk [vmem:[#allocation5 + $0x180] sm:$0xff] %vm179, %v1387
    %1404 = vst.msk [vmem:[#allocation5 + $0x1a8] sm:$0xff] %vm179, %v1388
    %1405 = vst.msk [vmem:[#allocation5 + $0x1d0] sm:$0xff] %vm179, %v1389
    %1406 = vst.msk [vmem:[#allocation5 + $0x1f8] sm:$0xff] %vm179, %v1390
    %1407 = vst.msk [vmem:[#allocation5 + $0x220] sm:$0xff] %vm179, %v1391
    %1408 = vst.msk [vmem:[#allocation5 + $0x248] sm:$0xff] %vm179, %v1392
    %1409 = vst.msk [vmem:[#allocation5 + $0x270] sm:$0xff] %vm179, %v1393
    %v1410 = vld [vmem:[%s1377 + $0x1] sm:$0xff]
    %v1411 = vld [vmem:[%s1377 + $0x11] sm:$0xff]
    %v1412 = vld [vmem:[%s1377 + $0x21] sm:$0xff]
    %v1413 = vld [vmem:[%s1377 + $0x31] sm:$0xff]
    %v1414 = vld [vmem:[%s1377 + $0x41] sm:$0xff]
    %v1415 = vld [vmem:[%s1377 + $0x51] sm:$0xff]
    %v1416 = vld [vmem:[%s1377 + $0x61] sm:$0xff]
    %v1417 = vld [vmem:[%s1377 + $0x71] sm:$0xff]
    %v1418 = vld [vmem:[%s1377 + $0xa1] sm:$0xff]
    %v1419 = vld [vmem:[%s1377 + $0xb1] sm:$0xff]
    %v1420 = vld [vmem:[%s1377 + $0xc1] sm:$0xff]
    %v1421 = vld [vmem:[%s1377 + $0xd1] sm:$0xff]
    %v1422 = vld [vmem:[%s1377 + $0xe1] sm:$0xff]
    %v1423 = vld [vmem:[%s1377 + $0xf1] sm:$0xff]
    %v1424 = vld [vmem:[%s1377 + $0x101] sm:$0xff]
    %v1425 = vld [vmem:[%s1377 + $0x111] sm:$0xff]
    %1442 = vrot.lane.b32.xlu0 %v1410, 64
    %v1443 = vpop.permute.xlu0 %1442
    %1444 = vrot.lane.b32.xlu0 %v1411, 64
    %v1445 = vpop.permute.xlu0 %1444
    %1446 = vrot.lane.b32.xlu0 %v1412, 64
    %v1447 = vpop.permute.xlu0 %1446
    %1448 = vrot.lane.b32.xlu0 %v1413, 64
    %v1449 = vpop.permute.xlu0 %1448
    %1450 = vrot.lane.b32.xlu0 %v1414, 64
    %v1451 = vpop.permute.xlu0 %1450
    %1452 = vrot.lane.b32.xlu0 %v1415, 64
    %v1453 = vpop.permute.xlu0 %1452
    %1454 = vrot.lane.b32.xlu0 %v1416, 64
    %v1455 = vpop.permute.xlu0 %1454
    %1456 = vrot.lane.b32.xlu0 %v1417, 64
    %v1457 = vpop.permute.xlu0 %1456
    %1458 = vrot.lane.b32.xlu0 %v1418, 64
    %v1459 = vpop.permute.xlu0 %1458
    %1460 = vrot.lane.b32.xlu0 %v1419, 64
    %v1461 = vpop.permute.xlu0 %1460
    %1462 = vrot.lane.b32.xlu0 %v1420, 64
    %v1463 = vpop.permute.xlu0 %1462
    %1464 = vrot.lane.b32.xlu0 %v1421, 64
    %v1465 = vpop.permute.xlu0 %1464
    %1466 = vrot.lane.b32.xlu0 %v1422, 64
    %v1467 = vpop.permute.xlu0 %1466
    %1468 = vrot.lane.b32.xlu0 %v1423, 64
    %v1469 = vpop.permute.xlu0 %1468
    %1470 = vrot.lane.b32.xlu0 %v1424, 64
    %v1471 = vpop.permute.xlu0 %1470
    %1472 = vrot.lane.b32.xlu0 %v1425, 64
    %v1473 = vpop.permute.xlu0 %1472
    %1490 = vst.msk [vmem:[#allocation5 + $0x18] sm:$0xff] %vm1103, %v1443
    %1491 = vst.msk [vmem:[#allocation5 + $0x40] sm:$0xff] %vm1103, %v1445
    %1492 = vst.msk [vmem:[#allocation5 + $0x68] sm:$0xff] %vm1103, %v1447
    %1493 = vst.msk [vmem:[#allocation5 + $0x90] sm:$0xff] %vm1103, %v1449
    %1494 = vst.msk [vmem:[#allocation5 + $0xb8] sm:$0xff] %vm1103, %v1451
    %1495 = vst.msk [vmem:[#allocation5 + $0xe0] sm:$0xff] %vm1103, %v1453
    %1496 = vst.msk [vmem:[#allocation5 + $0x108] sm:$0xff] %vm1103, %v1455
    %1497 = vst.msk [vmem:[#allocation5 + $0x130] sm:$0xff] %vm1103, %v1457
    %1498 = vst.msk [vmem:[#allocation5 + $0x158] sm:$0xff] %vm1103, %v1459
    %1499 = vst.msk [vmem:[#allocation5 + $0x180] sm:$0xff] %vm1103, %v1461
    %1500 = vst.msk [vmem:[#allocation5 + $0x1a8] sm:$0xff] %vm1103, %v1463
    %1501 = vst.msk [vmem:[#allocation5 + $0x1d0] sm:$0xff] %vm1103, %v1465
    %1502 = vst.msk [vmem:[#allocation5 + $0x1f8] sm:$0xff] %vm1103, %v1467
    %1503 = vst.msk [vmem:[#allocation5 + $0x220] sm:$0xff] %vm1103, %v1469
    %1504 = vst.msk [vmem:[#allocation5 + $0x248] sm:$0xff] %vm1103, %v1471
    %1505 = vst.msk [vmem:[#allocation5 + $0x270] sm:$0xff] %vm1103, %v1473
    %v1506 = vld [vmem:[%s1377 + $0x2] sm:$0xff]
    %v1507 = vld [vmem:[%s1377 + $0x12] sm:$0xff]
    %v1508 = vld [vmem:[%s1377 + $0x22] sm:$0xff]
    %v1509 = vld [vmem:[%s1377 + $0x32] sm:$0xff]
    %v1510 = vld [vmem:[%s1377 + $0x42] sm:$0xff]
    %v1511 = vld [vmem:[%s1377 + $0x52] sm:$0xff]
    %v1512 = vld [vmem:[%s1377 + $0x62] sm:$0xff]
    %v1513 = vld [vmem:[%s1377 + $0x72] sm:$0xff]
    %v1514 = vld [vmem:[%s1377 + $0xa2] sm:$0xff]
    %v1515 = vld [vmem:[%s1377 + $0xb2] sm:$0xff]
    %v1516 = vld [vmem:[%s1377 + $0xc2] sm:$0xff]
    %v1517 = vld [vmem:[%s1377 + $0xd2] sm:$0xff]
    %v1518 = vld [vmem:[%s1377 + $0xe2] sm:$0xff]
    %v1519 = vld [vmem:[%s1377 + $0xf2] sm:$0xff]
    %v1520 = vld [vmem:[%s1377 + $0x102] sm:$0xff]
    %v1521 = vld [vmem:[%s1377 + $0x112] sm:$0xff]
    %1522 = vst.msk [vmem:[#allocation5 + $0x20] sm:$0xff] %vm179, %v1506
    %1523 = vst.msk [vmem:[#allocation5 + $0x48] sm:$0xff] %vm179, %v1507
    %1524 = vst.msk [vmem:[#allocation5 + $0x70] sm:$0xff] %vm179, %v1508
    %1525 = vst.msk [vmem:[#allocation5 + $0x98] sm:$0xff] %vm179, %v1509
    %1526 = vst.msk [vmem:[#allocation5 + $0xc0] sm:$0xff] %vm179, %v1510
    %1527 = vst.msk [vmem:[#allocation5 + $0xe8] sm:$0xff] %vm179, %v1511
    %1528 = vst.msk [vmem:[#allocation5 + $0x110] sm:$0xff] %vm179, %v1512
    %1529 = vst.msk [vmem:[#allocation5 + $0x138] sm:$0xff] %vm179, %v1513
    %1530 = vst.msk [vmem:[#allocation5 + $0x160] sm:$0xff] %vm179, %v1514
    %1531 = vst.msk [vmem:[#allocation5 + $0x188] sm:$0xff] %vm179, %v1515
    %1532 = vst.msk [vmem:[#allocation5 + $0x1b0] sm:$0xff] %vm179, %v1516
    %1533 = vst.msk [vmem:[#allocation5 + $0x1d8] sm:$0xff] %vm179, %v1517
    %1534 = vst.msk [vmem:[#allocation5 + $0x200] sm:$0xff] %vm179, %v1518
    %1535 = vst.msk [vmem:[#allocation5 + $0x228] sm:$0xff] %vm179, %v1519
    %1536 = vst.msk [vmem:[#allocation5 + $0x250] sm:$0xff] %vm179, %v1520
    %1537 = vst.msk [vmem:[#allocation5 + $0x278] sm:$0xff] %vm179, %v1521
    %v1538 = vld [vmem:[#allocation5] sm:$0xff]
    %v1539 = vld [vmem:[#allocation5 + $0x8] sm:$0xff]
    %v1540 = vld [vmem:[#allocation5 + $0x10] sm:$0xff]
    %v1541 = vld [vmem:[#allocation5 + $0x18] sm:$0xff]
    %v1542 = vld [vmem:[#allocation5 + $0x20] sm:$0xff]
    %v1543 = vld [vmem:[#allocation5 + $0x28] sm:$0xff]
    %v1544 = vld [vmem:[#allocation5 + $0x30] sm:$0xff]
    %v1545 = vld [vmem:[#allocation5 + $0x38] sm:$0xff]
    %v1546 = vld [vmem:[#allocation5 + $0x40] sm:$0xff]
    %v1547 = vld [vmem:[#allocation5 + $0x48] sm:$0xff]
    %v1548 = vld [vmem:[#allocation5 + $0x50] sm:$0xff]
    %v1549 = vld [vmem:[#allocation5 + $0x58] sm:$0xff]
    %v1550 = vld [vmem:[#allocation5 + $0x60] sm:$0xff]
    %v1551 = vld [vmem:[#allocation5 + $0x68] sm:$0xff]
    %v1552 = vld [vmem:[#allocation5 + $0x70] sm:$0xff]
    %v1553 = vld [vmem:[#allocation5 + $0x78] sm:$0xff]
    %v1554 = vld [vmem:[#allocation5 + $0x80] sm:$0xff]
    %v1555 = vld [vmem:[#allocation5 + $0x88] sm:$0xff]
    %v1556 = vld [vmem:[#allocation5 + $0x90] sm:$0xff]
    %v1557 = vld [vmem:[#allocation5 + $0x98] sm:$0xff]
    %v1558 = vld [vmem:[#allocation5 + $0xa0] sm:$0xff]
    %v1559 = vld [vmem:[#allocation5 + $0xa8] sm:$0xff]
    %v1560 = vld [vmem:[#allocation5 + $0xb0] sm:$0xff]
    %v1561 = vld [vmem:[#allocation5 + $0xb8] sm:$0xff]
    %v1562 = vld [vmem:[#allocation5 + $0xc0] sm:$0xff]
    %v1563 = vld [vmem:[#allocation5 + $0xc8] sm:$0xff]
    %v1564 = vld [vmem:[#allocation5 + $0xd0] sm:$0xff]
    %v1565 = vld [vmem:[#allocation5 + $0xd8] sm:$0xff]
    %v1566 = vld [vmem:[#allocation5 + $0xe0] sm:$0xff]
    %v1567 = vld [vmem:[#allocation5 + $0xe8] sm:$0xff]
    %v1568 = vld [vmem:[#allocation5 + $0xf0] sm:$0xff]
    %v1569 = vld [vmem:[#allocation5 + $0xf8] sm:$0xff]
    %v1570 = vld [vmem:[#allocation5 + $0x100] sm:$0xff]
    %v1571 = vld [vmem:[#allocation5 + $0x108] sm:$0xff]
    %v1572 = vld [vmem:[#allocation5 + $0x110] sm:$0xff]
    %v1573 = vld [vmem:[#allocation5 + $0x118] sm:$0xff]
    %v1574 = vld [vmem:[#allocation5 + $0x120] sm:$0xff]
    %v1575 = vld [vmem:[#allocation5 + $0x128] sm:$0xff]
    %v1576 = vld [vmem:[#allocation5 + $0x130] sm:$0xff]
    %v1577 = vld [vmem:[#allocation5 + $0x138] sm:$0xff]
    %v1578 = vld [vmem:[#allocation5 + $0x140] sm:$0xff]
    %v1579 = vld [vmem:[#allocation5 + $0x148] sm:$0xff]
    %v1580 = vld [vmem:[#allocation5 + $0x150] sm:$0xff]
    %v1581 = vld [vmem:[#allocation5 + $0x158] sm:$0xff]
    %v1582 = vld [vmem:[#allocation5 + $0x160] sm:$0xff]
    %v1583 = vld [vmem:[#allocation5 + $0x168] sm:$0xff]
    %v1584 = vld [vmem:[#allocation5 + $0x170] sm:$0xff]
    %v1585 = vld [vmem:[#allocation5 + $0x178] sm:$0xff]
    %v1586 = vld [vmem:[#allocation5 + $0x180] sm:$0xff]
    %v1587 = vld [vmem:[#allocation5 + $0x188] sm:$0xff]
    %v1588 = vld [vmem:[#allocation5 + $0x190] sm:$0xff]
    %v1589 = vld [vmem:[#allocation5 + $0x198] sm:$0xff]
    %v1590 = vld [vmem:[#allocation5 + $0x1a0] sm:$0xff]
    %v1591 = vld [vmem:[#allocation5 + $0x1a8] sm:$0xff]
    %v1592 = vld [vmem:[#allocation5 + $0x1b0] sm:$0xff]
    %v1593 = vld [vmem:[#allocation5 + $0x1b8] sm:$0xff]
    %v1594 = vld [vmem:[#allocation5 + $0x1c0] sm:$0xff]
    %v1595 = vld [vmem:[#allocation5 + $0x1c8] sm:$0xff]
    %v1596 = vld [vmem:[#allocation5 + $0x1d0] sm:$0xff]
    %v1597 = vld [vmem:[#allocation5 + $0x1d8] sm:$0xff]
    %v1598 = vld [vmem:[#allocation5 + $0x1e0] sm:$0xff]
    %v1599 = vld [vmem:[#allocation5 + $0x1e8] sm:$0xff]
    %v1600 = vld [vmem:[#allocation5 + $0x1f0] sm:$0xff]
    %v1601 = vld [vmem:[#allocation5 + $0x1f8] sm:$0xff]
    %v1602 = vld [vmem:[#allocation5 + $0x200] sm:$0xff]
    %v1603 = vld [vmem:[#allocation5 + $0x208] sm:$0xff]
    %v1604 = vld [vmem:[#allocation5 + $0x210] sm:$0xff]
    %v1605 = vld [vmem:[#allocation5 + $0x218] sm:$0xff]
    %v1606 = vld [vmem:[#allocation5 + $0x220] sm:$0xff]
    %v1607 = vld [vmem:[#allocation5 + $0x228] sm:$0xff]
    %v1608 = vld [vmem:[#allocation5 + $0x230] sm:$0xff]
    %v1609 = vld [vmem:[#allocation5 + $0x238] sm:$0xff]
    %v1610 = vld [vmem:[#allocation5 + $0x240] sm:$0xff]
    %v1611 = vld [vmem:[#allocation5 + $0x248] sm:$0xff]
    %v1612 = vld [vmem:[#allocation5 + $0x250] sm:$0xff]
    %v1613 = vld [vmem:[#allocation5 + $0x258] sm:$0xff]
    %v1614 = vld [vmem:[#allocation5 + $0x260] sm:$0xff]
    %v1615 = vld [vmem:[#allocation5 + $0x268] sm:$0xff]
    %v1616 = vld [vmem:[#allocation5 + $0x270] sm:$0xff]
    %v1617 = vld [vmem:[#allocation5 + $0x278] sm:$0xff]
    %v1618 = vld [vmem:[#allocation17] sm:$0xff]
    %v1619 = vld [vmem:[#allocation17 + $0x8] sm:$0xff]
    %v1620 = vld [vmem:[#allocation17 + $0x10] sm:$0xff]
    %v1621 = vld [vmem:[#allocation17 + $0x18] sm:$0xff]
    %v1622 = vld [vmem:[#allocation17 + $0x20] sm:$0xff]
    %v1623 = vld [vmem:[#allocation17 + $0x28] sm:$0xff]
    %v1624 = vld [vmem:[#allocation17 + $0x30] sm:$0xff]
    %v1625 = vld [vmem:[#allocation17 + $0x38] sm:$0xff]
    %v1626 = vld [vmem:[#allocation17 + $0x40] sm:$0xff]
    %v1627 = vld [vmem:[#allocation17 + $0x48] sm:$0xff]
    %v1628 = vld [vmem:[#allocation17 + $0x50] sm:$0xff]
    %v1629 = vld [vmem:[#allocation17 + $0x58] sm:$0xff]
    %v1630 = vld [vmem:[#allocation17 + $0x60] sm:$0xff]
    %v1631 = vld [vmem:[#allocation17 + $0x68] sm:$0xff]
    %v1632 = vld [vmem:[#allocation17 + $0x70] sm:$0xff]
    %v1633 = vld [vmem:[#allocation17 + $0x78] sm:$0xff]
    %v1634 = vld [vmem:[#allocation17 + $0x80] sm:$0xff]
    %v1635 = vld [vmem:[#allocation17 + $0x88] sm:$0xff]
    %v1636 = vld [vmem:[#allocation17 + $0x90] sm:$0xff]
    %v1637 = vld [vmem:[#allocation17 + $0x98] sm:$0xff]
    %v1638 = vld [vmem:[#allocation17 + $0xa0] sm:$0xff]
    %v1639 = vld [vmem:[#allocation17 + $0xa8] sm:$0xff]
    %v1640 = vld [vmem:[#allocation17 + $0xb0] sm:$0xff]
    %v1641 = vld [vmem:[#allocation17 + $0xb8] sm:$0xff]
    %v1642 = vld [vmem:[#allocation17 + $0xc0] sm:$0xff]
    %v1643 = vld [vmem:[#allocation17 + $0xc8] sm:$0xff]
    %v1644 = vld [vmem:[#allocation17 + $0xd0] sm:$0xff]
    %v1645 = vld [vmem:[#allocation17 + $0xd8] sm:$0xff]
    %v1646 = vld [vmem:[#allocation17 + $0xe0] sm:$0xff]
    %v1647 = vld [vmem:[#allocation17 + $0xe8] sm:$0xff]
    %v1648 = vld [vmem:[#allocation17 + $0xf0] sm:$0xff]
    %v1649 = vld [vmem:[#allocation17 + $0xf8] sm:$0xff]
    %v1650 = vld [vmem:[#allocation17 + $0x100] sm:$0xff]
    %v1651 = vld [vmem:[#allocation17 + $0x108] sm:$0xff]
    %v1652 = vld [vmem:[#allocation17 + $0x110] sm:$0xff]
    %v1653 = vld [vmem:[#allocation17 + $0x118] sm:$0xff]
    %v1654 = vld [vmem:[#allocation17 + $0x120] sm:$0xff]
    %v1655 = vld [vmem:[#allocation17 + $0x128] sm:$0xff]
    %v1656 = vld [vmem:[#allocation17 + $0x130] sm:$0xff]
    %v1657 = vld [vmem:[#allocation17 + $0x138] sm:$0xff]
    %v1658 = vld [vmem:[#allocation17 + $0x140] sm:$0xff]
    %v1659 = vld [vmem:[#allocation17 + $0x148] sm:$0xff]
    %v1660 = vld [vmem:[#allocation17 + $0x150] sm:$0xff]
    %v1661 = vld [vmem:[#allocation17 + $0x158] sm:$0xff]
    %v1662 = vld [vmem:[#allocation17 + $0x160] sm:$0xff]
    %v1663 = vld [vmem:[#allocation17 + $0x168] sm:$0xff]
    %v1664 = vld [vmem:[#allocation17 + $0x170] sm:$0xff]
    %v1665 = vld [vmem:[#allocation17 + $0x178] sm:$0xff]
    %v1666 = vld [vmem:[#allocation17 + $0x180] sm:$0xff]
    %v1667 = vld [vmem:[#allocation17 + $0x188] sm:$0xff]
    %v1668 = vld [vmem:[#allocation17 + $0x190] sm:$0xff]
    %v1669 = vld [vmem:[#allocation17 + $0x198] sm:$0xff]
    %v1670 = vld [vmem:[#allocation17 + $0x1a0] sm:$0xff]
    %v1671 = vld [vmem:[#allocation17 + $0x1a8] sm:$0xff]
    %v1672 = vld [vmem:[#allocation17 + $0x1b0] sm:$0xff]
    %v1673 = vld [vmem:[#allocation17 + $0x1b8] sm:$0xff]
    %v1674 = vld [vmem:[#allocation17 + $0x1c0] sm:$0xff]
    %v1675 = vld [vmem:[#allocation17 + $0x1c8] sm:$0xff]
    %v1676 = vld [vmem:[#allocation17 + $0x1d0] sm:$0xff]
    %v1677 = vld [vmem:[#allocation17 + $0x1d8] sm:$0xff]
    %v1678 = vld [vmem:[#allocation17 + $0x1e0] sm:$0xff]
    %v1679 = vld [vmem:[#allocation17 + $0x1e8] sm:$0xff]
    %v1680 = vld [vmem:[#allocation17 + $0x1f0] sm:$0xff]
    %v1681 = vld [vmem:[#allocation17 + $0x1f8] sm:$0xff]
    %v1682 = vld [vmem:[#allocation17 + $0x200] sm:$0xff]
    %v1683 = vld [vmem:[#allocation17 + $0x208] sm:$0xff]
    %v1684 = vld [vmem:[#allocation17 + $0x210] sm:$0xff]
    %v1685 = vld [vmem:[#allocation17 + $0x218] sm:$0xff]
    %v1686 = vld [vmem:[#allocation17 + $0x220] sm:$0xff]
    %v1687 = vld [vmem:[#allocation17 + $0x228] sm:$0xff]
    %v1688 = vld [vmem:[#allocation17 + $0x230] sm:$0xff]
    %v1689 = vld [vmem:[#allocation17 + $0x238] sm:$0xff]
    %v1690 = vld [vmem:[#allocation19] sm:$0x1]
    %v1692 = vlaneseq
    %v1693 = vshrl.u32 %v1692, 7
    %v1694 = vsub.s32 0, %v1693
    %v1695 = vrot.slane %v1690, %v1694
    %v1698 = vsel %vm179, %v1542, 0
    %v1701 = vsel %vm179, %v1547, 0
    %v1704 = vsel %vm179, %v1552, 0
    %v1707 = vsel %vm179, %v1557, 0
    %v1710 = vsel %vm179, %v1562, 0
    %v1713 = vsel %vm179, %v1567, 0
    %v1716 = vsel %vm179, %v1572, 0
    %v1719 = vsel %vm179, %v1577, 0
    %v1722 = vsel %vm179, %v1582, 0
    %v1725 = vsel %vm179, %v1587, 0
    %v1728 = vsel %vm179, %v1592, 0
    %v1731 = vsel %vm179, %v1597, 0
    %v1734 = vsel %vm179, %v1602, 0
    %v1737 = vsel %vm179, %v1607, 0
    %v1740 = vsel %vm179, %v1612, 0
    %v1743 = vsel %vm179, %v1617, 0
    %1745 = vmatprep.subr.mxu0 0.0
    %1746 = vmatpush1.msra.mxu0 %v1618
    %1747 = vmatprep.subr.mxu0 0.0
    %1748 = vmatpush1.msra.mxu0 %v1619
    %1749 = vmatprep.subr.mxu0 0.0
    %1750 = vmatpush1.msra.mxu0 %v1620
    %1751 = vmatprep.subr.mxu0 0.0
    %1752 = vmatpush1.msra.mxu0 %v1621
    %1753 = vmatprep.subr.mxu0 0.0
    %1754 = vmatpush1.msra.mxu0 %v1622
    %1755 = vmatprep.subr.mxu0 0.0
    %1756 = vmatpush1.msra.mxu0 %v1623
    %1757 = vmatprep.subr.mxu0 0.0
    %1758 = vmatpush1.msra.mxu0 %v1624
    %1759 = vmatprep.subr.mxu0 0.0
    %1760 = vmatpush1.msra.mxu0 %v1625
    %1761 = vmatprep.subr.mxu0 0.0
    %1762 = vmatpush1.msra.mxu0 %v1626
    %1763 = vmatprep.subr.mxu0 0.0
    %1764 = vmatpush1.msra.mxu0 %v1627
    %1765 = vmatprep.subr.mxu0 0.0
    %1766 = vmatpush1.msra.mxu0 %v1628
    %1767 = vmatprep.subr.mxu0 0.0
    %1768 = vmatpush1.msra.mxu0 %v1629
    %1769 = vmatprep.subr.mxu0 0.0
    %1770 = vmatpush1.msra.mxu0 %v1630
    %1771 = vmatprep.subr.mxu0 0.0
    %1772 = vmatpush1.msra.mxu0 %v1631
    %1773 = vmatprep.subr.mxu0 0.0
    %1774 = vmatpush1.msra.mxu0 %v1632
    %1775 = vmatprep.subr.mxu0 0.0
    %1776 = vmatpush1.msra.mxu0 %v1633
    %1777 = vmatprep.subr.mxu0 0.0
    %1778 = vmatpush1.msra.mxu0 %v1634
    %1779 = vmatprep.subr.mxu0 0.0
    %1780 = vmatpush1.msra.mxu0 %v1635
    %1781 = vmatprep.subr.mxu0 0.0
    %1782 = vmatpush1.msra.mxu0 %v1636
    %1783 = vmatprep.subr.mxu0 0.0
    %1784 = vmatpush1.msra.mxu0 %v1637
    %1785 = vmatprep.subr.mxu0 0.0
    %1786 = vmatpush1.msra.mxu0 %v1638
    %1787 = vmatprep.subr.mxu0 0.0
    %1788 = vmatpush1.msra.mxu0 %v1639
    %1789 = vmatprep.subr.mxu0 0.0
    %1790 = vmatpush1.msra.mxu0 %v1640
    %1791 = vmatprep.subr.mxu0 0.0
    %1792 = vmatpush1.msra.mxu0 %v1641
    %1793 = vmatprep.subr.mxu0 0.0
    %1794 = vmatpush1.msra.mxu0 %v1642
    %1795 = vmatprep.subr.mxu0 0.0
    %1796 = vmatpush1.msra.mxu0 %v1643
    %1797 = vmatprep.subr.mxu0 0.0
    %1798 = vmatpush1.msra.mxu0 %v1644
    %1799 = vmatprep.subr.mxu0 0.0
    %1800 = vmatpush1.msra.mxu0 %v1645
    %1801 = vmatprep.subr.mxu0 0.0
    %1802 = vmatpush1.msra.mxu0 %v1646
    %1803 = vmatprep.subr.mxu0 0.0
    %1804 = vmatpush1.msra.mxu0 %v1647
    %1805 = vmatprep.subr.mxu0 0.0
    %1806 = vmatpush1.msra.mxu0 %v1648
    %1807 = vmatprep.subr.mxu0 0.0
    %1808 = vmatpush1.msra.mxu0 %v1649
    %1809 = vmatprep.mubr.f32.mxu0 %v1539
    %1810 = vmatmul.mubr.f32.gmra.mrb[0].mxu0 %v1538
    %v1811 = vpop.f32.mrb[0].mxu0
    %v1812 = vadd.f32 %v1695, %v1811
    %v1813 = vpop.f32.mrb[0].mxu0
    %1814 = vmatprep.mubr.f32.mxu0 %v1544
    %1815 = vmatmul.mubr.f32.gmra.mrb[0].mxu0 %v1543
    %v1816 = vpop.f32.mrb[0].mxu0
    %v1817 = vadd.f32 %v1695, %v1816
    %v1818 = vpop.f32.mrb[0].mxu0
    %1819 = vmatprep.mubr.f32.mxu0 %v1549
    %1820 = vmatmul.mubr.f32.gmra.mrb[0].mxu0 %v1548
    %v1821 = vpop.f32.mrb[0].mxu0
    %v1822 = vadd.f32 %v1695, %v1821
    %v1823 = vpop.f32.mrb[0].mxu0
    %1824 = vmatprep.mubr.f32.mxu0 %v1554
    %1825 = vmatmul.mubr.f32.gmra.mrb[0].mxu0 %v1553
    %v1826 = vpop.f32.mrb[0].mxu0
    %v1827 = vadd.f32 %v1695, %v1826
    %v1828 = vpop.f32.mrb[0].mxu0
    %1829 = vmatprep.mubr.f32.mxu0 %v1559
    %1830 = vmatmul.mubr.f32.gmra.mrb[0].mxu0 %v1558
    %v1831 = vpop.f32.mrb[0].mxu0
    %v1832 = vadd.f32 %v1695, %v1831
    %v1833 = vpop.f32.mrb[0].mxu0
    %1834 = vmatprep.mubr.f32.mxu0 %v1564
    %1835 = vmatmul.mubr.f32.gmra.mrb[0].mxu0 %v1563
    %v1836 = vpop.f32.mrb[0].mxu0
    %v1837 = vadd.f32 %v1695, %v1836
    %v1838 = vpop.f32.mrb[0].mxu0
    %1839 = vmatprep.mubr.f32.mxu0 %v1569
    %1840 = vmatmul.mubr.f32.gmra.mrb[0].mxu0 %v1568
    %v1841 = vpop.f32.mrb[0].mxu0
    %v1842 = vadd.f32 %v1695, %v1841
    %v1843 = vpop.f32.mrb[0].mxu0
    %1844 = vmatprep.mubr.f32.mxu0 %v1574
    %1845 = vmatmul.mubr.f32.gmra.mrb[0].mxu0 %v1573
    %v1846 = vpop.f32.mrb[0].mxu0
    %v1847 = vadd.f32 %v1695, %v1846
    %v1848 = vpop.f32.mrb[0].mxu0
    %1849 = vmatprep.mubr.f32.mxu0 %v1579
    %1850 = vmatmul.mubr.f32.gmra.mrb[0].mxu0 %v1578
    %v1851 = vpop.f32.mrb[0].mxu0
    %v1852 = vadd.f32 %v1695, %v1851
    %v1853 = vpop.f32.mrb[0].mxu0
    %1854 = vmatprep.mubr.f32.mxu0 %v1584
    %1855 = vmatmul.mubr.f32.gmra.mrb[0].mxu0 %v1583
    %v1856 = vpop.f32.mrb[0].mxu0
    %v1857 = vadd.f32 %v1695, %v1856
    %v1858 = vpop.f32.mrb[0].mxu0
    %1859 = vmatprep.mubr.f32.mxu0 %v1589
    %1860 = vmatmul.mubr.f32.gmra.mrb[0].mxu0 %v1588
    %v1861 = vpop.f32.mrb[0].mxu0
    %v1862 = vadd.f32 %v1695, %v1861
    %v1863 = vpop.f32.mrb[0].mxu0
    %1864 = vmatprep.mubr.f32.mxu0 %v1594
    %1865 = vmatmul.mubr.f32.gmra.mrb[0].mxu0 %v1593
    %v1866 = vpop.f32.mrb[0].mxu0
    %v1867 = vadd.f32 %v1695, %v1866
    %v1868 = vpop.f32.mrb[0].mxu0
    %1869 = vmatprep.mubr.f32.mxu0 %v1599
    %1870 = vmatmul.mubr.f32.gmra.mrb[0].mxu0 %v1598
    %v1871 = vpop.f32.mrb[0].mxu0
    %v1872 = vadd.f32 %v1695, %v1871
    %v1873 = vpop.f32.mrb[0].mxu0
    %1874 = vmatprep.mubr.f32.mxu0 %v1604
    %1875 = vmatmul.mubr.f32.gmra.mrb[0].mxu0 %v1603
    %v1876 = vpop.f32.mrb[0].mxu0
    %v1877 = vadd.f32 %v1695, %v1876
    %v1878 = vpop.f32.mrb[0].mxu0
    %1879 = vmatprep.mubr.f32.mxu0 %v1609
    %1880 = vmatmul.mubr.f32.gmra.mrb[0].mxu0 %v1608
    %v1881 = vpop.f32.mrb[0].mxu0
    %v1882 = vadd.f32 %v1695, %v1881
    %v1883 = vpop.f32.mrb[0].mxu0
    %1884 = vmatprep.mubr.f32.mxu0 %v1614
    %1885 = vmatmul.mubr.f32.gmra.mrb[0].mxu0 %v1613
    %v1886 = vpop.f32.mrb[0].mxu0
    %v1887 = vadd.f32 %v1695, %v1886
    %v1888 = vpop.f32.mrb[0].mxu0
    %1889 = vdwg.mxu0
    %1890 = vmatprep.subr.mxu0 0.0
    %1891 = vmatpush1.msra.mxu0 %v1650
    %1892 = vmatprep.subr.mxu0 0.0
    %1893 = vmatpush1.msra.mxu0 %v1651
    %1894 = vmatprep.subr.mxu0 0.0
    %1895 = vmatpush1.msra.mxu0 %v1652
    %1896 = vmatprep.subr.mxu0 0.0
    %1897 = vmatpush1.msra.mxu0 %v1653
    %1898 = vmatprep.subr.mxu0 0.0
    %1899 = vmatpush1.msra.mxu0 %v1654
    %1900 = vmatprep.subr.mxu0 0.0
    %1901 = vmatpush1.msra.mxu0 %v1655
    %1902 = vmatprep.subr.mxu0 0.0
    %1903 = vmatpush1.msra.mxu0 %v1656
    %1904 = vmatprep.subr.mxu0 0.0
    %1905 = vmatpush1.msra.mxu0 %v1657
    %1906 = vmatprep.subr.mxu0 0.0
    %1907 = vmatpush1.msra.mxu0 %v1658
    %1908 = vmatprep.subr.mxu0 0.0
    %1909 = vmatpush1.msra.mxu0 %v1659
    %1910 = vmatprep.subr.mxu0 0.0
    %1911 = vmatpush1.msra.mxu0 %v1660
    %1912 = vmatprep.subr.mxu0 0.0
    %1913 = vmatpush1.msra.mxu0 %v1661
    %1914 = vmatprep.subr.mxu0 0.0
    %1915 = vmatpush1.msra.mxu0 %v1662
    %1916 = vmatprep.subr.mxu0 0.0
    %1917 = vmatpush1.msra.mxu0 %v1663
    %1918 = vmatprep.subr.mxu0 0.0
    %1919 = vmatpush1.msra.mxu0 %v1664
    %1920 = vmatprep.subr.mxu0 0.0
    %1921 = vmatpush1.msra.mxu0 %v1665
    %1922 = vmatprep.subr.mxu0 0.0
    %1923 = vmatpush1.msra.mxu0 %v1666
    %1924 = vmatprep.subr.mxu0 0.0
    %1925 = vmatpush1.msra.mxu0 %v1667
    %1926 = vmatprep.subr.mxu0 0.0
    %1927 = vmatpush1.msra.mxu0 %v1668
    %1928 = vmatprep.subr.mxu0 0.0
    %1929 = vmatpush1.msra.mxu0 %v1669
    %1930 = vmatprep.subr.mxu0 0.0
    %1931 = vmatpush1.msra.mxu0 %v1670
    %1932 = vmatprep.subr.mxu0 0.0
    %1933 = vmatpush1.msra.mxu0 %v1671
    %1934 = vmatprep.subr.mxu0 0.0
    %1935 = vmatpush1.msra.mxu0 %v1672
    %1936 = vmatprep.subr.mxu0 0.0
    %1937 = vmatpush1.msra.mxu0 %v1673
    %1938 = vmatprep.subr.mxu0 0.0
    %1939 = vmatpush1.msra.mxu0 %v1674
    %1940 = vmatprep.subr.mxu0 0.0
    %1941 = vmatpush1.msra.mxu0 %v1675
    %1942 = vmatprep.subr.mxu0 0.0
    %1943 = vmatpush1.msra.mxu0 %v1676
    %1944 = vmatprep.subr.mxu0 0.0
    %1945 = vmatpush1.msra.mxu0 %v1677
    %1946 = vmatprep.subr.mxu0 0.0
    %1947 = vmatpush1.msra.mxu0 %v1678
    %1948 = vmatprep.subr.mxu0 0.0
    %1949 = vmatpush1.msra.mxu0 %v1679
    %1950 = vmatprep.subr.mxu0 0.0
    %1951 = vmatpush1.msra.mxu0 %v1680
    %1952 = vmatprep.subr.mxu0 0.0
    %1953 = vmatpush1.msra.mxu0 %v1681
    %1954 = vmatprep.mubr.f32.mxu0 %v1541
    %1955 = vmatmul.mubr.f32.gmra.mrb[0].mxu0 %v1540
    %v1956 = vpop.f32.mrb[0].mxu0
    %v1957 = vadd.f32 %v1812, %v1956
    %v1958 = vpop.f32.mrb[0].mxu0
    %1959 = vmatprep.mubr.f32.mxu0 %v1546
    %1960 = vmatmul.mubr.f32.gmra.mrb[0].mxu0 %v1545
    %v1961 = vpop.f32.mrb[0].mxu0
    %v1962 = vadd.f32 %v1817, %v1961
    %v1963 = vpop.f32.mrb[0].mxu0
    %1964 = vmatprep.mubr.f32.mxu0 %v1551
    %1965 = vmatmul.mubr.f32.gmra.mrb[0].mxu0 %v1550
    %v1966 = vpop.f32.mrb[0].mxu0
    %v1967 = vadd.f32 %v1822, %v1966
    %v1968 = vpop.f32.mrb[0].mxu0
    %1969 = vmatprep.mubr.f32.mxu0 %v1556
    %1970 = vmatmul.mubr.f32.gmra.mrb[0].mxu0 %v1555
    %v1971 = vpop.f32.mrb[0].mxu0
    %v1972 = vadd.f32 %v1827, %v1971
    %v1973 = vpop.f32.mrb[0].mxu0
    %1974 = vmatprep.mubr.f32.mxu0 %v1561
    %1975 = vmatmul.mubr.f32.gmra.mrb[0].mxu0 %v1560
    %v1976 = vpop.f32.mrb[0].mxu0
    %v1977 = vadd.f32 %v1832, %v1976
    %v1978 = vpop.f32.mrb[0].mxu0
    %1979 = vmatprep.mubr.f32.mxu0 %v1566
    %1980 = vmatmul.mubr.f32.gmra.mrb[0].mxu0 %v1565
    %v1981 = vpop.f32.mrb[0].mxu0
    %v1982 = vadd.f32 %v1837, %v1981
    %v1983 = vpop.f32.mrb[0].mxu0
    %1984 = vmatprep.mubr.f32.mxu0 %v1571
    %1985 = vmatmul.mubr.f32.gmra.mrb[0].mxu0 %v1570
    %v1986 = vpop.f32.mrb[0].mxu0
    %v1987 = vadd.f32 %v1842, %v1986
    %v1988 = vpop.f32.mrb[0].mxu0
    %1989 = vmatprep.mubr.f32.mxu0 %v1576
    %1990 = vmatmul.mubr.f32.gmra.mrb[0].mxu0 %v1575
    %v1991 = vpop.f32.mrb[0].mxu0
    %v1992 = vadd.f32 %v1847, %v1991
    %v1993 = vpop.f32.mrb[0].mxu0
    %1994 = vmatprep.mubr.f32.mxu0 %v1581
    %1995 = vmatmul.mubr.f32.gmra.mrb[0].mxu0 %v1580
    %v1996 = vpop.f32.mrb[0].mxu0
    %v1997 = vadd.f32 %v1852, %v1996
    %v1998 = vpop.f32.mrb[0].mxu0
    %1999 = vmatprep.mubr.f32.mxu0 %v1586
    %2000 = vmatmul.mubr.f32.gmra.mrb[0].mxu0 %v1585
    %v2001 = vpop.f32.mrb[0].mxu0
    %v2002 = vadd.f32 %v1857, %v2001
    %v2003 = vpop.f32.mrb[0].mxu0
    %2004 = vmatprep.mubr.f32.mxu0 %v1591
    %2005 = vmatmul.mubr.f32.gmra.mrb[0].mxu0 %v1590
    %v2006 = vpop.f32.mrb[0].mxu0
    %v2007 = vadd.f32 %v1862, %v2006
    %v2008 = vpop.f32.mrb[0].mxu0
    %2009 = vmatprep.mubr.f32.mxu0 %v1596
    %2010 = vmatmul.mubr.f32.gmra.mrb[0].mxu0 %v1595
    %v2011 = vpop.f32.mrb[0].mxu0
    %v2012 = vadd.f32 %v1867, %v2011
    %v2013 = vpop.f32.mrb[0].mxu0
    %2014 = vmatprep.mubr.f32.mxu0 %v1601
    %2015 = vmatmul.mubr.f32.gmra.mrb[0].mxu0 %v1600
    %v2016 = vpop.f32.mrb[0].mxu0
    %v2017 = vadd.f32 %v1872, %v2016
    %v2018 = vpop.f32.mrb[0].mxu0
    %2019 = vmatprep.mubr.f32.mxu0 %v1606
    %2020 = vmatmul.mubr.f32.gmra.mrb[0].mxu0 %v1605
    %v2021 = vpop.f32.mrb[0].mxu0
    %v2022 = vadd.f32 %v1877, %v2021
    %v2023 = vpop.f32.mrb[0].mxu0
    %2024 = vmatprep.mubr.f32.mxu0 %v1611
    %2025 = vmatmul.mubr.f32.gmra.mrb[0].mxu0 %v1610
    %v2026 = vpop.f32.mrb[0].mxu0
    %v2027 = vadd.f32 %v1882, %v2026
    %v2028 = vpop.f32.mrb[0].mxu0
    %2029 = vmatprep.mubr.f32.mxu0 %v1616
    %2030 = vmatmul.mubr.f32.gmra.mrb[0].mxu0 %v1615
    %v2031 = vpop.f32.mrb[0].mxu0
    %v2032 = vadd.f32 %v1887, %v2031
    %v2033 = vpop.f32.mrb[0].mxu0
    %2034 = vdwg.mxu0
    %2035 = vmatprep.subr.mxu0 0.0
    %2036 = vmatpush1.msra.mxu0 %v1682
    %2037 = vmatprep.subr.mxu0 0.0
    %2038 = vmatpush1.msra.mxu0 %v1683
    %2039 = vmatprep.subr.mxu0 0.0
    %2040 = vmatpush1.msra.mxu0 %v1684
    %2041 = vmatprep.subr.mxu0 0.0
    %2042 = vmatpush1.msra.mxu0 %v1685
    %2043 = vmatprep.subr.mxu0 0.0
    %2044 = vmatpush1.msra.mxu0 %v1686
    %2045 = vmatprep.subr.mxu0 0.0
    %2046 = vmatpush1.msra.mxu0 %v1687
    %2047 = vmatprep.subr.mxu0 0.0
    %2048 = vmatpush1.msra.mxu0 %v1688
    %2049 = vmatprep.subr.mxu0 0.0
    %2050 = vmatpush1.msra.mxu0 %v1689
    %2051 = vmatprep.subr.mxu0 0.0
    %2052 = vmatpush1.msra.mxu0 0.0
    %2053 = vmatprep.subr.mxu0 0.0
    %2054 = vmatpush1.msra.mxu0 0.0
    %2055 = vmatprep.subr.mxu0 0.0
    %2056 = vmatpush1.msra.mxu0 0.0
    %2057 = vmatprep.subr.mxu0 0.0
    %2058 = vmatpush1.msra.mxu0 0.0
    %2059 = vmatprep.subr.mxu0 0.0
    %2060 = vmatpush1.msra.mxu0 0.0
    %2061 = vmatprep.subr.mxu0 0.0
    %2062 = vmatpush1.msra.mxu0 0.0
    %2063 = vmatprep.subr.mxu0 0.0
    %2064 = vmatpush1.msra.mxu0 0.0
    %2065 = vmatprep.subr.mxu0 0.0
    %2066 = vmatpush1.msra.mxu0 0.0
    %2067 = vmatprep.subr.mxu0 0.0
    %2068 = vmatpush1.msra.mxu0 0.0
    %2069 = vmatprep.subr.mxu0 0.0
    %2070 = vmatpush1.msra.mxu0 0.0
    %2071 = vmatprep.subr.mxu0 0.0
    %2072 = vmatpush1.msra.mxu0 0.0
    %2073 = vmatprep.subr.mxu0 0.0
    %2074 = vmatpush1.msra.mxu0 0.0
    %2075 = vmatprep.subr.mxu0 0.0
    %2076 = vmatpush1.msra.mxu0 0.0
    %2077 = vmatprep.subr.mxu0 0.0
    %2078 = vmatpush1.msra.mxu0 0.0
    %2079 = vmatprep.subr.mxu0 0.0
    %2080 = vmatpush1.msra.mxu0 0.0
    %2081 = vmatprep.subr.mxu0 0.0
    %2082 = vmatpush1.msra.mxu0 0.0
    %2083 = vmatprep.subr.mxu0 0.0
    %2084 = vmatpush1.msra.mxu0 0.0
    %2085 = vmatprep.subr.mxu0 0.0
    %2086 = vmatpush1.msra.mxu0 0.0
    %2087 = vmatprep.subr.mxu0 0.0
    %2088 = vmatpush1.msra.mxu0 0.0
    %2089 = vmatprep.subr.mxu0 0.0
    %2090 = vmatpush1.msra.mxu0 0.0
    %2091 = vmatprep.subr.mxu0 0.0
    %2092 = vmatpush1.msra.mxu0 0.0
    %2093 = vmatprep.subr.mxu0 0.0
    %2094 = vmatpush1.msra.mxu0 0.0
    %2095 = vmatprep.subr.mxu0 0.0
    %2096 = vmatpush1.msra.mxu0 0.0
    %2097 = vmatprep.subr.mxu0 0.0
    %2098 = vmatpush1.msra.mxu0 0.0
    %2099 = vmatprep.mubr.f32.mxu0 0.0
    %2100 = vmatmul.mubr.f32.gmra.mrb[0].mxu0 %v1698
    %v2101 = vpop.f32.mrb[0].mxu0
    %v2102 = vadd.f32 %v1957, %v2101
    %v2103 = vpop.f32.mrb[0].mxu0
    %2104 = vmatprep.mubr.f32.mxu0 0.0
    %2105 = vmatmul.mubr.f32.gmra.mrb[0].mxu0 %v1701
    %v2106 = vpop.f32.mrb[0].mxu0
    %v2107 = vadd.f32 %v1962, %v2106
    %v2108 = vpop.f32.mrb[0].mxu0
    %2109 = vmatprep.mubr.f32.mxu0 0.0
    %2110 = vmatmul.mubr.f32.gmra.mrb[0].mxu0 %v1704
    %v2111 = vpop.f32.mrb[0].mxu0
    %v2112 = vadd.f32 %v1967, %v2111
    %v2113 = vpop.f32.mrb[0].mxu0
    %2114 = vmatprep.mubr.f32.mxu0 0.0
    %2115 = vmatmul.mubr.f32.gmra.mrb[0].mxu0 %v1707
    %v2116 = vpop.f32.mrb[0].mxu0
    %v2117 = vadd.f32 %v1972, %v2116
    %v2118 = vpop.f32.mrb[0].mxu0
    %2119 = vmatprep.mubr.f32.mxu0 0.0
    %2120 = vmatmul.mubr.f32.gmra.mrb[0].mxu0 %v1710
    %v2121 = vpop.f32.mrb[0].mxu0
    %v2122 = vadd.f32 %v1977, %v2121
    %v2123 = vpop.f32.mrb[0].mxu0
    %2124 = vmatprep.mubr.f32.mxu0 0.0
    %2125 = vmatmul.mubr.f32.gmra.mrb[0].mxu0 %v1713
    %v2126 = vpop.f32.mrb[0].mxu0
    %v2127 = vadd.f32 %v1982, %v2126
    %v2128 = vpop.f32.mrb[0].mxu0
    %2129 = vmatprep.mubr.f32.mxu0 0.0
    %2130 = vmatmul.mubr.f32.gmra.mrb[0].mxu0 %v1716
    %v2131 = vpop.f32.mrb[0].mxu0
    %v2132 = vadd.f32 %v1987, %v2131
    %v2133 = vpop.f32.mrb[0].mxu0
    %2134 = vmatprep.mubr.f32.mxu0 0.0
    %2135 = vmatmul.mubr.f32.gmra.mrb[0].mxu0 %v1719
    %v2136 = vpop.f32.mrb[0].mxu0
    %v2137 = vadd.f32 %v1992, %v2136
    %v2138 = vpop.f32.mrb[0].mxu0
    %2139 = vmatprep.mubr.f32.mxu0 0.0
    %2140 = vmatmul.mubr.f32.gmra.mrb[0].mxu0 %v1722
    %v2141 = vpop.f32.mrb[0].mxu0
    %v2142 = vadd.f32 %v1997, %v2141
    %v2143 = vpop.f32.mrb[0].mxu0
    %2144 = vmatprep.mubr.f32.mxu0 0.0
    %2145 = vmatmul.mubr.f32.gmra.mrb[0].mxu0 %v1725
    %v2146 = vpop.f32.mrb[0].mxu0
    %v2147 = vadd.f32 %v2002, %v2146
    %v2148 = vpop.f32.mrb[0].mxu0
    %2149 = vmatprep.mubr.f32.mxu0 0.0
    %2150 = vmatmul.mubr.f32.gmra.mrb[0].mxu0 %v1728
    %v2151 = vpop.f32.mrb[0].mxu0
    %v2152 = vadd.f32 %v2007, %v2151
    %v2153 = vpop.f32.mrb[0].mxu0
    %2154 = vmatprep.mubr.f32.mxu0 0.0
    %2155 = vmatmul.mubr.f32.gmra.mrb[0].mxu0 %v1731
    %v2156 = vpop.f32.mrb[0].mxu0
    %v2157 = vadd.f32 %v2012, %v2156
    %v2158 = vpop.f32.mrb[0].mxu0
    %2159 = vmatprep.mubr.f32.mxu0 0.0
    %2160 = vmatmul.mubr.f32.gmra.mrb[0].mxu0 %v1734
    %v2161 = vpop.f32.mrb[0].mxu0
    %v2162 = vadd.f32 %v2017, %v2161
    %v2163 = vpop.f32.mrb[0].mxu0
    %2164 = vmatprep.mubr.f32.mxu0 0.0
    %2165 = vmatmul.mubr.f32.gmra.mrb[0].mxu0 %v1737
    %v2166 = vpop.f32.mrb[0].mxu0
    %v2167 = vadd.f32 %v2022, %v2166
    %v2168 = vpop.f32.mrb[0].mxu0
    %2169 = vmatprep.mubr.f32.mxu0 0.0
    %2170 = vmatmul.mubr.f32.gmra.mrb[0].mxu0 %v1740
    %v2171 = vpop.f32.mrb[0].mxu0
    %v2172 = vadd.f32 %v2027, %v2171
    %v2173 = vpop.f32.mrb[0].mxu0
    %2174 = vmatprep.mubr.f32.mxu0 0.0
    %2175 = vmatmul.mubr.f32.gmra.mrb[0].mxu0 %v1743
    %v2176 = vpop.f32.mrb[0].mxu0
    %v2177 = vadd.f32 %v2032, %v2176
    %v2178 = vpop.f32.mrb[0].mxu0
    %2179 = vdwg.mxu0
    %v2180 = vmax.f32 %v2102, 0.0
    %v2181 = vmax.f32 %v2107, 0.0
    %v2182 = vmax.f32 %v2112, 0.0
    %v2183 = vmax.f32 %v2117, 0.0
    %v2184 = vmax.f32 %v2122, 0.0
    %v2185 = vmax.f32 %v2127, 0.0
    %v2186 = vmax.f32 %v2132, 0.0
    %v2187 = vmax.f32 %v2137, 0.0
    %v2188 = vmax.f32 %v2142, 0.0
    %v2189 = vmax.f32 %v2147, 0.0
    %v2190 = vmax.f32 %v2152, 0.0
    %v2191 = vmax.f32 %v2157, 0.0
    %v2192 = vmax.f32 %v2162, 0.0
    %v2193 = vmax.f32 %v2167, 0.0
    %v2194 = vmax.f32 %v2172, 0.0
    %v2195 = vmax.f32 %v2177, 0.0
    %2196 = vst.msk [vmem:[#allocation6] sm:$0xff] %vm179, %v2180
    %2197 = vst.msk [vmem:[#allocation6 + $0x8] sm:$0xff] %vm179, %v2181
    %2198 = vst.msk [vmem:[#allocation6 + $0x10] sm:$0xff] %vm179, %v2182
    %2199 = vst.msk [vmem:[#allocation6 + $0x18] sm:$0xff] %vm179, %v2183
    %2200 = vst.msk [vmem:[#allocation6 + $0x20] sm:$0xff] %vm179, %v2184
    %2201 = vst.msk [vmem:[#allocation6 + $0x28] sm:$0xff] %vm179, %v2185
    %2202 = vst.msk [vmem:[#allocation6 + $0x30] sm:$0xff] %vm179, %v2186
    %2203 = vst.msk [vmem:[#allocation6 + $0x38] sm:$0xff] %vm179, %v2187
    %2204 = vst.msk [vmem:[#allocation6 + $0x40] sm:$0xff] %vm179, %v2188
    %2205 = vst.msk [vmem:[#allocation6 + $0x48] sm:$0xff] %vm179, %v2189
    %2206 = vst.msk [vmem:[#allocation6 + $0x50] sm:$0xff] %vm179, %v2190
    %2207 = vst.msk [vmem:[#allocation6 + $0x58] sm:$0xff] %vm179, %v2191
    %2208 = vst.msk [vmem:[#allocation6 + $0x60] sm:$0xff] %vm179, %v2192
    %2209 = vst.msk [vmem:[#allocation6 + $0x68] sm:$0xff] %vm179, %v2193
    %2210 = vst.msk [vmem:[#allocation6 + $0x70] sm:$0xff] %vm179, %v2194
    %2211 = vst.msk [vmem:[#allocation6 + $0x78] sm:$0xff] %vm179, %v2195
    %v2212 = vld [vmem:[#allocation6] sm:$0x1]
    %v2213 = vld [vmem:[#allocation6 + $0x40] sm:$0x1]
    %v2217 = vunpack.c.l.s4 1983009808
    %v2218 = vunpack.c.0.s8 %v2217
    %v2219 = vlaneseq
    %v2220 = vshrl.u32 %v2219, 7
    %v2221 = vsub.s32 %v2218, %v2220
    %v2222 = vrot.slane %v2212, %v2221
    %v2224 = vunpack.c.l.s4 1983009808
    %v2225 = vunpack.c.0.s8 %v2224
    %v2226 = vlaneseq
    %v2227 = vshrl.u32 %v2226, 7
    %v2228 = vsub.s32 %v2225, %v2227
    %v2229 = vrot.slane %v2213, %v2228
    %vm2230 = vcmask 1044484
    %v2231 = vsel %vm2230, %v2222, %v2222
    %vm2232 = vcmask 1046534
    %v2233 = vsel %vm2232, %v2222, %v2231
    %v2234 = vrot.slane %v2229, 7
    %vm2235 = vcmask 1041409
    %v2236 = vsel %vm2235, %v2234, %v2233
    %vm2237 = vcmask 1043459
    %v2238 = vsel %vm2237, %v2234, %v2236
    %vm2239 = vcmask 1045509
    %v2240 = vsel %vm2239, %v2234, %v2238
    %vm2241 = vcmask 1047559
    %v2242 = vsel %vm2241, %v2234, %v2240
    %vm2244 = vcmask 517120
    %2245 = vst.msk [vmem:[#allocation7] sm:$0x3] %vm2244, %v2242
    %v2246 = vld [vmem:[#allocation6 + $0x1] sm:$0x1]
    %v2247 = vld [vmem:[#allocation6 + $0x41] sm:$0x1]
    %v2251 = vunpack.c.l.s4 1983009808
    %v2252 = vunpack.c.0.s8 %v2251
    %v2253 = vlaneseq
    %v2254 = vshrl.u32 %v2253, 7
    %v2255 = vsub.s32 %v2252, %v2254
    %v2256 = vrot.slane %v2246, %v2255
    %v2258 = vunpack.c.l.s4 1983009808
    %v2259 = vunpack.c.0.s8 %v2258
    %v2260 = vlaneseq
    %v2261 = vshrl.u32 %v2260, 7
    %v2262 = vsub.s32 %v2259, %v2261
    %v2263 = vrot.slane %v2247, %v2262
    %v2264 = vsel %vm2230, %v2256, %v2256
    %v2265 = vsel %vm2232, %v2256, %v2264
    %v2266 = vrot.slane %v2263, 7
    %v2267 = vsel %vm2235, %v2266, %v2265
    %v2268 = vsel %vm2237, %v2266, %v2267
    %v2269 = vsel %vm2239, %v2266, %v2268
    %v2270 = vsel %vm2241, %v2266, %v2269
    %2271 = vrot.lane.b32.xlu0 %v2270, 64
    %v2272 = vpop.permute.xlu0 %2271
    %vm2274 = vcmask 1041920
    %2275 = vst.msk [vmem:[#allocation7] sm:$0x3] %vm2274, %v2272
    %v2276 = vld [vmem:[#allocation6 + $0x2] sm:$0x1]
    %v2277 = vld [vmem:[#allocation6 + $0x42] sm:$0x1]
    %v2281 = vunpack.c.l.s4 1983009808
    %v2282 = vunpack.c.0.s8 %v2281
    %v2283 = vlaneseq
    %v2284 = vshrl.u32 %v2283, 7
    %v2285 = vsub.s32 %v2282, %v2284
    %v2286 = vrot.slane %v2276, %v2285
    %v2288 = vunpack.c.l.s4 1983009808
    %v2289 = vunpack.c.0.s8 %v2288
    %v2290 = vlaneseq
    %v2291 = vshrl.u32 %v2290, 7
    %v2292 = vsub.s32 %v2289, %v2291
    %v2293 = vrot.slane %v2277, %v2292
    %v2294 = vsel %vm2230, %v2286, %v2286
    %v2295 = vsel %vm2232, %v2286, %v2294
    %v2296 = vrot.slane %v2293, 7
    %v2297 = vsel %vm2235, %v2296, %v2295
    %v2298 = vsel %vm2237, %v2296, %v2297
    %v2299 = vsel %vm2239, %v2296, %v2298
    %v2300 = vsel %vm2241, %v2296, %v2299
    %2302 = vst.msk [vmem:[#allocation7 + $0x2] sm:$0x3] %vm2244, %v2300
    %v2303 = vld [vmem:[#allocation6 + $0x3] sm:$0x1]
    %v2304 = vld [vmem:[#allocation6 + $0x43] sm:$0x1]
    %v2308 = vunpack.c.l.s4 1983009808
    %v2309 = vunpack.c.0.s8 %v2308
    %v2310 = vlaneseq
    %v2311 = vshrl.u32 %v2310, 7
    %v2312 = vsub.s32 %v2309, %v2311
    %v2313 = vrot.slane %v2303, %v2312
    %v2315 = vunpack.c.l.s4 1983009808
    %v2316 = vunpack.c.0.s8 %v2315
    %v2317 = vlaneseq
    %v2318 = vshrl.u32 %v2317, 7
    %v2319 = vsub.s32 %v2316, %v2318
    %v2320 = vrot.slane %v2304, %v2319
    %v2321 = vsel %vm2230, %v2313, %v2313
    %v2322 = vsel %vm2232, %v2313, %v2321
    %v2323 = vrot.slane %v2320, 7
    %v2324 = vsel %vm2235, %v2323, %v2322
    %v2325 = vsel %vm2237, %v2323, %v2324
    %v2326 = vsel %vm2239, %v2323, %v2325
    %v2327 = vsel %vm2241, %v2323, %v2326
    %2328 = vrot.lane.b32.xlu0 %v2327, 64
    %v2329 = vpop.permute.xlu0 %2328
    %2331 = vst.msk [vmem:[#allocation7 + $0x2] sm:$0x3] %vm2274, %v2329
    %v2332 = vld [vmem:[#allocation6 + $0x4] sm:$0x1]
    %v2333 = vld [vmem:[#allocation6 + $0x44] sm:$0x1]
    %v2337 = vunpack.c.l.s4 1983009808
    %v2338 = vunpack.c.0.s8 %v2337
    %v2339 = vlaneseq
    %v2340 = vshrl.u32 %v2339, 7
    %v2341 = vsub.s32 %v2338, %v2340
    %v2342 = vrot.slane %v2332, %v2341
    %v2344 = vunpack.c.l.s4 1983009808
    %v2345 = vunpack.c.0.s8 %v2344
    %v2346 = vlaneseq
    %v2347 = vshrl.u32 %v2346, 7
    %v2348 = vsub.s32 %v2345, %v2347
    %v2349 = vrot.slane %v2333, %v2348
    %v2350 = vsel %vm2230, %v2342, %v2342
    %v2351 = vsel %vm2232, %v2342, %v2350
    %v2352 = vrot.slane %v2349, 7
    %v2353 = vsel %vm2235, %v2352, %v2351
    %v2354 = vsel %vm2237, %v2352, %v2353
    %v2355 = vsel %vm2239, %v2352, %v2354
    %v2356 = vsel %vm2241, %v2352, %v2355
    %2358 = vst.msk [vmem:[#allocation7 + $0x4] sm:$0x3] %vm2244, %v2356
    %s2359 = scalar_lea.vmem [#allocation6], 8
    %v2360 = vld [vmem:[%s2359] sm:$0x1]
    %v2361 = vld [vmem:[%s2359 + $0x40] sm:$0x1]
    %v2365 = vunpack.c.l.s4 1983009808
    %v2366 = vunpack.c.0.s8 %v2365
    %v2367 = vlaneseq
    %v2368 = vshrl.u32 %v2367, 7
    %v2369 = vsub.s32 %v2366, %v2368
    %v2370 = vrot.slane %v2360, %v2369
    %v2372 = vunpack.c.l.s4 1983009808
    %v2373 = vunpack.c.0.s8 %v2372
    %v2374 = vlaneseq
    %v2375 = vshrl.u32 %v2374, 7
    %v2376 = vsub.s32 %v2373, %v2375
    %v2377 = vrot.slane %v2361, %v2376
    %v2378 = vsel %vm2230, %v2370, %v2370
    %v2379 = vsel %vm2232, %v2370, %v2378
    %v2380 = vrot.slane %v2377, 7
    %v2381 = vsel %vm2235, %v2380, %v2379
    %v2382 = vsel %vm2237, %v2380, %v2381
    %v2383 = vsel %vm2239, %v2380, %v2382
    %v2384 = vsel %vm2241, %v2380, %v2383
    %2385 = vrot.lane.b32.xlu0 %v2384, 64
    %v2386 = vpop.permute.xlu0 %2385
    %2388 = vst.msk [vmem:[#allocation7 + $0x4] sm:$0x3] %vm2274, %v2386
    %v2389 = vld [vmem:[%s2359 + $0x1] sm:$0x1]
    %v2390 = vld [vmem:[%s2359 + $0x41] sm:$0x1]
    %v2394 = vunpack.c.l.s4 1983009808
    %v2395 = vunpack.c.0.s8 %v2394
    %v2396 = vlaneseq
    %v2397 = vshrl.u32 %v2396, 7
    %v2398 = vsub.s32 %v2395, %v2397
    %v2399 = vrot.slane %v2389, %v2398
    %v2401 = vunpack.c.l.s4 1983009808
    %v2402 = vunpack.c.0.s8 %v2401
    %v2403 = vlaneseq
    %v2404 = vshrl.u32 %v2403, 7
    %v2405 = vsub.s32 %v2402, %v2404
    %v2406 = vrot.slane %v2390, %v2405
    %v2407 = vsel %vm2230, %v2399, %v2399
    %v2408 = vsel %vm2232, %v2399, %v2407
    %v2409 = vrot.slane %v2406, 7
    %v2410 = vsel %vm2235, %v2409, %v2408
    %v2411 = vsel %vm2237, %v2409, %v2410
    %v2412 = vsel %vm2239, %v2409, %v2411
    %v2413 = vsel %vm2241, %v2409, %v2412
    %2415 = vst.msk [vmem:[#allocation7 + $0x6] sm:$0x3] %vm2244, %v2413
    %v2416 = vld [vmem:[%s2359 + $0x2] sm:$0x1]
    %v2417 = vld [vmem:[%s2359 + $0x42] sm:$0x1]
    %v2421 = vunpack.c.l.s4 1983009808
    %v2422 = vunpack.c.0.s8 %v2421
    %v2423 = vlaneseq
    %v2424 = vshrl.u32 %v2423, 7
    %v2425 = vsub.s32 %v2422, %v2424
    %v2426 = vrot.slane %v2416, %v2425
    %v2428 = vunpack.c.l.s4 1983009808
    %v2429 = vunpack.c.0.s8 %v2428
    %v2430 = vlaneseq
    %v2431 = vshrl.u32 %v2430, 7
    %v2432 = vsub.s32 %v2429, %v2431
    %v2433 = vrot.slane %v2417, %v2432
    %v2434 = vsel %vm2230, %v2426, %v2426
    %v2435 = vsel %vm2232, %v2426, %v2434
    %v2436 = vrot.slane %v2433, 7
    %v2437 = vsel %vm2235, %v2436, %v2435
    %v2438 = vsel %vm2237, %v2436, %v2437
    %v2439 = vsel %vm2239, %v2436, %v2438
    %v2440 = vsel %vm2241, %v2436, %v2439
    %2441 = vrot.lane.b32.xlu0 %v2440, 64
    %v2442 = vpop.permute.xlu0 %2441
    %2444 = vst.msk [vmem:[#allocation7 + $0x6] sm:$0x3] %vm2274, %v2442
    %v2445 = vld [vmem:[%s2359 + $0x3] sm:$0x1]
    %v2446 = vld [vmem:[%s2359 + $0x43] sm:$0x1]
    %v2450 = vunpack.c.l.s4 1983009808
    %v2451 = vunpack.c.0.s8 %v2450
    %v2452 = vlaneseq
    %v2453 = vshrl.u32 %v2452, 7
    %v2454 = vsub.s32 %v2451, %v2453
    %v2455 = vrot.slane %v2445, %v2454
    %v2457 = vunpack.c.l.s4 1983009808
    %v2458 = vunpack.c.0.s8 %v2457
    %v2459 = vlaneseq
    %v2460 = vshrl.u32 %v2459, 7
    %v2461 = vsub.s32 %v2458, %v2460
    %v2462 = vrot.slane %v2446, %v2461
    %v2463 = vsel %vm2230, %v2455, %v2455
    %v2464 = vsel %vm2232, %v2455, %v2463
    %v2465 = vrot.slane %v2462, 7
    %v2466 = vsel %vm2235, %v2465, %v2464
    %v2467 = vsel %vm2237, %v2465, %v2466
    %v2468 = vsel %vm2239, %v2465, %v2467
    %v2469 = vsel %vm2241, %v2465, %v2468
    %2471 = vst.msk [vmem:[#allocation7 + $0x8] sm:$0x3] %vm2244, %v2469
    %v2472 = vld [vmem:[%s2359 + $0x4] sm:$0x1]
    %v2473 = vld [vmem:[%s2359 + $0x44] sm:$0x1]
    %v2477 = vunpack.c.l.s4 1983009808
    %v2478 = vunpack.c.0.s8 %v2477
    %v2479 = vlaneseq
    %v2480 = vshrl.u32 %v2479, 7
    %v2481 = vsub.s32 %v2478, %v2480
    %v2482 = vrot.slane %v2472, %v2481
    %v2484 = vunpack.c.l.s4 1983009808
    %v2485 = vunpack.c.0.s8 %v2484
    %v2486 = vlaneseq
    %v2487 = vshrl.u32 %v2486, 7
    %v2488 = vsub.s32 %v2485, %v2487
    %v2489 = vrot.slane %v2473, %v2488
    %v2490 = vsel %vm2230, %v2482, %v2482
    %v2491 = vsel %vm2232, %v2482, %v2490
    %v2492 = vrot.slane %v2489, 7
    %v2493 = vsel %vm2235, %v2492, %v2491
    %v2494 = vsel %vm2237, %v2492, %v2493
    %v2495 = vsel %vm2239, %v2492, %v2494
    %v2496 = vsel %vm2241, %v2492, %v2495
    %2497 = vrot.lane.b32.xlu0 %v2496, 64
    %v2498 = vpop.permute.xlu0 %2497
    %2500 = vst.msk [vmem:[#allocation7 + $0x8] sm:$0x3] %vm2274, %v2498
    %s2501 = scalar_lea.vmem [#allocation6], 16
    %v2502 = vld [vmem:[%s2501] sm:$0x1]
    %v2503 = vld [vmem:[%s2501 + $0x40] sm:$0x1]
    %v2507 = vunpack.c.l.s4 1983009808
    %v2508 = vunpack.c.0.s8 %v2507
    %v2509 = vlaneseq
    %v2510 = vshrl.u32 %v2509, 7
    %v2511 = vsub.s32 %v2508, %v2510
    %v2512 = vrot.slane %v2502, %v2511
    %v2514 = vunpack.c.l.s4 1983009808
    %v2515 = vunpack.c.0.s8 %v2514
    %v2516 = vlaneseq
    %v2517 = vshrl.u32 %v2516, 7
    %v2518 = vsub.s32 %v2515, %v2517
    %v2519 = vrot.slane %v2503, %v2518
    %v2520 = vsel %vm2230, %v2512, %v2512
    %v2521 = vsel %vm2232, %v2512, %v2520
    %v2522 = vrot.slane %v2519, 7
    %v2523 = vsel %vm2235, %v2522, %v2521
    %v2524 = vsel %vm2237, %v2522, %v2523
    %v2525 = vsel %vm2239, %v2522, %v2524
    %v2526 = vsel %vm2241, %v2522, %v2525
    %2528 = vst.msk [vmem:[#allocation7 + $0xa] sm:$0x3] %vm2244, %v2526
    %v2529 = vld [vmem:[%s2501 + $0x1] sm:$0x1]
    %v2530 = vld [vmem:[%s2501 + $0x41] sm:$0x1]
    %v2534 = vunpack.c.l.s4 1983009808
    %v2535 = vunpack.c.0.s8 %v2534
    %v2536 = vlaneseq
    %v2537 = vshrl.u32 %v2536, 7
    %v2538 = vsub.s32 %v2535, %v2537
    %v2539 = vrot.slane %v2529, %v2538
    %v2541 = vunpack.c.l.s4 1983009808
    %v2542 = vunpack.c.0.s8 %v2541
    %v2543 = vlaneseq
    %v2544 = vshrl.u32 %v2543, 7
    %v2545 = vsub.s32 %v2542, %v2544
    %v2546 = vrot.slane %v2530, %v2545
    %v2547 = vsel %vm2230, %v2539, %v2539
    %v2548 = vsel %vm2232, %v2539, %v2547
    %v2549 = vrot.slane %v2546, 7
    %v2550 = vsel %vm2235, %v2549, %v2548
    %v2551 = vsel %vm2237, %v2549, %v2550
    %v2552 = vsel %vm2239, %v2549, %v2551
    %v2553 = vsel %vm2241, %v2549, %v2552
    %2554 = vrot.lane.b32.xlu0 %v2553, 64
    %v2555 = vpop.permute.xlu0 %2554
    %2557 = vst.msk [vmem:[#allocation7 + $0xa] sm:$0x3] %vm2274, %v2555
    %v2558 = vld [vmem:[%s2501 + $0x2] sm:$0x1]
    %v2559 = vld [vmem:[%s2501 + $0x42] sm:$0x1]
    %v2563 = vunpack.c.l.s4 1983009808
    %v2564 = vunpack.c.0.s8 %v2563
    %v2565 = vlaneseq
    %v2566 = vshrl.u32 %v2565, 7
    %v2567 = vsub.s32 %v2564, %v2566
    %v2568 = vrot.slane %v2558, %v2567
    %v2570 = vunpack.c.l.s4 1983009808
    %v2571 = vunpack.c.0.s8 %v2570
    %v2572 = vlaneseq
    %v2573 = vshrl.u32 %v2572, 7
    %v2574 = vsub.s32 %v2571, %v2573
    %v2575 = vrot.slane %v2559, %v2574
    %v2576 = vsel %vm2230, %v2568, %v2568
    %v2577 = vsel %vm2232, %v2568, %v2576
    %v2578 = vrot.slane %v2575, 7
    %v2579 = vsel %vm2235, %v2578, %v2577
    %v2580 = vsel %vm2237, %v2578, %v2579
    %v2581 = vsel %vm2239, %v2578, %v2580
    %v2582 = vsel %vm2241, %v2578, %v2581
    %2584 = vst.msk [vmem:[#allocation7 + $0xc] sm:$0x3] %vm2244, %v2582
    %v2585 = vld [vmem:[%s2501 + $0x3] sm:$0x1]
    %v2586 = vld [vmem:[%s2501 + $0x43] sm:$0x1]
    %v2590 = vunpack.c.l.s4 1983009808
    %v2591 = vunpack.c.0.s8 %v2590
    %v2592 = vlaneseq
    %v2593 = vshrl.u32 %v2592, 7
    %v2594 = vsub.s32 %v2591, %v2593
    %v2595 = vrot.slane %v2585, %v2594
    %v2597 = vunpack.c.l.s4 1983009808
    %v2598 = vunpack.c.0.s8 %v2597
    %v2599 = vlaneseq
    %v2600 = vshrl.u32 %v2599, 7
    %v2601 = vsub.s32 %v2598, %v2600
    %v2602 = vrot.slane %v2586, %v2601
    %v2603 = vsel %vm2230, %v2595, %v2595
    %v2604 = vsel %vm2232, %v2595, %v2603
    %v2605 = vrot.slane %v2602, 7
    %v2606 = vsel %vm2235, %v2605, %v2604
    %v2607 = vsel %vm2237, %v2605, %v2606
    %v2608 = vsel %vm2239, %v2605, %v2607
    %v2609 = vsel %vm2241, %v2605, %v2608
    %2610 = vrot.lane.b32.xlu0 %v2609, 64
    %v2611 = vpop.permute.xlu0 %2610
    %2613 = vst.msk [vmem:[#allocation7 + $0xc] sm:$0x3] %vm2274, %v2611
    %v2614 = vld [vmem:[%s2501 + $0x4] sm:$0x1]
    %v2615 = vld [vmem:[%s2501 + $0x44] sm:$0x1]
    %v2619 = vunpack.c.l.s4 1983009808
    %v2620 = vunpack.c.0.s8 %v2619
    %v2621 = vlaneseq
    %v2622 = vshrl.u32 %v2621, 7
    %v2623 = vsub.s32 %v2620, %v2622
    %v2624 = vrot.slane %v2614, %v2623
    %v2626 = vunpack.c.l.s4 1983009808
    %v2627 = vunpack.c.0.s8 %v2626
    %v2628 = vlaneseq
    %v2629 = vshrl.u32 %v2628, 7
    %v2630 = vsub.s32 %v2627, %v2629
    %v2631 = vrot.slane %v2615, %v2630
    %v2632 = vsel %vm2230, %v2624, %v2624
    %v2633 = vsel %vm2232, %v2624, %v2632
    %v2634 = vrot.slane %v2631, 7
    %v2635 = vsel %vm2235, %v2634, %v2633
    %v2636 = vsel %vm2237, %v2634, %v2635
    %v2637 = vsel %vm2239, %v2634, %v2636
    %v2638 = vsel %vm2241, %v2634, %v2637
    %2640 = vst.msk [vmem:[#allocation7 + $0xe] sm:$0x3] %vm2244, %v2638
    %s2641 = scalar_lea.vmem [#allocation6], 24
    %v2642 = vld [vmem:[%s2641] sm:$0x1]
    %v2643 = vld [vmem:[%s2641 + $0x40] sm:$0x1]
    %v2647 = vunpack.c.l.s4 1983009808
    %v2648 = vunpack.c.0.s8 %v2647
    %v2649 = vlaneseq
    %v2650 = vshrl.u32 %v2649, 7
    %v2651 = vsub.s32 %v2648, %v2650
    %v2652 = vrot.slane %v2642, %v2651
    %v2654 = vunpack.c.l.s4 1983009808
    %v2655 = vunpack.c.0.s8 %v2654
    %v2656 = vlaneseq
    %v2657 = vshrl.u32 %v2656, 7
    %v2658 = vsub.s32 %v2655, %v2657
    %v2659 = vrot.slane %v2643, %v2658
    %v2660 = vsel %vm2230, %v2652, %v2652
    %v2661 = vsel %vm2232, %v2652, %v2660
    %v2662 = vrot.slane %v2659, 7
    %v2663 = vsel %vm2235, %v2662, %v2661
    %v2664 = vsel %vm2237, %v2662, %v2663
    %v2665 = vsel %vm2239, %v2662, %v2664
    %v2666 = vsel %vm2241, %v2662, %v2665
    %2667 = vrot.lane.b32.xlu0 %v2666, 64
    %v2668 = vpop.permute.xlu0 %2667
    %2670 = vst.msk [vmem:[#allocation7 + $0xe] sm:$0x3] %vm2274, %v2668
    %v2671 = vld [vmem:[%s2641 + $0x1] sm:$0x1]
    %v2672 = vld [vmem:[%s2641 + $0x41] sm:$0x1]
    %v2676 = vunpack.c.l.s4 1983009808
    %v2677 = vunpack.c.0.s8 %v2676
    %v2678 = vlaneseq
    %v2679 = vshrl.u32 %v2678, 7
    %v2680 = vsub.s32 %v2677, %v2679
    %v2681 = vrot.slane %v2671, %v2680
    %v2683 = vunpack.c.l.s4 1983009808
    %v2684 = vunpack.c.0.s8 %v2683
    %v2685 = vlaneseq
    %v2686 = vshrl.u32 %v2685, 7
    %v2687 = vsub.s32 %v2684, %v2686
    %v2688 = vrot.slane %v2672, %v2687
    %v2689 = vsel %vm2230, %v2681, %v2681
    %v2690 = vsel %vm2232, %v2681, %v2689
    %v2691 = vrot.slane %v2688, 7
    %v2692 = vsel %vm2235, %v2691, %v2690
    %v2693 = vsel %vm2237, %v2691, %v2692
    %v2694 = vsel %vm2239, %v2691, %v2693
    %v2695 = vsel %vm2241, %v2691, %v2694
    %2697 = vst.msk [vmem:[#allocation7 + $0x10] sm:$0x3] %vm2244, %v2695
    %v2698 = vld [vmem:[%s2641 + $0x2] sm:$0x1]
    %v2699 = vld [vmem:[%s2641 + $0x42] sm:$0x1]
    %v2703 = vunpack.c.l.s4 1983009808
    %v2704 = vunpack.c.0.s8 %v2703
    %v2705 = vlaneseq
    %v2706 = vshrl.u32 %v2705, 7
    %v2707 = vsub.s32 %v2704, %v2706
    %v2708 = vrot.slane %v2698, %v2707
    %v2710 = vunpack.c.l.s4 1983009808
    %v2711 = vunpack.c.0.s8 %v2710
    %v2712 = vlaneseq
    %v2713 = vshrl.u32 %v2712, 7
    %v2714 = vsub.s32 %v2711, %v2713
    %v2715 = vrot.slane %v2699, %v2714
    %v2716 = vsel %vm2230, %v2708, %v2708
    %v2717 = vsel %vm2232, %v2708, %v2716
    %v2718 = vrot.slane %v2715, 7
    %v2719 = vsel %vm2235, %v2718, %v2717
    %v2720 = vsel %vm2237, %v2718, %v2719
    %v2721 = vsel %vm2239, %v2718, %v2720
    %v2722 = vsel %vm2241, %v2718, %v2721
    %2723 = vrot.lane.b32.xlu0 %v2722, 64
    %v2724 = vpop.permute.xlu0 %2723
    %2726 = vst.msk [vmem:[#allocation7 + $0x10] sm:$0x3] %vm2274, %v2724
    %v2727 = vld [vmem:[%s2641 + $0x3] sm:$0x1]
    %v2728 = vld [vmem:[%s2641 + $0x43] sm:$0x1]
    %v2732 = vunpack.c.l.s4 1983009808
    %v2733 = vunpack.c.0.s8 %v2732
    %v2734 = vlaneseq
    %v2735 = vshrl.u32 %v2734, 7
    %v2736 = vsub.s32 %v2733, %v2735
    %v2737 = vrot.slane %v2727, %v2736
    %v2739 = vunpack.c.l.s4 1983009808
    %v2740 = vunpack.c.0.s8 %v2739
    %v2741 = vlaneseq
    %v2742 = vshrl.u32 %v2741, 7
    %v2743 = vsub.s32 %v2740, %v2742
    %v2744 = vrot.slane %v2728, %v2743
    %v2745 = vsel %vm2230, %v2737, %v2737
    %v2746 = vsel %vm2232, %v2737, %v2745
    %v2747 = vrot.slane %v2744, 7
    %v2748 = vsel %vm2235, %v2747, %v2746
    %v2749 = vsel %vm2237, %v2747, %v2748
    %v2750 = vsel %vm2239, %v2747, %v2749
    %v2751 = vsel %vm2241, %v2747, %v2750
    %2753 = vst.msk [vmem:[#allocation7 + $0x12] sm:$0x3] %vm2244, %v2751
    %v2754 = vld [vmem:[%s2641 + $0x4] sm:$0x1]
    %v2755 = vld [vmem:[%s2641 + $0x44] sm:$0x1]
    %v2759 = vunpack.c.l.s4 1983009808
    %v2760 = vunpack.c.0.s8 %v2759
    %v2761 = vlaneseq
    %v2762 = vshrl.u32 %v2761, 7
    %v2763 = vsub.s32 %v2760, %v2762
    %v2764 = vrot.slane %v2754, %v2763
    %v2766 = vunpack.c.l.s4 1983009808
    %v2767 = vunpack.c.0.s8 %v2766
    %v2768 = vlaneseq
    %v2769 = vshrl.u32 %v2768, 7
    %v2770 = vsub.s32 %v2767, %v2769
    %v2771 = vrot.slane %v2755, %v2770
    %v2772 = vsel %vm2230, %v2764, %v2764
    %v2773 = vsel %vm2232, %v2764, %v2772
    %v2774 = vrot.slane %v2771, 7
    %v2775 = vsel %vm2235, %v2774, %v2773
    %v2776 = vsel %vm2237, %v2774, %v2775
    %v2777 = vsel %vm2239, %v2774, %v2776
    %v2778 = vsel %vm2241, %v2774, %v2777
    %2779 = vrot.lane.b32.xlu0 %v2778, 64
    %v2780 = vpop.permute.xlu0 %2779
    %2782 = vst.msk [vmem:[#allocation7 + $0x12] sm:$0x3] %vm2274, %v2780
    %s2783 = scalar_lea.vmem [#allocation6], 32
    %v2784 = vld [vmem:[%s2783] sm:$0x1]
    %v2785 = vld [vmem:[%s2783 + $0x40] sm:$0x1]
    %v2789 = vunpack.c.l.s4 1983009808
    %v2790 = vunpack.c.0.s8 %v2789
    %v2791 = vlaneseq
    %v2792 = vshrl.u32 %v2791, 7
    %v2793 = vsub.s32 %v2790, %v2792
    %v2794 = vrot.slane %v2784, %v2793
    %v2796 = vunpack.c.l.s4 1983009808
    %v2797 = vunpack.c.0.s8 %v2796
    %v2798 = vlaneseq
    %v2799 = vshrl.u32 %v2798, 7
    %v2800 = vsub.s32 %v2797, %v2799
    %v2801 = vrot.slane %v2785, %v2800
    %v2802 = vsel %vm2230, %v2794, %v2794
    %v2803 = vsel %vm2232, %v2794, %v2802
    %v2804 = vrot.slane %v2801, 7
    %v2805 = vsel %vm2235, %v2804, %v2803
    %v2806 = vsel %vm2237, %v2804, %v2805
    %v2807 = vsel %vm2239, %v2804, %v2806
    %v2808 = vsel %vm2241, %v2804, %v2807
    %2810 = vst.msk [vmem:[#allocation7 + $0x14] sm:$0x3] %vm2244, %v2808
    %v2811 = vld [vmem:[%s2783 + $0x1] sm:$0x1]
    %v2812 = vld [vmem:[%s2783 + $0x41] sm:$0x1]
    %v2816 = vunpack.c.l.s4 1983009808
    %v2817 = vunpack.c.0.s8 %v2816
    %v2818 = vlaneseq
    %v2819 = vshrl.u32 %v2818, 7
    %v2820 = vsub.s32 %v2817, %v2819
    %v2821 = vrot.slane %v2811, %v2820
    %v2823 = vunpack.c.l.s4 1983009808
    %v2824 = vunpack.c.0.s8 %v2823
    %v2825 = vlaneseq
    %v2826 = vshrl.u32 %v2825, 7
    %v2827 = vsub.s32 %v2824, %v2826
    %v2828 = vrot.slane %v2812, %v2827
    %v2829 = vsel %vm2230, %v2821, %v2821
    %v2830 = vsel %vm2232, %v2821, %v2829
    %v2831 = vrot.slane %v2828, 7
    %v2832 = vsel %vm2235, %v2831, %v2830
    %v2833 = vsel %vm2237, %v2831, %v2832
    %v2834 = vsel %vm2239, %v2831, %v2833
    %v2835 = vsel %vm2241, %v2831, %v2834
    %2836 = vrot.lane.b32.xlu0 %v2835, 64
    %v2837 = vpop.permute.xlu0 %2836
    %2839 = vst.msk [vmem:[#allocation7 + $0x14] sm:$0x3] %vm2274, %v2837
    %v2840 = vld [vmem:[%s2783 + $0x2] sm:$0x1]
    %v2841 = vld [vmem:[%s2783 + $0x42] sm:$0x1]
    %v2845 = vunpack.c.l.s4 1983009808
    %v2846 = vunpack.c.0.s8 %v2845
    %v2847 = vlaneseq
    %v2848 = vshrl.u32 %v2847, 7
    %v2849 = vsub.s32 %v2846, %v2848
    %v2850 = vrot.slane %v2840, %v2849
    %v2852 = vunpack.c.l.s4 1983009808
    %v2853 = vunpack.c.0.s8 %v2852
    %v2854 = vlaneseq
    %v2855 = vshrl.u32 %v2854, 7
    %v2856 = vsub.s32 %v2853, %v2855
    %v2857 = vrot.slane %v2841, %v2856
    %v2858 = vsel %vm2230, %v2850, %v2850
    %v2859 = vsel %vm2232, %v2850, %v2858
    %v2860 = vrot.slane %v2857, 7
    %v2861 = vsel %vm2235, %v2860, %v2859
    %v2862 = vsel %vm2237, %v2860, %v2861
    %v2863 = vsel %vm2239, %v2860, %v2862
    %v2864 = vsel %vm2241, %v2860, %v2863
    %2866 = vst.msk [vmem:[#allocation7 + $0x16] sm:$0x3] %vm2244, %v2864
    %v2867 = vld [vmem:[%s2783 + $0x3] sm:$0x1]
    %v2868 = vld [vmem:[%s2783 + $0x43] sm:$0x1]
    %v2872 = vunpack.c.l.s4 1983009808
    %v2873 = vunpack.c.0.s8 %v2872
    %v2874 = vlaneseq
    %v2875 = vshrl.u32 %v2874, 7
    %v2876 = vsub.s32 %v2873, %v2875
    %v2877 = vrot.slane %v2867, %v2876
    %v2879 = vunpack.c.l.s4 1983009808
    %v2880 = vunpack.c.0.s8 %v2879
    %v2881 = vlaneseq
    %v2882 = vshrl.u32 %v2881, 7
    %v2883 = vsub.s32 %v2880, %v2882
    %v2884 = vrot.slane %v2868, %v2883
    %v2885 = vsel %vm2230, %v2877, %v2877
    %v2886 = vsel %vm2232, %v2877, %v2885
    %v2887 = vrot.slane %v2884, 7
    %v2888 = vsel %vm2235, %v2887, %v2886
    %v2889 = vsel %vm2237, %v2887, %v2888
    %v2890 = vsel %vm2239, %v2887, %v2889
    %v2891 = vsel %vm2241, %v2887, %v2890
    %2892 = vrot.lane.b32.xlu0 %v2891, 64
    %v2893 = vpop.permute.xlu0 %2892
    %2895 = vst.msk [vmem:[#allocation7 + $0x16] sm:$0x3] %vm2274, %v2893
    %v2896 = vld [vmem:[%s2783 + $0x4] sm:$0x1]
    %v2897 = vld [vmem:[%s2783 + $0x44] sm:$0x1]
    %v2901 = vunpack.c.l.s4 1983009808
    %v2902 = vunpack.c.0.s8 %v2901
    %v2903 = vlaneseq
    %v2904 = vshrl.u32 %v2903, 7
    %v2905 = vsub.s32 %v2902, %v2904
    %v2906 = vrot.slane %v2896, %v2905
    %v2908 = vunpack.c.l.s4 1983009808
    %v2909 = vunpack.c.0.s8 %v2908
    %v2910 = vlaneseq
    %v2911 = vshrl.u32 %v2910, 7
    %v2912 = vsub.s32 %v2909, %v2911
    %v2913 = vrot.slane %v2897, %v2912
    %v2914 = vsel %vm2230, %v2906, %v2906
    %v2915 = vsel %vm2232, %v2906, %v2914
    %v2916 = vrot.slane %v2913, 7
    %v2917 = vsel %vm2235, %v2916, %v2915
    %v2918 = vsel %vm2237, %v2916, %v2917
    %v2919 = vsel %vm2239, %v2916, %v2918
    %v2920 = vsel %vm2241, %v2916, %v2919
    %2922 = vst.msk [vmem:[#allocation7 + $0x18] sm:$0x3] %vm2244, %v2920
    %v2923 = vld [vmem:[#allocation7] sm:$0xff]
    %v2924 = vld [vmem:[#allocation7 + $0x8] sm:$0xff]
    %v2925 = vld [vmem:[#allocation7 + $0x10] sm:$0xff]
    %v2926 = vld [vmem:[#allocation7 + $0x18] sm:$0x3]
    %v2931 = vcombine.high %v2923, %v2923
    %v2933 = vunpack.c.l.s4 1983009808
    %v2934 = vunpack.c.0.s8 %v2933
    %v2935 = vlaneseq
    %v2936 = vshrl.u32 %v2935, 7
    %v2937 = vsub.s32 %v2934, %v2936
    %v2938 = vrot.slane %v2923, %v2937
    %v2940 = vunpack.c.l.s4 1983009808
    %v2941 = vunpack.c.0.s8 %v2940
    %v2942 = vlaneseq
    %v2943 = vshrl.u32 %v2942, 7
    %v2944 = vsub.s32 %v2941, %v2943
    %v2945 = vrot.slane %v2931, %v2944
    %v2946 = vcombine.high %v2938, %v2938
    %v2947 = vcombine.high %v2945, %v2945
    %v2948 = vcombine.high %v2924, %v2924
    %v2950 = vunpack.c.l.s4 1983009808
    %v2951 = vunpack.c.0.s8 %v2950
    %v2952 = vlaneseq
    %v2953 = vshrl.u32 %v2952, 7
    %v2954 = vsub.s32 %v2951, %v2953
    %v2955 = vrot.slane %v2924, %v2954
    %v2957 = vunpack.c.l.s4 1983009808
    %v2958 = vunpack.c.0.s8 %v2957
    %v2959 = vlaneseq
    %v2960 = vshrl.u32 %v2959, 7
    %v2961 = vsub.s32 %v2958, %v2960
    %v2962 = vrot.slane %v2948, %v2961
    %v2963 = vcombine.high %v2955, %v2955
    %v2964 = vcombine.high %v2962, %v2962
    %v2965 = vcombine.high %v2925, %v2925
    %v2967 = vunpack.c.l.s4 1983009808
    %v2968 = vunpack.c.0.s8 %v2967
    %v2969 = vlaneseq
    %v2970 = vshrl.u32 %v2969, 7
    %v2971 = vsub.s32 %v2968, %v2970
    %v2972 = vrot.slane %v2925, %v2971
    %v2974 = vunpack.c.l.s4 1983009808
    %v2975 = vunpack.c.0.s8 %v2974
    %v2976 = vlaneseq
    %v2977 = vshrl.u32 %v2976, 7
    %v2978 = vsub.s32 %v2975, %v2977
    %v2979 = vrot.slane %v2965, %v2978
    %v2980 = vcombine.high %v2972, %v2972
    %v2981 = vcombine.high %v2979, %v2979
    %v2983 = vunpack.c.l.s4 1983009808
    %v2984 = vunpack.c.0.s8 %v2983
    %v2985 = vlaneseq
    %v2986 = vshrl.u32 %v2985, 7
    %v2987 = vsub.s32 %v2984, %v2986
    %v2988 = vrot.slane %v2926, %v2987
    %v3002 = vpack.c.bf16 %v2938, %v2938
    %v3003 = vpack.c.bf16 %v2946, %v2946
    %v3004 = vpack.c.bf16 %v2945, %v2945
    %v3005 = vpack.c.bf16 %v2947, %v2947
    %v3006 = vpack.c.bf16 %v2955, %v2955
    %v3007 = vpack.c.bf16 %v2963, %v2963
    %v3008 = vpack.c.bf16 %v2962, %v2962
    %v3009 = vpack.c.bf16 %v2964, %v2964
    %v3010 = vpack.c.bf16 %v2972, %v2972
    %v3011 = vpack.c.bf16 %v2980, %v2980
    %v3012 = vpack.c.bf16 %v2979, %v2979
    %v3013 = vpack.c.bf16 %v2981, %v2981
    %v3014 = vpack.c.bf16 %v2988, %v2988
    %v3015 = vld [vmem:[#allocation20] sm:$0xff]
    %v3016 = vld [vmem:[#allocation20 + $0x8] sm:$0xff]
    %v3017 = vld [vmem:[#allocation20 + $0x10] sm:$0xff]
    %v3018 = vld [vmem:[#allocation20 + $0x18] sm:$0xff]
    %v3019 = vld [vmem:[#allocation20 + $0x20] sm:$0xff]
    %v3020 = vld [vmem:[#allocation20 + $0x28] sm:$0xff]
    %v3021 = vld [vmem:[#allocation20 + $0x30] sm:$0xff]
    %v3022 = vld [vmem:[#allocation20 + $0x38] sm:$0xff]
    %v3023 = vld [vmem:[#allocation20 + $0x40] sm:$0xff]
    %v3024 = vld [vmem:[#allocation20 + $0x48] sm:$0xff]
    %v3025 = vld [vmem:[#allocation20 + $0x50] sm:$0xff]
    %v3026 = vld [vmem:[#allocation20 + $0x58] sm:$0xff]
    %v3027 = vld [vmem:[#allocation20 + $0x60] sm:$0xff]
    %v3028 = vld [vmem:[#allocation20 + $0x68] sm:$0xff]
    %v3029 = vld [vmem:[#allocation20 + $0x70] sm:$0xff]
    %v3030 = vld [vmem:[#allocation20 + $0x78] sm:$0xff]
    %v3031 = vld [vmem:[#allocation20 + $0x80] sm:$0xff]
    %v3032 = vld [vmem:[#allocation20 + $0x88] sm:$0xff]
    %v3033 = vld [vmem:[#allocation20 + $0x90] sm:$0xff]
    %v3034 = vld [vmem:[#allocation20 + $0x98] sm:$0xff]
    %v3035 = vld [vmem:[#allocation20 + $0xa0] sm:$0xff]
    %v3036 = vld [vmem:[#allocation20 + $0xa8] sm:$0xff]
    %v3037 = vld [vmem:[#allocation20 + $0xb0] sm:$0xff]
    %v3038 = vld [vmem:[#allocation20 + $0xb8] sm:$0xff]
    %v3039 = vld [vmem:[#allocation20 + $0xc0] sm:$0xff]
    %v3040 = vld [vmem:[#allocation20 + $0xc8] sm:$0xff]
    %v3041 = vld [vmem:[#allocation20 + $0xd0] sm:$0xff]
    %v3042 = vld [vmem:[#allocation20 + $0xd8] sm:$0xff]
    %v3043 = vld [vmem:[#allocation20 + $0xe0] sm:$0xff]
    %v3044 = vld [vmem:[#allocation20 + $0xe8] sm:$0xff]
    %v3045 = vld [vmem:[#allocation20 + $0xf0] sm:$0xff]
    %v3046 = vld [vmem:[#allocation20 + $0xf8] sm:$0xff]
    %v3047 = vld [vmem:[#allocation20 + $0x100] sm:$0xff]
    %v3048 = vld [vmem:[#allocation20 + $0x108] sm:$0xff]
    %v3049 = vld [vmem:[#allocation20 + $0x110] sm:$0xff]
    %v3050 = vld [vmem:[#allocation20 + $0x118] sm:$0xff]
    %v3051 = vld [vmem:[#allocation20 + $0x120] sm:$0xff]
    %v3052 = vld [vmem:[#allocation20 + $0x128] sm:$0xff]
    %v3053 = vld [vmem:[#allocation20 + $0x130] sm:$0xff]
    %v3054 = vld [vmem:[#allocation20 + $0x138] sm:$0xff]
    %v3055 = vld [vmem:[#allocation20 + $0x140] sm:$0xff]
    %v3056 = vld [vmem:[#allocation20 + $0x148] sm:$0xff]
    %v3057 = vld [vmem:[#allocation20 + $0x150] sm:$0xff]
    %v3058 = vld [vmem:[#allocation20 + $0x158] sm:$0xff]
    %v3059 = vld [vmem:[#allocation20 + $0x160] sm:$0xff]
    %v3060 = vld [vmem:[#allocation20 + $0x168] sm:$0xff]
    %v3061 = vld [vmem:[#allocation20 + $0x170] sm:$0xff]
    %v3062 = vld [vmem:[#allocation20 + $0x178] sm:$0xff]
    %v3063 = vld [vmem:[#allocation20 + $0x180] sm:$0xff]
    %v3064 = vld [vmem:[#allocation20 + $0x188] sm:$0xff]
    %v3065 = vld [vmem:[#allocation20 + $0x190] sm:$0xff]
    %v3066 = vld [vmem:[#allocation20 + $0x198] sm:$0xff]
    %v3067 = vld [vmem:[#allocation20 + $0x1a0] sm:$0xff]
    %v3068 = vld [vmem:[#allocation20 + $0x1a8] sm:$0xff]
    %v3069 = vld [vmem:[#allocation20 + $0x1b0] sm:$0xff]
    %v3070 = vld [vmem:[#allocation20 + $0x1b8] sm:$0xff]
    %v3071 = vld [vmem:[#allocation20 + $0x1c0] sm:$0xff]
    %v3072 = vld [vmem:[#allocation20 + $0x1c8] sm:$0xff]
    %v3073 = vld [vmem:[#allocation20 + $0x1d0] sm:$0xff]
    %v3074 = vld [vmem:[#allocation20 + $0x1d8] sm:$0xff]
    %v3075 = vld [vmem:[#allocation20 + $0x1e0] sm:$0xff]
    %v3076 = vld [vmem:[#allocation20 + $0x1e8] sm:$0xff]
    %v3077 = vld [vmem:[#allocation20 + $0x1f0] sm:$0xff]
    %v3078 = vld [vmem:[#allocation20 + $0x1f8] sm:$0xff]
    %v3079 = vld [vmem:[#allocation20 + $0x200] sm:$0xff]
    %v3080 = vld [vmem:[#allocation20 + $0x208] sm:$0xff]
    %v3081 = vld [vmem:[#allocation20 + $0x210] sm:$0xff]
    %v3082 = vld [vmem:[#allocation20 + $0x218] sm:$0xff]
    %v3083 = vld [vmem:[#allocation20 + $0x220] sm:$0xff]
    %v3084 = vld [vmem:[#allocation20 + $0x228] sm:$0xff]
    %v3085 = vld [vmem:[#allocation20 + $0x230] sm:$0xff]
    %v3086 = vld [vmem:[#allocation20 + $0x238] sm:$0xff]
    %v3087 = vld [vmem:[#allocation20 + $0x240] sm:$0xff]
    %v3088 = vld [vmem:[#allocation20 + $0x248] sm:$0xff]
    %v3089 = vld [vmem:[#allocation20 + $0x250] sm:$0xff]
    %v3090 = vld [vmem:[#allocation20 + $0x258] sm:$0xff]
    %v3091 = vld [vmem:[#allocation20 + $0x260] sm:$0xff]
    %v3092 = vld [vmem:[#allocation20 + $0x268] sm:$0xff]
    %v3093 = vld [vmem:[#allocation20 + $0x270] sm:$0xff]
    %v3094 = vld [vmem:[#allocation20 + $0x278] sm:$0xff]
    %v3095 = vld [vmem:[#allocation20 + $0x280] sm:$0xff]
    %v3096 = vld [vmem:[#allocation20 + $0x288] sm:$0xff]
    %v3097 = vld [vmem:[#allocation20 + $0x290] sm:$0xff]
    %v3098 = vld [vmem:[#allocation20 + $0x298] sm:$0xff]
    %v3099 = vld [vmem:[#allocation20 + $0x2a0] sm:$0xff]
    %v3100 = vld [vmem:[#allocation20 + $0x2a8] sm:$0xff]
    %v3101 = vld [vmem:[#allocation20 + $0x2b0] sm:$0xff]
    %v3102 = vld [vmem:[#allocation20 + $0x2b8] sm:$0xff]
    %v3103 = vld [vmem:[#allocation20 + $0x2c0] sm:$0xff]
    %v3104 = vld [vmem:[#allocation20 + $0x2c8] sm:$0xff]
    %v3105 = vld [vmem:[#allocation20 + $0x2d0] sm:$0xff]
    %v3106 = vld [vmem:[#allocation20 + $0x2d8] sm:$0xff]
    %v3107 = vld [vmem:[#allocation20 + $0x2e0] sm:$0xff]
    %v3108 = vld [vmem:[#allocation20 + $0x2e8] sm:$0xff]
    %v3109 = vld [vmem:[#allocation20 + $0x2f0] sm:$0xff]
    %v3110 = vld [vmem:[#allocation20 + $0x2f8] sm:$0xff]
    %v3111 = vld [vmem:[#allocation20 + $0x300] sm:$0xff]
    %v3112 = vld [vmem:[#allocation20 + $0x308] sm:$0xff]
    %v3113 = vld [vmem:[#allocation20 + $0x310] sm:$0xff]
    %v3114 = vld [vmem:[#allocation20 + $0x318] sm:$0xff]
    %v3115 = vld [vmem:[#allocation20 + $0x320] sm:$0xff]
    %v3116 = vld [vmem:[#allocation20 + $0x328] sm:$0xff]
    %v3117 = vld [vmem:[#allocation20 + $0x330] sm:$0xff]
    %v3118 = vld [vmem:[#allocation20 + $0x338] sm:$0xff]
    %v3119 = vld [vmem:[#allocation20 + $0x340] sm:$0xff]
    %v3120 = vld [vmem:[#allocation20 + $0x348] sm:$0xff]
    %v3121 = vld [vmem:[#allocation20 + $0x350] sm:$0xff]
    %v3122 = vld [vmem:[#allocation20 + $0x358] sm:$0xff]
    %v3123 = vld [vmem:[#allocation20 + $0x360] sm:$0xff]
    %v3124 = vld [vmem:[#allocation20 + $0x368] sm:$0xff]
    %v3125 = vld [vmem:[#allocation20 + $0x370] sm:$0xff]
    %v3126 = vld [vmem:[#allocation20 + $0x378] sm:$0xff]
    %v3127 = vld [vmem:[#allocation20 + $0x380] sm:$0xff]
    %v3128 = vld [vmem:[#allocation20 + $0x388] sm:$0xff]
    %v3129 = vld [vmem:[#allocation20 + $0x390] sm:$0xff]
    %v3130 = vld [vmem:[#allocation20 + $0x398] sm:$0xff]
    %v3131 = vld [vmem:[#allocation20 + $0x3a0] sm:$0xff]
    %v3132 = vld [vmem:[#allocation20 + $0x3a8] sm:$0xff]
    %v3133 = vld [vmem:[#allocation20 + $0x3b0] sm:$0xff]
    %v3134 = vld [vmem:[#allocation20 + $0x3b8] sm:$0xff]
    %v3135 = vld [vmem:[#allocation20 + $0x3c0] sm:$0xff]
    %v3136 = vld [vmem:[#allocation20 + $0x3c8] sm:$0xff]
    %v3137 = vld [vmem:[#allocation20 + $0x3d0] sm:$0xff]
    %v3138 = vld [vmem:[#allocation20 + $0x3d8] sm:$0xff]
    %v3139 = vld [vmem:[#allocation20 + $0x3e0] sm:$0xff]
    %v3140 = vld [vmem:[#allocation20 + $0x3e8] sm:$0xff]
    %v3141 = vld [vmem:[#allocation20 + $0x3f0] sm:$0xff]
    %v3142 = vld [vmem:[#allocation20 + $0x3f8] sm:$0xff]
    %v3143 = vld [vmem:[#allocation20 + $0x400] sm:$0xff]
    %v3144 = vld [vmem:[#allocation20 + $0x408] sm:$0xff]
    %v3145 = vld [vmem:[#allocation20 + $0x410] sm:$0xff]
    %v3146 = vld [vmem:[#allocation20 + $0x418] sm:$0xff]
    %v3147 = vld [vmem:[#allocation20 + $0x420] sm:$0xff]
    %v3148 = vld [vmem:[#allocation20 + $0x428] sm:$0xff]
    %v3149 = vld [vmem:[#allocation20 + $0x430] sm:$0xff]
    %v3150 = vld [vmem:[#allocation20 + $0x438] sm:$0xff]
    %v3151 = vld [vmem:[#allocation20 + $0x440] sm:$0xff]
    %v3152 = vld [vmem:[#allocation20 + $0x448] sm:$0xff]
    %v3153 = vld [vmem:[#allocation20 + $0x450] sm:$0xff]
    %v3154 = vld [vmem:[#allocation20 + $0x458] sm:$0xff]
    %v3155 = vld [vmem:[#allocation20 + $0x460] sm:$0xff]
    %v3156 = vld [vmem:[#allocation20 + $0x468] sm:$0xff]
    %v3157 = vld [vmem:[#allocation20 + $0x470] sm:$0xff]
    %v3158 = vld [vmem:[#allocation20 + $0x478] sm:$0xff]
    %v3159 = vld [vmem:[#allocation20 + $0x480] sm:$0xff]
    %v3160 = vld [vmem:[#allocation20 + $0x488] sm:$0xff]
    %v3161 = vld [vmem:[#allocation20 + $0x490] sm:$0xff]
    %v3162 = vld [vmem:[#allocation20 + $0x498] sm:$0xff]
    %v3163 = vld [vmem:[#allocation20 + $0x4a0] sm:$0xff]
    %v3164 = vld [vmem:[#allocation20 + $0x4a8] sm:$0xff]
    %v3165 = vld [vmem:[#allocation20 + $0x4b0] sm:$0xff]
    %v3166 = vld [vmem:[#allocation20 + $0x4b8] sm:$0xff]
    %v3167 = vld [vmem:[#allocation20 + $0x4c0] sm:$0xff]
    %v3168 = vld [vmem:[#allocation20 + $0x4c8] sm:$0xff]
    %v3169 = vld [vmem:[#allocation20 + $0x4d0] sm:$0xff]
    %v3170 = vld [vmem:[#allocation20 + $0x4d8] sm:$0xff]
    %v3171 = vld [vmem:[#allocation20 + $0x4e0] sm:$0xff]
    %v3172 = vld [vmem:[#allocation20 + $0x4e8] sm:$0xff]
    %v3173 = vld [vmem:[#allocation20 + $0x4f0] sm:$0xff]
    %v3174 = vld [vmem:[#allocation20 + $0x4f8] sm:$0xff]
    %v3175 = vld [vmem:[#allocation20 + $0x500] sm:$0xff]
    %v3176 = vld [vmem:[#allocation20 + $0x508] sm:$0xff]
    %v3177 = vld [vmem:[#allocation20 + $0x510] sm:$0xff]
    %v3178 = vld [vmem:[#allocation20 + $0x518] sm:$0xff]
    %v3179 = vld [vmem:[#allocation20 + $0x520] sm:$0xff]
    %v3180 = vld [vmem:[#allocation20 + $0x528] sm:$0xff]
    %v3181 = vld [vmem:[#allocation20 + $0x530] sm:$0xff]
    %v3182 = vld [vmem:[#allocation20 + $0x538] sm:$0xff]
    %v3183 = vld [vmem:[#allocation20 + $0x540] sm:$0xff]
    %v3184 = vld [vmem:[#allocation20 + $0x548] sm:$0xff]
    %v3185 = vld [vmem:[#allocation20 + $0x550] sm:$0xff]
    %v3186 = vld [vmem:[#allocation20 + $0x558] sm:$0xff]
    %v3187 = vld [vmem:[#allocation20 + $0x560] sm:$0xff]
    %v3188 = vld [vmem:[#allocation20 + $0x568] sm:$0xff]
    %v3189 = vld [vmem:[#allocation20 + $0x570] sm:$0xff]
    %v3190 = vld [vmem:[#allocation20 + $0x578] sm:$0xff]
    %v3191 = vld [vmem:[#allocation20 + $0x580] sm:$0xff]
    %v3192 = vld [vmem:[#allocation20 + $0x588] sm:$0xff]
    %v3193 = vld [vmem:[#allocation20 + $0x590] sm:$0xff]
    %v3194 = vld [vmem:[#allocation20 + $0x598] sm:$0xff]
    %v3195 = vld [vmem:[#allocation20 + $0x5a0] sm:$0xff]
    %v3196 = vld [vmem:[#allocation20 + $0x5a8] sm:$0xff]
    %v3197 = vld [vmem:[#allocation20 + $0x5b0] sm:$0xff]
    %v3198 = vld [vmem:[#allocation20 + $0x5b8] sm:$0xff]
    %v3199 = vld [vmem:[#allocation20 + $0x5c0] sm:$0xff]
    %v3200 = vld [vmem:[#allocation20 + $0x5c8] sm:$0xff]
    %v3201 = vld [vmem:[#allocation20 + $0x5d0] sm:$0xff]
    %v3202 = vld [vmem:[#allocation20 + $0x5d8] sm:$0xff]
    %v3203 = vld [vmem:[#allocation20 + $0x5e0] sm:$0xff]
    %v3204 = vld [vmem:[#allocation20 + $0x5e8] sm:$0xff]
    %v3205 = vld [vmem:[#allocation20 + $0x5f0] sm:$0xff]
    %v3206 = vld [vmem:[#allocation20 + $0x5f8] sm:$0xff]
    %v3207 = vld [vmem:[#allocation20 + $0x600] sm:$0xff]
    %v3208 = vld [vmem:[#allocation20 + $0x608] sm:$0xff]
    %v3209 = vld [vmem:[#allocation20 + $0x610] sm:$0xff]
    %v3210 = vld [vmem:[#allocation20 + $0x618] sm:$0xff]
    %v3211 = vld [vmem:[#allocation20 + $0x620] sm:$0xff]
    %v3212 = vld [vmem:[#allocation20 + $0x628] sm:$0xff]
    %v3213 = vld [vmem:[#allocation20 + $0x630] sm:$0xff]
    %v3214 = vld [vmem:[#allocation20 + $0x638] sm:$0xff]
    %v3215 = vld [vmem:[#allocation20 + $0x640] sm:$0xff]
    %v3216 = vld [vmem:[#allocation20 + $0x648] sm:$0xff]
    %v3217 = vld [vmem:[#allocation20 + $0x650] sm:$0xff]
    %v3218 = vld [vmem:[#allocation20 + $0x658] sm:$0xff]
    %v3219 = vld [vmem:[#allocation20 + $0x660] sm:$0xff]
    %v3220 = vld [vmem:[#allocation20 + $0x668] sm:$0xff]
    %v3221 = vld [vmem:[#allocation20 + $0x670] sm:$0xff]
    %v3222 = vld [vmem:[#allocation20 + $0x678] sm:$0xff]
    %v3223 = vld [vmem:[#allocation20 + $0x680] sm:$0xff]
    %v3224 = vld [vmem:[#allocation20 + $0x688] sm:$0xff]
    %v3225 = vld [vmem:[#allocation20 + $0x690] sm:$0xff]
    %v3226 = vld [vmem:[#allocation20 + $0x698] sm:$0xff]
    %v3227 = vld [vmem:[#allocation20 + $0x6a0] sm:$0xff]
    %v3228 = vld [vmem:[#allocation20 + $0x6a8] sm:$0xff]
    %v3229 = vld [vmem:[#allocation20 + $0x6b0] sm:$0xff]
    %v3230 = vld [vmem:[#allocation20 + $0x6b8] sm:$0xff]
    %v3231 = vld [vmem:[#allocation20 + $0x6c0] sm:$0xff]
    %v3232 = vld [vmem:[#allocation20 + $0x6c8] sm:$0xff]
    %v3233 = vld [vmem:[#allocation20 + $0x6d0] sm:$0xff]
    %v3234 = vld [vmem:[#allocation20 + $0x6d8] sm:$0xff]
    %v3235 = vld [vmem:[#allocation20 + $0x6e0] sm:$0xff]
    %v3236 = vld [vmem:[#allocation20 + $0x6e8] sm:$0xff]
    %v3237 = vld [vmem:[#allocation20 + $0x6f0] sm:$0xff]
    %v3238 = vld [vmem:[#allocation20 + $0x6f8] sm:$0xff]
    %v3239 = vld [vmem:[#allocation20 + $0x700] sm:$0xff]
    %v3240 = vld [vmem:[#allocation20 + $0x708] sm:$0xff]
    %v3241 = vld [vmem:[#allocation20 + $0x710] sm:$0xff]
    %v3242 = vld [vmem:[#allocation20 + $0x718] sm:$0xff]
    %v3243 = vld [vmem:[#allocation20 + $0x720] sm:$0xff]
    %v3244 = vld [vmem:[#allocation20 + $0x728] sm:$0xff]
    %v3245 = vld [vmem:[#allocation20 + $0x730] sm:$0xff]
    %v3246 = vld [vmem:[#allocation20 + $0x738] sm:$0xff]
    %v3247 = vld [vmem:[#allocation20 + $0x740] sm:$0xff]
    %v3248 = vld [vmem:[#allocation20 + $0x748] sm:$0xff]
    %v3249 = vld [vmem:[#allocation20 + $0x750] sm:$0xff]
    %v3250 = vld [vmem:[#allocation20 + $0x758] sm:$0xff]
    %v3251 = vld [vmem:[#allocation20 + $0x760] sm:$0xff]
    %v3252 = vld [vmem:[#allocation20 + $0x768] sm:$0xff]
    %v3253 = vld [vmem:[#allocation20 + $0x770] sm:$0xff]
    %v3254 = vld [vmem:[#allocation20 + $0x778] sm:$0xff]
    %v3255 = vld [vmem:[#allocation20 + $0x780] sm:$0xff]
    %v3256 = vld [vmem:[#allocation20 + $0x788] sm:$0xff]
    %v3257 = vld [vmem:[#allocation20 + $0x790] sm:$0xff]
    %v3258 = vld [vmem:[#allocation20 + $0x798] sm:$0xff]
    %v3259 = vld [vmem:[#allocation20 + $0x7a0] sm:$0xff]
    %v3260 = vld [vmem:[#allocation20 + $0x7a8] sm:$0xff]
    %v3261 = vld [vmem:[#allocation20 + $0x7b0] sm:$0xff]
    %v3262 = vld [vmem:[#allocation20 + $0x7b8] sm:$0xff]
    %v3263 = vld [vmem:[#allocation20 + $0x7c0] sm:$0xff]
    %v3264 = vld [vmem:[#allocation20 + $0x7c8] sm:$0xff]
    %v3265 = vld [vmem:[#allocation20 + $0x7d0] sm:$0xff]
    %v3266 = vld [vmem:[#allocation20 + $0x7d8] sm:$0xff]
    %v3267 = vld [vmem:[#allocation20 + $0x7e0] sm:$0xff]
    %v3268 = vld [vmem:[#allocation20 + $0x7e8] sm:$0xff]
    %v3269 = vld [vmem:[#allocation20 + $0x7f0] sm:$0xff]
    %v3270 = vld [vmem:[#allocation20 + $0x7f8] sm:$0xff]
    %v3271 = vld [vmem:[#allocation20 + $0x800] sm:$0xff]
    %v3272 = vld [vmem:[#allocation20 + $0x808] sm:$0xff]
    %v3273 = vld [vmem:[#allocation20 + $0x810] sm:$0xff]
    %v3274 = vld [vmem:[#allocation20 + $0x818] sm:$0xff]
    %v3275 = vld [vmem:[#allocation20 + $0x820] sm:$0xff]
    %v3276 = vld [vmem:[#allocation20 + $0x828] sm:$0xff]
    %v3277 = vld [vmem:[#allocation20 + $0x830] sm:$0xff]
    %v3278 = vld [vmem:[#allocation20 + $0x838] sm:$0xff]
    %v3279 = vld [vmem:[#allocation20 + $0x840] sm:$0xff]
    %v3280 = vld [vmem:[#allocation20 + $0x848] sm:$0xff]
    %v3281 = vld [vmem:[#allocation20 + $0x850] sm:$0xff]
    %v3282 = vld [vmem:[#allocation20 + $0x858] sm:$0xff]
    %v3283 = vld [vmem:[#allocation20 + $0x860] sm:$0xff]
    %v3284 = vld [vmem:[#allocation20 + $0x868] sm:$0xff]
    %v3285 = vld [vmem:[#allocation20 + $0x870] sm:$0xff]
    %v3286 = vld [vmem:[#allocation20 + $0x878] sm:$0xff]
    %v3287 = vld [vmem:[#allocation20 + $0x880] sm:$0xff]
    %v3288 = vld [vmem:[#allocation20 + $0x888] sm:$0xff]
    %v3289 = vld [vmem:[#allocation20 + $0x890] sm:$0xff]
    %v3290 = vld [vmem:[#allocation20 + $0x898] sm:$0xff]
    %v3291 = vld [vmem:[#allocation20 + $0x8a0] sm:$0xff]
    %v3292 = vld [vmem:[#allocation20 + $0x8a8] sm:$0xff]
    %v3293 = vld [vmem:[#allocation20 + $0x8b0] sm:$0xff]
    %v3294 = vld [vmem:[#allocation20 + $0x8b8] sm:$0xff]
    %v3295 = vld [vmem:[#allocation20 + $0x8c0] sm:$0xff]
    %v3296 = vld [vmem:[#allocation20 + $0x8c8] sm:$0xff]
    %v3297 = vld [vmem:[#allocation20 + $0x8d0] sm:$0xff]
    %v3298 = vld [vmem:[#allocation20 + $0x8d8] sm:$0xff]
    %v3299 = vld [vmem:[#allocation20 + $0x8e0] sm:$0xff]
    %v3300 = vld [vmem:[#allocation20 + $0x8e8] sm:$0xff]
    %v3301 = vld [vmem:[#allocation20 + $0x8f0] sm:$0xff]
    %v3302 = vld [vmem:[#allocation20 + $0x8f8] sm:$0xff]
    %v3303 = vld [vmem:[#allocation20 + $0x900] sm:$0xff]
    %v3304 = vld [vmem:[#allocation20 + $0x908] sm:$0xff]
    %v3305 = vld [vmem:[#allocation20 + $0x910] sm:$0xff]
    %v3306 = vld [vmem:[#allocation20 + $0x918] sm:$0xff]
    %v3307 = vld [vmem:[#allocation20 + $0x920] sm:$0xff]
    %v3308 = vld [vmem:[#allocation20 + $0x928] sm:$0xff]
    %v3309 = vld [vmem:[#allocation20 + $0x930] sm:$0xff]
    %v3310 = vld [vmem:[#allocation20 + $0x938] sm:$0xff]
    %v3311 = vld [vmem:[#allocation20 + $0x940] sm:$0xff]
    %v3312 = vld [vmem:[#allocation20 + $0x948] sm:$0xff]
    %v3313 = vld [vmem:[#allocation20 + $0x950] sm:$0xff]
    %v3314 = vld [vmem:[#allocation20 + $0x958] sm:$0xff]
    %v3315 = vld [vmem:[#allocation20 + $0x960] sm:$0xff]
    %v3316 = vld [vmem:[#allocation20 + $0x968] sm:$0xff]
    %v3317 = vld [vmem:[#allocation20 + $0x970] sm:$0xff]
    %v3318 = vld [vmem:[#allocation20 + $0x978] sm:$0xff]
    %v3319 = vld [vmem:[#allocation20 + $0x980] sm:$0xff]
    %v3320 = vld [vmem:[#allocation20 + $0x988] sm:$0xff]
    %v3321 = vld [vmem:[#allocation20 + $0x990] sm:$0xff]
    %v3322 = vld [vmem:[#allocation20 + $0x998] sm:$0xff]
    %v3323 = vld [vmem:[#allocation20 + $0x9a0] sm:$0xff]
    %v3324 = vld [vmem:[#allocation20 + $0x9a8] sm:$0xff]
    %v3325 = vld [vmem:[#allocation20 + $0x9b0] sm:$0xff]
    %v3326 = vld [vmem:[#allocation20 + $0x9b8] sm:$0xff]
    %v3327 = vld [vmem:[#allocation20 + $0x9c0] sm:$0xff]
    %v3328 = vld [vmem:[#allocation20 + $0x9c8] sm:$0xff]
    %v3329 = vld [vmem:[#allocation20 + $0x9d0] sm:$0xff]
    %v3330 = vld [vmem:[#allocation20 + $0x9d8] sm:$0xff]
    %v3331 = vld [vmem:[#allocation20 + $0x9e0] sm:$0xff]
    %v3332 = vld [vmem:[#allocation20 + $0x9e8] sm:$0xff]
    %v3333 = vld [vmem:[#allocation20 + $0x9f0] sm:$0xff]
    %v3334 = vld [vmem:[#allocation20 + $0x9f8] sm:$0xff]
    %v3335 = vld [vmem:[#allocation20 + $0xa00] sm:$0xff]
    %v3336 = vld [vmem:[#allocation20 + $0xa08] sm:$0xff]
    %v3337 = vld [vmem:[#allocation20 + $0xa10] sm:$0xff]
    %v3338 = vld [vmem:[#allocation20 + $0xa18] sm:$0xff]
    %v3339 = vld [vmem:[#allocation20 + $0xa20] sm:$0xff]
    %v3340 = vld [vmem:[#allocation20 + $0xa28] sm:$0xff]
    %v3341 = vld [vmem:[#allocation20 + $0xa30] sm:$0xff]
    %v3342 = vld [vmem:[#allocation20 + $0xa38] sm:$0xff]
    %v3343 = vld [vmem:[#allocation20 + $0xa40] sm:$0xff]
    %v3344 = vld [vmem:[#allocation20 + $0xa48] sm:$0xff]
    %v3345 = vld [vmem:[#allocation20 + $0xa50] sm:$0xff]
    %v3346 = vld [vmem:[#allocation20 + $0xa58] sm:$0xff]
    %v3347 = vld [vmem:[#allocation20 + $0xa60] sm:$0xff]
    %v3348 = vld [vmem:[#allocation20 + $0xa68] sm:$0xff]
    %v3349 = vld [vmem:[#allocation20 + $0xa70] sm:$0xff]
    %v3350 = vld [vmem:[#allocation20 + $0xa78] sm:$0xff]
    %v3351 = vld [vmem:[#allocation20 + $0xa80] sm:$0xff]
    %v3352 = vld [vmem:[#allocation20 + $0xa88] sm:$0xff]
    %v3353 = vld [vmem:[#allocation20 + $0xa90] sm:$0xff]
    %v3354 = vld [vmem:[#allocation20 + $0xa98] sm:$0xff]
    %v3355 = vld [vmem:[#allocation20 + $0xaa0] sm:$0xff]
    %v3356 = vld [vmem:[#allocation20 + $0xaa8] sm:$0xff]
    %v3357 = vld [vmem:[#allocation20 + $0xab0] sm:$0xff]
    %v3358 = vld [vmem:[#allocation20 + $0xab8] sm:$0xff]
    %v3359 = vld [vmem:[#allocation20 + $0xac0] sm:$0xff]
    %v3360 = vld [vmem:[#allocation20 + $0xac8] sm:$0xff]
    %v3361 = vld [vmem:[#allocation20 + $0xad0] sm:$0xff]
    %v3362 = vld [vmem:[#allocation20 + $0xad8] sm:$0xff]
    %v3363 = vld [vmem:[#allocation20 + $0xae0] sm:$0xff]
    %v3364 = vld [vmem:[#allocation20 + $0xae8] sm:$0xff]
    %v3365 = vld [vmem:[#allocation20 + $0xaf0] sm:$0xff]
    %v3366 = vld [vmem:[#allocation20 + $0xaf8] sm:$0xff]
    %v3367 = vld [vmem:[#allocation20 + $0xb00] sm:$0xff]
    %v3368 = vld [vmem:[#allocation20 + $0xb08] sm:$0xff]
    %v3369 = vld [vmem:[#allocation20 + $0xb10] sm:$0xff]
    %v3370 = vld [vmem:[#allocation20 + $0xb18] sm:$0xff]
    %v3371 = vld [vmem:[#allocation20 + $0xb20] sm:$0xff]
    %v3372 = vld [vmem:[#allocation20 + $0xb28] sm:$0xff]
    %v3373 = vld [vmem:[#allocation20 + $0xb30] sm:$0xff]
    %v3374 = vld [vmem:[#allocation20 + $0xb38] sm:$0xff]
    %v3375 = vld [vmem:[#allocation20 + $0xb40] sm:$0xff]
    %v3376 = vld [vmem:[#allocation20 + $0xb48] sm:$0xff]
    %v3377 = vld [vmem:[#allocation20 + $0xb50] sm:$0xff]
    %v3378 = vld [vmem:[#allocation20 + $0xb58] sm:$0xff]
    %v3379 = vld [vmem:[#allocation20 + $0xb60] sm:$0xff]
    %v3380 = vld [vmem:[#allocation20 + $0xb68] sm:$0xff]
    %v3381 = vld [vmem:[#allocation20 + $0xb70] sm:$0xff]
    %v3382 = vld [vmem:[#allocation20 + $0xb78] sm:$0xff]
    %v3383 = vld [vmem:[#allocation20 + $0xb80] sm:$0xff]
    %v3384 = vld [vmem:[#allocation20 + $0xb88] sm:$0xff]
    %v3385 = vld [vmem:[#allocation20 + $0xb90] sm:$0xff]
    %v3386 = vld [vmem:[#allocation20 + $0xb98] sm:$0xff]
    %v3387 = vld [vmem:[#allocation20 + $0xba0] sm:$0xff]
    %v3388 = vld [vmem:[#allocation20 + $0xba8] sm:$0xff]
    %v3389 = vld [vmem:[#allocation20 + $0xbb0] sm:$0xff]
    %v3390 = vld [vmem:[#allocation20 + $0xbb8] sm:$0xff]
    %v3391 = vld [vmem:[#allocation20 + $0xbc0] sm:$0xff]
    %v3392 = vld [vmem:[#allocation20 + $0xbc8] sm:$0xff]
    %v3393 = vld [vmem:[#allocation20 + $0xbd0] sm:$0xff]
    %v3394 = vld [vmem:[#allocation20 + $0xbd8] sm:$0xff]
    %v3395 = vld [vmem:[#allocation20 + $0xbe0] sm:$0xff]
    %v3396 = vld [vmem:[#allocation20 + $0xbe8] sm:$0xff]
    %v3397 = vld [vmem:[#allocation20 + $0xbf0] sm:$0xff]
    %v3398 = vld [vmem:[#allocation20 + $0xbf8] sm:$0xff]
    %v3399 = vld [vmem:[#allocation20 + $0xc00] sm:$0xff]
    %v3400 = vld [vmem:[#allocation20 + $0xc08] sm:$0xff]
    %v3401 = vld [vmem:[#allocation20 + $0xc10] sm:$0xff]
    %v3402 = vld [vmem:[#allocation20 + $0xc18] sm:$0xff]
    %v3403 = vld [vmem:[#allocation20 + $0xc20] sm:$0xff]
    %v3404 = vld [vmem:[#allocation20 + $0xc28] sm:$0xff]
    %v3405 = vld [vmem:[#allocation20 + $0xc30] sm:$0xff]
    %v3406 = vld [vmem:[#allocation20 + $0xc38] sm:$0xff]
    %v3407 = vld [vmem:[#allocation20 + $0xc40] sm:$0xff]
    %v3408 = vld [vmem:[#allocation20 + $0xc48] sm:$0xff]
    %v3409 = vld [vmem:[#allocation20 + $0xc50] sm:$0xff]
    %v3410 = vld [vmem:[#allocation20 + $0xc58] sm:$0xff]
    %v3411 = vld [vmem:[#allocation20 + $0xc60] sm:$0xff]
    %v3412 = vld [vmem:[#allocation20 + $0xc68] sm:$0xff]
    %v3413 = vld [vmem:[#allocation20 + $0xc70] sm:$0xff]
    %v3414 = vld [vmem:[#allocation20 + $0xc78] sm:$0xff]
    %v3415 = vld [vmem:[#allocation22] sm:$0xf]
    %v3417 = vlaneseq
    %v3418 = vshrl.u32 %v3417, 7
    %v3419 = vsub.s32 0, %v3418
    %v3420 = vrot.slane %v3415, %v3419
    %v3421 = vlaneseq
    %v3422 = vshrl.u32 %v3421, 7
    %v3423 = vsub.s32 1, %v3422
    %v3424 = vrot.slane %v3415, %v3423
    %v3425 = vlaneseq
    %v3426 = vshrl.u32 %v3425, 7
    %v3427 = vsub.s32 2, %v3426
    %v3428 = vrot.slane %v3415, %v3427
    %v3429 = vlaneseq
    %v3430 = vshrl.u32 %v3429, 7
    %v3431 = vsub.s32 3, %v3430
    %v3432 = vrot.slane %v3415, %v3431
    %v3837 = vunpack.c.l.b16 %v3015
    %v3838 = vunpack.c.h.b16 %v3015
    %v3839 = vunpack.c.l.b16 %v3016
    %v3840 = vunpack.c.h.b16 %v3016
    %v3841 = vunpack.c.l.b16 %v3017
    %v3842 = vunpack.c.h.b16 %v3017
    %v3843 = vunpack.c.l.b16 %v3018
    %v3844 = vunpack.c.h.b16 %v3018
    %v3845 = vunpack.c.l.b16 %v3019
    %v3846 = vunpack.c.h.b16 %v3019
    %v3847 = vunpack.c.l.b16 %v3020
    %v3848 = vunpack.c.h.b16 %v3020
    %v3849 = vunpack.c.l.b16 %v3021
    %v3850 = vunpack.c.h.b16 %v3021
    %v3851 = vunpack.c.l.b16 %v3022
    %v3852 = vunpack.c.h.b16 %v3022
    %v3853 = vunpack.c.l.b16 %v3023
    %v3854 = vunpack.c.h.b16 %v3023
    %v3855 = vunpack.c.l.b16 %v3024
    %v3856 = vunpack.c.h.b16 %v3024
    %v3857 = vunpack.c.l.b16 %v3025
    %v3858 = vunpack.c.h.b16 %v3025
    %v3859 = vunpack.c.l.b16 %v3026
    %v3860 = vunpack.c.h.b16 %v3026
    %v3861 = vunpack.c.l.b16 %v3027
    %v3862 = vunpack.c.h.b16 %v3027
    %v3863 = vunpack.c.l.b16 %v3028
    %v3864 = vunpack.c.h.b16 %v3028
    %v3865 = vunpack.c.l.b16 %v3029
    %v3866 = vunpack.c.h.b16 %v3029
    %v3867 = vunpack.c.l.b16 %v3030
    %v3868 = vunpack.c.h.b16 %v3030
    %v3869 = vunpack.c.l.b16 %v3031
    %v3870 = vunpack.c.h.b16 %v3031
    %v3871 = vunpack.c.l.b16 %v3032
    %v3872 = vunpack.c.h.b16 %v3032
    %v3873 = vunpack.c.l.b16 %v3033
    %v3874 = vunpack.c.h.b16 %v3033
    %v3875 = vunpack.c.l.b16 %v3034
    %v3876 = vunpack.c.h.b16 %v3034
    %v3877 = vunpack.c.l.b16 %v3035
    %v3878 = vunpack.c.h.b16 %v3035
    %v3879 = vunpack.c.l.b16 %v3036
    %v3880 = vunpack.c.h.b16 %v3036
    %v3881 = vunpack.c.l.b16 %v3037
    %v3882 = vunpack.c.h.b16 %v3037
    %v3883 = vunpack.c.l.b16 %v3038
    %v3884 = vunpack.c.h.b16 %v3038
    %v3885 = vunpack.c.l.b16 %v3039
    %v3886 = vunpack.c.h.b16 %v3039
    %v3887 = vunpack.c.l.b16 %v3040
    %v3888 = vunpack.c.h.b16 %v3040
    %v3889 = vunpack.c.l.b16 %v3041
    %v3890 = vunpack.c.h.b16 %v3041
    %v3891 = vunpack.c.l.b16 %v3042
    %v3892 = vunpack.c.h.b16 %v3042
    %v3893 = vunpack.c.l.b16 %v3043
    %v3894 = vunpack.c.h.b16 %v3043
    %v3895 = vunpack.c.l.b16 %v3044
    %v3896 = vunpack.c.h.b16 %v3044
    %v3897 = vunpack.c.l.b16 %v3045
    %v3898 = vunpack.c.h.b16 %v3045
    %v3899 = vunpack.c.l.b16 %v3046
    %v3900 = vunpack.c.h.b16 %v3046
    %v3901 = vunpack.c.l.b16 %v3047
    %v3902 = vunpack.c.h.b16 %v3047
    %v3903 = vunpack.c.l.b16 %v3048
    %v3904 = vunpack.c.h.b16 %v3048
    %v3905 = vunpack.c.l.b16 %v3049
    %v3906 = vunpack.c.h.b16 %v3049
    %v3907 = vunpack.c.l.b16 %v3050
    %v3908 = vunpack.c.h.b16 %v3050
    %v3909 = vunpack.c.l.b16 %v3051
    %v3910 = vunpack.c.h.b16 %v3051
    %v3911 = vunpack.c.l.b16 %v3052
    %v3912 = vunpack.c.h.b16 %v3052
    %v3913 = vunpack.c.l.b16 %v3053
    %v3914 = vunpack.c.h.b16 %v3053
    %v3915 = vunpack.c.l.b16 %v3054
    %v3916 = vunpack.c.h.b16 %v3054
    %v3917 = vunpack.c.l.b16 %v3055
    %v3918 = vunpack.c.h.b16 %v3055
    %v3919 = vunpack.c.l.b16 %v3056
    %v3920 = vunpack.c.h.b16 %v3056
    %v3921 = vunpack.c.l.b16 %v3057
    %v3922 = vunpack.c.h.b16 %v3057
    %v3923 = vunpack.c.l.b16 %v3058
    %v3924 = vunpack.c.h.b16 %v3058
    %v3925 = vunpack.c.l.b16 %v3059
    %v3926 = vunpack.c.h.b16 %v3059
    %v3927 = vunpack.c.l.b16 %v3060
    %v3928 = vunpack.c.h.b16 %v3060
    %v3929 = vunpack.c.l.b16 %v3061
    %v3930 = vunpack.c.h.b16 %v3061
    %v3931 = vunpack.c.l.b16 %v3062
    %v3932 = vunpack.c.h.b16 %v3062
    %v3933 = vunpack.c.l.b16 %v3063
    %v3934 = vunpack.c.h.b16 %v3063
    %v3935 = vunpack.c.l.b16 %v3064
    %v3936 = vunpack.c.h.b16 %v3064
    %v3937 = vunpack.c.l.b16 %v3065
    %v3938 = vunpack.c.h.b16 %v3065
    %v3939 = vunpack.c.l.b16 %v3066
    %v3940 = vunpack.c.h.b16 %v3066
    %v3941 = vunpack.c.l.b16 %v3067
    %v3942 = vunpack.c.h.b16 %v3067
    %v3943 = vunpack.c.l.b16 %v3068
    %v3944 = vunpack.c.h.b16 %v3068
    %v3945 = vunpack.c.l.b16 %v3069
    %v3946 = vunpack.c.h.b16 %v3069
    %v3947 = vunpack.c.l.b16 %v3070
    %v3948 = vunpack.c.h.b16 %v3070
    %v3949 = vunpack.c.l.b16 %v3071
    %v3950 = vunpack.c.h.b16 %v3071
    %v3951 = vunpack.c.l.b16 %v3072
    %v3952 = vunpack.c.h.b16 %v3072
    %v3953 = vunpack.c.l.b16 %v3073
    %v3954 = vunpack.c.h.b16 %v3073
    %v3955 = vunpack.c.l.b16 %v3074
    %v3956 = vunpack.c.h.b16 %v3074
    %v3957 = vunpack.c.l.b16 %v3075
    %v3958 = vunpack.c.h.b16 %v3075
    %v3959 = vunpack.c.l.b16 %v3076
    %v3960 = vunpack.c.h.b16 %v3076
    %v3961 = vunpack.c.l.b16 %v3077
    %v3962 = vunpack.c.h.b16 %v3077
    %v3963 = vunpack.c.l.b16 %v3078
    %v3964 = vunpack.c.h.b16 %v3078
    %v3965 = vunpack.c.l.b16 %v3079
    %v3966 = vunpack.c.h.b16 %v3079
    %v3967 = vunpack.c.l.b16 %v3080
    %v3968 = vunpack.c.h.b16 %v3080
    %v3969 = vunpack.c.l.b16 %v3081
    %v3970 = vunpack.c.h.b16 %v3081
    %v3971 = vunpack.c.l.b16 %v3082
    %v3972 = vunpack.c.h.b16 %v3082
    %v3973 = vunpack.c.l.b16 %v3083
    %v3974 = vunpack.c.h.b16 %v3083
    %v3975 = vunpack.c.l.b16 %v3084
    %v3976 = vunpack.c.h.b16 %v3084
    %v3977 = vunpack.c.l.b16 %v3085
    %v3978 = vunpack.c.h.b16 %v3085
    %v3979 = vunpack.c.l.b16 %v3086
    %v3980 = vunpack.c.h.b16 %v3086
    %v3981 = vunpack.c.l.b16 %v3087
    %v3982 = vunpack.c.h.b16 %v3087
    %v3983 = vunpack.c.l.b16 %v3088
    %v3984 = vunpack.c.h.b16 %v3088
    %v3985 = vunpack.c.l.b16 %v3089
    %v3986 = vunpack.c.h.b16 %v3089
    %v3987 = vunpack.c.l.b16 %v3090
    %v3988 = vunpack.c.h.b16 %v3090
    %v3989 = vunpack.c.l.b16 %v3091
    %v3990 = vunpack.c.h.b16 %v3091
    %v3991 = vunpack.c.l.b16 %v3092
    %v3992 = vunpack.c.h.b16 %v3092
    %v3993 = vunpack.c.l.b16 %v3093
    %v3994 = vunpack.c.h.b16 %v3093
    %v3995 = vunpack.c.l.b16 %v3094
    %v3996 = vunpack.c.h.b16 %v3094
    %v3997 = vunpack.c.l.b16 %v3095
    %v3998 = vunpack.c.h.b16 %v3095
    %v3999 = vunpack.c.l.b16 %v3096
    %v4000 = vunpack.c.h.b16 %v3096
    %v4001 = vunpack.c.l.b16 %v3097
    %v4002 = vunpack.c.h.b16 %v3097
    %v4003 = vunpack.c.l.b16 %v3098
    %v4004 = vunpack.c.h.b16 %v3098
    %v4005 = vunpack.c.l.b16 %v3099
    %v4006 = vunpack.c.h.b16 %v3099
    %v4007 = vunpack.c.l.b16 %v3100
    %v4008 = vunpack.c.h.b16 %v3100
    %v4009 = vunpack.c.l.b16 %v3101
    %v4010 = vunpack.c.h.b16 %v3101
    %v4011 = vunpack.c.l.b16 %v3102
    %v4012 = vunpack.c.h.b16 %v3102
    %v4013 = vunpack.c.l.b16 %v3103
    %v4014 = vunpack.c.h.b16 %v3103
    %v4015 = vunpack.c.l.b16 %v3104
    %v4016 = vunpack.c.h.b16 %v3104
    %v4017 = vunpack.c.l.b16 %v3105
    %v4018 = vunpack.c.h.b16 %v3105
    %v4019 = vunpack.c.l.b16 %v3106
    %v4020 = vunpack.c.h.b16 %v3106
    %v4021 = vunpack.c.l.b16 %v3107
    %v4022 = vunpack.c.h.b16 %v3107
    %v4023 = vunpack.c.l.b16 %v3108
    %v4024 = vunpack.c.h.b16 %v3108
    %v4025 = vunpack.c.l.b16 %v3109
    %v4026 = vunpack.c.h.b16 %v3109
    %v4027 = vunpack.c.l.b16 %v3110
    %v4028 = vunpack.c.h.b16 %v3110
    %v4029 = vunpack.c.l.b16 %v3111
    %v4030 = vunpack.c.h.b16 %v3111
    %v4031 = vunpack.c.l.b16 %v3112
    %v4032 = vunpack.c.h.b16 %v3112
    %v4033 = vunpack.c.l.b16 %v3113
    %v4034 = vunpack.c.h.b16 %v3113
    %v4035 = vunpack.c.l.b16 %v3114
    %v4036 = vunpack.c.h.b16 %v3114
    %v4037 = vunpack.c.l.b16 %v3115
    %v4038 = vunpack.c.h.b16 %v3115
    %v4039 = vunpack.c.l.b16 %v3116
    %v4040 = vunpack.c.h.b16 %v3116
    %v4041 = vunpack.c.l.b16 %v3117
    %v4042 = vunpack.c.h.b16 %v3117
    %v4043 = vunpack.c.l.b16 %v3118
    %v4044 = vunpack.c.h.b16 %v3118
    %v4045 = vunpack.c.l.b16 %v3119
    %v4046 = vunpack.c.h.b16 %v3119
    %v4047 = vunpack.c.l.b16 %v3120
    %v4048 = vunpack.c.h.b16 %v3120
    %v4049 = vunpack.c.l.b16 %v3121
    %v4050 = vunpack.c.h.b16 %v3121
    %v4051 = vunpack.c.l.b16 %v3122
    %v4052 = vunpack.c.h.b16 %v3122
    %v4053 = vunpack.c.l.b16 %v3123
    %v4054 = vunpack.c.h.b16 %v3123
    %v4055 = vunpack.c.l.b16 %v3124
    %v4056 = vunpack.c.h.b16 %v3124
    %v4057 = vunpack.c.l.b16 %v3125
    %v4058 = vunpack.c.h.b16 %v3125
    %v4059 = vunpack.c.l.b16 %v3126
    %v4060 = vunpack.c.h.b16 %v3126
    %v4061 = vunpack.c.l.b16 %v3127
    %v4062 = vunpack.c.h.b16 %v3127
    %v4063 = vunpack.c.l.b16 %v3128
    %v4064 = vunpack.c.h.b16 %v3128
    %v4065 = vunpack.c.l.b16 %v3129
    %v4066 = vunpack.c.h.b16 %v3129
    %v4067 = vunpack.c.l.b16 %v3130
    %v4068 = vunpack.c.h.b16 %v3130
    %v4069 = vunpack.c.l.b16 %v3131
    %v4070 = vunpack.c.h.b16 %v3131
    %v4071 = vunpack.c.l.b16 %v3132
    %v4072 = vunpack.c.h.b16 %v3132
    %v4073 = vunpack.c.l.b16 %v3133
    %v4074 = vunpack.c.h.b16 %v3133
    %v4075 = vunpack.c.l.b16 %v3134
    %v4076 = vunpack.c.h.b16 %v3134
    %v4077 = vunpack.c.l.b16 %v3135
    %v4078 = vunpack.c.h.b16 %v3135
    %v4079 = vunpack.c.l.b16 %v3136
    %v4080 = vunpack.c.h.b16 %v3136
    %v4081 = vunpack.c.l.b16 %v3137
    %v4082 = vunpack.c.h.b16 %v3137
    %v4083 = vunpack.c.l.b16 %v3138
    %v4084 = vunpack.c.h.b16 %v3138
    %v4085 = vunpack.c.l.b16 %v3139
    %v4086 = vunpack.c.h.b16 %v3139
    %v4087 = vunpack.c.l.b16 %v3140
    %v4088 = vunpack.c.h.b16 %v3140
    %v4089 = vunpack.c.l.b16 %v3141
    %v4090 = vunpack.c.h.b16 %v3141
    %v4091 = vunpack.c.l.b16 %v3142
    %v4092 = vunpack.c.h.b16 %v3142
    %v4093 = vunpack.c.l.b16 %v3143
    %v4094 = vunpack.c.h.b16 %v3143
    %v4095 = vunpack.c.l.b16 %v3144
    %v4096 = vunpack.c.h.b16 %v3144
    %v4097 = vunpack.c.l.b16 %v3145
    %v4098 = vunpack.c.h.b16 %v3145
    %v4099 = vunpack.c.l.b16 %v3146
    %v4100 = vunpack.c.h.b16 %v3146
    %v4101 = vunpack.c.l.b16 %v3147
    %v4102 = vunpack.c.h.b16 %v3147
    %v4103 = vunpack.c.l.b16 %v3148
    %v4104 = vunpack.c.h.b16 %v3148
    %v4105 = vunpack.c.l.b16 %v3149
    %v4106 = vunpack.c.h.b16 %v3149
    %v4107 = vunpack.c.l.b16 %v3150
    %v4108 = vunpack.c.h.b16 %v3150
    %v4109 = vunpack.c.l.b16 %v3151
    %v4110 = vunpack.c.h.b16 %v3151
    %v4111 = vunpack.c.l.b16 %v3152
    %v4112 = vunpack.c.h.b16 %v3152
    %v4113 = vunpack.c.l.b16 %v3153
    %v4114 = vunpack.c.h.b16 %v3153
    %v4115 = vunpack.c.l.b16 %v3154
    %v4116 = vunpack.c.h.b16 %v3154
    %v4117 = vunpack.c.l.b16 %v3155
    %v4118 = vunpack.c.h.b16 %v3155
    %v4119 = vunpack.c.l.b16 %v3156
    %v4120 = vunpack.c.h.b16 %v3156
    %v4121 = vunpack.c.l.b16 %v3157
    %v4122 = vunpack.c.h.b16 %v3157
    %v4123 = vunpack.c.l.b16 %v3158
    %v4124 = vunpack.c.h.b16 %v3158
    %v4125 = vunpack.c.l.b16 %v3159
    %v4126 = vunpack.c.h.b16 %v3159
    %v4127 = vunpack.c.l.b16 %v3160
    %v4128 = vunpack.c.h.b16 %v3160
    %v4129 = vunpack.c.l.b16 %v3161
    %v4130 = vunpack.c.h.b16 %v3161
    %v4131 = vunpack.c.l.b16 %v3162
    %v4132 = vunpack.c.h.b16 %v3162
    %v4133 = vunpack.c.l.b16 %v3163
    %v4134 = vunpack.c.h.b16 %v3163
    %v4135 = vunpack.c.l.b16 %v3164
    %v4136 = vunpack.c.h.b16 %v3164
    %v4137 = vunpack.c.l.b16 %v3165
    %v4138 = vunpack.c.h.b16 %v3165
    %v4139 = vunpack.c.l.b16 %v3166
    %v4140 = vunpack.c.h.b16 %v3166
    %v4141 = vunpack.c.l.b16 %v3167
    %v4142 = vunpack.c.h.b16 %v3167
    %v4143 = vunpack.c.l.b16 %v3168
    %v4144 = vunpack.c.h.b16 %v3168
    %v4145 = vunpack.c.l.b16 %v3169
    %v4146 = vunpack.c.h.b16 %v3169
    %v4147 = vunpack.c.l.b16 %v3170
    %v4148 = vunpack.c.h.b16 %v3170
    %v4149 = vunpack.c.l.b16 %v3171
    %v4150 = vunpack.c.h.b16 %v3171
    %v4151 = vunpack.c.l.b16 %v3172
    %v4152 = vunpack.c.h.b16 %v3172
    %v4153 = vunpack.c.l.b16 %v3173
    %v4154 = vunpack.c.h.b16 %v3173
    %v4155 = vunpack.c.l.b16 %v3174
    %v4156 = vunpack.c.h.b16 %v3174
    %v4157 = vunpack.c.l.b16 %v3175
    %v4158 = vunpack.c.h.b16 %v3175
    %v4159 = vunpack.c.l.b16 %v3176
    %v4160 = vunpack.c.h.b16 %v3176
    %v4161 = vunpack.c.l.b16 %v3177
    %v4162 = vunpack.c.h.b16 %v3177
    %v4163 = vunpack.c.l.b16 %v3178
    %v4164 = vunpack.c.h.b16 %v3178
    %v4165 = vunpack.c.l.b16 %v3179
    %v4166 = vunpack.c.h.b16 %v3179
    %v4167 = vunpack.c.l.b16 %v3180
    %v4168 = vunpack.c.h.b16 %v3180
    %v4169 = vunpack.c.l.b16 %v3181
    %v4170 = vunpack.c.h.b16 %v3181
    %v4171 = vunpack.c.l.b16 %v3182
    %v4172 = vunpack.c.h.b16 %v3182
    %v4173 = vunpack.c.l.b16 %v3183
    %v4174 = vunpack.c.h.b16 %v3183
    %v4175 = vunpack.c.l.b16 %v3184
    %v4176 = vunpack.c.h.b16 %v3184
    %v4177 = vunpack.c.l.b16 %v3185
    %v4178 = vunpack.c.h.b16 %v3185
    %v4179 = vunpack.c.l.b16 %v3186
    %v4180 = vunpack.c.h.b16 %v3186
    %v4181 = vunpack.c.l.b16 %v3187
    %v4182 = vunpack.c.h.b16 %v3187
    %v4183 = vunpack.c.l.b16 %v3188
    %v4184 = vunpack.c.h.b16 %v3188
    %v4185 = vunpack.c.l.b16 %v3189
    %v4186 = vunpack.c.h.b16 %v3189
    %v4187 = vunpack.c.l.b16 %v3190
    %v4188 = vunpack.c.h.b16 %v3190
    %v4189 = vunpack.c.l.b16 %v3191
    %v4190 = vunpack.c.h.b16 %v3191
    %v4191 = vunpack.c.l.b16 %v3192
    %v4192 = vunpack.c.h.b16 %v3192
    %v4193 = vunpack.c.l.b16 %v3193
    %v4194 = vunpack.c.h.b16 %v3193
    %v4195 = vunpack.c.l.b16 %v3194
    %v4196 = vunpack.c.h.b16 %v3194
    %v4197 = vunpack.c.l.b16 %v3195
    %v4198 = vunpack.c.h.b16 %v3195
    %v4199 = vunpack.c.l.b16 %v3196
    %v4200 = vunpack.c.h.b16 %v3196
    %v4201 = vunpack.c.l.b16 %v3197
    %v4202 = vunpack.c.h.b16 %v3197
    %v4203 = vunpack.c.l.b16 %v3198
    %v4204 = vunpack.c.h.b16 %v3198
    %v4205 = vunpack.c.l.b16 %v3199
    %v4206 = vunpack.c.h.b16 %v3199
    %v4207 = vunpack.c.l.b16 %v3200
    %v4208 = vunpack.c.h.b16 %v3200
    %v4209 = vunpack.c.l.b16 %v3201
    %v4210 = vunpack.c.h.b16 %v3201
    %v4211 = vunpack.c.l.b16 %v3202
    %v4212 = vunpack.c.h.b16 %v3202
    %v4213 = vunpack.c.l.b16 %v3203
    %v4214 = vunpack.c.h.b16 %v3203
    %v4215 = vunpack.c.l.b16 %v3204
    %v4216 = vunpack.c.h.b16 %v3204
    %v4217 = vunpack.c.l.b16 %v3205
    %v4218 = vunpack.c.h.b16 %v3205
    %v4219 = vunpack.c.l.b16 %v3206
    %v4220 = vunpack.c.h.b16 %v3206
    %v4221 = vunpack.c.l.b16 %v3207
    %v4222 = vunpack.c.h.b16 %v3207
    %v4223 = vunpack.c.l.b16 %v3208
    %v4224 = vunpack.c.h.b16 %v3208
    %v4225 = vunpack.c.l.b16 %v3209
    %v4226 = vunpack.c.h.b16 %v3209
    %v4227 = vunpack.c.l.b16 %v3210
    %v4228 = vunpack.c.h.b16 %v3210
    %v4229 = vunpack.c.l.b16 %v3211
    %v4230 = vunpack.c.h.b16 %v3211
    %v4231 = vunpack.c.l.b16 %v3212
    %v4232 = vunpack.c.h.b16 %v3212
    %v4233 = vunpack.c.l.b16 %v3213
    %v4234 = vunpack.c.h.b16 %v3213
    %v4235 = vunpack.c.l.b16 %v3214
    %v4236 = vunpack.c.h.b16 %v3214
    %v4237 = vunpack.c.l.b16 %v3215
    %v4238 = vunpack.c.h.b16 %v3215
    %v4239 = vunpack.c.l.b16 %v3216
    %v4240 = vunpack.c.h.b16 %v3216
    %v4241 = vunpack.c.l.b16 %v3217
    %v4242 = vunpack.c.h.b16 %v3217
    %v4243 = vunpack.c.l.b16 %v3218
    %v4244 = vunpack.c.h.b16 %v3218
    %v4245 = vunpack.c.l.b16 %v3219
    %v4246 = vunpack.c.h.b16 %v3219
    %v4247 = vunpack.c.l.b16 %v3220
    %v4248 = vunpack.c.h.b16 %v3220
    %v4249 = vunpack.c.l.b16 %v3221
    %v4250 = vunpack.c.h.b16 %v3221
    %v4251 = vunpack.c.l.b16 %v3222
    %v4252 = vunpack.c.h.b16 %v3222
    %v4253 = vunpack.c.l.b16 %v3223
    %v4254 = vunpack.c.h.b16 %v3223
    %v4255 = vunpack.c.l.b16 %v3224
    %v4256 = vunpack.c.h.b16 %v3224
    %v4257 = vunpack.c.l.b16 %v3225
    %v4258 = vunpack.c.h.b16 %v3225
    %v4259 = vunpack.c.l.b16 %v3226
    %v4260 = vunpack.c.h.b16 %v3226
    %v4261 = vunpack.c.l.b16 %v3227
    %v4262 = vunpack.c.h.b16 %v3227
    %v4263 = vunpack.c.l.b16 %v3228
    %v4264 = vunpack.c.h.b16 %v3228
    %v4265 = vunpack.c.l.b16 %v3229
    %v4266 = vunpack.c.h.b16 %v3229
    %v4267 = vunpack.c.l.b16 %v3230
    %v4268 = vunpack.c.h.b16 %v3230
    %v4269 = vunpack.c.l.b16 %v3231
    %v4270 = vunpack.c.h.b16 %v3231
    %v4271 = vunpack.c.l.b16 %v3232
    %v4272 = vunpack.c.h.b16 %v3232
    %v4273 = vunpack.c.l.b16 %v3233
    %v4274 = vunpack.c.h.b16 %v3233
    %v4275 = vunpack.c.l.b16 %v3234
    %v4276 = vunpack.c.h.b16 %v3234
    %v4277 = vunpack.c.l.b16 %v3235
    %v4278 = vunpack.c.h.b16 %v3235
    %v4279 = vunpack.c.l.b16 %v3236
    %v4280 = vunpack.c.h.b16 %v3236
    %v4281 = vunpack.c.l.b16 %v3237
    %v4282 = vunpack.c.h.b16 %v3237
    %v4283 = vunpack.c.l.b16 %v3238
    %v4284 = vunpack.c.h.b16 %v3238
    %v4285 = vunpack.c.l.b16 %v3239
    %v4286 = vunpack.c.h.b16 %v3239
    %v4287 = vunpack.c.l.b16 %v3240
    %v4288 = vunpack.c.h.b16 %v3240
    %v4289 = vunpack.c.l.b16 %v3241
    %v4290 = vunpack.c.h.b16 %v3241
    %v4291 = vunpack.c.l.b16 %v3242
    %v4292 = vunpack.c.h.b16 %v3242
    %v4293 = vunpack.c.l.b16 %v3243
    %v4294 = vunpack.c.h.b16 %v3243
    %v4295 = vunpack.c.l.b16 %v3244
    %v4296 = vunpack.c.h.b16 %v3244
    %v4297 = vunpack.c.l.b16 %v3245
    %v4298 = vunpack.c.h.b16 %v3245
    %v4299 = vunpack.c.l.b16 %v3246
    %v4300 = vunpack.c.h.b16 %v3246
    %v4301 = vunpack.c.l.b16 %v3247
    %v4302 = vunpack.c.h.b16 %v3247
    %v4303 = vunpack.c.l.b16 %v3248
    %v4304 = vunpack.c.h.b16 %v3248
    %v4305 = vunpack.c.l.b16 %v3249
    %v4306 = vunpack.c.h.b16 %v3249
    %v4307 = vunpack.c.l.b16 %v3250
    %v4308 = vunpack.c.h.b16 %v3250
    %v4309 = vunpack.c.l.b16 %v3251
    %v4310 = vunpack.c.h.b16 %v3251
    %v4311 = vunpack.c.l.b16 %v3252
    %v4312 = vunpack.c.h.b16 %v3252
    %v4313 = vunpack.c.l.b16 %v3253
    %v4314 = vunpack.c.h.b16 %v3253
    %v4315 = vunpack.c.l.b16 %v3254
    %v4316 = vunpack.c.h.b16 %v3254
    %v4317 = vunpack.c.l.b16 %v3255
    %v4318 = vunpack.c.h.b16 %v3255
    %v4319 = vunpack.c.l.b16 %v3256
    %v4320 = vunpack.c.h.b16 %v3256
    %v4321 = vunpack.c.l.b16 %v3257
    %v4322 = vunpack.c.h.b16 %v3257
    %v4323 = vunpack.c.l.b16 %v3258
    %v4324 = vunpack.c.h.b16 %v3258
    %v4325 = vunpack.c.l.b16 %v3259
    %v4326 = vunpack.c.h.b16 %v3259
    %v4327 = vunpack.c.l.b16 %v3260
    %v4328 = vunpack.c.h.b16 %v3260
    %v4329 = vunpack.c.l.b16 %v3261
    %v4330 = vunpack.c.h.b16 %v3261
    %v4331 = vunpack.c.l.b16 %v3262
    %v4332 = vunpack.c.h.b16 %v3262
    %v4333 = vunpack.c.l.b16 %v3263
    %v4334 = vunpack.c.h.b16 %v3263
    %v4335 = vunpack.c.l.b16 %v3264
    %v4336 = vunpack.c.h.b16 %v3264
    %v4337 = vunpack.c.l.b16 %v3265
    %v4338 = vunpack.c.h.b16 %v3265
    %v4339 = vunpack.c.l.b16 %v3266
    %v4340 = vunpack.c.h.b16 %v3266
    %v4341 = vunpack.c.l.b16 %v3267
    %v4342 = vunpack.c.h.b16 %v3267
    %v4343 = vunpack.c.l.b16 %v3268
    %v4344 = vunpack.c.h.b16 %v3268
    %v4345 = vunpack.c.l.b16 %v3269
    %v4346 = vunpack.c.h.b16 %v3269
    %v4347 = vunpack.c.l.b16 %v3270
    %v4348 = vunpack.c.h.b16 %v3270
    %v4349 = vunpack.c.l.b16 %v3271
    %v4350 = vunpack.c.h.b16 %v3271
    %v4351 = vunpack.c.l.b16 %v3272
    %v4352 = vunpack.c.h.b16 %v3272
    %v4353 = vunpack.c.l.b16 %v3273
    %v4354 = vunpack.c.h.b16 %v3273
    %v4355 = vunpack.c.l.b16 %v3274
    %v4356 = vunpack.c.h.b16 %v3274
    %v4357 = vunpack.c.l.b16 %v3275
    %v4358 = vunpack.c.h.b16 %v3275
    %v4359 = vunpack.c.l.b16 %v3276
    %v4360 = vunpack.c.h.b16 %v3276
    %v4361 = vunpack.c.l.b16 %v3277
    %v4362 = vunpack.c.h.b16 %v3277
    %v4363 = vunpack.c.l.b16 %v3278
    %v4364 = vunpack.c.h.b16 %v3278
    %v4365 = vunpack.c.l.b16 %v3279
    %v4366 = vunpack.c.h.b16 %v3279
    %v4367 = vunpack.c.l.b16 %v3280
    %v4368 = vunpack.c.h.b16 %v3280
    %v4369 = vunpack.c.l.b16 %v3281
    %v4370 = vunpack.c.h.b16 %v3281
    %v4371 = vunpack.c.l.b16 %v3282
    %v4372 = vunpack.c.h.b16 %v3282
    %v4373 = vunpack.c.l.b16 %v3283
    %v4374 = vunpack.c.h.b16 %v3283
    %v4375 = vunpack.c.l.b16 %v3284
    %v4376 = vunpack.c.h.b16 %v3284
    %v4377 = vunpack.c.l.b16 %v3285
    %v4378 = vunpack.c.h.b16 %v3285
    %v4379 = vunpack.c.l.b16 %v3286
    %v4380 = vunpack.c.h.b16 %v3286
    %v4381 = vunpack.c.l.b16 %v3287
    %v4382 = vunpack.c.h.b16 %v3287
    %v4383 = vunpack.c.l.b16 %v3288
    %v4384 = vunpack.c.h.b16 %v3288
    %v4385 = vunpack.c.l.b16 %v3289
    %v4386 = vunpack.c.h.b16 %v3289
    %v4387 = vunpack.c.l.b16 %v3290
    %v4388 = vunpack.c.h.b16 %v3290
    %v4389 = vunpack.c.l.b16 %v3291
    %v4390 = vunpack.c.h.b16 %v3291
    %v4391 = vunpack.c.l.b16 %v3292
    %v4392 = vunpack.c.h.b16 %v3292
    %v4393 = vunpack.c.l.b16 %v3293
    %v4394 = vunpack.c.h.b16 %v3293
    %v4395 = vunpack.c.l.b16 %v3294
    %v4396 = vunpack.c.h.b16 %v3294
    %v4397 = vunpack.c.l.b16 %v3295
    %v4398 = vunpack.c.h.b16 %v3295
    %v4399 = vunpack.c.l.b16 %v3296
    %v4400 = vunpack.c.h.b16 %v3296
    %v4401 = vunpack.c.l.b16 %v3297
    %v4402 = vunpack.c.h.b16 %v3297
    %v4403 = vunpack.c.l.b16 %v3298
    %v4404 = vunpack.c.h.b16 %v3298
    %v4405 = vunpack.c.l.b16 %v3299
    %v4406 = vunpack.c.h.b16 %v3299
    %v4407 = vunpack.c.l.b16 %v3300
    %v4408 = vunpack.c.h.b16 %v3300
    %v4409 = vunpack.c.l.b16 %v3301
    %v4410 = vunpack.c.h.b16 %v3301
    %v4411 = vunpack.c.l.b16 %v3302
    %v4412 = vunpack.c.h.b16 %v3302
    %v4413 = vunpack.c.l.b16 %v3303
    %v4414 = vunpack.c.h.b16 %v3303
    %v4415 = vunpack.c.l.b16 %v3304
    %v4416 = vunpack.c.h.b16 %v3304
    %v4417 = vunpack.c.l.b16 %v3305
    %v4418 = vunpack.c.h.b16 %v3305
    %v4419 = vunpack.c.l.b16 %v3306
    %v4420 = vunpack.c.h.b16 %v3306
    %v4421 = vunpack.c.l.b16 %v3307
    %v4422 = vunpack.c.h.b16 %v3307
    %v4423 = vunpack.c.l.b16 %v3308
    %v4424 = vunpack.c.h.b16 %v3308
    %v4425 = vunpack.c.l.b16 %v3309
    %v4426 = vunpack.c.h.b16 %v3309
    %v4427 = vunpack.c.l.b16 %v3310
    %v4428 = vunpack.c.h.b16 %v3310
    %v4429 = vunpack.c.l.b16 %v3311
    %v4430 = vunpack.c.h.b16 %v3311
    %v4431 = vunpack.c.l.b16 %v3312
    %v4432 = vunpack.c.h.b16 %v3312
    %v4433 = vunpack.c.l.b16 %v3313
    %v4434 = vunpack.c.h.b16 %v3313
    %v4435 = vunpack.c.l.b16 %v3314
    %v4436 = vunpack.c.h.b16 %v3314
    %v4437 = vunpack.c.l.b16 %v3315
    %v4438 = vunpack.c.h.b16 %v3315
    %v4439 = vunpack.c.l.b16 %v3316
    %v4440 = vunpack.c.h.b16 %v3316
    %v4441 = vunpack.c.l.b16 %v3317
    %v4442 = vunpack.c.h.b16 %v3317
    %v4443 = vunpack.c.l.b16 %v3318
    %v4444 = vunpack.c.h.b16 %v3318
    %v4445 = vunpack.c.l.b16 %v3319
    %v4446 = vunpack.c.h.b16 %v3319
    %v4447 = vunpack.c.l.b16 %v3320
    %v4448 = vunpack.c.h.b16 %v3320
    %v4449 = vunpack.c.l.b16 %v3321
    %v4450 = vunpack.c.h.b16 %v3321
    %v4451 = vunpack.c.l.b16 %v3322
    %v4452 = vunpack.c.h.b16 %v3322
    %v4453 = vunpack.c.l.b16 %v3323
    %v4454 = vunpack.c.h.b16 %v3323
    %v4455 = vunpack.c.l.b16 %v3324
    %v4456 = vunpack.c.h.b16 %v3324
    %v4457 = vunpack.c.l.b16 %v3325
    %v4458 = vunpack.c.h.b16 %v3325
    %v4459 = vunpack.c.l.b16 %v3326
    %v4460 = vunpack.c.h.b16 %v3326
    %v4461 = vunpack.c.l.b16 %v3327
    %v4462 = vunpack.c.h.b16 %v3327
    %v4463 = vunpack.c.l.b16 %v3328
    %v4464 = vunpack.c.h.b16 %v3328
    %v4465 = vunpack.c.l.b16 %v3329
    %v4466 = vunpack.c.h.b16 %v3329
    %v4467 = vunpack.c.l.b16 %v3330
    %v4468 = vunpack.c.h.b16 %v3330
    %v4469 = vunpack.c.l.b16 %v3331
    %v4470 = vunpack.c.h.b16 %v3331
    %v4471 = vunpack.c.l.b16 %v3332
    %v4472 = vunpack.c.h.b16 %v3332
    %v4473 = vunpack.c.l.b16 %v3333
    %v4474 = vunpack.c.h.b16 %v3333
    %v4475 = vunpack.c.l.b16 %v3334
    %v4476 = vunpack.c.h.b16 %v3334
    %v4477 = vunpack.c.l.b16 %v3335
    %v4478 = vunpack.c.h.b16 %v3335
    %v4479 = vunpack.c.l.b16 %v3336
    %v4480 = vunpack.c.h.b16 %v3336
    %v4481 = vunpack.c.l.b16 %v3337
    %v4482 = vunpack.c.h.b16 %v3337
    %v4483 = vunpack.c.l.b16 %v3338
    %v4484 = vunpack.c.h.b16 %v3338
    %v4485 = vunpack.c.l.b16 %v3339
    %v4486 = vunpack.c.h.b16 %v3339
    %v4487 = vunpack.c.l.b16 %v3340
    %v4488 = vunpack.c.h.b16 %v3340
    %v4489 = vunpack.c.l.b16 %v3341
    %v4490 = vunpack.c.h.b16 %v3341
    %v4491 = vunpack.c.l.b16 %v3342
    %v4492 = vunpack.c.h.b16 %v3342
    %v4493 = vunpack.c.l.b16 %v3343
    %v4494 = vunpack.c.h.b16 %v3343
    %v4495 = vunpack.c.l.b16 %v3344
    %v4496 = vunpack.c.h.b16 %v3344
    %v4497 = vunpack.c.l.b16 %v3345
    %v4498 = vunpack.c.h.b16 %v3345
    %v4499 = vunpack.c.l.b16 %v3346
    %v4500 = vunpack.c.h.b16 %v3346
    %v4501 = vunpack.c.l.b16 %v3347
    %v4502 = vunpack.c.h.b16 %v3347
    %v4503 = vunpack.c.l.b16 %v3348
    %v4504 = vunpack.c.h.b16 %v3348
    %v4505 = vunpack.c.l.b16 %v3349
    %v4506 = vunpack.c.h.b16 %v3349
    %v4507 = vunpack.c.l.b16 %v3350
    %v4508 = vunpack.c.h.b16 %v3350
    %v4509 = vunpack.c.l.b16 %v3351
    %v4510 = vunpack.c.h.b16 %v3351
    %v4511 = vunpack.c.l.b16 %v3352
    %v4512 = vunpack.c.h.b16 %v3352
    %v4513 = vunpack.c.l.b16 %v3353
    %v4514 = vunpack.c.h.b16 %v3353
    %v4515 = vunpack.c.l.b16 %v3354
    %v4516 = vunpack.c.h.b16 %v3354
    %v4517 = vunpack.c.l.b16 %v3355
    %v4518 = vunpack.c.h.b16 %v3355
    %v4519 = vunpack.c.l.b16 %v3356
    %v4520 = vunpack.c.h.b16 %v3356
    %v4521 = vunpack.c.l.b16 %v3357
    %v4522 = vunpack.c.h.b16 %v3357
    %v4523 = vunpack.c.l.b16 %v3358
    %v4524 = vunpack.c.h.b16 %v3358
    %v4525 = vunpack.c.l.b16 %v3359
    %v4526 = vunpack.c.h.b16 %v3359
    %v4527 = vunpack.c.l.b16 %v3360
    %v4528 = vunpack.c.h.b16 %v3360
    %v4529 = vunpack.c.l.b16 %v3361
    %v4530 = vunpack.c.h.b16 %v3361
    %v4531 = vunpack.c.l.b16 %v3362
    %v4532 = vunpack.c.h.b16 %v3362
    %v4533 = vunpack.c.l.b16 %v3363
    %v4534 = vunpack.c.h.b16 %v3363
    %v4535 = vunpack.c.l.b16 %v3364
    %v4536 = vunpack.c.h.b16 %v3364
    %v4537 = vunpack.c.l.b16 %v3365
    %v4538 = vunpack.c.h.b16 %v3365
    %v4539 = vunpack.c.l.b16 %v3366
    %v4540 = vunpack.c.h.b16 %v3366
    %v4541 = vunpack.c.l.b16 %v3367
    %v4542 = vunpack.c.h.b16 %v3367
    %v4543 = vunpack.c.l.b16 %v3368
    %v4544 = vunpack.c.h.b16 %v3368
    %v4545 = vunpack.c.l.b16 %v3369
    %v4546 = vunpack.c.h.b16 %v3369
    %v4547 = vunpack.c.l.b16 %v3370
    %v4548 = vunpack.c.h.b16 %v3370
    %v4549 = vunpack.c.l.b16 %v3371
    %v4550 = vunpack.c.h.b16 %v3371
    %v4551 = vunpack.c.l.b16 %v3372
    %v4552 = vunpack.c.h.b16 %v3372
    %v4553 = vunpack.c.l.b16 %v3373
    %v4554 = vunpack.c.h.b16 %v3373
    %v4555 = vunpack.c.l.b16 %v3374
    %v4556 = vunpack.c.h.b16 %v3374
    %v4557 = vunpack.c.l.b16 %v3375
    %v4558 = vunpack.c.h.b16 %v3375
    %v4559 = vunpack.c.l.b16 %v3376
    %v4560 = vunpack.c.h.b16 %v3376
    %v4561 = vunpack.c.l.b16 %v3377
    %v4562 = vunpack.c.h.b16 %v3377
    %v4563 = vunpack.c.l.b16 %v3378
    %v4564 = vunpack.c.h.b16 %v3378
    %v4565 = vunpack.c.l.b16 %v3379
    %v4566 = vunpack.c.h.b16 %v3379
    %v4567 = vunpack.c.l.b16 %v3380
    %v4568 = vunpack.c.h.b16 %v3380
    %v4569 = vunpack.c.l.b16 %v3381
    %v4570 = vunpack.c.h.b16 %v3381
    %v4571 = vunpack.c.l.b16 %v3382
    %v4572 = vunpack.c.h.b16 %v3382
    %v4573 = vunpack.c.l.b16 %v3383
    %v4574 = vunpack.c.h.b16 %v3383
    %v4575 = vunpack.c.l.b16 %v3384
    %v4576 = vunpack.c.h.b16 %v3384
    %v4577 = vunpack.c.l.b16 %v3385
    %v4578 = vunpack.c.h.b16 %v3385
    %v4579 = vunpack.c.l.b16 %v3386
    %v4580 = vunpack.c.h.b16 %v3386
    %v4581 = vunpack.c.l.b16 %v3387
    %v4582 = vunpack.c.h.b16 %v3387
    %v4583 = vunpack.c.l.b16 %v3388
    %v4584 = vunpack.c.h.b16 %v3388
    %v4585 = vunpack.c.l.b16 %v3389
    %v4586 = vunpack.c.h.b16 %v3389
    %v4587 = vunpack.c.l.b16 %v3390
    %v4588 = vunpack.c.h.b16 %v3390
    %v4589 = vunpack.c.l.b16 %v3391
    %v4590 = vunpack.c.h.b16 %v3391
    %v4591 = vunpack.c.l.b16 %v3392
    %v4592 = vunpack.c.h.b16 %v3392
    %v4593 = vunpack.c.l.b16 %v3393
    %v4594 = vunpack.c.h.b16 %v3393
    %v4595 = vunpack.c.l.b16 %v3394
    %v4596 = vunpack.c.h.b16 %v3394
    %v4597 = vunpack.c.l.b16 %v3395
    %v4598 = vunpack.c.h.b16 %v3395
    %v4599 = vunpack.c.l.b16 %v3396
    %v4600 = vunpack.c.h.b16 %v3396
    %v4601 = vunpack.c.l.b16 %v3397
    %v4602 = vunpack.c.h.b16 %v3397
    %v4603 = vunpack.c.l.b16 %v3398
    %v4604 = vunpack.c.h.b16 %v3398
    %v4605 = vunpack.c.l.b16 %v3399
    %v4606 = vunpack.c.h.b16 %v3399
    %v4607 = vunpack.c.l.b16 %v3400
    %v4608 = vunpack.c.h.b16 %v3400
    %v4609 = vunpack.c.l.b16 %v3401
    %v4610 = vunpack.c.h.b16 %v3401
    %v4611 = vunpack.c.l.b16 %v3402
    %v4612 = vunpack.c.h.b16 %v3402
    %v4613 = vunpack.c.l.b16 %v3403
    %v4614 = vunpack.c.h.b16 %v3403
    %v4615 = vunpack.c.l.b16 %v3404
    %v4616 = vunpack.c.h.b16 %v3404
    %v4617 = vunpack.c.l.b16 %v3405
    %v4618 = vunpack.c.h.b16 %v3405
    %v4619 = vunpack.c.l.b16 %v3406
    %v4620 = vunpack.c.h.b16 %v3406
    %v4621 = vunpack.c.l.b16 %v3407
    %v4622 = vunpack.c.h.b16 %v3407
    %v4623 = vunpack.c.l.b16 %v3408
    %v4624 = vunpack.c.h.b16 %v3408
    %v4625 = vunpack.c.l.b16 %v3409
    %v4626 = vunpack.c.h.b16 %v3409
    %v4627 = vunpack.c.l.b16 %v3410
    %v4628 = vunpack.c.h.b16 %v3410
    %v4629 = vunpack.c.l.b16 %v3411
    %v4630 = vunpack.c.h.b16 %v3411
    %v4631 = vunpack.c.l.b16 %v3412
    %v4632 = vunpack.c.h.b16 %v3412
    %v4633 = vunpack.c.l.b16 %v3413
    %v4634 = vunpack.c.h.b16 %v3413
    %v4635 = vunpack.c.l.b16 %v3414
    %v4636 = vunpack.c.h.b16 %v3414
    %v4637 = vpack.c.b16 %v3841, %v3837
    %v4638 = vpack.c.b16 %v3842, %v3838
    %v4639 = vpack.c.b16 %v3843, %v3839
    %v4640 = vpack.c.b16 %v3844, %v3840
    %v4641 = vpack.c.b16 %v3849, %v3845
    %v4642 = vpack.c.b16 %v3850, %v3846
    %v4643 = vpack.c.b16 %v3851, %v3847
    %v4644 = vpack.c.b16 %v3852, %v3848
    %v4645 = vpack.c.b16 %v3857, %v3853
    %v4646 = vpack.c.b16 %v3858, %v3854
    %v4647 = vpack.c.b16 %v3859, %v3855
    %v4648 = vpack.c.b16 %v3860, %v3856
    %v4649 = vpack.c.b16 %v3865, %v3861
    %v4650 = vpack.c.b16 %v3866, %v3862
    %v4651 = vpack.c.b16 %v3867, %v3863
    %v4652 = vpack.c.b16 %v3868, %v3864
    %v4653 = vpack.c.b16 %v3873, %v3869
    %v4654 = vpack.c.b16 %v3874, %v3870
    %v4655 = vpack.c.b16 %v3875, %v3871
    %v4656 = vpack.c.b16 %v3876, %v3872
    %v4657 = vpack.c.b16 %v3881, %v3877
    %v4658 = vpack.c.b16 %v3882, %v3878
    %v4659 = vpack.c.b16 %v3883, %v3879
    %v4660 = vpack.c.b16 %v3884, %v3880
    %v4661 = vpack.c.b16 %v3889, %v3885
    %v4662 = vpack.c.b16 %v3890, %v3886
    %v4663 = vpack.c.b16 %v3891, %v3887
    %v4664 = vpack.c.b16 %v3892, %v3888
    %v4665 = vpack.c.b16 %v3897, %v3893
    %v4666 = vpack.c.b16 %v3898, %v3894
    %v4667 = vpack.c.b16 %v3899, %v3895
    %v4668 = vpack.c.b16 %v3900, %v3896
    %v4669 = vpack.c.b16 %v3905, %v3901
    %v4670 = vpack.c.b16 %v3906, %v3902
    %v4671 = vpack.c.b16 %v3907, %v3903
    %v4672 = vpack.c.b16 %v3908, %v3904
    %v4673 = vpack.c.b16 %v3913, %v3909
    %v4674 = vpack.c.b16 %v3914, %v3910
    %v4675 = vpack.c.b16 %v3915, %v3911
    %v4676 = vpack.c.b16 %v3916, %v3912
    %v4677 = vpack.c.b16 %v3921, %v3917
    %v4678 = vpack.c.b16 %v3922, %v3918
    %v4679 = vpack.c.b16 %v3923, %v3919
    %v4680 = vpack.c.b16 %v3924, %v3920
    %v4681 = vpack.c.b16 %v3929, %v3925
    %v4682 = vpack.c.b16 %v3930, %v3926
    %v4683 = vpack.c.b16 %v3931, %v3927
    %v4684 = vpack.c.b16 %v3932, %v3928
    %v4685 = vpack.c.b16 %v3937, %v3933
    %v4686 = vpack.c.b16 %v3938, %v3934
    %v4687 = vpack.c.b16 %v3939, %v3935
    %v4688 = vpack.c.b16 %v3940, %v3936
    %v4689 = vpack.c.b16 %v3945, %v3941
    %v4690 = vpack.c.b16 %v3946, %v3942
    %v4691 = vpack.c.b16 %v3947, %v3943
    %v4692 = vpack.c.b16 %v3948, %v3944
    %v4693 = vpack.c.b16 %v3953, %v3949
    %v4694 = vpack.c.b16 %v3954, %v3950
    %v4695 = vpack.c.b16 %v3955, %v3951
    %v4696 = vpack.c.b16 %v3956, %v3952
    %v4697 = vpack.c.b16 %v3961, %v3957
    %v4698 = vpack.c.b16 %v3962, %v3958
    %v4699 = vpack.c.b16 %v3963, %v3959
    %v4700 = vpack.c.b16 %v3964, %v3960
    %v4701 = vpack.c.b16 %v3969, %v3965
    %v4702 = vpack.c.b16 %v3970, %v3966
    %v4703 = vpack.c.b16 %v3971, %v3967
    %v4704 = vpack.c.b16 %v3972, %v3968
    %v4705 = vpack.c.b16 %v3977, %v3973
    %v4706 = vpack.c.b16 %v3978, %v3974
    %v4707 = vpack.c.b16 %v3979, %v3975
    %v4708 = vpack.c.b16 %v3980, %v3976
    %v4709 = vpack.c.b16 %v3985, %v3981
    %v4710 = vpack.c.b16 %v3986, %v3982
    %v4711 = vpack.c.b16 %v3987, %v3983
    %v4712 = vpack.c.b16 %v3988, %v3984
    %v4713 = vpack.c.b16 %v3993, %v3989
    %v4714 = vpack.c.b16 %v3994, %v3990
    %v4715 = vpack.c.b16 %v3995, %v3991
    %v4716 = vpack.c.b16 %v3996, %v3992
    %v4717 = vpack.c.b16 %v4001, %v3997
    %v4718 = vpack.c.b16 %v4002, %v3998
    %v4719 = vpack.c.b16 %v4003, %v3999
    %v4720 = vpack.c.b16 %v4004, %v4000
    %v4721 = vpack.c.b16 %v4009, %v4005
    %v4722 = vpack.c.b16 %v4010, %v4006
    %v4723 = vpack.c.b16 %v4011, %v4007
    %v4724 = vpack.c.b16 %v4012, %v4008
    %v4725 = vpack.c.b16 %v4017, %v4013
    %v4726 = vpack.c.b16 %v4018, %v4014
    %v4727 = vpack.c.b16 %v4019, %v4015
    %v4728 = vpack.c.b16 %v4020, %v4016
    %v4729 = vpack.c.b16 %v4025, %v4021
    %v4730 = vpack.c.b16 %v4026, %v4022
    %v4731 = vpack.c.b16 %v4027, %v4023
    %v4732 = vpack.c.b16 %v4028, %v4024
    %v4733 = vpack.c.b16 %v4033, %v4029
    %v4734 = vpack.c.b16 %v4034, %v4030
    %v4735 = vpack.c.b16 %v4035, %v4031
    %v4736 = vpack.c.b16 %v4036, %v4032
    %v4737 = vpack.c.b16 %v4041, %v4037
    %v4738 = vpack.c.b16 %v4042, %v4038
    %v4739 = vpack.c.b16 %v4043, %v4039
    %v4740 = vpack.c.b16 %v4044, %v4040
    %v4741 = vpack.c.b16 %v4049, %v4045
    %v4742 = vpack.c.b16 %v4050, %v4046
    %v4743 = vpack.c.b16 %v4051, %v4047
    %v4744 = vpack.c.b16 %v4052, %v4048
    %v4745 = vpack.c.b16 %v4057, %v4053
    %v4746 = vpack.c.b16 %v4058, %v4054
    %v4747 = vpack.c.b16 %v4059, %v4055
    %v4748 = vpack.c.b16 %v4060, %v4056
    %v4749 = vpack.c.b16 %v4065, %v4061
    %v4750 = vpack.c.b16 %v4066, %v4062
    %v4751 = vpack.c.b16 %v4067, %v4063
    %v4752 = vpack.c.b16 %v4068, %v4064
    %v4753 = vpack.c.b16 %v4073, %v4069
    %v4754 = vpack.c.b16 %v4074, %v4070
    %v4755 = vpack.c.b16 %v4075, %v4071
    %v4756 = vpack.c.b16 %v4076, %v4072
    %v4757 = vpack.c.b16 %v4081, %v4077
    %v4758 = vpack.c.b16 %v4082, %v4078
    %v4759 = vpack.c.b16 %v4083, %v4079
    %v4760 = vpack.c.b16 %v4084, %v4080
    %v4761 = vpack.c.b16 %v4089, %v4085
    %v4762 = vpack.c.b16 %v4090, %v4086
    %v4763 = vpack.c.b16 %v4091, %v4087
    %v4764 = vpack.c.b16 %v4092, %v4088
    %v4765 = vpack.c.b16 %v4097, %v4093
    %v4766 = vpack.c.b16 %v4098, %v4094
    %v4767 = vpack.c.b16 %v4099, %v4095
    %v4768 = vpack.c.b16 %v4100, %v4096
    %v4769 = vpack.c.b16 %v4105, %v4101
    %v4770 = vpack.c.b16 %v4106, %v4102
    %v4771 = vpack.c.b16 %v4107, %v4103
    %v4772 = vpack.c.b16 %v4108, %v4104
    %v4773 = vpack.c.b16 %v4113, %v4109
    %v4774 = vpack.c.b16 %v4114, %v4110
    %v4775 = vpack.c.b16 %v4115, %v4111
    %v4776 = vpack.c.b16 %v4116, %v4112
    %v4777 = vpack.c.b16 %v4121, %v4117
    %v4778 = vpack.c.b16 %v4122, %v4118
    %v4779 = vpack.c.b16 %v4123, %v4119
    %v4780 = vpack.c.b16 %v4124, %v4120
    %v4781 = vpack.c.b16 %v4129, %v4125
    %v4782 = vpack.c.b16 %v4130, %v4126
    %v4783 = vpack.c.b16 %v4131, %v4127
    %v4784 = vpack.c.b16 %v4132, %v4128
    %v4785 = vpack.c.b16 %v4137, %v4133
    %v4786 = vpack.c.b16 %v4138, %v4134
    %v4787 = vpack.c.b16 %v4139, %v4135
    %v4788 = vpack.c.b16 %v4140, %v4136
    %v4789 = vpack.c.b16 %v4145, %v4141
    %v4790 = vpack.c.b16 %v4146, %v4142
    %v4791 = vpack.c.b16 %v4147, %v4143
    %v4792 = vpack.c.b16 %v4148, %v4144
    %v4793 = vpack.c.b16 %v4153, %v4149
    %v4794 = vpack.c.b16 %v4154, %v4150
    %v4795 = vpack.c.b16 %v4155, %v4151
    %v4796 = vpack.c.b16 %v4156, %v4152
    %v4797 = vpack.c.b16 %v4161, %v4157
    %v4798 = vpack.c.b16 %v4162, %v4158
    %v4799 = vpack.c.b16 %v4163, %v4159
    %v4800 = vpack.c.b16 %v4164, %v4160
    %v4801 = vpack.c.b16 %v4169, %v4165
    %v4802 = vpack.c.b16 %v4170, %v4166
    %v4803 = vpack.c.b16 %v4171, %v4167
    %v4804 = vpack.c.b16 %v4172, %v4168
    %v4805 = vpack.c.b16 %v4177, %v4173
    %v4806 = vpack.c.b16 %v4178, %v4174
    %v4807 = vpack.c.b16 %v4179, %v4175
    %v4808 = vpack.c.b16 %v4180, %v4176
    %v4809 = vpack.c.b16 %v4185, %v4181
    %v4810 = vpack.c.b16 %v4186, %v4182
    %v4811 = vpack.c.b16 %v4187, %v4183
    %v4812 = vpack.c.b16 %v4188, %v4184
    %v4813 = vpack.c.b16 %v4193, %v4189
    %v4814 = vpack.c.b16 %v4194, %v4190
    %v4815 = vpack.c.b16 %v4195, %v4191
    %v4816 = vpack.c.b16 %v4196, %v4192
    %v4817 = vpack.c.b16 %v4201, %v4197
    %v4818 = vpack.c.b16 %v4202, %v4198
    %v4819 = vpack.c.b16 %v4203, %v4199
    %v4820 = vpack.c.b16 %v4204, %v4200
    %v4821 = vpack.c.b16 %v4209, %v4205
    %v4822 = vpack.c.b16 %v4210, %v4206
    %v4823 = vpack.c.b16 %v4211, %v4207
    %v4824 = vpack.c.b16 %v4212, %v4208
    %v4825 = vpack.c.b16 %v4217, %v4213
    %v4826 = vpack.c.b16 %v4218, %v4214
    %v4827 = vpack.c.b16 %v4219, %v4215
    %v4828 = vpack.c.b16 %v4220, %v4216
    %v4829 = vpack.c.b16 %v4225, %v4221
    %v4830 = vpack.c.b16 %v4226, %v4222
    %v4831 = vpack.c.b16 %v4227, %v4223
    %v4832 = vpack.c.b16 %v4228, %v4224
    %v4833 = vpack.c.b16 %v4233, %v4229
    %v4834 = vpack.c.b16 %v4234, %v4230
    %v4835 = vpack.c.b16 %v4235, %v4231
    %v4836 = vpack.c.b16 %v4236, %v4232
    %v4837 = vpack.c.b16 %v4241, %v4237
    %v4838 = vpack.c.b16 %v4242, %v4238
    %v4839 = vpack.c.b16 %v4243, %v4239
    %v4840 = vpack.c.b16 %v4244, %v4240
    %v4841 = vpack.c.b16 %v4249, %v4245
    %v4842 = vpack.c.b16 %v4250, %v4246
    %v4843 = vpack.c.b16 %v4251, %v4247
    %v4844 = vpack.c.b16 %v4252, %v4248
    %v4845 = vpack.c.b16 %v4257, %v4253
    %v4846 = vpack.c.b16 %v4258, %v4254
    %v4847 = vpack.c.b16 %v4259, %v4255
    %v4848 = vpack.c.b16 %v4260, %v4256
    %v4849 = vpack.c.b16 %v4265, %v4261
    %v4850 = vpack.c.b16 %v4266, %v4262
    %v4851 = vpack.c.b16 %v4267, %v4263
    %v4852 = vpack.c.b16 %v4268, %v4264
    %v4853 = vpack.c.b16 %v4273, %v4269
    %v4854 = vpack.c.b16 %v4274, %v4270
    %v4855 = vpack.c.b16 %v4275, %v4271
    %v4856 = vpack.c.b16 %v4276, %v4272
    %v4857 = vpack.c.b16 %v4281, %v4277
    %v4858 = vpack.c.b16 %v4282, %v4278
    %v4859 = vpack.c.b16 %v4283, %v4279
    %v4860 = vpack.c.b16 %v4284, %v4280
    %v4861 = vpack.c.b16 %v4289, %v4285
    %v4862 = vpack.c.b16 %v4290, %v4286
    %v4863 = vpack.c.b16 %v4291, %v4287
    %v4864 = vpack.c.b16 %v4292, %v4288
    %v4865 = vpack.c.b16 %v4297, %v4293
    %v4866 = vpack.c.b16 %v4298, %v4294
    %v4867 = vpack.c.b16 %v4299, %v4295
    %v4868 = vpack.c.b16 %v4300, %v4296
    %v4869 = vpack.c.b16 %v4305, %v4301
    %v4870 = vpack.c.b16 %v4306, %v4302
    %v4871 = vpack.c.b16 %v4307, %v4303
    %v4872 = vpack.c.b16 %v4308, %v4304
    %v4873 = vpack.c.b16 %v4313, %v4309
    %v4874 = vpack.c.b16 %v4314, %v4310
    %v4875 = vpack.c.b16 %v4315, %v4311
    %v4876 = vpack.c.b16 %v4316, %v4312
    %v4877 = vpack.c.b16 %v4321, %v4317
    %v4878 = vpack.c.b16 %v4322, %v4318
    %v4879 = vpack.c.b16 %v4323, %v4319
    %v4880 = vpack.c.b16 %v4324, %v4320
    %v4881 = vpack.c.b16 %v4329, %v4325
    %v4882 = vpack.c.b16 %v4330, %v4326
    %v4883 = vpack.c.b16 %v4331, %v4327
    %v4884 = vpack.c.b16 %v4332, %v4328
    %v4885 = vpack.c.b16 %v4337, %v4333
    %v4886 = vpack.c.b16 %v4338, %v4334
    %v4887 = vpack.c.b16 %v4339, %v4335
    %v4888 = vpack.c.b16 %v4340, %v4336
    %v4889 = vpack.c.b16 %v4345, %v4341
    %v4890 = vpack.c.b16 %v4346, %v4342
    %v4891 = vpack.c.b16 %v4347, %v4343
    %v4892 = vpack.c.b16 %v4348, %v4344
    %v4893 = vpack.c.b16 %v4353, %v4349
    %v4894 = vpack.c.b16 %v4354, %v4350
    %v4895 = vpack.c.b16 %v4355, %v4351
    %v4896 = vpack.c.b16 %v4356, %v4352
    %v4897 = vpack.c.b16 %v4361, %v4357
    %v4898 = vpack.c.b16 %v4362, %v4358
    %v4899 = vpack.c.b16 %v4363, %v4359
    %v4900 = vpack.c.b16 %v4364, %v4360
    %v4901 = vpack.c.b16 %v4369, %v4365
    %v4902 = vpack.c.b16 %v4370, %v4366
    %v4903 = vpack.c.b16 %v4371, %v4367
    %v4904 = vpack.c.b16 %v4372, %v4368
    %v4905 = vpack.c.b16 %v4377, %v4373
    %v4906 = vpack.c.b16 %v4378, %v4374
    %v4907 = vpack.c.b16 %v4379, %v4375
    %v4908 = vpack.c.b16 %v4380, %v4376
    %v4909 = vpack.c.b16 %v4385, %v4381
    %v4910 = vpack.c.b16 %v4386, %v4382
    %v4911 = vpack.c.b16 %v4387, %v4383
    %v4912 = vpack.c.b16 %v4388, %v4384
    %v4913 = vpack.c.b16 %v4393, %v4389
    %v4914 = vpack.c.b16 %v4394, %v4390
    %v4915 = vpack.c.b16 %v4395, %v4391
    %v4916 = vpack.c.b16 %v4396, %v4392
    %v4917 = vpack.c.b16 %v4401, %v4397
    %v4918 = vpack.c.b16 %v4402, %v4398
    %v4919 = vpack.c.b16 %v4403, %v4399
    %v4920 = vpack.c.b16 %v4404, %v4400
    %v4921 = vpack.c.b16 %v4409, %v4405
    %v4922 = vpack.c.b16 %v4410, %v4406
    %v4923 = vpack.c.b16 %v4411, %v4407
    %v4924 = vpack.c.b16 %v4412, %v4408
    %v4925 = vpack.c.b16 %v4417, %v4413
    %v4926 = vpack.c.b16 %v4418, %v4414
    %v4927 = vpack.c.b16 %v4419, %v4415
    %v4928 = vpack.c.b16 %v4420, %v4416
    %v4929 = vpack.c.b16 %v4425, %v4421
    %v4930 = vpack.c.b16 %v4426, %v4422
    %v4931 = vpack.c.b16 %v4427, %v4423
    %v4932 = vpack.c.b16 %v4428, %v4424
    %v4933 = vpack.c.b16 %v4433, %v4429
    %v4934 = vpack.c.b16 %v4434, %v4430
    %v4935 = vpack.c.b16 %v4435, %v4431
    %v4936 = vpack.c.b16 %v4436, %v4432
    %v4937 = vpack.c.b16 %v4441, %v4437
    %v4938 = vpack.c.b16 %v4442, %v4438
    %v4939 = vpack.c.b16 %v4443, %v4439
    %v4940 = vpack.c.b16 %v4444, %v4440
    %v4941 = vpack.c.b16 %v4449, %v4445
    %v4942 = vpack.c.b16 %v4450, %v4446
    %v4943 = vpack.c.b16 %v4451, %v4447
    %v4944 = vpack.c.b16 %v4452, %v4448
    %v4945 = vpack.c.b16 %v4457, %v4453
    %v4946 = vpack.c.b16 %v4458, %v4454
    %v4947 = vpack.c.b16 %v4459, %v4455
    %v4948 = vpack.c.b16 %v4460, %v4456
    %v4949 = vpack.c.b16 %v4465, %v4461
    %v4950 = vpack.c.b16 %v4466, %v4462
    %v4951 = vpack.c.b16 %v4467, %v4463
    %v4952 = vpack.c.b16 %v4468, %v4464
    %v4953 = vpack.c.b16 %v4473, %v4469
    %v4954 = vpack.c.b16 %v4474, %v4470
    %v4955 = vpack.c.b16 %v4475, %v4471
    %v4956 = vpack.c.b16 %v4476, %v4472
    %v4957 = vpack.c.b16 %v4481, %v4477
    %v4958 = vpack.c.b16 %v4482, %v4478
    %v4959 = vpack.c.b16 %v4483, %v4479
    %v4960 = vpack.c.b16 %v4484, %v4480
    %v4961 = vpack.c.b16 %v4489, %v4485
    %v4962 = vpack.c.b16 %v4490, %v4486
    %v4963 = vpack.c.b16 %v4491, %v4487
    %v4964 = vpack.c.b16 %v4492, %v4488
    %v4965 = vpack.c.b16 %v4497, %v4493
    %v4966 = vpack.c.b16 %v4498, %v4494
    %v4967 = vpack.c.b16 %v4499, %v4495
    %v4968 = vpack.c.b16 %v4500, %v4496
    %v4969 = vpack.c.b16 %v4505, %v4501
    %v4970 = vpack.c.b16 %v4506, %v4502
    %v4971 = vpack.c.b16 %v4507, %v4503
    %v4972 = vpack.c.b16 %v4508, %v4504
    %v4973 = vpack.c.b16 %v4513, %v4509
    %v4974 = vpack.c.b16 %v4514, %v4510
    %v4975 = vpack.c.b16 %v4515, %v4511
    %v4976 = vpack.c.b16 %v4516, %v4512
    %v4977 = vpack.c.b16 %v4521, %v4517
    %v4978 = vpack.c.b16 %v4522, %v4518
    %v4979 = vpack.c.b16 %v4523, %v4519
    %v4980 = vpack.c.b16 %v4524, %v4520
    %v4981 = vpack.c.b16 %v4529, %v4525
    %v4982 = vpack.c.b16 %v4530, %v4526
    %v4983 = vpack.c.b16 %v4531, %v4527
    %v4984 = vpack.c.b16 %v4532, %v4528
    %v4985 = vpack.c.b16 %v4537, %v4533
    %v4986 = vpack.c.b16 %v4538, %v4534
    %v4987 = vpack.c.b16 %v4539, %v4535
    %v4988 = vpack.c.b16 %v4540, %v4536
    %v4989 = vpack.c.b16 %v4545, %v4541
    %v4990 = vpack.c.b16 %v4546, %v4542
    %v4991 = vpack.c.b16 %v4547, %v4543
    %v4992 = vpack.c.b16 %v4548, %v4544
    %v4993 = vpack.c.b16 %v4553, %v4549
    %v4994 = vpack.c.b16 %v4554, %v4550
    %v4995 = vpack.c.b16 %v4555, %v4551
    %v4996 = vpack.c.b16 %v4556, %v4552
    %v4997 = vpack.c.b16 %v4561, %v4557
    %v4998 = vpack.c.b16 %v4562, %v4558
    %v4999 = vpack.c.b16 %v4563, %v4559
    %v5000 = vpack.c.b16 %v4564, %v4560
    %v5001 = vpack.c.b16 %v4569, %v4565
    %v5002 = vpack.c.b16 %v4570, %v4566
    %v5003 = vpack.c.b16 %v4571, %v4567
    %v5004 = vpack.c.b16 %v4572, %v4568
    %v5005 = vpack.c.b16 %v4577, %v4573
    %v5006 = vpack.c.b16 %v4578, %v4574
    %v5007 = vpack.c.b16 %v4579, %v4575
    %v5008 = vpack.c.b16 %v4580, %v4576
    %v5009 = vpack.c.b16 %v4585, %v4581
    %v5010 = vpack.c.b16 %v4586, %v4582
    %v5011 = vpack.c.b16 %v4587, %v4583
    %v5012 = vpack.c.b16 %v4588, %v4584
    %v5013 = vpack.c.b16 %v4593, %v4589
    %v5014 = vpack.c.b16 %v4594, %v4590
    %v5015 = vpack.c.b16 %v4595, %v4591
    %v5016 = vpack.c.b16 %v4596, %v4592
    %v5017 = vpack.c.b16 %v4601, %v4597
    %v5018 = vpack.c.b16 %v4602, %v4598
    %v5019 = vpack.c.b16 %v4603, %v4599
    %v5020 = vpack.c.b16 %v4604, %v4600
    %v5021 = vpack.c.b16 %v4609, %v4605
    %v5022 = vpack.c.b16 %v4610, %v4606
    %v5023 = vpack.c.b16 %v4611, %v4607
    %v5024 = vpack.c.b16 %v4612, %v4608
    %v5025 = vpack.c.b16 %v4617, %v4613
    %v5026 = vpack.c.b16 %v4618, %v4614
    %v5027 = vpack.c.b16 %v4619, %v4615
    %v5028 = vpack.c.b16 %v4620, %v4616
    %v5029 = vpack.c.b16 %v4625, %v4621
    %v5030 = vpack.c.b16 %v4626, %v4622
    %v5031 = vpack.c.b16 %v4627, %v4623
    %v5032 = vpack.c.b16 %v4628, %v4624
    %v5033 = vpack.c.b16 %v4633, %v4629
    %v5034 = vpack.c.b16 %v4634, %v4630
    %v5035 = vpack.c.b16 %v4635, %v4631
    %v5036 = vpack.c.b16 %v4636, %v4632
    %v5438 = vsel %vm179, %v3014, 0
    %5440 = vmatprep.subr.bf16.mxu0 %v4638
    %5441 = vmatpush1.bf16.msra.mxu0 %v4637
    %5442 = vmatprep.subr.bf16.mxu0 %v4642
    %5443 = vmatpush1.bf16.msra.mxu0 %v4641
    %5444 = vmatprep.subr.bf16.mxu0 %v4646
    %5445 = vmatpush1.bf16.msra.mxu0 %v4645
    %5446 = vmatprep.subr.bf16.mxu0 %v4650
    %5447 = vmatpush1.bf16.msra.mxu0 %v4649
    %5448 = vmatprep.subr.bf16.mxu0 %v4654
    %5449 = vmatpush1.bf16.msra.mxu0 %v4653
    %5450 = vmatprep.subr.bf16.mxu0 %v4658
    %5451 = vmatpush1.bf16.msra.mxu0 %v4657
    %5452 = vmatprep.subr.bf16.mxu0 %v4662
    %5453 = vmatpush1.bf16.msra.mxu0 %v4661
    %5454 = vmatprep.subr.bf16.mxu0 %v4666
    %5455 = vmatpush1.bf16.msra.mxu0 %v4665
    %5456 = vmatprep.subr.bf16.mxu0 %v4670
    %5457 = vmatpush1.bf16.msra.mxu0 %v4669
    %5458 = vmatprep.subr.bf16.mxu0 %v4674
    %5459 = vmatpush1.bf16.msra.mxu0 %v4673
    %5460 = vmatprep.subr.bf16.mxu0 %v4678
    %5461 = vmatpush1.bf16.msra.mxu0 %v4677
    %5462 = vmatprep.subr.bf16.mxu0 %v4682
    %5463 = vmatpush1.bf16.msra.mxu0 %v4681
    %5464 = vmatprep.subr.bf16.mxu0 %v4686
    %5465 = vmatpush1.bf16.msra.mxu0 %v4685
    %5466 = vmatprep.subr.bf16.mxu0 %v4690
    %5467 = vmatpush1.bf16.msra.mxu0 %v4689
    %5468 = vmatprep.subr.bf16.mxu0 %v4694
    %5469 = vmatpush1.bf16.msra.mxu0 %v4693
    %5470 = vmatprep.subr.bf16.mxu0 %v4698
    %5471 = vmatpush1.bf16.msra.mxu0 %v4697
    %5472 = vmatprep.mubr.bf16.mxu0 %v3003
    %5473 = vmatmul.mubr.bf16.gmra.mrb[0].mxu0 %v3002
    %v5474 = vpop.f32.mrb[0].mxu0
    %v5475 = vadd.f32 %v3420, %v5474
    %v5476 = vpop.f32.mrb[0].mxu0
    %v5477 = vadd.f32 %v3424, %v5476
    %v5478 = vpop.f32.mrb[0].mxu0
    %v5479 = vpop.f32.mrb[0].mxu0
    %5480 = vdwg.mxu0
    %5481 = vmatprep.subr.bf16.mxu0 %v4702
    %5482 = vmatpush1.bf16.msra.mxu0 %v4701
    %5483 = vmatprep.subr.bf16.mxu0 %v4706
    %5484 = vmatpush1.bf16.msra.mxu0 %v4705
    %5485 = vmatprep.subr.bf16.mxu0 %v4710
    %5486 = vmatpush1.bf16.msra.mxu0 %v4709
    %5487 = vmatprep.subr.bf16.mxu0 %v4714
    %5488 = vmatpush1.bf16.msra.mxu0 %v4713
    %5489 = vmatprep.subr.bf16.mxu0 %v4718
    %5490 = vmatpush1.bf16.msra.mxu0 %v4717
    %5491 = vmatprep.subr.bf16.mxu0 %v4722
    %5492 = vmatpush1.bf16.msra.mxu0 %v4721
    %5493 = vmatprep.subr.bf16.mxu0 %v4726
    %5494 = vmatpush1.bf16.msra.mxu0 %v4725
    %5495 = vmatprep.subr.bf16.mxu0 %v4730
    %5496 = vmatpush1.bf16.msra.mxu0 %v4729
    %5497 = vmatprep.subr.bf16.mxu0 %v4734
    %5498 = vmatpush1.bf16.msra.mxu0 %v4733
    %5499 = vmatprep.subr.bf16.mxu0 %v4738
    %5500 = vmatpush1.bf16.msra.mxu0 %v4737
    %5501 = vmatprep.subr.bf16.mxu0 %v4742
    %5502 = vmatpush1.bf16.msra.mxu0 %v4741
    %5503 = vmatprep.subr.bf16.mxu0 %v4746
    %5504 = vmatpush1.bf16.msra.mxu0 %v4745
    %5505 = vmatprep.subr.bf16.mxu0 %v4750
    %5506 = vmatpush1.bf16.msra.mxu0 %v4749
    %5507 = vmatprep.subr.bf16.mxu0 %v4754
    %5508 = vmatpush1.bf16.msra.mxu0 %v4753
    %5509 = vmatprep.subr.bf16.mxu0 %v4758
    %5510 = vmatpush1.bf16.msra.mxu0 %v4757
    %5511 = vmatprep.subr.bf16.mxu0 %v4762
    %5512 = vmatpush1.bf16.msra.mxu0 %v4761
    %5513 = vmatprep.mubr.bf16.mxu0 %v3005
    %5514 = vmatmul.mubr.bf16.gmra.mrb[0].mxu0 %v3004
    %v5515 = vpop.f32.mrb[0].mxu0
    %v5516 = vadd.f32 %v5475, %v5515
    %v5517 = vpop.f32.mrb[0].mxu0
    %v5518 = vadd.f32 %v5477, %v5517
    %v5519 = vpop.f32.mrb[0].mxu0
    %v5520 = vpop.f32.mrb[0].mxu0
    %5521 = vdwg.mxu0
    %5522 = vmatprep.subr.bf16.mxu0 %v4766
    %5523 = vmatpush1.bf16.msra.mxu0 %v4765
    %5524 = vmatprep.subr.bf16.mxu0 %v4770
    %5525 = vmatpush1.bf16.msra.mxu0 %v4769
    %5526 = vmatprep.subr.bf16.mxu0 %v4774
    %5527 = vmatpush1.bf16.msra.mxu0 %v4773
    %5528 = vmatprep.subr.bf16.mxu0 %v4778
    %5529 = vmatpush1.bf16.msra.mxu0 %v4777
    %5530 = vmatprep.subr.bf16.mxu0 %v4782
    %5531 = vmatpush1.bf16.msra.mxu0 %v4781
    %5532 = vmatprep.subr.bf16.mxu0 %v4786
    %5533 = vmatpush1.bf16.msra.mxu0 %v4785
    %5534 = vmatprep.subr.bf16.mxu0 %v4790
    %5535 = vmatpush1.bf16.msra.mxu0 %v4789
    %5536 = vmatprep.subr.bf16.mxu0 %v4794
    %5537 = vmatpush1.bf16.msra.mxu0 %v4793
    %5538 = vmatprep.subr.bf16.mxu0 %v4798
    %5539 = vmatpush1.bf16.msra.mxu0 %v4797
    %5540 = vmatprep.subr.bf16.mxu0 %v4802
    %5541 = vmatpush1.bf16.msra.mxu0 %v4801
    %5542 = vmatprep.subr.bf16.mxu0 %v4806
    %5543 = vmatpush1.bf16.msra.mxu0 %v4805
    %5544 = vmatprep.subr.bf16.mxu0 %v4810
    %5545 = vmatpush1.bf16.msra.mxu0 %v4809
    %5546 = vmatprep.subr.bf16.mxu0 %v4814
    %5547 = vmatpush1.bf16.msra.mxu0 %v4813
    %5548 = vmatprep.subr.bf16.mxu0 %v4818
    %5549 = vmatpush1.bf16.msra.mxu0 %v4817
    %5550 = vmatprep.subr.bf16.mxu0 %v4822
    %5551 = vmatpush1.bf16.msra.mxu0 %v4821
    %5552 = vmatprep.subr.bf16.mxu0 %v4826
    %5553 = vmatpush1.bf16.msra.mxu0 %v4825
    %5554 = vmatprep.mubr.bf16.mxu0 %v3007
    %5555 = vmatmul.mubr.bf16.gmra.mrb[0].mxu0 %v3006
    %v5556 = vpop.f32.mrb[0].mxu0
    %v5557 = vadd.f32 %v5516, %v5556
    %v5558 = vpop.f32.mrb[0].mxu0
    %v5559 = vadd.f32 %v5518, %v5558
    %v5560 = vpop.f32.mrb[0].mxu0
    %v5561 = vpop.f32.mrb[0].mxu0
    %5562 = vdwg.mxu0
    %5563 = vmatprep.subr.bf16.mxu0 %v4830
    %5564 = vmatpush1.bf16.msra.mxu0 %v4829
    %5565 = vmatprep.subr.bf16.mxu0 %v4834
    %5566 = vmatpush1.bf16.msra.mxu0 %v4833
    %5567 = vmatprep.subr.bf16.mxu0 %v4838
    %5568 = vmatpush1.bf16.msra.mxu0 %v4837
    %5569 = vmatprep.subr.bf16.mxu0 %v4842
    %5570 = vmatpush1.bf16.msra.mxu0 %v4841
    %5571 = vmatprep.subr.bf16.mxu0 %v4846
    %5572 = vmatpush1.bf16.msra.mxu0 %v4845
    %5573 = vmatprep.subr.bf16.mxu0 %v4850
    %5574 = vmatpush1.bf16.msra.mxu0 %v4849
    %5575 = vmatprep.subr.bf16.mxu0 %v4854
    %5576 = vmatpush1.bf16.msra.mxu0 %v4853
    %5577 = vmatprep.subr.bf16.mxu0 %v4858
    %5578 = vmatpush1.bf16.msra.mxu0 %v4857
    %5579 = vmatprep.subr.bf16.mxu0 %v4862
    %5580 = vmatpush1.bf16.msra.mxu0 %v4861
    %5581 = vmatprep.subr.bf16.mxu0 %v4866
    %5582 = vmatpush1.bf16.msra.mxu0 %v4865
    %5583 = vmatprep.subr.bf16.mxu0 %v4870
    %5584 = vmatpush1.bf16.msra.mxu0 %v4869
    %5585 = vmatprep.subr.bf16.mxu0 %v4874
    %5586 = vmatpush1.bf16.msra.mxu0 %v4873
    %5587 = vmatprep.subr.bf16.mxu0 %v4878
    %5588 = vmatpush1.bf16.msra.mxu0 %v4877
    %5589 = vmatprep.subr.bf16.mxu0 %v4882
    %5590 = vmatpush1.bf16.msra.mxu0 %v4881
    %5591 = vmatprep.subr.bf16.mxu0 %v4886
    %5592 = vmatpush1.bf16.msra.mxu0 %v4885
    %5593 = vmatprep.subr.bf16.mxu0 %v4890
    %5594 = vmatpush1.bf16.msra.mxu0 %v4889
    %5595 = vmatprep.mubr.bf16.mxu0 %v3009
    %5596 = vmatmul.mubr.bf16.gmra.mrb[0].mxu0 %v3008
    %v5597 = vpop.f32.mrb[0].mxu0
    %v5598 = vadd.f32 %v5557, %v5597
    %v5599 = vpop.f32.mrb[0].mxu0
    %v5600 = vadd.f32 %v5559, %v5599
    %v5601 = vpop.f32.mrb[0].mxu0
    %v5602 = vpop.f32.mrb[0].mxu0
    %5603 = vdwg.mxu0
    %5604 = vmatprep.subr.bf16.mxu0 %v4894
    %5605 = vmatpush1.bf16.msra.mxu0 %v4893
    %5606 = vmatprep.subr.bf16.mxu0 %v4898
    %5607 = vmatpush1.bf16.msra.mxu0 %v4897
    %5608 = vmatprep.subr.bf16.mxu0 %v4902
    %5609 = vmatpush1.bf16.msra.mxu0 %v4901
    %5610 = vmatprep.subr.bf16.mxu0 %v4906
    %5611 = vmatpush1.bf16.msra.mxu0 %v4905
    %5612 = vmatprep.subr.bf16.mxu0 %v4910
    %5613 = vmatpush1.bf16.msra.mxu0 %v4909
    %5614 = vmatprep.subr.bf16.mxu0 %v4914
    %5615 = vmatpush1.bf16.msra.mxu0 %v4913
    %5616 = vmatprep.subr.bf16.mxu0 %v4918
    %5617 = vmatpush1.bf16.msra.mxu0 %v4917
    %5618 = vmatprep.subr.bf16.mxu0 %v4922
    %5619 = vmatpush1.bf16.msra.mxu0 %v4921
    %5620 = vmatprep.subr.bf16.mxu0 %v4926
    %5621 = vmatpush1.bf16.msra.mxu0 %v4925
    %5622 = vmatprep.subr.bf16.mxu0 %v4930
    %5623 = vmatpush1.bf16.msra.mxu0 %v4929
    %5624 = vmatprep.subr.bf16.mxu0 %v4934
    %5625 = vmatpush1.bf16.msra.mxu0 %v4933
    %5626 = vmatprep.subr.bf16.mxu0 %v4938
    %5627 = vmatpush1.bf16.msra.mxu0 %v4937
    %5628 = vmatprep.subr.bf16.mxu0 %v4942
    %5629 = vmatpush1.bf16.msra.mxu0 %v4941
    %5630 = vmatprep.subr.bf16.mxu0 %v4946
    %5631 = vmatpush1.bf16.msra.mxu0 %v4945
    %5632 = vmatprep.subr.bf16.mxu0 %v4950
    %5633 = vmatpush1.bf16.msra.mxu0 %v4949
    %5634 = vmatprep.subr.bf16.mxu0 %v4954
    %5635 = vmatpush1.bf16.msra.mxu0 %v4953
    %5636 = vmatprep.mubr.bf16.mxu0 %v3011
    %5637 = vmatmul.mubr.bf16.gmra.mrb[0].mxu0 %v3010
    %v5638 = vpop.f32.mrb[0].mxu0
    %v5639 = vadd.f32 %v5598, %v5638
    %v5640 = vpop.f32.mrb[0].mxu0
    %v5641 = vadd.f32 %v5600, %v5640
    %v5642 = vpop.f32.mrb[0].mxu0
    %v5643 = vpop.f32.mrb[0].mxu0
    %5644 = vdwg.mxu0
    %5645 = vmatprep.subr.bf16.mxu0 %v4958
    %5646 = vmatpush1.bf16.msra.mxu0 %v4957
    %5647 = vmatprep.subr.bf16.mxu0 %v4962
    %5648 = vmatpush1.bf16.msra.mxu0 %v4961
    %5649 = vmatprep.subr.bf16.mxu0 %v4966
    %5650 = vmatpush1.bf16.msra.mxu0 %v4965
    %5651 = vmatprep.subr.bf16.mxu0 %v4970
    %5652 = vmatpush1.bf16.msra.mxu0 %v4969
    %5653 = vmatprep.subr.bf16.mxu0 %v4974
    %5654 = vmatpush1.bf16.msra.mxu0 %v4973
    %5655 = vmatprep.subr.bf16.mxu0 %v4978
    %5656 = vmatpush1.bf16.msra.mxu0 %v4977
    %5657 = vmatprep.subr.bf16.mxu0 %v4982
    %5658 = vmatpush1.bf16.msra.mxu0 %v4981
    %5659 = vmatprep.subr.bf16.mxu0 %v4986
    %5660 = vmatpush1.bf16.msra.mxu0 %v4985
    %5661 = vmatprep.subr.bf16.mxu0 %v4990
    %5662 = vmatpush1.bf16.msra.mxu0 %v4989
    %5663 = vmatprep.subr.bf16.mxu0 %v4994
    %5664 = vmatpush1.bf16.msra.mxu0 %v4993
    %5665 = vmatprep.subr.bf16.mxu0 %v4998
    %5666 = vmatpush1.bf16.msra.mxu0 %v4997
    %5667 = vmatprep.subr.bf16.mxu0 %v5002
    %5668 = vmatpush1.bf16.msra.mxu0 %v5001
    %5669 = vmatprep.subr.bf16.mxu0 %v5006
    %5670 = vmatpush1.bf16.msra.mxu0 %v5005
    %5671 = vmatprep.subr.bf16.mxu0 %v5010
    %5672 = vmatpush1.bf16.msra.mxu0 %v5009
    %5673 = vmatprep.subr.bf16.mxu0 %v5014
    %5674 = vmatpush1.bf16.msra.mxu0 %v5013
    %5675 = vmatprep.subr.bf16.mxu0 %v5018
    %5676 = vmatpush1.bf16.msra.mxu0 %v5017
    %5677 = vmatprep.mubr.bf16.mxu0 %v3013
    %5678 = vmatmul.mubr.bf16.gmra.mrb[0].mxu0 %v3012
    %v5679 = vpop.f32.mrb[0].mxu0
    %v5680 = vadd.f32 %v5639, %v5679
    %v5681 = vpop.f32.mrb[0].mxu0
    %v5682 = vadd.f32 %v5641, %v5681
    %v5683 = vpop.f32.mrb[0].mxu0
    %v5684 = vpop.f32.mrb[0].mxu0
    %5685 = vdwg.mxu0
    %5686 = vmatprep.subr.bf16.mxu0 %v5022
    %5687 = vmatpush1.bf16.msra.mxu0 %v5021
    %5688 = vmatprep.subr.bf16.mxu0 %v5026
    %5689 = vmatpush1.bf16.msra.mxu0 %v5025
    %5690 = vmatprep.subr.bf16.mxu0 %v5030
    %5691 = vmatpush1.bf16.msra.mxu0 %v5029
    %5692 = vmatprep.subr.bf16.mxu0 %v5034
    %5693 = vmatpush1.bf16.msra.mxu0 %v5033
    %5694 = vmatprep.subr.bf16.mxu0 0
    %5695 = vmatpush1.bf16.msra.mxu0 0
    %5696 = vmatprep.subr.bf16.mxu0 0
    %5697 = vmatpush1.bf16.msra.mxu0 0
    %5698 = vmatprep.subr.bf16.mxu0 0
    %5699 = vmatpush1.bf16.msra.mxu0 0
    %5700 = vmatprep.subr.bf16.mxu0 0
    %5701 = vmatpush1.bf16.msra.mxu0 0
    %5702 = vmatprep.subr.bf16.mxu0 0
    %5703 = vmatpush1.bf16.msra.mxu0 0
    %5704 = vmatprep.subr.bf16.mxu0 0
    %5705 = vmatpush1.bf16.msra.mxu0 0
    %5706 = vmatprep.subr.bf16.mxu0 0
    %5707 = vmatpush1.bf16.msra.mxu0 0
    %5708 = vmatprep.subr.bf16.mxu0 0
    %5709 = vmatpush1.bf16.msra.mxu0 0
    %5710 = vmatprep.subr.bf16.mxu0 0
    %5711 = vmatpush1.bf16.msra.mxu0 0
    %5712 = vmatprep.subr.bf16.mxu0 0
    %5713 = vmatpush1.bf16.msra.mxu0 0
    %5714 = vmatprep.subr.bf16.mxu0 0
    %5715 = vmatpush1.bf16.msra.mxu0 0
    %5716 = vmatprep.subr.bf16.mxu0 0
    %5717 = vmatpush1.bf16.msra.mxu0 0
    %5718 = vmatprep.mubr.bf16.mxu0 0
    %5719 = vmatmul.mubr.bf16.gmra.mrb[0].mxu0 %v5438
    %v5720 = vpop.f32.mrb[0].mxu0
    %v5721 = vadd.f32 %v5680, %v5720
    %v5722 = vpop.f32.mrb[0].mxu0
    %v5723 = vadd.f32 %v5682, %v5722
    %v5724 = vpop.f32.mrb[0].mxu0
    %v5725 = vpop.f32.mrb[0].mxu0
    %5726 = vdwg.mxu0
    %5727 = vmatprep.subr.bf16.mxu0 %v4640
    %5728 = vmatpush1.bf16.msra.mxu0 %v4639
    %5729 = vmatprep.subr.bf16.mxu0 %v4644
    %5730 = vmatpush1.bf16.msra.mxu0 %v4643
    %5731 = vmatprep.subr.bf16.mxu0 %v4648
    %5732 = vmatpush1.bf16.msra.mxu0 %v4647
    %5733 = vmatprep.subr.bf16.mxu0 %v4652
    %5734 = vmatpush1.bf16.msra.mxu0 %v4651
    %5735 = vmatprep.subr.bf16.mxu0 %v4656
    %5736 = vmatpush1.bf16.msra.mxu0 %v4655
    %5737 = vmatprep.subr.bf16.mxu0 %v4660
    %5738 = vmatpush1.bf16.msra.mxu0 %v4659
    %5739 = vmatprep.subr.bf16.mxu0 %v4664
    %5740 = vmatpush1.bf16.msra.mxu0 %v4663
    %5741 = vmatprep.subr.bf16.mxu0 %v4668
    %5742 = vmatpush1.bf16.msra.mxu0 %v4667
    %5743 = vmatprep.subr.bf16.mxu0 %v4672
    %5744 = vmatpush1.bf16.msra.mxu0 %v4671
    %5745 = vmatprep.subr.bf16.mxu0 %v4676
    %5746 = vmatpush1.bf16.msra.mxu0 %v4675
    %5747 = vmatprep.subr.bf16.mxu0 %v4680
    %5748 = vmatpush1.bf16.msra.mxu0 %v4679
    %5749 = vmatprep.subr.bf16.mxu0 %v4684
    %5750 = vmatpush1.bf16.msra.mxu0 %v4683
    %5751 = vmatprep.subr.bf16.mxu0 %v4688
    %5752 = vmatpush1.bf16.msra.mxu0 %v4687
    %5753 = vmatprep.subr.bf16.mxu0 %v4692
    %5754 = vmatpush1.bf16.msra.mxu0 %v4691
    %5755 = vmatprep.subr.bf16.mxu0 %v4696
    %5756 = vmatpush1.bf16.msra.mxu0 %v4695
    %5757 = vmatprep.subr.bf16.mxu0 %v4700
    %5758 = vmatpush1.bf16.msra.mxu0 %v4699
    %5759 = vmatprep.mubr.bf16.mxu0 %v3003
    %5760 = vmatmul.mubr.bf16.gmra.mrb[0].mxu0 %v3002
    %v5761 = vpop.f32.mrb[0].mxu0
    %v5762 = vadd.f32 %v3428, %v5761
    %v5763 = vpop.f32.mrb[0].mxu0
    %v5764 = vadd.f32 %v3432, %v5763
    %v5765 = vpop.f32.mrb[0].mxu0
    %v5766 = vpop.f32.mrb[0].mxu0
    %5767 = vdwg.mxu0
    %5768 = vmatprep.subr.bf16.mxu0 %v4704
    %5769 = vmatpush1.bf16.msra.mxu0 %v4703
    %5770 = vmatprep.subr.bf16.mxu0 %v4708
    %5771 = vmatpush1.bf16.msra.mxu0 %v4707
    %5772 = vmatprep.subr.bf16.mxu0 %v4712
    %5773 = vmatpush1.bf16.msra.mxu0 %v4711
    %5774 = vmatprep.subr.bf16.mxu0 %v4716
    %5775 = vmatpush1.bf16.msra.mxu0 %v4715
    %5776 = vmatprep.subr.bf16.mxu0 %v4720
    %5777 = vmatpush1.bf16.msra.mxu0 %v4719
    %5778 = vmatprep.subr.bf16.mxu0 %v4724
    %5779 = vmatpush1.bf16.msra.mxu0 %v4723
    %5780 = vmatprep.subr.bf16.mxu0 %v4728
    %5781 = vmatpush1.bf16.msra.mxu0 %v4727
    %5782 = vmatprep.subr.bf16.mxu0 %v4732
    %5783 = vmatpush1.bf16.msra.mxu0 %v4731
    %5784 = vmatprep.subr.bf16.mxu0 %v4736
    %5785 = vmatpush1.bf16.msra.mxu0 %v4735
    %5786 = vmatprep.subr.bf16.mxu0 %v4740
    %5787 = vmatpush1.bf16.msra.mxu0 %v4739
    %5788 = vmatprep.subr.bf16.mxu0 %v4744
    %5789 = vmatpush1.bf16.msra.mxu0 %v4743
    %5790 = vmatprep.subr.bf16.mxu0 %v4748
    %5791 = vmatpush1.bf16.msra.mxu0 %v4747
    %5792 = vmatprep.subr.bf16.mxu0 %v4752
    %5793 = vmatpush1.bf16.msra.mxu0 %v4751
    %5794 = vmatprep.subr.bf16.mxu0 %v4756
    %5795 = vmatpush1.bf16.msra.mxu0 %v4755
    %5796 = vmatprep.subr.bf16.mxu0 %v4760
    %5797 = vmatpush1.bf16.msra.mxu0 %v4759
    %5798 = vmatprep.subr.bf16.mxu0 %v4764
    %5799 = vmatpush1.bf16.msra.mxu0 %v4763
    %5800 = vmatprep.mubr.bf16.mxu0 %v3005
    %5801 = vmatmul.mubr.bf16.gmra.mrb[0].mxu0 %v3004
    %v5802 = vpop.f32.mrb[0].mxu0
    %v5803 = vadd.f32 %v5762, %v5802
    %v5804 = vpop.f32.mrb[0].mxu0
    %v5805 = vadd.f32 %v5764, %v5804
    %v5806 = vpop.f32.mrb[0].mxu0
    %v5807 = vpop.f32.mrb[0].mxu0
    %5808 = vdwg.mxu0
    %5809 = vmatprep.subr.bf16.mxu0 %v4768
    %5810 = vmatpush1.bf16.msra.mxu0 %v4767
    %5811 = vmatprep.subr.bf16.mxu0 %v4772
    %5812 = vmatpush1.bf16.msra.mxu0 %v4771
    %5813 = vmatprep.subr.bf16.mxu0 %v4776
    %5814 = vmatpush1.bf16.msra.mxu0 %v4775
    %5815 = vmatprep.subr.bf16.mxu0 %v4780
    %5816 = vmatpush1.bf16.msra.mxu0 %v4779
    %5817 = vmatprep.subr.bf16.mxu0 %v4784
    %5818 = vmatpush1.bf16.msra.mxu0 %v4783
    %5819 = vmatprep.subr.bf16.mxu0 %v4788
    %5820 = vmatpush1.bf16.msra.mxu0 %v4787
    %5821 = vmatprep.subr.bf16.mxu0 %v4792
    %5822 = vmatpush1.bf16.msra.mxu0 %v4791
    %5823 = vmatprep.subr.bf16.mxu0 %v4796
    %5824 = vmatpush1.bf16.msra.mxu0 %v4795
    %5825 = vmatprep.subr.bf16.mxu0 %v4800
    %5826 = vmatpush1.bf16.msra.mxu0 %v4799
    %5827 = vmatprep.subr.bf16.mxu0 %v4804
    %5828 = vmatpush1.bf16.msra.mxu0 %v4803
    %5829 = vmatprep.subr.bf16.mxu0 %v4808
    %5830 = vmatpush1.bf16.msra.mxu0 %v4807
    %5831 = vmatprep.subr.bf16.mxu0 %v4812
    %5832 = vmatpush1.bf16.msra.mxu0 %v4811
    %5833 = vmatprep.subr.bf16.mxu0 %v4816
    %5834 = vmatpush1.bf16.msra.mxu0 %v4815
    %5835 = vmatprep.subr.bf16.mxu0 %v4820
    %5836 = vmatpush1.bf16.msra.mxu0 %v4819
    %5837 = vmatprep.subr.bf16.mxu0 %v4824
    %5838 = vmatpush1.bf16.msra.mxu0 %v4823
    %5839 = vmatprep.subr.bf16.mxu0 %v4828
    %5840 = vmatpush1.bf16.msra.mxu0 %v4827
    %5841 = vmatprep.mubr.bf16.mxu0 %v3007
    %5842 = vmatmul.mubr.bf16.gmra.mrb[0].mxu0 %v3006
    %v5843 = vpop.f32.mrb[0].mxu0
    %v5844 = vadd.f32 %v5803, %v5843
    %v5845 = vpop.f32.mrb[0].mxu0
    %v5846 = vadd.f32 %v5805, %v5845
    %v5847 = vpop.f32.mrb[0].mxu0
    %v5848 = vpop.f32.mrb[0].mxu0
    %5849 = vdwg.mxu0
    %5850 = vmatprep.subr.bf16.mxu0 %v4832
    %5851 = vmatpush1.bf16.msra.mxu0 %v4831
    %5852 = vmatprep.subr.bf16.mxu0 %v4836
    %5853 = vmatpush1.bf16.msra.mxu0 %v4835
    %5854 = vmatprep.subr.bf16.mxu0 %v4840
    %5855 = vmatpush1.bf16.msra.mxu0 %v4839
    %5856 = vmatprep.subr.bf16.mxu0 %v4844
    %5857 = vmatpush1.bf16.msra.mxu0 %v4843
    %5858 = vmatprep.subr.bf16.mxu0 %v4848
    %5859 = vmatpush1.bf16.msra.mxu0 %v4847
    %5860 = vmatprep.subr.bf16.mxu0 %v4852
    %5861 = vmatpush1.bf16.msra.mxu0 %v4851
    %5862 = vmatprep.subr.bf16.mxu0 %v4856
    %5863 = vmatpush1.bf16.msra.mxu0 %v4855
    %5864 = vmatprep.subr.bf16.mxu0 %v4860
    %5865 = vmatpush1.bf16.msra.mxu0 %v4859
    %5866 = vmatprep.subr.bf16.mxu0 %v4864
    %5867 = vmatpush1.bf16.msra.mxu0 %v4863
    %5868 = vmatprep.subr.bf16.mxu0 %v4868
    %5869 = vmatpush1.bf16.msra.mxu0 %v4867
    %5870 = vmatprep.subr.bf16.mxu0 %v4872
    %5871 = vmatpush1.bf16.msra.mxu0 %v4871
    %5872 = vmatprep.subr.bf16.mxu0 %v4876
    %5873 = vmatpush1.bf16.msra.mxu0 %v4875
    %5874 = vmatprep.subr.bf16.mxu0 %v4880
    %5875 = vmatpush1.bf16.msra.mxu0 %v4879
    %5876 = vmatprep.subr.bf16.mxu0 %v4884
    %5877 = vmatpush1.bf16.msra.mxu0 %v4883
    %5878 = vmatprep.subr.bf16.mxu0 %v4888
    %5879 = vmatpush1.bf16.msra.mxu0 %v4887
    %5880 = vmatprep.subr.bf16.mxu0 %v4892
    %5881 = vmatpush1.bf16.msra.mxu0 %v4891
    %5882 = vmatprep.mubr.bf16.mxu0 %v3009
    %5883 = vmatmul.mubr.bf16.gmra.mrb[0].mxu0 %v3008
    %v5884 = vpop.f32.mrb[0].mxu0
    %v5885 = vadd.f32 %v5844, %v5884
    %v5886 = vpop.f32.mrb[0].mxu0
    %v5887 = vadd.f32 %v5846, %v5886
    %v5888 = vpop.f32.mrb[0].mxu0
    %v5889 = vpop.f32.mrb[0].mxu0
    %5890 = vdwg.mxu0
    %5891 = vmatprep.subr.bf16.mxu0 %v4896
    %5892 = vmatpush1.bf16.msra.mxu0 %v4895
    %5893 = vmatprep.subr.bf16.mxu0 %v4900
    %5894 = vmatpush1.bf16.msra.mxu0 %v4899
    %5895 = vmatprep.subr.bf16.mxu0 %v4904
    %5896 = vmatpush1.bf16.msra.mxu0 %v4903
    %5897 = vmatprep.subr.bf16.mxu0 %v4908
    %5898 = vmatpush1.bf16.msra.mxu0 %v4907
    %5899 = vmatprep.subr.bf16.mxu0 %v4912
    %5900 = vmatpush1.bf16.msra.mxu0 %v4911
    %5901 = vmatprep.subr.bf16.mxu0 %v4916
    %5902 = vmatpush1.bf16.msra.mxu0 %v4915
    %5903 = vmatprep.subr.bf16.mxu0 %v4920
    %5904 = vmatpush1.bf16.msra.mxu0 %v4919
    %5905 = vmatprep.subr.bf16.mxu0 %v4924
    %5906 = vmatpush1.bf16.msra.mxu0 %v4923
    %5907 = vmatprep.subr.bf16.mxu0 %v4928
    %5908 = vmatpush1.bf16.msra.mxu0 %v4927
    %5909 = vmatprep.subr.bf16.mxu0 %v4932
    %5910 = vmatpush1.bf16.msra.mxu0 %v4931
    %5911 = vmatprep.subr.bf16.mxu0 %v4936
    %5912 = vmatpush1.bf16.msra.mxu0 %v4935
    %5913 = vmatprep.subr.bf16.mxu0 %v4940
    %5914 = vmatpush1.bf16.msra.mxu0 %v4939
    %5915 = vmatprep.subr.bf16.mxu0 %v4944
    %5916 = vmatpush1.bf16.msra.mxu0 %v4943
    %5917 = vmatprep.subr.bf16.mxu0 %v4948
    %5918 = vmatpush1.bf16.msra.mxu0 %v4947
    %5919 = vmatprep.subr.bf16.mxu0 %v4952
    %5920 = vmatpush1.bf16.msra.mxu0 %v4951
    %5921 = vmatprep.subr.bf16.mxu0 %v4956
    %5922 = vmatpush1.bf16.msra.mxu0 %v4955
    %5923 = vmatprep.mubr.bf16.mxu0 %v3011
    %5924 = vmatmul.mubr.bf16.gmra.mrb[0].mxu0 %v3010
    %v5925 = vpop.f32.mrb[0].mxu0
    %v5926 = vadd.f32 %v5885, %v5925
    %v5927 = vpop.f32.mrb[0].mxu0
    %v5928 = vadd.f32 %v5887, %v5927
    %v5929 = vpop.f32.mrb[0].mxu0
    %v5930 = vpop.f32.mrb[0].mxu0
    %5931 = vdwg.mxu0
    %5932 = vmatprep.subr.bf16.mxu0 %v4960
    %5933 = vmatpush1.bf16.msra.mxu0 %v4959
    %5934 = vmatprep.subr.bf16.mxu0 %v4964
    %5935 = vmatpush1.bf16.msra.mxu0 %v4963
    %5936 = vmatprep.subr.bf16.mxu0 %v4968
    %5937 = vmatpush1.bf16.msra.mxu0 %v4967
    %5938 = vmatprep.subr.bf16.mxu0 %v4972
    %5939 = vmatpush1.bf16.msra.mxu0 %v4971
    %5940 = vmatprep.subr.bf16.mxu0 %v4976
    %5941 = vmatpush1.bf16.msra.mxu0 %v4975
    %5942 = vmatprep.subr.bf16.mxu0 %v4980
    %5943 = vmatpush1.bf16.msra.mxu0 %v4979
    %5944 = vmatprep.subr.bf16.mxu0 %v4984
    %5945 = vmatpush1.bf16.msra.mxu0 %v4983
    %5946 = vmatprep.subr.bf16.mxu0 %v4988
    %5947 = vmatpush1.bf16.msra.mxu0 %v4987
    %5948 = vmatprep.subr.bf16.mxu0 %v4992
    %5949 = vmatpush1.bf16.msra.mxu0 %v4991
    %5950 = vmatprep.subr.bf16.mxu0 %v4996
    %5951 = vmatpush1.bf16.msra.mxu0 %v4995
    %5952 = vmatprep.subr.bf16.mxu0 %v5000
    %5953 = vmatpush1.bf16.msra.mxu0 %v4999
    %5954 = vmatprep.subr.bf16.mxu0 %v5004
    %5955 = vmatpush1.bf16.msra.mxu0 %v5003
    %5956 = vmatprep.subr.bf16.mxu0 %v5008
    %5957 = vmatpush1.bf16.msra.mxu0 %v5007
    %5958 = vmatprep.subr.bf16.mxu0 %v5012
    %5959 = vmatpush1.bf16.msra.mxu0 %v5011
    %5960 = vmatprep.subr.bf16.mxu0 %v5016
    %5961 = vmatpush1.bf16.msra.mxu0 %v5015
    %5962 = vmatprep.subr.bf16.mxu0 %v5020
    %5963 = vmatpush1.bf16.msra.mxu0 %v5019
    %5964 = vmatprep.mubr.bf16.mxu0 %v3013
    %5965 = vmatmul.mubr.bf16.gmra.mrb[0].mxu0 %v3012
    %v5966 = vpop.f32.mrb[0].mxu0
    %v5967 = vadd.f32 %v5926, %v5966
    %v5968 = vpop.f32.mrb[0].mxu0
    %v5969 = vadd.f32 %v5928, %v5968
    %v5970 = vpop.f32.mrb[0].mxu0
    %v5971 = vpop.f32.mrb[0].mxu0
    %5972 = vdwg.mxu0
    %5973 = vmatprep.subr.bf16.mxu0 %v5024
    %5974 = vmatpush1.bf16.msra.mxu0 %v5023
    %5975 = vmatprep.subr.bf16.mxu0 %v5028
    %5976 = vmatpush1.bf16.msra.mxu0 %v5027
    %5977 = vmatprep.subr.bf16.mxu0 %v5032
    %5978 = vmatpush1.bf16.msra.mxu0 %v5031
    %5979 = vmatprep.subr.bf16.mxu0 %v5036
    %5980 = vmatpush1.bf16.msra.mxu0 %v5035
    %5981 = vmatprep.subr.bf16.mxu0 0
    %5982 = vmatpush1.bf16.msra.mxu0 0
    %5983 = vmatprep.subr.bf16.mxu0 0
    %5984 = vmatpush1.bf16.msra.mxu0 0
    %5985 = vmatprep.subr.bf16.mxu0 0
    %5986 = vmatpush1.bf16.msra.mxu0 0
    %5987 = vmatprep.subr.bf16.mxu0 0
    %5988 = vmatpush1.bf16.msra.mxu0 0
    %5989 = vmatprep.subr.bf16.mxu0 0
    %5990 = vmatpush1.bf16.msra.mxu0 0
    %5991 = vmatprep.subr.bf16.mxu0 0
    %5992 = vmatpush1.bf16.msra.mxu0 0
    %5993 = vmatprep.subr.bf16.mxu0 0
    %5994 = vmatpush1.bf16.msra.mxu0 0
    %5995 = vmatprep.subr.bf16.mxu0 0
    %5996 = vmatpush1.bf16.msra.mxu0 0
    %5997 = vmatprep.subr.bf16.mxu0 0
    %5998 = vmatpush1.bf16.msra.mxu0 0
    %5999 = vmatprep.subr.bf16.mxu0 0
    %6000 = vmatpush1.bf16.msra.mxu0 0
    %6001 = vmatprep.subr.bf16.mxu0 0
    %6002 = vmatpush1.bf16.msra.mxu0 0
    %6003 = vmatprep.subr.bf16.mxu0 0
    %6004 = vmatpush1.bf16.msra.mxu0 0
    %6005 = vmatprep.mubr.bf16.mxu0 0
    %6006 = vmatmul.mubr.bf16.gmra.mrb[0].mxu0 %v5438
    %v6007 = vpop.f32.mrb[0].mxu0
    %v6008 = vadd.f32 %v5967, %v6007
    %v6009 = vpop.f32.mrb[0].mxu0
    %v6010 = vadd.f32 %v5969, %v6009
    %v6011 = vpop.f32.mrb[0].mxu0
    %v6012 = vpop.f32.mrb[0].mxu0
    %6013 = vdwg.mxu0
    %v6014 = vmax.f32 %v5721, 0.0
    %v6015 = vmax.f32 %v5723, 0.0
    %v6016 = vmax.f32 %v6008, 0.0
    %v6017 = vmax.f32 %v6010, 0.0
    %v6022 = vcombine.low %v6014, %v6015
    %v6023 = vcombine.low %v6016, %v6017
    %v6025 = vunpack.c.l.s4 1983009808
    %v6026 = vunpack.c.0.s8 %v6025
    %v6027 = vlaneseq
    %v6028 = vshrl.u32 %v6027, 7
    %v6029 = vsub.s32 %v6026, %v6028
    %v6030 = vrot.slane %v6022, %v6029
    %v6032 = vunpack.c.l.s4 1983009808
    %v6033 = vunpack.c.0.s8 %v6032
    %v6034 = vlaneseq
    %v6035 = vshrl.u32 %v6034, 7
    %v6036 = vsub.s32 %v6033, %v6035
    %v6037 = vrot.slane %v6023, %v6036
    %v6038 = vcombine.low %v6030, %v6037
    %6040 = vst [vmem:[#allocation23] sm:$0xff] %v6038
    // Predicated region
    $region74: #{base_feature_extractor_forward.1} parent=1 // pred_check
      _
    $region75: #{base_feature_extractor_forward.1} parent=1 // pred_check_branch
      %6042 = sbr.rel (0) target = $region77
    $region76: #{base_feature_extractor_forward.1} parent=1 // pred_region
      %s6044 = ssub.s32 128, 128
      %6045 = vsyncadd [#allocation10], %s6044
      %s6047 = sshll.u32 [#allocation23], 4
      %s6048 = int_to_ptr.vmem [resolvable:$true] %s6047
      %6050 = dma.vmem_to_hbm [thread:$0]  %s6048, 128, %s9, [#allocation10]
    $region77: #{base_feature_extractor_forward.1} parent=1 // pred_fallthru
      _
    // Predicated region
    $region78: #{base_feature_extractor_forward.1} parent=1 // pred_check
      _
    $region79: #{base_feature_extractor_forward.1} parent=1 // pred_check_branch
      %6052 = sbr.rel (0) target = $region81
    $region80: #{base_feature_extractor_forward.1} parent=1 // pred_region
      %6053 = dma.done [#allocation10], 128
    $region81: #{base_feature_extractor_forward.1} parent=1 // pred_fallthru
      _
    %6054 = vsyncpa [#allocation9], 1
    %6055 = vsyncpa [#allocation12], 1
    %6056 = vsyncpa [#allocation15], 1
    %6057 = vsyncpa [#allocation18], 1
    %6058 = vsyncpa [#allocation21], 1
    %6059 = vsyncpa [#allocation10], 1

</llo_original>
